<compile_context>
chip_gen: v7x
topology: tpu7x:2x2x1
jax: 0.10.0
libtpu: 0.0.40
codegen_flags: <defaults>
</compile_context>

<pallas_src>
import functools
import math

import jax
import jax.numpy as jnp
from jax import lax
from jax.experimental import pallas as pl
from jax.experimental.pallas import tpu as pltpu

V_TH = 1.0      # v_threshold
INV_TAU = 0.5   # ParametricLIF at init: init_tau=2.0 -> sigmoid(0)=0.5 ; v_reset = 0
BN_EPS = 1e-5


def sew_resblock_kernel(x_ref, w1_ref, w2_ref, shift_ref, out_ref,
                        pad_ref, v1_ref, v2_ref, *, NB, Tblk, H, W, C):
    """One (image-block n, time-block tb) grid point.

    x_ref/out_ref: (Tblk, NB, H, W*C) lane-dense blocks.
    pad_ref:       (NB, H+2, W*C)  zero sublane-halo scratch (shared by both convs).
    v1_ref/v2_ref: (NB*H, W*C)     persistent membrane potentials.
    """
    tb = pl.program_id(1)
    WC = W * C
    M = NB * H

    # Membrane potentials and the zero halo rows persist across the sequential
    # time axis; re-initialize them for every image block (time is inner axis).
    @pl.when(tb == 0)
    def _init():
        pad_ref[...] = jnp.zeros_like(pad_ref)   # halo rows 0 and H+1 stay zero
        v1_ref[...] = jnp.zeros_like(v1_ref)
        v2_ref[...] = jnp.zeros_like(v2_ref)

    def conv3x3(w_ref):
        # 3x3 SAME conv as 3 matmuls of depth exactly W*C: for each ky, the
        # sublane-shifted slice of the zero-halo buffer (flattened to M = NB*H
        # rows) is contracted against a banded (W*C, W*C) weight matrix whose
        # zero rows implement the kx width-boundary drop.  No rolls, no masks,
        # fully lane-dense operands.
        acc = jnp.dot(pad_ref[:, 0:H, :].reshape(M, WC), w_ref[0],
                      preferred_element_type=jnp.float32)
        for ky in (1, 2):
            acc = acc + jnp.dot(pad_ref[:, ky:ky + H, :].reshape(M, WC), w_ref[ky],
                                preferred_element_type=jnp.float32)
        return acc

    shift1 = shift_ref[0:1, :]
    shift2 = shift_ref[1:2, :]

    for tt in range(Tblk):                       # static unrolled time loop
        x = x_ref[tt]                            # (NB, H, WC) f32, identity branch
        x2d = x.reshape(M, WC)

        # conv1 + BN1 (BN scale folded into the banded weights; shift added here)
        pad_ref[:, 1:H + 1, :] = x
        y1 = conv3x3(w1_ref) + shift1

        # sn1: ParametricLIF (at init), decay_input, hard reset to v_reset = 0
        v1 = v1_ref[...]
        v1 = v1 + (y1 - v1) * INV_TAU
        s1 = (v1 >= V_TH).astype(jnp.float32)
        v1_ref[...] = v1 * (1.0 - s1)

        # conv2 + BN2 (halo scratch reused for the spike map)
        pad_ref[:, 1:H + 1, :] = s1.reshape(NB, H, WC)
        y2 = conv3x3(w2_ref) + shift2

        # sn2
        v2 = v2_ref[...]
        v2 = v2 + (y2 - v2) * INV_TAU
        s2 = (v2 >= V_TH).astype(jnp.float32)
        v2_ref[...] = v2 * (1.0 - s2)

        # SEW 'ADD' connect: output spike + identity
        out_ref[tt] = (s2 + x2d).reshape(NB, H, WC).astype(out_ref.dtype)


def _banded_conv_weights(w_hwio, scale, W):
    """Fold the eval-mode BN scale into the conv weights and expand them into
    three banded (W*C_in, W*C_out) matrices (one per ky).  The band encodes the
    kx taps; out-of-range width taps are zero rows, so a 3x3 SAME conv over the
    (H, W*C) layout becomes three K=W*C matmuls against an H-halo buffer."""
    wsc = w_hwio.astype(jnp.float32) * scale.astype(jnp.float32)[None, None, None, :]
    C_in, C_out = wsc.shape[2], wsc.shape[3]
    # band[kx, wi, w] = 1 iff wi == w + kx - 1 (and wi in range)
    band = jnp.stack([jnp.eye(W, k=1, dtype=jnp.float32),    # kx=0: wi = w-1
                      jnp.eye(W, k=0, dtype=jnp.float32),    # kx=1: wi = w
                      jnp.eye(W, k=-1, dtype=jnp.float32)],  # kx=2: wi = w+1
                     axis=0)
    wb = jnp.einsum('xpw,yxio->ypiwo', band, wsc)             # (3, W, C_in, W, C_out)
    return wb.reshape(3, W * C_in, W * C_out)


def _largest_divisor_leq(n, target):
    d = max(1, min(n, target))
    while n % d:
        d -= 1
    return d


def sew_resblock(x_tnchw, w1_hwio, w2_hwio, scale1, shift1, scale2, shift2,
                 nb_target=16, tblk_target=8):
    """SEWResBlock forward (eval-mode BN, PLIF-at-init, ADD connect).

    nb_target / tblk_target: per-grid-step image / timestep block sizes.
    Defaults (16, 8) target v6e/v7x (M = 256 MXU rows, MB-scale DMAs); use
    nb_target=8 on v5e.  They are clamped to divisors of N / T.  On v7x prefer
    an nb_target that leaves N // NB >= 2 so both TensorCores get work.
    """
    T, N, C, H, W = x_tnchw.shape
    WC = W * C
    NB = _largest_divisor_leq(N, nb_target)
    Tblk = _largest_divisor_leq(T, tblk_target)

    # lane-dense working layout (T, N, H, W*C): last dim is a multiple of 128
    x_flat = jnp.transpose(x_tnchw, (0, 1, 3, 4, 2)).reshape(T, N, H, WC).astype(jnp.float32)
    w1b = _banded_conv_weights(w1_hwio, scale1, W)            # (3, W*C, W*C)
    w2b = _banded_conv_weights(w2_hwio, scale2, W)
    shifts = jnp.stack([jnp.tile(shift1.astype(jnp.float32), W),
                        jnp.tile(shift2.astype(jnp.float32), W)], axis=0)   # (2, W*C)

    out_flat = pl.pallas_call(
        functools.partial(sew_resblock_kernel, NB=NB, Tblk=Tblk, H=H, W=W, C=C),
        out_shape=jax.ShapeDtypeStruct((T, N, H, WC), jnp.float32),
        grid_spec=pltpu.PrefetchScalarGridSpec(
            num_scalar_prefetch=0,
            grid=(N // NB, T // Tblk),           # image blocks parallel, time sequential
            in_specs=[
                pl.BlockSpec((Tblk, NB, H, WC), lambda n, t: (t, n, 0, 0)),   # x block
                pl.BlockSpec((3, WC, WC), lambda n, t: (0, 0, 0)),            # conv1 banded weights
                pl.BlockSpec((3, WC, WC), lambda n, t: (0, 0, 0)),            # conv2 banded weights
                pl.BlockSpec((2, WC), lambda n, t: (0, 0)),                   # BN shifts (lane layout)
            ],
            out_specs=pl.BlockSpec((Tblk, NB, H, WC), lambda n, t: (t, n, 0, 0)),
            scratch_shapes=[
                pltpu.VMEM((NB, H + 2, WC), jnp.float32),    # shared zero-halo buffer
                pltpu.VMEM((NB * H, WC), jnp.float32),       # v1 membrane potential
                pltpu.VMEM((NB * H, WC), jnp.float32),       # v2 membrane potential
            ],
        ),
        compiler_params=pltpu.CompilerParams(
            dimension_semantics=("parallel", "arbitrary"),   # images independent; time stateful
            vmem_limit_bytes=32 * 1024 * 1024,               # ~12-16 MB at NB=16,Tblk=8; v7x-safe
        ),
    )(x_flat, w1b, w2b, shifts)

    return out_flat.reshape(T, N, H, W, C).transpose(0, 1, 4, 2, 3)


def sew_resblock_ref(x_tnchw, w1_hwio, w2_hwio, scale1, shift1, scale2, shift2):
    """Pure-JAX reference (lax conv), same SEWResBlock semantics.
    BN scale is folded into the conv weights (mathematically identical)."""
    T, N, C, H, W = x_tnchw.shape
    x = jnp.transpose(x_tnchw, (0, 1, 3, 4, 2)).astype(jnp.float32)   # T,N,H,W,C
    dn = ('NHWC', 'HWIO', 'NHWC')
    w1s = w1_hwio * scale1[None, None, None, :]
    w2s = w2_hwio * scale2[None, None, None, :]
    v1 = jnp.zeros((N, H, W, C), jnp.float32)
    v2 = jnp.zeros((N, H, W, C), jnp.float32)
    outs = []
    for t in range(T):
        xt = x[t]
        y1 = lax.conv_general_dilated(xt, w1s, (1, 1), 'SAME', dimension_numbers=dn) + shift1
        v1 = v1 + (y1 - v1) * INV_TAU
        s1 = (v1 >= V_TH).astype(jnp.float32)
        v1 = v1 * (1.0 - s1)
        y2 = lax.conv_general_dilated(s1, w2s, (1, 1), 'SAME', dimension_numbers=dn) + shift2
        v2 = v2 + (y2 - v2) * INV_TAU
        s2 = (v2 >= V_TH).astype(jnp.float32)
        v2 = v2 * (1.0 - s2)
        outs.append(s2 + xt)
    out = jnp.stack(outs, axis=0)
    return jnp.transpose(out, (0, 1, 4, 2, 3))


if __name__ == "__main__":
    # in_channels = out_channels = 16, stride = 1 (required for the ADD shortcut)
    T, N, C, H, W = 8, 4, 16, 16, 16
    key = jax.random.PRNGKey(0)
    kx, kw1, kw2, kg1, kb1, kg2, kb2 = jax.random.split(key, 7)

    x = 2.0 * jax.random.normal(kx, (T, N, C, H, W), jnp.float32)

    bound = 1.0 / math.sqrt(C * 3 * 3)   # PyTorch Conv2d default init bound
    w1 = jax.random.uniform(kw1, (3, 3, C, C), jnp.float32, -bound, bound)  # HWIO
    w2 = jax.random.uniform(kw2, (3, 3, C, C), jnp.float32, -bound, bound)  # HWIO

    # eval-mode BatchNorm (running_mean=0, running_var=1) folded to per-channel affine
    gamma1 = jax.random.uniform(kg1, (C,), jnp.float32, 0.5, 1.5)
    beta1 = 0.1 * jax.random.normal(kb1, (C,), jnp.float32)
    gamma2 = jax.random.uniform(kg2, (C,), jnp.float32, 0.5, 1.5)
    beta2 = 0.1 * jax.random.normal(kb2, (C,), jnp.float32)
    scale1 = gamma1 / jnp.sqrt(1.0 + BN_EPS)
    shift1 = beta1
    scale2 = gamma2 / jnp.sqrt(1.0 + BN_EPS)
    shift2 = beta2

    # Small block targets here so the smoke test exercises both multiple image
    # blocks (state re-init) and multiple time blocks (state carry across tb).
    # Production defaults are nb_target=16, tblk_target=8.
    out = sew_resblock(x, w1, w2, scale1, shift1, scale2, shift2,
                       nb_target=2, tblk_target=4)
    jax.block_until_ready(out)

    ref = sew_resblock_ref(x, w1, w2, scale1, shift1, scale2, shift2)
    assert out.shape == x.shape
    err = jnp.abs(out - ref)
    # The spike threshold is discontinuous, so ulp-level accumulation-order
    # differences (banded MXU matmul vs lax conv) could in rare cases flip a
    # single spike; use a robust mismatch-fraction check instead of pure max.
    frac_bad = float(jnp.mean((err > 1e-3).astype(jnp.float32)))
    assert frac_bad < 5e-3, (
        f"mismatch fraction vs reference: {frac_bad}, max abs err: {float(jnp.max(err))}")
    print("KERNEL_OK")
</pallas_src>

<mosaic_0001>
module attributes {stable_mosaic.version = 11 : i64} {
  func.func @sew_resblock_kernel(%arg0: i32, %arg1: i32, %arg2: memref<4x2x16x256xf32, #tpu.memory_space<vmem>>, %arg3: memref<3x256x256xf32, #tpu.memory_space<vmem>>, %arg4: memref<3x256x256xf32, #tpu.memory_space<vmem>>, %arg5: memref<2x256xf32, #tpu.memory_space<vmem>>, %arg6: memref<4x2x16x256xf32, #tpu.memory_space<vmem>>, %arg7: memref<2x18x256xf32, #tpu.memory_space<vmem>>, %arg8: memref<32x256xf32, #tpu.memory_space<vmem>>, %arg9: memref<32x256xf32, #tpu.memory_space<vmem>>) attributes {dimension_semantics = [#tpu.dimension_semantics<parallel>, #tpu.dimension_semantics<arbitrary>], iteration_bounds = array<i64: 2, 2>, scalar_prefetch = 0 : i64, scratch_operands = 3 : i64, tpu.core_type = #tpu.core_type<tc>, window_params = [{transform_indices = @transform_0, window_bounds = array<i64: 4, 2, 16, 256>}, {pipeline_mode = #tpu.pipeline_mode<synchronous>, transform_indices = @transform_1, window_bounds = array<i64: 3, 256, 256>}, {pipeline_mode = #tpu.pipeline_mode<synchronous>, transform_indices = @transform_2, window_bounds = array<i64: 3, 256, 256>}, {pipeline_mode = #tpu.pipeline_mode<synchronous>, transform_indices = @transform_3, window_bounds = array<i64: 2, 256>}, {transform_indices = @transform_4, window_bounds = array<i64: 4, 2, 16, 256>}]} {
    %c0_i32 = arith.constant 0 : i32
    %0 = arith.cmpi eq, %arg1, %c0_i32 : i32
    %1 = arith.extui %0 : i1 to i32
    %c0_i32_0 = arith.constant 0 : i32
    %2 = arith.cmpi ne, %1, %c0_i32_0 : i32
    scf.if %2 {
      %cst_280 = arith.constant 0.000000e+00 : f32
      %305 = vector.broadcast %cst_280 : f32 to vector<2x18x256xf32>
      %c0_281 = arith.constant 0 : index
      %c0_282 = arith.constant 0 : index
      %c0_283 = arith.constant 0 : index
      %306 = vector.load %arg7[%c0_281, %c0_282, %c0_283] : memref<2x18x256xf32, #tpu.memory_space<vmem>>, vector<2x18x256xf32>
      tpu.vector_store %arg7[%c0_281, %c0_282, %c0_283], %305 {strides = array<i32>} : memref<2x18x256xf32, #tpu.memory_space<vmem>>, vector<2x18x256xf32>,
      %cst_284 = arith.constant 0.000000e+00 : f32
      %307 = vector.broadcast %cst_284 : f32 to vector<32x256xf32>
      %c0_285 = arith.constant 0 : index
      %c0_286 = arith.constant 0 : index
      %308 = vector.load %arg8[%c0_285, %c0_286] : memref<32x256xf32, #tpu.memory_space<vmem>>, vector<32x256xf32>
      tpu.vector_store %arg8[%c0_285, %c0_286], %307 {strides = array<i32>} : memref<32x256xf32, #tpu.memory_space<vmem>>, vector<32x256xf32>,
      %cst_287 = arith.constant 0.000000e+00 : f32
      %309 = vector.broadcast %cst_287 : f32 to vector<32x256xf32>
      %c0_288 = arith.constant 0 : index
      %c0_289 = arith.constant 0 : index
      %310 = vector.load %arg9[%c0_288, %c0_289] : memref<32x256xf32, #tpu.memory_space<vmem>>, vector<32x256xf32>
      tpu.vector_store %arg9[%c0_288, %c0_289], %309 {strides = array<i32>} : memref<32x256xf32, #tpu.memory_space<vmem>>, vector<32x256xf32>,
    } else {
    }
    %c0 = arith.constant 0 : index
    %c0_1 = arith.constant 0 : index
    %3 = vector.load %arg5[%c0, %c0_1] : memref<2x256xf32, #tpu.memory_space<vmem>>, vector<1x256xf32>
    %c1 = arith.constant 1 : index
    %c0_2 = arith.constant 0 : index
    %4 = vector.load %arg5[%c1, %c0_2] : memref<2x256xf32, #tpu.memory_space<vmem>>, vector<1x256xf32>
    %c0_3 = arith.constant 0 : index
    %c0_4 = arith.constant 0 : index
    %c0_5 = arith.constant 0 : index
    %c0_6 = arith.constant 0 : index
    %5 = vector.load %arg2[%c0_3, %c0_4, %c0_5, %c0_6] : memref<4x2x16x256xf32, #tpu.memory_space<vmem>>, vector<1x2x16x256xf32>
    %6 = vector.shape_cast %5 : vector<1x2x16x256xf32> to vector<2x16x256xf32>
    %7 = vector.shape_cast %6 : vector<2x16x256xf32> to vector<32x256xf32>
    %c0_7 = arith.constant 0 : index
    %c1_8 = arith.constant 1 : index
    %c0_9 = arith.constant 0 : index
    %8 = vector.load %arg7[%c0_7, %c1_8, %c0_9] : memref<2x18x256xf32, #tpu.memory_space<vmem>>, vector<2x16x256xf32>
    tpu.vector_store %arg7[%c0_7, %c1_8, %c0_9], %6 {strides = array<i32>} : memref<2x18x256xf32, #tpu.memory_space<vmem>>, vector<2x16x256xf32>,
    %c0_10 = arith.constant 0 : index
    %c0_11 = arith.constant 0 : index
    %c0_12 = arith.constant 0 : index
    %9 = vector.load %arg7[%c0_10, %c0_11, %c0_12] : memref<2x18x256xf32, #tpu.memory_space<vmem>>, vector<2x16x256xf32>
    %10 = vector.shape_cast %9 : vector<2x16x256xf32> to vector<32x256xf32>
    %c0_13 = arith.constant 0 : index
    %c0_14 = arith.constant 0 : index
    %c0_15 = arith.constant 0 : index
    %11 = vector.load %arg3[%c0_13, %c0_14, %c0_15] : memref<3x256x256xf32, #tpu.memory_space<vmem>>, vector<1x256x256xf32>
    %12 = vector.shape_cast %11 : vector<1x256x256xf32> to vector<256x256xf32>
    %cst = arith.constant dense<0.000000e+00> : vector<32x256xf32>
    %13 = tpu.matmul %10, %12, %cst {dimension_numbers = #tpu.dot_dimension_numbers<[1], [0], [0], [1], [0, 0, 1, 1], [], []>} : vector<32x256xf32>, vector<256x256xf32>, vector<32x256xf32> -> vector<32x256xf32>
    %c0_16 = arith.constant 0 : index
    %c1_17 = arith.constant 1 : index
    %c0_18 = arith.constant 0 : index
    %14 = vector.load %arg7[%c0_16, %c1_17, %c0_18] : memref<2x18x256xf32, #tpu.memory_space<vmem>>, vector<2x16x256xf32>
    %15 = vector.shape_cast %14 : vector<2x16x256xf32> to vector<32x256xf32>
    %c1_19 = arith.constant 1 : index
    %c0_20 = arith.constant 0 : index
    %c0_21 = arith.constant 0 : index
    %16 = vector.load %arg3[%c1_19, %c0_20, %c0_21] : memref<3x256x256xf32, #tpu.memory_space<vmem>>, vector<1x256x256xf32>
    %17 = vector.shape_cast %16 : vector<1x256x256xf32> to vector<256x256xf32>
    %cst_22 = arith.constant dense<0.000000e+00> : vector<32x256xf32>
    %18 = tpu.matmul %15, %17, %cst_22 {dimension_numbers = #tpu.dot_dimension_numbers<[1], [0], [0], [1], [0, 0, 1, 1], [], []>} : vector<32x256xf32>, vector<256x256xf32>, vector<32x256xf32> -> vector<32x256xf32>
    %19 = arith.addf %13, %18 : vector<32x256xf32>
    %c0_23 = arith.constant 0 : index
    %c2 = arith.constant 2 : index
    %c0_24 = arith.constant 0 : index
    %20 = vector.load %arg7[%c0_23, %c2, %c0_24] : memref<2x18x256xf32, #tpu.memory_space<vmem>>, vector<2x16x256xf32>
    %21 = vector.shape_cast %20 : vector<2x16x256xf32> to vector<32x256xf32>
    %c2_25 = arith.constant 2 : index
    %c0_26 = arith.constant 0 : index
    %c0_27 = arith.constant 0 : index
    %22 = vector.load %arg3[%c2_25, %c0_26, %c0_27] : memref<3x256x256xf32, #tpu.memory_space<vmem>>, vector<1x256x256xf32>
    %23 = vector.shape_cast %22 : vector<1x256x256xf32> to vector<256x256xf32>
    %cst_28 = arith.constant dense<0.000000e+00> : vector<32x256xf32>
    %24 = tpu.matmul %21, %23, %cst_28 {dimension_numbers = #tpu.dot_dimension_numbers<[1], [0], [0], [1], [0, 0, 1, 1], [], []>} : vector<32x256xf32>, vector<256x256xf32>, vector<32x256xf32> -> vector<32x256xf32>
    %25 = arith.addf %19, %24 : vector<32x256xf32>
    %26 = vector.broadcast %3 : vector<1x256xf32> to vector<32x256xf32>
    %27 = arith.addf %25, %26 : vector<32x256xf32>
    %c0_29 = arith.constant 0 : index
    %c0_30 = arith.constant 0 : index
    %28 = vector.load %arg8[%c0_29, %c0_30] : memref<32x256xf32, #tpu.memory_space<vmem>>, vector<32x256xf32>
    %29 = arith.subf %27, %28 : vector<32x256xf32>
    %cst_31 = arith.constant 5.000000e-01 : f32
    %30 = vector.broadcast %cst_31 : f32 to vector<32x256xf32>
    %31 = arith.mulf %29, %30 : vector<32x256xf32>
    %32 = arith.addf %28, %31 : vector<32x256xf32>
    %cst_32 = arith.constant 1.000000e+00 : f32
    %33 = vector.broadcast %cst_32 : f32 to vector<32x256xf32>
    %34 = arith.cmpf oge, %32, %33 : vector<32x256xf32>
    %35 = arith.extui %34 : vector<32x256xi1> to vector<32x256xi32>
    %36 = arith.sitofp %35 : vector<32x256xi32> to vector<32x256xf32>
    %cst_33 = arith.constant 1.000000e+00 : f32
    %37 = vector.broadcast %cst_33 : f32 to vector<32x256xf32>
    %38 = arith.subf %37, %36 : vector<32x256xf32>
    %39 = arith.mulf %32, %38 : vector<32x256xf32>
    %c0_34 = arith.constant 0 : index
    %c0_35 = arith.constant 0 : index
    %40 = vector.load %arg8[%c0_34, %c0_35] : memref<32x256xf32, #tpu.memory_space<vmem>>, vector<32x256xf32>
    tpu.vector_store %arg8[%c0_34, %c0_35], %39 {strides = array<i32>} : memref<32x256xf32, #tpu.memory_space<vmem>>, vector<32x256xf32>,
    %41 = vector.shape_cast %36 : vector<32x256xf32> to vector<2x16x256xf32>
    %c0_36 = arith.constant 0 : index
    %c1_37 = arith.constant 1 : index
    %c0_38 = arith.constant 0 : index
    %42 = vector.load %arg7[%c0_36, %c1_37, %c0_38] : memref<2x18x256xf32, #tpu.memory_space<vmem>>, vector<2x16x256xf32>
    tpu.vector_store %arg7[%c0_36, %c1_37, %c0_38], %41 {strides = array<i32>} : memref<2x18x256xf32, #tpu.memory_space<vmem>>, vector<2x16x256xf32>,
    %c0_39 = arith.constant 0 : index
    %c0_40 = arith.constant 0 : index
    %c0_41 = arith.constant 0 : index
    %43 = vector.load %arg7[%c0_39, %c0_40, %c0_41] : memref<2x18x256xf32, #tpu.memory_space<vmem>>, vector<2x16x256xf32>
    %44 = vector.shape_cast %43 : vector<2x16x256xf32> to vector<32x256xf32>
    %c0_42 = arith.constant 0 : index
    %c0_43 = arith.constant 0 : index
    %c0_44 = arith.constant 0 : index
    %45 = vector.load %arg4[%c0_42, %c0_43, %c0_44] : memref<3x256x256xf32, #tpu.memory_space<vmem>>, vector<1x256x256xf32>
    %46 = vector.shape_cast %45 : vector<1x256x256xf32> to vector<256x256xf32>
    %cst_45 = arith.constant dense<0.000000e+00> : vector<32x256xf32>
    %47 = tpu.matmul %44, %46, %cst_45 {dimension_numbers = #tpu.dot_dimension_numbers<[1], [0], [0], [1], [0, 0, 1, 1], [], []>} : vector<32x256xf32>, vector<256x256xf32>, vector<32x256xf32> -> vector<32x256xf32>
    %c0_46 = arith.constant 0 : index
    %c1_47 = arith.constant 1 : index
    %c0_48 = arith.constant 0 : index
    %48 = vector.load %arg7[%c0_46, %c1_47, %c0_48] : memref<2x18x256xf32, #tpu.memory_space<vmem>>, vector<2x16x256xf32>
    %49 = vector.shape_cast %48 : vector<2x16x256xf32> to vector<32x256xf32>
    %c1_49 = arith.constant 1 : index
    %c0_50 = arith.constant 0 : index
    %c0_51 = arith.constant 0 : index
    %50 = vector.load %arg4[%c1_49, %c0_50, %c0_51] : memref<3x256x256xf32, #tpu.memory_space<vmem>>, vector<1x256x256xf32>
    %51 = vector.shape_cast %50 : vector<1x256x256xf32> to vector<256x256xf32>
    %cst_52 = arith.constant dense<0.000000e+00> : vector<32x256xf32>
    %52 = tpu.matmul %49, %51, %cst_52 {dimension_numbers = #tpu.dot_dimension_numbers<[1], [0], [0], [1], [0, 0, 1, 1], [], []>} : vector<32x256xf32>, vector<256x256xf32>, vector<32x256xf32> -> vector<32x256xf32>
    %53 = arith.addf %47, %52 : vector<32x256xf32>
    %c0_53 = arith.constant 0 : index
    %c2_54 = arith.constant 2 : index
    %c0_55 = arith.constant 0 : index
    %54 = vector.load %arg7[%c0_53, %c2_54, %c0_55] : memref<2x18x256xf32, #tpu.memory_space<vmem>>, vector<2x16x256xf32>
    %55 = vector.shape_cast %54 : vector<2x16x256xf32> to vector<32x256xf32>
    %c2_56 = arith.constant 2 : index
    %c0_57 = arith.constant 0 : index
    %c0_58 = arith.constant 0 : index
    %56 = vector.load %arg4[%c2_56, %c0_57, %c0_58] : memref<3x256x256xf32, #tpu.memory_space<vmem>>, vector<1x256x256xf32>
    %57 = vector.shape_cast %56 : vector<1x256x256xf32> to vector<256x256xf32>
    %cst_59 = arith.constant dense<0.000000e+00> : vector<32x256xf32>
    %58 = tpu.matmul %55, %57, %cst_59 {dimension_numbers = #tpu.dot_dimension_numbers<[1], [0], [0], [1], [0, 0, 1, 1], [], []>} : vector<32x256xf32>, vector<256x256xf32>, vector<32x256xf32> -> vector<32x256xf32>
    %59 = arith.addf %53, %58 : vector<32x256xf32>
    %60 = vector.broadcast %4 : vector<1x256xf32> to vector<32x256xf32>
    %61 = arith.addf %59, %60 : vector<32x256xf32>
    %c0_60 = arith.constant 0 : index
    %c0_61 = arith.constant 0 : index
    %62 = vector.load %arg9[%c0_60, %c0_61] : memref<32x256xf32, #tpu.memory_space<vmem>>, vector<32x256xf32>
    %63 = arith.subf %61, %62 : vector<32x256xf32>
    %cst_62 = arith.constant 5.000000e-01 : f32
    %64 = vector.broadcast %cst_62 : f32 to vector<32x256xf32>
    %65 = arith.mulf %63, %64 : vector<32x256xf32>
    %66 = arith.addf %62, %65 : vector<32x256xf32>
    %cst_63 = arith.constant 1.000000e+00 : f32
    %67 = vector.broadcast %cst_63 : f32 to vector<32x256xf32>
    %68 = arith.cmpf oge, %66, %67 : vector<32x256xf32>
    %69 = arith.extui %68 : vector<32x256xi1> to vector<32x256xi32>
    %70 = arith.sitofp %69 : vector<32x256xi32> to vector<32x256xf32>
    %cst_64 = arith.constant 1.000000e+00 : f32
    %71 = vector.broadcast %cst_64 : f32 to vector<32x256xf32>
    %72 = arith.subf %71, %70 : vector<32x256xf32>
    %73 = arith.mulf %66, %72 : vector<32x256xf32>
    %c0_65 = arith.constant 0 : index
    %c0_66 = arith.constant 0 : index
    %74 = vector.load %arg9[%c0_65, %c0_66] : memref<32x256xf32, #tpu.memory_space<vmem>>, vector<32x256xf32>
    tpu.vector_store %arg9[%c0_65, %c0_66], %73 {strides = array<i32>} : memref<32x256xf32, #tpu.memory_space<vmem>>, vector<32x256xf32>,
    %75 = arith.addf %70, %7 : vector<32x256xf32>
    %76 = vector.shape_cast %75 : vector<32x256xf32> to vector<2x16x256xf32>
    %c0_67 = arith.constant 0 : index
    %c0_68 = arith.constant 0 : index
    %c0_69 = arith.constant 0 : index
    %c0_70 = arith.constant 0 : index
    %77 = vector.load %arg6[%c0_67, %c0_68, %c0_69, %c0_70] : memref<4x2x16x256xf32, #tpu.memory_space<vmem>>, vector<1x2x16x256xf32>
    %78 = vector.shape_cast %77 : vector<1x2x16x256xf32> to vector<2x16x256xf32>
    %79 = vector.shape_cast %76 : vector<2x16x256xf32> to vector<1x2x16x256xf32>
    tpu.vector_store %arg6[%c0_67, %c0_68, %c0_69, %c0_70], %79 {strides = array<i32>} : memref<4x2x16x256xf32, #tpu.memory_space<vmem>>, vector<1x2x16x256xf32>,
    %c1_71 = arith.constant 1 : index
    %c0_72 = arith.constant 0 : index
    %c0_73 = arith.constant 0 : index
    %c0_74 = arith.constant 0 : index
    %80 = vector.load %arg2[%c1_71, %c0_72, %c0_73, %c0_74] : memref<4x2x16x256xf32, #tpu.memory_space<vmem>>, vector<1x2x16x256xf32>
    %81 = vector.shape_cast %80 : vector<1x2x16x256xf32> to vector<2x16x256xf32>
    %82 = vector.shape_cast %81 : vector<2x16x256xf32> to vector<32x256xf32>
    %c0_75 = arith.constant 0 : index
    %c1_76 = arith.constant 1 : index
    %c0_77 = arith.constant 0 : index
    %83 = vector.load %arg7[%c0_75, %c1_76, %c0_77] : memref<2x18x256xf32, #tpu.memory_space<vmem>>, vector<2x16x256xf32>
    tpu.vector_store %arg7[%c0_75, %c1_76, %c0_77], %81 {strides = array<i32>} : memref<2x18x256xf32, #tpu.memory_space<vmem>>, vector<2x16x256xf32>,
    %c0_78 = arith.constant 0 : index
    %c0_79 = arith.constant 0 : index
    %c0_80 = arith.constant 0 : index
    %84 = vector.load %arg7[%c0_78, %c0_79, %c0_80] : memref<2x18x256xf32, #tpu.memory_space<vmem>>, vector<2x16x256xf32>
    %85 = vector.shape_cast %84 : vector<2x16x256xf32> to vector<32x256xf32>
    %c0_81 = arith.constant 0 : index
    %c0_82 = arith.constant 0 : index
    %c0_83 = arith.constant 0 : index
    %86 = vector.load %arg3[%c0_81, %c0_82, %c0_83] : memref<3x256x256xf32, #tpu.memory_space<vmem>>, vector<1x256x256xf32>
    %87 = vector.shape_cast %86 : vector<1x256x256xf32> to vector<256x256xf32>
    %cst_84 = arith.constant dense<0.000000e+00> : vector<32x256xf32>
    %88 = tpu.matmul %85, %87, %cst_84 {dimension_numbers = #tpu.dot_dimension_numbers<[1], [0], [0], [1], [0, 0, 1, 1], [], []>} : vector<32x256xf32>, vector<256x256xf32>, vector<32x256xf32> -> vector<32x256xf32>
    %c0_85 = arith.constant 0 : index
    %c1_86 = arith.constant 1 : index
    %c0_87 = arith.constant 0 : index
    %89 = vector.load %arg7[%c0_85, %c1_86, %c0_87] : memref<2x18x256xf32, #tpu.memory_space<vmem>>, vector<2x16x256xf32>
    %90 = vector.shape_cast %89 : vector<2x16x256xf32> to vector<32x256xf32>
    %c1_88 = arith.constant 1 : index
    %c0_89 = arith.constant 0 : index
    %c0_90 = arith.constant 0 : index
    %91 = vector.load %arg3[%c1_88, %c0_89, %c0_90] : memref<3x256x256xf32, #tpu.memory_space<vmem>>, vector<1x256x256xf32>
    %92 = vector.shape_cast %91 : vector<1x256x256xf32> to vector<256x256xf32>
    %cst_91 = arith.constant dense<0.000000e+00> : vector<32x256xf32>
    %93 = tpu.matmul %90, %92, %cst_91 {dimension_numbers = #tpu.dot_dimension_numbers<[1], [0], [0], [1], [0, 0, 1, 1], [], []>} : vector<32x256xf32>, vector<256x256xf32>, vector<32x256xf32> -> vector<32x256xf32>
    %94 = arith.addf %88, %93 : vector<32x256xf32>
    %c0_92 = arith.constant 0 : index
    %c2_93 = arith.constant 2 : index
    %c0_94 = arith.constant 0 : index
    %95 = vector.load %arg7[%c0_92, %c2_93, %c0_94] : memref<2x18x256xf32, #tpu.memory_space<vmem>>, vector<2x16x256xf32>
    %96 = vector.shape_cast %95 : vector<2x16x256xf32> to vector<32x256xf32>
    %c2_95 = arith.constant 2 : index
    %c0_96 = arith.constant 0 : index
    %c0_97 = arith.constant 0 : index
    %97 = vector.load %arg3[%c2_95, %c0_96, %c0_97] : memref<3x256x256xf32, #tpu.memory_space<vmem>>, vector<1x256x256xf32>
    %98 = vector.shape_cast %97 : vector<1x256x256xf32> to vector<256x256xf32>
    %cst_98 = arith.constant dense<0.000000e+00> : vector<32x256xf32>
    %99 = tpu.matmul %96, %98, %cst_98 {dimension_numbers = #tpu.dot_dimension_numbers<[1], [0], [0], [1], [0, 0, 1, 1], [], []>} : vector<32x256xf32>, vector<256x256xf32>, vector<32x256xf32> -> vector<32x256xf32>
    %100 = arith.addf %94, %99 : vector<32x256xf32>
    %101 = vector.broadcast %3 : vector<1x256xf32> to vector<32x256xf32>
    %102 = arith.addf %100, %101 : vector<32x256xf32>
    %c0_99 = arith.constant 0 : index
    %c0_100 = arith.constant 0 : index
    %103 = vector.load %arg8[%c0_99, %c0_100] : memref<32x256xf32, #tpu.memory_space<vmem>>, vector<32x256xf32>
    %104 = arith.subf %102, %103 : vector<32x256xf32>
    %cst_101 = arith.constant 5.000000e-01 : f32
    %105 = vector.broadcast %cst_101 : f32 to vector<32x256xf32>
    %106 = arith.mulf %104, %105 : vector<32x256xf32>
    %107 = arith.addf %103, %106 : vector<32x256xf32>
    %cst_102 = arith.constant 1.000000e+00 : f32
    %108 = vector.broadcast %cst_102 : f32 to vector<32x256xf32>
    %109 = arith.cmpf oge, %107, %108 : vector<32x256xf32>
    %110 = arith.extui %109 : vector<32x256xi1> to vector<32x256xi32>
    %111 = arith.sitofp %110 : vector<32x256xi32> to vector<32x256xf32>
    %cst_103 = arith.constant 1.000000e+00 : f32
    %112 = vector.broadcast %cst_103 : f32 to vector<32x256xf32>
    %113 = arith.subf %112, %111 : vector<32x256xf32>
    %114 = arith.mulf %107, %113 : vector<32x256xf32>
    %c0_104 = arith.constant 0 : index
    %c0_105 = arith.constant 0 : index
    %115 = vector.load %arg8[%c0_104, %c0_105] : memref<32x256xf32, #tpu.memory_space<vmem>>, vector<32x256xf32>
    tpu.vector_store %arg8[%c0_104, %c0_105], %114 {strides = array<i32>} : memref<32x256xf32, #tpu.memory_space<vmem>>, vector<32x256xf32>,
    %116 = vector.shape_cast %111 : vector<32x256xf32> to vector<2x16x256xf32>
    %c0_106 = arith.constant 0 : index
    %c1_107 = arith.constant 1 : index
    %c0_108 = arith.constant 0 : index
    %117 = vector.load %arg7[%c0_106, %c1_107, %c0_108] : memref<2x18x256xf32, #tpu.memory_space<vmem>>, vector<2x16x256xf32>
    tpu.vector_store %arg7[%c0_106, %c1_107, %c0_108], %116 {strides = array<i32>} : memref<2x18x256xf32, #tpu.memory_space<vmem>>, vector<2x16x256xf32>,
    %c0_109 = arith.constant 0 : index
    %c0_110 = arith.constant 0 : index
    %c0_111 = arith.constant 0 : index
    %118 = vector.load %arg7[%c0_109, %c0_110, %c0_111] : memref<2x18x256xf32, #tpu.memory_space<vmem>>, vector<2x16x256xf32>
    %119 = vector.shape_cast %118 : vector<2x16x256xf32> to vector<32x256xf32>
    %c0_112 = arith.constant 0 : index
    %c0_113 = arith.constant 0 : index
    %c0_114 = arith.constant 0 : index
    %120 = vector.load %arg4[%c0_112, %c0_113, %c0_114] : memref<3x256x256xf32, #tpu.memory_space<vmem>>, vector<1x256x256xf32>
    %121 = vector.shape_cast %120 : vector<1x256x256xf32> to vector<256x256xf32>
    %cst_115 = arith.constant dense<0.000000e+00> : vector<32x256xf32>
    %122 = tpu.matmul %119, %121, %cst_115 {dimension_numbers = #tpu.dot_dimension_numbers<[1], [0], [0], [1], [0, 0, 1, 1], [], []>} : vector<32x256xf32>, vector<256x256xf32>, vector<32x256xf32> -> vector<32x256xf32>
    %c0_116 = arith.constant 0 : index
    %c1_117 = arith.constant 1 : index
    %c0_118 = arith.constant 0 : index
    %123 = vector.load %arg7[%c0_116, %c1_117, %c0_118] : memref<2x18x256xf32, #tpu.memory_space<vmem>>, vector<2x16x256xf32>
    %124 = vector.shape_cast %123 : vector<2x16x256xf32> to vector<32x256xf32>
    %c1_119 = arith.constant 1 : index
    %c0_120 = arith.constant 0 : index
    %c0_121 = arith.constant 0 : index
    %125 = vector.load %arg4[%c1_119, %c0_120, %c0_121] : memref<3x256x256xf32, #tpu.memory_space<vmem>>, vector<1x256x256xf32>
    %126 = vector.shape_cast %125 : vector<1x256x256xf32> to vector<256x256xf32>
    %cst_122 = arith.constant dense<0.000000e+00> : vector<32x256xf32>
    %127 = tpu.matmul %124, %126, %cst_122 {dimension_numbers = #tpu.dot_dimension_numbers<[1], [0], [0], [1], [0, 0, 1, 1], [], []>} : vector<32x256xf32>, vector<256x256xf32>, vector<32x256xf32> -> vector<32x256xf32>
    %128 = arith.addf %122, %127 : vector<32x256xf32>
    %c0_123 = arith.constant 0 : index
    %c2_124 = arith.constant 2 : index
    %c0_125 = arith.constant 0 : index
    %129 = vector.load %arg7[%c0_123, %c2_124, %c0_125] : memref<2x18x256xf32, #tpu.memory_space<vmem>>, vector<2x16x256xf32>
    %130 = vector.shape_cast %129 : vector<2x16x256xf32> to vector<32x256xf32>
    %c2_126 = arith.constant 2 : index
    %c0_127 = arith.constant 0 : index
    %c0_128 = arith.constant 0 : index
    %131 = vector.load %arg4[%c2_126, %c0_127, %c0_128] : memref<3x256x256xf32, #tpu.memory_space<vmem>>, vector<1x256x256xf32>
    %132 = vector.shape_cast %131 : vector<1x256x256xf32> to vector<256x256xf32>
    %cst_129 = arith.constant dense<0.000000e+00> : vector<32x256xf32>
    %133 = tpu.matmul %130, %132, %cst_129 {dimension_numbers = #tpu.dot_dimension_numbers<[1], [0], [0], [1], [0, 0, 1, 1], [], []>} : vector<32x256xf32>, vector<256x256xf32>, vector<32x256xf32> -> vector<32x256xf32>
    %134 = arith.addf %128, %133 : vector<32x256xf32>
    %135 = vector.broadcast %4 : vector<1x256xf32> to vector<32x256xf32>
    %136 = arith.addf %134, %135 : vector<32x256xf32>
    %c0_130 = arith.constant 0 : index
    %c0_131 = arith.constant 0 : index
    %137 = vector.load %arg9[%c0_130, %c0_131] : memref<32x256xf32, #tpu.memory_space<vmem>>, vector<32x256xf32>
    %138 = arith.subf %136, %137 : vector<32x256xf32>
    %cst_132 = arith.constant 5.000000e-01 : f32
    %139 = vector.broadcast %cst_132 : f32 to vector<32x256xf32>
    %140 = arith.mulf %138, %139 : vector<32x256xf32>
    %141 = arith.addf %137, %140 : vector<32x256xf32>
    %cst_133 = arith.constant 1.000000e+00 : f32
    %142 = vector.broadcast %cst_133 : f32 to vector<32x256xf32>
    %143 = arith.cmpf oge, %141, %142 : vector<32x256xf32>
    %144 = arith.extui %143 : vector<32x256xi1> to vector<32x256xi32>
    %145 = arith.sitofp %144 : vector<32x256xi32> to vector<32x256xf32>
    %cst_134 = arith.constant 1.000000e+00 : f32
    %146 = vector.broadcast %cst_134 : f32 to vector<32x256xf32>
    %147 = arith.subf %146, %145 : vector<32x256xf32>
    %148 = arith.mulf %141, %147 : vector<32x256xf32>
    %c0_135 = arith.constant 0 : index
    %c0_136 = arith.constant 0 : index
    %149 = vector.load %arg9[%c0_135, %c0_136] : memref<32x256xf32, #tpu.memory_space<vmem>>, vector<32x256xf32>
    tpu.vector_store %arg9[%c0_135, %c0_136], %148 {strides = array<i32>} : memref<32x256xf32, #tpu.memory_space<vmem>>, vector<32x256xf32>,
    %150 = arith.addf %145, %82 : vector<32x256xf32>
    %151 = vector.shape_cast %150 : vector<32x256xf32> to vector<2x16x256xf32>
    %c1_137 = arith.constant 1 : index
    %c0_138 = arith.constant 0 : index
    %c0_139 = arith.constant 0 : index
    %c0_140 = arith.constant 0 : index
    %152 = vector.load %arg6[%c1_137, %c0_138, %c0_139, %c0_140] : memref<4x2x16x256xf32, #tpu.memory_space<vmem>>, vector<1x2x16x256xf32>
    %153 = vector.shape_cast %152 : vector<1x2x16x256xf32> to vector<2x16x256xf32>
    %154 = vector.shape_cast %151 : vector<2x16x256xf32> to vector<1x2x16x256xf32>
    tpu.vector_store %arg6[%c1_137, %c0_138, %c0_139, %c0_140], %154 {strides = array<i32>} : memref<4x2x16x256xf32, #tpu.memory_space<vmem>>, vector<1x2x16x256xf32>,
    %c2_141 = arith.constant 2 : index
    %c0_142 = arith.constant 0 : index
    %c0_143 = arith.constant 0 : index
    %c0_144 = arith.constant 0 : index
    %155 = vector.load %arg2[%c2_141, %c0_142, %c0_143, %c0_144] : memref<4x2x16x256xf32, #tpu.memory_space<vmem>>, vector<1x2x16x256xf32>
    %156 = vector.shape_cast %155 : vector<1x2x16x256xf32> to vector<2x16x256xf32>
    %157 = vector.shape_cast %156 : vector<2x16x256xf32> to vector<32x256xf32>
    %c0_145 = arith.constant 0 : index
    %c1_146 = arith.constant 1 : index
    %c0_147 = arith.constant 0 : index
    %158 = vector.load %arg7[%c0_145, %c1_146, %c0_147] : memref<2x18x256xf32, #tpu.memory_space<vmem>>, vector<2x16x256xf32>
    tpu.vector_store %arg7[%c0_145, %c1_146, %c0_147], %156 {strides = array<i32>} : memref<2x18x256xf32, #tpu.memory_space<vmem>>, vector<2x16x256xf32>,
    %c0_148 = arith.constant 0 : index
    %c0_149 = arith.constant 0 : index
    %c0_150 = arith.constant 0 : index
    %159 = vector.load %arg7[%c0_148, %c0_149, %c0_150] : memref<2x18x256xf32, #tpu.memory_space<vmem>>, vector<2x16x256xf32>
    %160 = vector.shape_cast %159 : vector<2x16x256xf32> to vector<32x256xf32>
    %c0_151 = arith.constant 0 : index
    %c0_152 = arith.constant 0 : index
    %c0_153 = arith.constant 0 : index
    %161 = vector.load %arg3[%c0_151, %c0_152, %c0_153] : memref<3x256x256xf32, #tpu.memory_space<vmem>>, vector<1x256x256xf32>
    %162 = vector.shape_cast %161 : vector<1x256x256xf32> to vector<256x256xf32>
    %cst_154 = arith.constant dense<0.000000e+00> : vector<32x256xf32>
    %163 = tpu.matmul %160, %162, %cst_154 {dimension_numbers = #tpu.dot_dimension_numbers<[1], [0], [0], [1], [0, 0, 1, 1], [], []>} : vector<32x256xf32>, vector<256x256xf32>, vector<32x256xf32> -> vector<32x256xf32>
    %c0_155 = arith.constant 0 : index
    %c1_156 = arith.constant 1 : index
    %c0_157 = arith.constant 0 : index
    %164 = vector.load %arg7[%c0_155, %c1_156, %c0_157] : memref<2x18x256xf32, #tpu.memory_space<vmem>>, vector<2x16x256xf32>
    %165 = vector.shape_cast %164 : vector<2x16x256xf32> to vector<32x256xf32>
    %c1_158 = arith.constant 1 : index
    %c0_159 = arith.constant 0 : index
    %c0_160 = arith.constant 0 : index
    %166 = vector.load %arg3[%c1_158, %c0_159, %c0_160] : memref<3x256x256xf32, #tpu.memory_space<vmem>>, vector<1x256x256xf32>
    %167 = vector.shape_cast %166 : vector<1x256x256xf32> to vector<256x256xf32>
    %cst_161 = arith.constant dense<0.000000e+00> : vector<32x256xf32>
    %168 = tpu.matmul %165, %167, %cst_161 {dimension_numbers = #tpu.dot_dimension_numbers<[1], [0], [0], [1], [0, 0, 1, 1], [], []>} : vector<32x256xf32>, vector<256x256xf32>, vector<32x256xf32> -> vector<32x256xf32>
    %169 = arith.addf %163, %168 : vector<32x256xf32>
    %c0_162 = arith.constant 0 : index
    %c2_163 = arith.constant 2 : index
    %c0_164 = arith.constant 0 : index
    %170 = vector.load %arg7[%c0_162, %c2_163, %c0_164] : memref<2x18x256xf32, #tpu.memory_space<vmem>>, vector<2x16x256xf32>
    %171 = vector.shape_cast %170 : vector<2x16x256xf32> to vector<32x256xf32>
    %c2_165 = arith.constant 2 : index
    %c0_166 = arith.constant 0 : index
    %c0_167 = arith.constant 0 : index
    %172 = vector.load %arg3[%c2_165, %c0_166, %c0_167] : memref<3x256x256xf32, #tpu.memory_space<vmem>>, vector<1x256x256xf32>
    %173 = vector.shape_cast %172 : vector<1x256x256xf32> to vector<256x256xf32>
    %cst_168 = arith.constant dense<0.000000e+00> : vector<32x256xf32>
    %174 = tpu.matmul %171, %173, %cst_168 {dimension_numbers = #tpu.dot_dimension_numbers<[1], [0], [0], [1], [0, 0, 1, 1], [], []>} : vector<32x256xf32>, vector<256x256xf32>, vector<32x256xf32> -> vector<32x256xf32>
    %175 = arith.addf %169, %174 : vector<32x256xf32>
    %176 = vector.broadcast %3 : vector<1x256xf32> to vector<32x256xf32>
    %177 = arith.addf %175, %176 : vector<32x256xf32>
    %c0_169 = arith.constant 0 : index
    %c0_170 = arith.constant 0 : index
    %178 = vector.load %arg8[%c0_169, %c0_170] : memref<32x256xf32, #tpu.memory_space<vmem>>, vector<32x256xf32>
    %179 = arith.subf %177, %178 : vector<32x256xf32>
    %cst_171 = arith.constant 5.000000e-01 : f32
    %180 = vector.broadcast %cst_171 : f32 to vector<32x256xf32>
    %181 = arith.mulf %179, %180 : vector<32x256xf32>
    %182 = arith.addf %178, %181 : vector<32x256xf32>
    %cst_172 = arith.constant 1.000000e+00 : f32
    %183 = vector.broadcast %cst_172 : f32 to vector<32x256xf32>
    %184 = arith.cmpf oge, %182, %183 : vector<32x256xf32>
    %185 = arith.extui %184 : vector<32x256xi1> to vector<32x256xi32>
    %186 = arith.sitofp %185 : vector<32x256xi32> to vector<32x256xf32>
    %cst_173 = arith.constant 1.000000e+00 : f32
    %187 = vector.broadcast %cst_173 : f32 to vector<32x256xf32>
    %188 = arith.subf %187, %186 : vector<32x256xf32>
    %189 = arith.mulf %182, %188 : vector<32x256xf32>
    %c0_174 = arith.constant 0 : index
    %c0_175 = arith.constant 0 : index
    %190 = vector.load %arg8[%c0_174, %c0_175] : memref<32x256xf32, #tpu.memory_space<vmem>>, vector<32x256xf32>
    tpu.vector_store %arg8[%c0_174, %c0_175], %189 {strides = array<i32>} : memref<32x256xf32, #tpu.memory_space<vmem>>, vector<32x256xf32>,
    %191 = vector.shape_cast %186 : vector<32x256xf32> to vector<2x16x256xf32>
    %c0_176 = arith.constant 0 : index
    %c1_177 = arith.constant 1 : index
    %c0_178 = arith.constant 0 : index
    %192 = vector.load %arg7[%c0_176, %c1_177, %c0_178] : memref<2x18x256xf32, #tpu.memory_space<vmem>>, vector<2x16x256xf32>
    tpu.vector_store %arg7[%c0_176, %c1_177, %c0_178], %191 {strides = array<i32>} : memref<2x18x256xf32, #tpu.memory_space<vmem>>, vector<2x16x256xf32>,
    %c0_179 = arith.constant 0 : index
    %c0_180 = arith.constant 0 : index
    %c0_181 = arith.constant 0 : index
    %193 = vector.load %arg7[%c0_179, %c0_180, %c0_181] : memref<2x18x256xf32, #tpu.memory_space<vmem>>, vector<2x16x256xf32>
    %194 = vector.shape_cast %193 : vector<2x16x256xf32> to vector<32x256xf32>
    %c0_182 = arith.constant 0 : index
    %c0_183 = arith.constant 0 : index
    %c0_184 = arith.constant 0 : index
    %195 = vector.load %arg4[%c0_182, %c0_183, %c0_184] : memref<3x256x256xf32, #tpu.memory_space<vmem>>, vector<1x256x256xf32>
    %196 = vector.shape_cast %195 : vector<1x256x256xf32> to vector<256x256xf32>
    %cst_185 = arith.constant dense<0.000000e+00> : vector<32x256xf32>
    %197 = tpu.matmul %194, %196, %cst_185 {dimension_numbers = #tpu.dot_dimension_numbers<[1], [0], [0], [1], [0, 0, 1, 1], [], []>} : vector<32x256xf32>, vector<256x256xf32>, vector<32x256xf32> -> vector<32x256xf32>
    %c0_186 = arith.constant 0 : index
    %c1_187 = arith.constant 1 : index
    %c0_188 = arith.constant 0 : index
    %198 = vector.load %arg7[%c0_186, %c1_187, %c0_188] : memref<2x18x256xf32, #tpu.memory_space<vmem>>, vector<2x16x256xf32>
    %199 = vector.shape_cast %198 : vector<2x16x256xf32> to vector<32x256xf32>
    %c1_189 = arith.constant 1 : index
    %c0_190 = arith.constant 0 : index
    %c0_191 = arith.constant 0 : index
    %200 = vector.load %arg4[%c1_189, %c0_190, %c0_191] : memref<3x256x256xf32, #tpu.memory_space<vmem>>, vector<1x256x256xf32>
    %201 = vector.shape_cast %200 : vector<1x256x256xf32> to vector<256x256xf32>
    %cst_192 = arith.constant dense<0.000000e+00> : vector<32x256xf32>
    %202 = tpu.matmul %199, %201, %cst_192 {dimension_numbers = #tpu.dot_dimension_numbers<[1], [0], [0], [1], [0, 0, 1, 1], [], []>} : vector<32x256xf32>, vector<256x256xf32>, vector<32x256xf32> -> vector<32x256xf32>
    %203 = arith.addf %197, %202 : vector<32x256xf32>
    %c0_193 = arith.constant 0 : index
    %c2_194 = arith.constant 2 : index
    %c0_195 = arith.constant 0 : index
    %204 = vector.load %arg7[%c0_193, %c2_194, %c0_195] : memref<2x18x256xf32, #tpu.memory_space<vmem>>, vector<2x16x256xf32>
    %205 = vector.shape_cast %204 : vector<2x16x256xf32> to vector<32x256xf32>
    %c2_196 = arith.constant 2 : index
    %c0_197 = arith.constant 0 : index
    %c0_198 = arith.constant 0 : index
    %206 = vector.load %arg4[%c2_196, %c0_197, %c0_198] : memref<3x256x256xf32, #tpu.memory_space<vmem>>, vector<1x256x256xf32>
    %207 = vector.shape_cast %206 : vector<1x256x256xf32> to vector<256x256xf32>
    %cst_199 = arith.constant dense<0.000000e+00> : vector<32x256xf32>
    %208 = tpu.matmul %205, %207, %cst_199 {dimension_numbers = #tpu.dot_dimension_numbers<[1], [0], [0], [1], [0, 0, 1, 1], [], []>} : vector<32x256xf32>, vector<256x256xf32>, vector<32x256xf32> -> vector<32x256xf32>
    %209 = arith.addf %203, %208 : vector<32x256xf32>
    %210 = vector.broadcast %4 : vector<1x256xf32> to vector<32x256xf32>
    %211 = arith.addf %209, %210 : vector<32x256xf32>
    %c0_200 = arith.constant 0 : index
    %c0_201 = arith.constant 0 : index
    %212 = vector.load %arg9[%c0_200, %c0_201] : memref<32x256xf32, #tpu.memory_space<vmem>>, vector<32x256xf32>
    %213 = arith.subf %211, %212 : vector<32x256xf32>
    %cst_202 = arith.constant 5.000000e-01 : f32
    %214 = vector.broadcast %cst_202 : f32 to vector<32x256xf32>
    %215 = arith.mulf %213, %214 : vector<32x256xf32>
    %216 = arith.addf %212, %215 : vector<32x256xf32>
    %cst_203 = arith.constant 1.000000e+00 : f32
    %217 = vector.broadcast %cst_203 : f32 to vector<32x256xf32>
    %218 = arith.cmpf oge, %216, %217 : vector<32x256xf32>
    %219 = arith.extui %218 : vector<32x256xi1> to vector<32x256xi32>
    %220 = arith.sitofp %219 : vector<32x256xi32> to vector<32x256xf32>
    %cst_204 = arith.constant 1.000000e+00 : f32
    %221 = vector.broadcast %cst_204 : f32 to vector<32x256xf32>
    %222 = arith.subf %221, %220 : vector<32x256xf32>
    %223 = arith.mulf %216, %222 : vector<32x256xf32>
    %c0_205 = arith.constant 0 : index
    %c0_206 = arith.constant 0 : index
    %224 = vector.load %arg9[%c0_205, %c0_206] : memref<32x256xf32, #tpu.memory_space<vmem>>, vector<32x256xf32>
    tpu.vector_store %arg9[%c0_205, %c0_206], %223 {strides = array<i32>} : memref<32x256xf32, #tpu.memory_space<vmem>>, vector<32x256xf32>,
    %225 = arith.addf %220, %157 : vector<32x256xf32>
    %226 = vector.shape_cast %225 : vector<32x256xf32> to vector<2x16x256xf32>
    %c2_207 = arith.constant 2 : index
    %c0_208 = arith.constant 0 : index
    %c0_209 = arith.constant 0 : index
    %c0_210 = arith.constant 0 : index
    %227 = vector.load %arg6[%c2_207, %c0_208, %c0_209, %c0_210] : memref<4x2x16x256xf32, #tpu.memory_space<vmem>>, vector<1x2x16x256xf32>
    %228 = vector.shape_cast %227 : vector<1x2x16x256xf32> to vector<2x16x256xf32>
    %229 = vector.shape_cast %226 : vector<2x16x256xf32> to vector<1x2x16x256xf32>
    tpu.vector_store %arg6[%c2_207, %c0_208, %c0_209, %c0_210], %229 {strides = array<i32>} : memref<4x2x16x256xf32, #tpu.memory_space<vmem>>, vector<1x2x16x256xf32>,
    %c3 = arith.constant 3 : index
    %c0_211 = arith.constant 0 : index
    %c0_212 = arith.constant 0 : index
    %c0_213 = arith.constant 0 : index
    %230 = vector.load %arg2[%c3, %c0_211, %c0_212, %c0_213] : memref<4x2x16x256xf32, #tpu.memory_space<vmem>>, vector<1x2x16x256xf32>
    %231 = vector.shape_cast %230 : vector<1x2x16x256xf32> to vector<2x16x256xf32>
    %232 = vector.shape_cast %231 : vector<2x16x256xf32> to vector<32x256xf32>
    %c0_214 = arith.constant 0 : index
    %c1_215 = arith.constant 1 : index
    %c0_216 = arith.constant 0 : index
    %233 = vector.load %arg7[%c0_214, %c1_215, %c0_216] : memref<2x18x256xf32, #tpu.memory_space<vmem>>, vector<2x16x256xf32>
    tpu.vector_store %arg7[%c0_214, %c1_215, %c0_216], %231 {strides = array<i32>} : memref<2x18x256xf32, #tpu.memory_space<vmem>>, vector<2x16x256xf32>,
    %c0_217 = arith.constant 0 : index
    %c0_218 = arith.constant 0 : index
    %c0_219 = arith.constant 0 : index
    %234 = vector.load %arg7[%c0_217, %c0_218, %c0_219] : memref<2x18x256xf32, #tpu.memory_space<vmem>>, vector<2x16x256xf32>
    %235 = vector.shape_cast %234 : vector<2x16x256xf32> to vector<32x256xf32>
    %c0_220 = arith.constant 0 : index
    %c0_221 = arith.constant 0 : index
    %c0_222 = arith.constant 0 : index
    %236 = vector.load %arg3[%c0_220, %c0_221, %c0_222] : memref<3x256x256xf32, #tpu.memory_space<vmem>>, vector<1x256x256xf32>
    %237 = vector.shape_cast %236 : vector<1x256x256xf32> to vector<256x256xf32>
    %cst_223 = arith.constant dense<0.000000e+00> : vector<32x256xf32>
    %238 = tpu.matmul %235, %237, %cst_223 {dimension_numbers = #tpu.dot_dimension_numbers<[1], [0], [0], [1], [0, 0, 1, 1], [], []>} : vector<32x256xf32>, vector<256x256xf32>, vector<32x256xf32> -> vector<32x256xf32>
    %c0_224 = arith.constant 0 : index
    %c1_225 = arith.constant 1 : index
    %c0_226 = arith.constant 0 : index
    %239 = vector.load %arg7[%c0_224, %c1_225, %c0_226] : memref<2x18x256xf32, #tpu.memory_space<vmem>>, vector<2x16x256xf32>
    %240 = vector.shape_cast %239 : vector<2x16x256xf32> to vector<32x256xf32>
    %c1_227 = arith.constant 1 : index
    %c0_228 = arith.constant 0 : index
    %c0_229 = arith.constant 0 : index
    %241 = vector.load %arg3[%c1_227, %c0_228, %c0_229] : memref<3x256x256xf32, #tpu.memory_space<vmem>>, vector<1x256x256xf32>
    %242 = vector.shape_cast %241 : vector<1x256x256xf32> to vector<256x256xf32>
    %cst_230 = arith.constant dense<0.000000e+00> : vector<32x256xf32>
    %243 = tpu.matmul %240, %242, %cst_230 {dimension_numbers = #tpu.dot_dimension_numbers<[1], [0], [0], [1], [0, 0, 1, 1], [], []>} : vector<32x256xf32>, vector<256x256xf32>, vector<32x256xf32> -> vector<32x256xf32>
    %244 = arith.addf %238, %243 : vector<32x256xf32>
    %c0_231 = arith.constant 0 : index
    %c2_232 = arith.constant 2 : index
    %c0_233 = arith.constant 0 : index
    %245 = vector.load %arg7[%c0_231, %c2_232, %c0_233] : memref<2x18x256xf32, #tpu.memory_space<vmem>>, vector<2x16x256xf32>
    %246 = vector.shape_cast %245 : vector<2x16x256xf32> to vector<32x256xf32>
    %c2_234 = arith.constant 2 : index
    %c0_235 = arith.constant 0 : index
    %c0_236 = arith.constant 0 : index
    %247 = vector.load %arg3[%c2_234, %c0_235, %c0_236] : memref<3x256x256xf32, #tpu.memory_space<vmem>>, vector<1x256x256xf32>
    %248 = vector.shape_cast %247 : vector<1x256x256xf32> to vector<256x256xf32>
    %cst_237 = arith.constant dense<0.000000e+00> : vector<32x256xf32>
    %249 = tpu.matmul %246, %248, %cst_237 {dimension_numbers = #tpu.dot_dimension_numbers<[1], [0], [0], [1], [0, 0, 1, 1], [], []>} : vector<32x256xf32>, vector<256x256xf32>, vector<32x256xf32> -> vector<32x256xf32>
    %250 = arith.addf %244, %249 : vector<32x256xf32>
    %251 = vector.broadcast %3 : vector<1x256xf32> to vector<32x256xf32>
    %252 = arith.addf %250, %251 : vector<32x256xf32>
    %c0_238 = arith.constant 0 : index
    %c0_239 = arith.constant 0 : index
    %253 = vector.load %arg8[%c0_238, %c0_239] : memref<32x256xf32, #tpu.memory_space<vmem>>, vector<32x256xf32>
    %254 = arith.subf %252, %253 : vector<32x256xf32>
    %cst_240 = arith.constant 5.000000e-01 : f32
    %255 = vector.broadcast %cst_240 : f32 to vector<32x256xf32>
    %256 = arith.mulf %254, %255 : vector<32x256xf32>
    %257 = arith.addf %253, %256 : vector<32x256xf32>
    %cst_241 = arith.constant 1.000000e+00 : f32
    %258 = vector.broadcast %cst_241 : f32 to vector<32x256xf32>
    %259 = arith.cmpf oge, %257, %258 : vector<32x256xf32>
    %260 = arith.extui %259 : vector<32x256xi1> to vector<32x256xi32>
    %261 = arith.sitofp %260 : vector<32x256xi32> to vector<32x256xf32>
    %cst_242 = arith.constant 1.000000e+00 : f32
    %262 = vector.broadcast %cst_242 : f32 to vector<32x256xf32>
    %263 = arith.subf %262, %261 : vector<32x256xf32>
    %264 = arith.mulf %257, %263 : vector<32x256xf32>
    %c0_243 = arith.constant 0 : index
    %c0_244 = arith.constant 0 : index
    %265 = vector.load %arg8[%c0_243, %c0_244] : memref<32x256xf32, #tpu.memory_space<vmem>>, vector<32x256xf32>
    tpu.vector_store %arg8[%c0_243, %c0_244], %264 {strides = array<i32>} : memref<32x256xf32, #tpu.memory_space<vmem>>, vector<32x256xf32>,
    %266 = vector.shape_cast %261 : vector<32x256xf32> to vector<2x16x256xf32>
    %c0_245 = arith.constant 0 : index
    %c1_246 = arith.constant 1 : index
    %c0_247 = arith.constant 0 : index
    %267 = vector.load %arg7[%c0_245, %c1_246, %c0_247] : memref<2x18x256xf32, #tpu.memory_space<vmem>>, vector<2x16x256xf32>
    tpu.vector_store %arg7[%c0_245, %c1_246, %c0_247], %266 {strides = array<i32>} : memref<2x18x256xf32, #tpu.memory_space<vmem>>, vector<2x16x256xf32>,
    %c0_248 = arith.constant 0 : index
    %c0_249 = arith.constant 0 : index
    %c0_250 = arith.constant 0 : index
    %268 = vector.load %arg7[%c0_248, %c0_249, %c0_250] : memref<2x18x256xf32, #tpu.memory_space<vmem>>, vector<2x16x256xf32>
    %269 = vector.shape_cast %268 : vector<2x16x256xf32> to vector<32x256xf32>
    %c0_251 = arith.constant 0 : index
    %c0_252 = arith.constant 0 : index
    %c0_253 = arith.constant 0 : index
    %270 = vector.load %arg4[%c0_251, %c0_252, %c0_253] : memref<3x256x256xf32, #tpu.memory_space<vmem>>, vector<1x256x256xf32>
    %271 = vector.shape_cast %270 : vector<1x256x256xf32> to vector<256x256xf32>
    %cst_254 = arith.constant dense<0.000000e+00> : vector<32x256xf32>
    %272 = tpu.matmul %269, %271, %cst_254 {dimension_numbers = #tpu.dot_dimension_numbers<[1], [0], [0], [1], [0, 0, 1, 1], [], []>} : vector<32x256xf32>, vector<256x256xf32>, vector<32x256xf32> -> vector<32x256xf32>
    %c0_255 = arith.constant 0 : index
    %c1_256 = arith.constant 1 : index
    %c0_257 = arith.constant 0 : index
    %273 = vector.load %arg7[%c0_255, %c1_256, %c0_257] : memref<2x18x256xf32, #tpu.memory_space<vmem>>, vector<2x16x256xf32>
    %274 = vector.shape_cast %273 : vector<2x16x256xf32> to vector<32x256xf32>
    %c1_258 = arith.constant 1 : index
    %c0_259 = arith.constant 0 : index
    %c0_260 = arith.constant 0 : index
    %275 = vector.load %arg4[%c1_258, %c0_259, %c0_260] : memref<3x256x256xf32, #tpu.memory_space<vmem>>, vector<1x256x256xf32>
    %276 = vector.shape_cast %275 : vector<1x256x256xf32> to vector<256x256xf32>
    %cst_261 = arith.constant dense<0.000000e+00> : vector<32x256xf32>
    %277 = tpu.matmul %274, %276, %cst_261 {dimension_numbers = #tpu.dot_dimension_numbers<[1], [0], [0], [1], [0, 0, 1, 1], [], []>} : vector<32x256xf32>, vector<256x256xf32>, vector<32x256xf32> -> vector<32x256xf32>
    %278 = arith.addf %272, %277 : vector<32x256xf32>
    %c0_262 = arith.constant 0 : index
    %c2_263 = arith.constant 2 : index
    %c0_264 = arith.constant 0 : index
    %279 = vector.load %arg7[%c0_262, %c2_263, %c0_264] : memref<2x18x256xf32, #tpu.memory_space<vmem>>, vector<2x16x256xf32>
    %280 = vector.shape_cast %279 : vector<2x16x256xf32> to vector<32x256xf32>
    %c2_265 = arith.constant 2 : index
    %c0_266 = arith.constant 0 : index
    %c0_267 = arith.constant 0 : index
    %281 = vector.load %arg4[%c2_265, %c0_266, %c0_267] : memref<3x256x256xf32, #tpu.memory_space<vmem>>, vector<1x256x256xf32>
    %282 = vector.shape_cast %281 : vector<1x256x256xf32> to vector<256x256xf32>
    %cst_268 = arith.constant dense<0.000000e+00> : vector<32x256xf32>
    %283 = tpu.matmul %280, %282, %cst_268 {dimension_numbers = #tpu.dot_dimension_numbers<[1], [0], [0], [1], [0, 0, 1, 1], [], []>} : vector<32x256xf32>, vector<256x256xf32>, vector<32x256xf32> -> vector<32x256xf32>
    %284 = arith.addf %278, %283 : vector<32x256xf32>
    %285 = vector.broadcast %4 : vector<1x256xf32> to vector<32x256xf32>
    %286 = arith.addf %284, %285 : vector<32x256xf32>
    %c0_269 = arith.constant 0 : index
    %c0_270 = arith.constant 0 : index
    %287 = vector.load %arg9[%c0_269, %c0_270] : memref<32x256xf32, #tpu.memory_space<vmem>>, vector<32x256xf32>
    %288 = arith.subf %286, %287 : vector<32x256xf32>
    %cst_271 = arith.constant 5.000000e-01 : f32
    %289 = vector.broadcast %cst_271 : f32 to vector<32x256xf32>
    %290 = arith.mulf %288, %289 : vector<32x256xf32>
    %291 = arith.addf %287, %290 : vector<32x256xf32>
    %cst_272 = arith.constant 1.000000e+00 : f32
    %292 = vector.broadcast %cst_272 : f32 to vector<32x256xf32>
    %293 = arith.cmpf oge, %291, %292 : vector<32x256xf32>
    %294 = arith.extui %293 : vector<32x256xi1> to vector<32x256xi32>
    %295 = arith.sitofp %294 : vector<32x256xi32> to vector<32x256xf32>
    %cst_273 = arith.constant 1.000000e+00 : f32
    %296 = vector.broadcast %cst_273 : f32 to vector<32x256xf32>
    %297 = arith.subf %296, %295 : vector<32x256xf32>
    %298 = arith.mulf %291, %297 : vector<32x256xf32>
    %c0_274 = arith.constant 0 : index
    %c0_275 = arith.constant 0 : index
    %299 = vector.load %arg9[%c0_274, %c0_275] : memref<32x256xf32, #tpu.memory_space<vmem>>, vector<32x256xf32>
    tpu.vector_store %arg9[%c0_274, %c0_275], %298 {strides = array<i32>} : memref<32x256xf32, #tpu.memory_space<vmem>>, vector<32x256xf32>,
    %300 = arith.addf %295, %232 : vector<32x256xf32>
    %301 = vector.shape_cast %300 : vector<32x256xf32> to vector<2x16x256xf32>
    %c3_276 = arith.constant 3 : index
    %c0_277 = arith.constant 0 : index
    %c0_278 = arith.constant 0 : index
    %c0_279 = arith.constant 0 : index
    %302 = vector.load %arg6[%c3_276, %c0_277, %c0_278, %c0_279] : memref<4x2x16x256xf32, #tpu.memory_space<vmem>>, vector<1x2x16x256xf32>
    %303 = vector.shape_cast %302 : vector<1x2x16x256xf32> to vector<2x16x256xf32>
    %304 = vector.shape_cast %301 : vector<2x16x256xf32> to vector<1x2x16x256xf32>
    tpu.vector_store %arg6[%c3_276, %c0_277, %c0_278, %c0_279], %304 {strides = array<i32>} : memref<4x2x16x256xf32, #tpu.memory_space<vmem>>, vector<1x2x16x256xf32>,
    return
  }
  func.func @transform_0(%arg0: i32, %arg1: i32) -> (i32, i32, i32, i32) {
    %c0_i32 = arith.constant 0 : i32
    %c0_i32_0 = arith.constant 0 : i32
    %c0_i32_1 = arith.constant 0 : i32
    return %arg1, %arg0, %c0_i32, %c0_i32_0 : i32, i32, i32, i32
  }
  func.func @transform_1(%arg0: i32, %arg1: i32) -> (i32, i32, i32) {
    %c0_i32 = arith.constant 0 : i32
    %c0_i32_0 = arith.constant 0 : i32
    %c0_i32_1 = arith.constant 0 : i32
    %c0_i32_2 = arith.constant 0 : i32
    return %c0_i32, %c0_i32_0, %c0_i32_1 : i32, i32, i32
  }
  func.func @transform_2(%arg0: i32, %arg1: i32) -> (i32, i32, i32) {
    %c0_i32 = arith.constant 0 : i32
    %c0_i32_0 = arith.constant 0 : i32
    %c0_i32_1 = arith.constant 0 : i32
    %c0_i32_2 = arith.constant 0 : i32
    return %c0_i32, %c0_i32_0, %c0_i32_1 : i32, i32, i32
  }
  func.func @transform_3(%arg0: i32, %arg1: i32) -> (i32, i32) {
    %c0_i32 = arith.constant 0 : i32
    %c0_i32_0 = arith.constant 0 : i32
    %c0_i32_1 = arith.constant 0 : i32
    return %c0_i32, %c0_i32_0 : i32, i32
  }
  func.func @transform_4(%arg0: i32, %arg1: i32) -> (i32, i32, i32, i32) {
    %c0_i32 = arith.constant 0 : i32
    %c0_i32_0 = arith.constant 0 : i32
    %c0_i32_1 = arith.constant 0 : i32
    return %arg1, %arg0, %c0_i32, %c0_i32_0 : i32, i32, i32, i32
  }
}

</mosaic_0001>

<llo_original>
// kernel: tpu_custom_call.1
$region0: #{tpu_custom_call.1}
  #allocation0 [shape = 'u32[]', space=smem, size = 0x4, offset = 0x4, fixed_abs, tag = 'smem constant byte address 0x4 - core index']
  #allocation1 [shape = 'u32[144,128]{1,0:T(1,128)}', space=vmem, size = 0x12000, scoped, tag = 'internal scratch']
  #allocation2 [shape = 'f32[2,18,256]{2,1,0:T(8,128)}', space=vmem, size = 0xc000, scoped, tag = 'scratch operand']
  #allocation3 [shape = 'f32[32,256]{1,0:T(8,128)}', space=vmem, size = 0x8000, scoped, tag = 'scratch operand']
  #allocation4 [shape = 'f32[32,256]{1,0:T(8,128)}', space=vmem, size = 0x8000, scoped, tag = 'scratch operand']
  #allocation12 [shape = 's32[]', space=sflag, size = 0x4, offset = 0, fixed_abs, tag = 'sflag constant byte address 0x0 - dummy sync flag']
  #allocation14 [shape = 's32[]', space=sflag, size = 0x4, offset = 0, fixed_abs, tag = 'sflag constant byte address 0x0 - dummy sync flag']
  %s0 = inlined_call_operand.hbm [shape: f32[8,4,16,256], index: 0, kind: input, shape index: {}]
  %s1 = inlined_call_operand.hbm [shape: f32[3,256,256], index: 1, kind: input, shape index: {}]
  %s2 = inlined_call_operand.hbm [shape: f32[3,256,256], index: 2, kind: input, shape index: {}]
  %s3 = inlined_call_operand.vmem [shape: f32[2,256], index: 3, kind: input, shape index: {}]
  %s4 = inlined_call_operand.hbm [shape: f32[8,4,16,256], index: 4, kind: output, shape index: {}]
  %s5 = sld [smem:[#allocation0]]
  $region65: #{tpu_custom_call.1} parent=0
    _
  %s7 = ssub.s32 1, %s5
  %s8 = scalar_select 0, %s7, %s5
  $region1: #{tpu_custom_call.1} parent=0
    #allocation5 [shape = 'u8[262144]{0}', space=vmem, size = 0x40000, scoped, tag = 'input window, operand 0']
    #allocation6 [shape = 's32[2]{0}', space=sflag, size = 0x8, scoped, tag = 'scoped memory for tpu_custom_call.1']
    #allocation7 [shape = 's32[2]{0}', space=sflag, size = 0x8, scoped, tag = 'scoped memory for tpu_custom_call.1']
    #allocation8 [shape = 'u8[786432]{0}', space=vmem, size = 0xc0000, scoped, tag = 'input window, operand 1, single buffered']
    #allocation9 [shape = 's32[1]{0}', space=sflag, size = 0x4, scoped, tag = 'scoped memory for tpu_custom_call.1']
    #allocation10 [shape = 'u8[786432]{0}', space=vmem, size = 0xc0000, scoped, tag = 'input window, operand 2, single buffered']
    #allocation11 [shape = 'u8[262144]{0}', space=vmem, size = 0x40000, scoped, tag = 'output window, operand 0']
    %9 = vsyncpa [#allocation6], 0
    %s10 = scalar_lea.sflag [#allocation6], 1
    %11 = vsyncpa %s10, 0
    %12 = vsyncpa [#allocation9], 0
    %13 = vsyncpa [#allocation7], 0
    %s14 = scalar_lea.sflag [#allocation7], 1
    %15 = vsyncpa %s14, 0
    loop: start=0, step=1, limit=6
    $region2: #{tpu_custom_call.1} parent=1 // loop_pre_header
      _
    $region3: #{tpu_custom_call.1} parent=1 // loop_header
      %s17 = sphi 0, %s21
      %p18 = scmp.ge.s32.totalorder %s17, 6
      %s24 = sphi 0, %s36
      %s25 = sphi 0, %s32
      %s26 = sphi 0, %s24
      %s27 = sphi 0, %s25
      %s28 = sphi 0, %s26
      %s29 = sphi 0, %s27
      %s41 = sphi 0, %s43
      %s44 = sphi 0, %s41
      %s45 = sphi 0, %s44
      %s61 = sphi 0, %s45
      %s65 = sphi 0, %s65
      %s67 = sphi 0, %s65
      %s68 = sphi 0, %s67
      %s82 = sphi 0, %s68
      %s86 = sphi 0, %s86
      %s88 = sphi 0, %s86
      %s89 = sphi 0, %s88
      %s103 = sphi 0, %s89
      %s107 = sphi 0, %s107
      %s109 = sphi 0, %s107
      %s110 = sphi 0, %s109
      %s124 = sphi 0, %s110
      %s132 = sphi 0, %s134
      %s135 = sphi 0, %s132
      %s136 = sphi 0, %s135
      %s152 = sphi 0, %s136
    $region4: #{tpu_custom_call.1} parent=1 // loop_header_branch
      %20 = sbr.rel (%p18) target = $region8
    $region5: #{tpu_custom_call.1} parent=1 // loop_body
      %s22 = ssub.s32 %s17, 1
      %s23 = ssub.s32 %s17, 2
      %s30 = sadd.s32 1, %s25
      %p31 = scmp.ge.s32.totalorder %s30, 2
      %s32 = scalar_select %p31, 0, %s30
      %s33 = sadd.s32 1, %s24
      %s34 = scalar_select %p31, %s33, %s24
      %p35 = scmp.ge.s32.totalorder %s34, 2
      %s36 = scalar_select %p35, 0, %s34
      %s37 = ssub.s32 %s25, %s32
      %s38 = ssub.s32 %s24, %s36
      %s39 = sor.u32 %s37, %s38
      %p40 = scmp.eq.s32.totalorder %s39, 0
      %s42 = sadd.s32 %s41, 1
      %s43 = scalar_select %p40, %s41, %s42
      %p46 = pneg %p40
      %p47 = scmp.eq.s32.totalorder %s17, 3
      %p48 = por %p46, %p47
      %p49 = scmp.ne.s32.totalorder %s41, %s44
      %p50 = scmp.eq.s32.totalorder %s17, 0
      %p51 = por %p49, %p50
      %p52 = scmp.ne.s32.totalorder %s41, %s44
      %p53 = scmp.eq.s32.totalorder %s22, 3
      %p54 = por %p52, %p53
      %p55 = scmp.ne.s32.totalorder %s44, %s45
      %p56 = scmp.eq.s32.totalorder %s22, 0
      %p57 = por %p55, %p56
      %p58 = scmp.ne.s32.totalorder %s44, %s45
      %p59 = scmp.eq.s32.totalorder %s23, 3
      %p60 = por %p58, %p59
      %p62 = scmp.ne.s32.totalorder %s45, %s61
      %p63 = scmp.eq.s32.totalorder %s23, 0
      %p64 = por %p62, %p63
      %s66 = sadd.s32 %s65, 1
      %p69 = scmp.eq.s32.totalorder %s17, 3
      %p70 = scmp.ne.s32.totalorder %s65, %s67
      %p71 = scmp.eq.s32.totalorder %s17, 0
      %p72 = por %p70, %p71
      %p73 = scmp.ne.s32.totalorder %s65, %s67
      %p74 = scmp.eq.s32.totalorder %s22, 3
      %p75 = por %p73, %p74
      %p76 = scmp.ne.s32.totalorder %s67, %s68
      %p77 = scmp.eq.s32.totalorder %s22, 0
      %p78 = por %p76, %p77
      %p79 = scmp.ne.s32.totalorder %s67, %s68
      %p80 = scmp.eq.s32.totalorder %s23, 3
      %p81 = por %p79, %p80
      %p83 = scmp.ne.s32.totalorder %s68, %s82
      %p84 = scmp.eq.s32.totalorder %s23, 0
      %p85 = por %p83, %p84
      %s87 = sadd.s32 %s86, 1
      %p90 = scmp.eq.s32.totalorder %s17, 3
      %p91 = scmp.ne.s32.totalorder %s86, %s88
      %p92 = scmp.eq.s32.totalorder %s17, 0
      %p93 = por %p91, %p92
      %p94 = scmp.ne.s32.totalorder %s86, %s88
      %p95 = scmp.eq.s32.totalorder %s22, 3
      %p96 = por %p94, %p95
      %p97 = scmp.ne.s32.totalorder %s88, %s89
      %p98 = scmp.eq.s32.totalorder %s22, 0
      %p99 = por %p97, %p98
      %p100 = scmp.ne.s32.totalorder %s88, %s89
      %p101 = scmp.eq.s32.totalorder %s23, 3
      %p102 = por %p100, %p101
      %p104 = scmp.ne.s32.totalorder %s89, %s103
      %p105 = scmp.eq.s32.totalorder %s23, 0
      %p106 = por %p104, %p105
      %s108 = sadd.s32 %s107, 1
      %p111 = scmp.eq.s32.totalorder %s17, 3
      %p112 = scmp.ne.s32.totalorder %s107, %s109
      %p113 = scmp.eq.s32.totalorder %s17, 0
      %p114 = por %p112, %p113
      %p115 = scmp.ne.s32.totalorder %s107, %s109
      %p116 = scmp.eq.s32.totalorder %s22, 3
      %p117 = por %p115, %p116
      %p118 = scmp.ne.s32.totalorder %s109, %s110
      %p119 = scmp.eq.s32.totalorder %s22, 0
      %p120 = por %p118, %p119
      %p121 = scmp.ne.s32.totalorder %s109, %s110
      %p122 = scmp.eq.s32.totalorder %s23, 3
      %p123 = por %p121, %p122
      %p125 = scmp.ne.s32.totalorder %s110, %s124
      %p126 = scmp.eq.s32.totalorder %s23, 0
      %p127 = por %p125, %p126
      %s128 = ssub.s32 %s25, %s32
      %s129 = ssub.s32 %s24, %s36
      %s130 = sor.u32 %s128, %s129
      %p131 = scmp.eq.s32.totalorder %s130, 0
      %s133 = sadd.s32 %s132, 1
      %s134 = scalar_select %p131, %s132, %s133
      %p137 = pneg %p131
      %p138 = scmp.eq.s32.totalorder %s17, 3
      %p139 = por %p137, %p138
      %p140 = scmp.ne.s32.totalorder %s132, %s135
      %p141 = scmp.eq.s32.totalorder %s17, 0
      %p142 = por %p140, %p141
      %p143 = scmp.ne.s32.totalorder %s132, %s135
      %p144 = scmp.eq.s32.totalorder %s22, 3
      %p145 = por %p143, %p144
      %p146 = scmp.ne.s32.totalorder %s135, %s136
      %p147 = scmp.eq.s32.totalorder %s22, 0
      %p148 = por %p146, %p147
      %p149 = scmp.ne.s32.totalorder %s135, %s136
      %p150 = scmp.eq.s32.totalorder %s23, 3
      %p151 = por %p149, %p150
      %p153 = scmp.ne.s32.totalorder %s136, %s152
      %p154 = scmp.eq.s32.totalorder %s23, 0
      %p155 = por %p153, %p154
      %p156 = scmp.le.s32.totalorder 1, %s17
      %p157 = scmp.lt.s32.totalorder %s17, 5
      %p158 = pnand %p156, %p157
      %p159 = pneg %p158
      // Predicated region
      $region9: #{tpu_custom_call.1} parent=5 // pred_check
        _
      $region10: #{tpu_custom_call.1} parent=5 // pred_check_branch
        %161 = sbr.rel (%p158) target = $region12
      $region11: #{tpu_custom_call.1} parent=5 // pred_region
        %s162 = ssub.s32 %s17, 1
        // Predicated region
        $region13: #{tpu_custom_call.1} parent=11 // pred_check
          %p163 = pneg %p78
        $region14: #{tpu_custom_call.1} parent=11 // pred_check_branch
          %165 = sbr.rel (%p163) target = $region16
        $region15: #{tpu_custom_call.1} parent=11 // pred_region
          %s167 = ssub.s32 24576, 24576
          %168 = vsyncadd [#allocation9], %s167
          %s169 = sshll.u32 [#allocation8], 4
          %s170 = int_to_ptr.vmem [resolvable:$true] %s169
          %175 = dma.hbm_to_vmem [thread:$0]  %s1, 24576, %s170, [#allocation9], 256, 256, 16
        $region16: #{tpu_custom_call.1} parent=11 // pred_fallthru
          _
        // Predicated region
        $region17: #{tpu_custom_call.1} parent=11 // pred_check
          %p176 = pneg %p99
        $region18: #{tpu_custom_call.1} parent=11 // pred_check_branch
          %178 = sbr.rel (%p176) target = $region20
        $region19: #{tpu_custom_call.1} parent=11 // pred_region
          %s180 = ssub.s32 24576, 24576
          %181 = vsyncadd [#allocation9], %s180
          %s182 = sshll.u32 [#allocation10], 4
          %s183 = int_to_ptr.vmem [resolvable:$true] %s182
          %188 = dma.hbm_to_vmem [thread:$0]  %s2, 24576, %s183, [#allocation9], 256, 256, 16
        $region20: #{tpu_custom_call.1} parent=11 // pred_fallthru
          _
        // Predicated region
        $region21: #{tpu_custom_call.1} parent=11 // pred_check
          %p189 = pneg %p120
        $region22: #{tpu_custom_call.1} parent=11 // pred_check_branch
          %191 = sbr.rel (%p189) target = $region24
        $region23: #{tpu_custom_call.1} parent=11 // pred_region
          _
        $region24: #{tpu_custom_call.1} parent=11 // pred_fallthru
          _
      $region12: #{tpu_custom_call.1} parent=5 // pred_fallthru
        _
      %p192 = scmp.lt.s32.totalorder %s17, 4
      // Predicated region
      $region25: #{tpu_custom_call.1} parent=5 // pred_check
        %p193 = pneg %p192
      $region26: #{tpu_custom_call.1} parent=5 // pred_check_branch
        %195 = sbr.rel (%p193) target = $region28
      $region27: #{tpu_custom_call.1} parent=5 // pred_region
        // Predicated region
        $region29: #{tpu_custom_call.1} parent=27 // pred_check
          %p196 = pneg %p51
        $region30: #{tpu_custom_call.1} parent=27 // pred_check_branch
          %198 = sbr.rel (%p196) target = $region32
        $region31: #{tpu_custom_call.1} parent=27 // pred_region
          #allocation13 [shape = 'u32[6]{0}', space=smem, size = 0x18, scoped, tag = 'DMA stride descriptor']
          %s199 = sand.u32 %s41, 1
          %s200 = scalar_lea.sflag [#allocation6], %s199
          %s201 = sand.u32 %s41, 1
          %s202 = smul.addr %s201, 256
          %s203 = scalar_lea.vmem [#allocation5], %s202
          %s204 = smul.u32 4, %s25
          %s205 = smul.u32 2, %s24
          %s207 = ssub.s32 4096, 4096
          %208 = vsyncadd %s200, %s207
          %s209 = smul.addr %s205, 4
          %s210 = smul.addr %s204, 16
          %s211 = sadd.s32 %s209, %s210
          %s212 = smul.addr %s211, 128
          %s213 = scalar_lea.hbm %s0, %s212
          %s215 = sshll.u32 1, 14
          %s216 = sxor.u32 4294967295, %s215
          %s218 = sld [smem:[#allocation0]]
          %s219 = sadd.s32 2, %s218
          %s221 = sshll.u32 7, 26
          %s222 = sxor.u32 4294967295, %s221
          %s223 = sand.u32 0, %s222
          %s224 = sshll.u32 %s219, 26
          %s225 = sor.u32 %s223, %s224
          %s226 = sshll.u32 %s203, 4
          %s227 = int_to_ptr.vmem [resolvable:$true] %s226
          %233 = sst [smem:[#allocation13]] 2048
          %s234 = scalar_lea.smem [#allocation13], 1
          %235 = sst [smem:[%s234]] 1024
          %s236 = scalar_lea.smem [#allocation13], 2
          %237 = sst [smem:[%s236]] 4
          %s238 = scalar_lea.smem [#allocation13], 3
          %239 = sst [smem:[%s238]] 256
          %s240 = scalar_lea.smem [#allocation13], 4
          %241 = sst [smem:[%s240]] 256
          %s242 = scalar_lea.smem [#allocation13], 5
          %243 = sst [smem:[%s242]] 16
          %245 = dma.general %s213, 4096, %s227, %s200, [#allocation12], [#allocation13], %s225, 0
        $region32: #{tpu_custom_call.1} parent=27 // pred_fallthru
          _
      $region28: #{tpu_custom_call.1} parent=5 // pred_fallthru
        _
      %p246 = scmp.le.s32.totalorder 1, %s17
      %p247 = scmp.lt.s32.totalorder %s17, 5
      %p248 = pnand %p246, %p247
      %p249 = pneg %p248
      // Predicated region
      $region33: #{tpu_custom_call.1} parent=5 // pred_check
        _
      $region34: #{tpu_custom_call.1} parent=5 // pred_check_branch
        %251 = sbr.rel (%p248) target = $region36
      $region35: #{tpu_custom_call.1} parent=5 // pred_region
        %s252 = ssub.s32 %s17, 1
        %s253 = sand.u32 %s44, 1
        %s254 = scalar_lea.sflag [#allocation6], %s253
        %s255 = sand.u32 %s44, 1
        %s256 = smul.addr %s255, 256
        %s257 = scalar_lea.vmem [#allocation5], %s256
        // Predicated region
        $region37: #{tpu_custom_call.1} parent=35 // pred_check
          %p258 = pneg %p57
        $region38: #{tpu_custom_call.1} parent=35 // pred_check_branch
          %260 = sbr.rel (%p258) target = $region40
        $region39: #{tpu_custom_call.1} parent=35 // pred_region
          %261 = dma.done %s254, 4096
        $region40: #{tpu_custom_call.1} parent=35 // pred_fallthru
          _
        // Predicated region
        $region41: #{tpu_custom_call.1} parent=35 // pred_check
          %p262 = pneg %p78
        $region42: #{tpu_custom_call.1} parent=35 // pred_check_branch
          %264 = sbr.rel (%p262) target = $region44
        $region43: #{tpu_custom_call.1} parent=35 // pred_region
          %265 = dma.done [#allocation9], 24576
        $region44: #{tpu_custom_call.1} parent=35 // pred_fallthru
          _
        // Predicated region
        $region45: #{tpu_custom_call.1} parent=35 // pred_check
          %p266 = pneg %p99
        $region46: #{tpu_custom_call.1} parent=35 // pred_check_branch
          %268 = sbr.rel (%p266) target = $region48
        $region47: #{tpu_custom_call.1} parent=35 // pred_region
          %269 = dma.done [#allocation9], 24576
        $region48: #{tpu_custom_call.1} parent=35 // pred_fallthru
          _
        %s270 = sand.u32 %s44, 1
        %s271 = scalar_lea.sflag [#allocation6], %s270
        %s272 = sand.u32 %s44, 1
        %s273 = smul.addr %s272, 256
        %s274 = scalar_lea.vmem [#allocation5], %s273
        %p275 = pneg %p57
        %p276 = pneg %p54
        %p277 = pneg %p78
        %p278 = pneg %p75
        %p279 = pneg %p99
        %p280 = pneg %p96
        %p281 = pneg %p120
        %p282 = pneg %p117
        %p283 = pneg %p148
        %p284 = pneg %p145
        %s285 = sand.u32 %s135, 1
        %s286 = scalar_lea.sflag [#allocation7], %s285
        %s287 = sand.u32 %s135, 1
        %s288 = smul.addr %s287, 256
        %s289 = scalar_lea.vmem [#allocation11], %s288
        %s290 = smul.u32 4, %s27
        %s291 = smul.u32 2, %s26
        %s292 = smul.u32 4, %s27
        %s293 = smul.u32 2, %s26
        %p294 = scmp.eq.s32.totalorder %s27, 0
        // Predicated region
        $region49: #{tpu_custom_call.1} parent=35 // pred_check
          %p295 = pneg %p294
        $region50: #{tpu_custom_call.1} parent=35 // pred_check_branch
          %297 = sbr.rel (%p295) target = $region52
        $region51: #{tpu_custom_call.1} parent=35 // pred_region
          %298 = vst [vmem:[#allocation2] sm:$0xff] 0.0
          %299 = vst [vmem:[#allocation2 + $0x8] sm:$0xff] 0.0
          %300 = vst [vmem:[#allocation2 + $0x10] sm:$0xff] 0.0
          %301 = vst [vmem:[#allocation2 + $0x18] sm:$0xff] 0.0
          %302 = vst [vmem:[#allocation2 + $0x20] sm:$0x3] 0.0
          %303 = vst [vmem:[#allocation2 + $0x28] sm:$0x3] 0.0
          %304 = vst [vmem:[#allocation2 + $0x30] sm:$0xff] 0.0
          %305 = vst [vmem:[#allocation2 + $0x38] sm:$0xff] 0.0
          %306 = vst [vmem:[#allocation2 + $0x40] sm:$0xff] 0.0
          %307 = vst [vmem:[#allocation2 + $0x48] sm:$0xff] 0.0
          %308 = vst [vmem:[#allocation2 + $0x50] sm:$0x3] 0.0
          %309 = vst [vmem:[#allocation2 + $0x58] sm:$0x3] 0.0
          %310 = vst [vmem:[#allocation3] sm:$0xff] 0.0
          %311 = vst [vmem:[#allocation3 + $0x8] sm:$0xff] 0.0
          %312 = vst [vmem:[#allocation3 + $0x10] sm:$0xff] 0.0
          %313 = vst [vmem:[#allocation3 + $0x18] sm:$0xff] 0.0
          %314 = vst [vmem:[#allocation3 + $0x20] sm:$0xff] 0.0
          %315 = vst [vmem:[#allocation3 + $0x28] sm:$0xff] 0.0
          %316 = vst [vmem:[#allocation3 + $0x30] sm:$0xff] 0.0
          %317 = vst [vmem:[#allocation3 + $0x38] sm:$0xff] 0.0
          %318 = vst [vmem:[#allocation4] sm:$0xff] 0.0
          %319 = vst [vmem:[#allocation4 + $0x8] sm:$0xff] 0.0
          %320 = vst [vmem:[#allocation4 + $0x10] sm:$0xff] 0.0
          %321 = vst [vmem:[#allocation4 + $0x18] sm:$0xff] 0.0
          %322 = vst [vmem:[#allocation4 + $0x20] sm:$0xff] 0.0
          %323 = vst [vmem:[#allocation4 + $0x28] sm:$0xff] 0.0
          %324 = vst [vmem:[#allocation4 + $0x30] sm:$0xff] 0.0
          %325 = vst [vmem:[#allocation4 + $0x38] sm:$0xff] 0.0
        $region52: #{tpu_custom_call.1} parent=35 // pred_fallthru
          _
        %v326 = vld [vmem:[%s3] ss:$2 sm:$0x3]
        %s327 = scalar_lea.vmem %s3, 1
        %v328 = vld [vmem:[%s327] ss:$2 sm:$0x3]
        %v329 = vld [vmem:[%s257] sm:$0xff]
        %v330 = vld [vmem:[%s257 + $0x8] sm:$0xff]
        %v331 = vld [vmem:[%s257 + $0x10] sm:$0xff]
        %v332 = vld [vmem:[%s257 + $0x18] sm:$0xff]
        %v333 = vld [vmem:[%s257 + $0x20] sm:$0xff]
        %v334 = vld [vmem:[%s257 + $0x28] sm:$0xff]
        %v335 = vld [vmem:[%s257 + $0x30] sm:$0xff]
        %v336 = vld [vmem:[%s257 + $0x38] sm:$0xff]
        %vm345 = vcmask 1040384
        %v346 = vrot.slane %v329, 7
        %v347 = vrot.slane %v330, 7
        %v348 = vrot.slane %v331, 7
        %v349 = vsel %vm345, %v346, %v348
        %v350 = vrot.slane %v332, 7
        %v351 = vsel %vm345, %v347, %v350
        %v352 = vrot.slane %v333, 7
        %v353 = vrot.slane %v334, 7
        %v354 = vrot.slane %v335, 7
        %v355 = vsel %vm345, %v352, %v354
        %v356 = vrot.slane %v336, 7
        %v357 = vsel %vm345, %v353, %v356
        %370 = vst [vmem:[#allocation2] sm:$0xfe] %v346
        %371 = vst [vmem:[#allocation2 + $0x8] sm:$0xfe] %v347
        %372 = vst [vmem:[#allocation2 + $0x10] sm:$0xff] %v349
        %373 = vst [vmem:[#allocation2 + $0x18] sm:$0xff] %v351
        %374 = vst [vmem:[#allocation2 + $0x20] sm:$0x1] %v348
        %375 = vst [vmem:[#allocation2 + $0x28] sm:$0x1] %v350
        %376 = vst [vmem:[#allocation2 + $0x30] sm:$0xfe] %v352
        %377 = vst [vmem:[#allocation2 + $0x38] sm:$0xfe] %v353
        %378 = vst [vmem:[#allocation2 + $0x40] sm:$0xff] %v355
        %379 = vst [vmem:[#allocation2 + $0x48] sm:$0xff] %v357
        %380 = vst [vmem:[#allocation2 + $0x50] sm:$0x1] %v354
        %381 = vst [vmem:[#allocation2 + $0x58] sm:$0x1] %v356
        %v382 = vld [vmem:[#allocation2] sm:$0xff]
        %v383 = vld [vmem:[#allocation2 + $0x8] sm:$0xff]
        %v384 = vld [vmem:[#allocation2 + $0x10] sm:$0xff]
        %v385 = vld [vmem:[#allocation2 + $0x18] sm:$0xff]
        %v386 = vld [vmem:[#allocation2 + $0x30] sm:$0xff]
        %v387 = vld [vmem:[#allocation2 + $0x38] sm:$0xff]
        %v388 = vld [vmem:[#allocation2 + $0x40] sm:$0xff]
        %v389 = vld [vmem:[#allocation2 + $0x48] sm:$0xff]
        %v390 = vld [vmem:[#allocation8] sm:$0xff]
        %v391 = vld [vmem:[#allocation8 + $0x8] sm:$0xff]
        %v392 = vld [vmem:[#allocation8 + $0x10] sm:$0xff]
        %v393 = vld [vmem:[#allocation8 + $0x18] sm:$0xff]
        %v394 = vld [vmem:[#allocation8 + $0x20] sm:$0xff]
        %v395 = vld [vmem:[#allocation8 + $0x28] sm:$0xff]
        %v396 = vld [vmem:[#allocation8 + $0x30] sm:$0xff]
        %v397 = vld [vmem:[#allocation8 + $0x38] sm:$0xff]
        %v398 = vld [vmem:[#allocation8 + $0x40] sm:$0xff]
        %v399 = vld [vmem:[#allocation8 + $0x48] sm:$0xff]
        %v400 = vld [vmem:[#allocation8 + $0x50] sm:$0xff]
        %v401 = vld [vmem:[#allocation8 + $0x58] sm:$0xff]
        %v402 = vld [vmem:[#allocation8 + $0x60] sm:$0xff]
        %v403 = vld [vmem:[#allocation8 + $0x68] sm:$0xff]
        %v404 = vld [vmem:[#allocation8 + $0x70] sm:$0xff]
        %v405 = vld [vmem:[#allocation8 + $0x78] sm:$0xff]
        %v406 = vld [vmem:[#allocation8 + $0x80] sm:$0xff]
        %v407 = vld [vmem:[#allocation8 + $0x88] sm:$0xff]
        %v408 = vld [vmem:[#allocation8 + $0x90] sm:$0xff]
        %v409 = vld [vmem:[#allocation8 + $0x98] sm:$0xff]
        %v410 = vld [vmem:[#allocation8 + $0xa0] sm:$0xff]
        %v411 = vld [vmem:[#allocation8 + $0xa8] sm:$0xff]
        %v412 = vld [vmem:[#allocation8 + $0xb0] sm:$0xff]
        %v413 = vld [vmem:[#allocation8 + $0xb8] sm:$0xff]
        %v414 = vld [vmem:[#allocation8 + $0xc0] sm:$0xff]
        %v415 = vld [vmem:[#allocation8 + $0xc8] sm:$0xff]
        %v416 = vld [vmem:[#allocation8 + $0xd0] sm:$0xff]
        %v417 = vld [vmem:[#allocation8 + $0xd8] sm:$0xff]
        %v418 = vld [vmem:[#allocation8 + $0xe0] sm:$0xff]
        %v419 = vld [vmem:[#allocation8 + $0xe8] sm:$0xff]
        %v420 = vld [vmem:[#allocation8 + $0xf0] sm:$0xff]
        %v421 = vld [vmem:[#allocation8 + $0xf8] sm:$0xff]
        %v422 = vld [vmem:[#allocation8 + $0x100] sm:$0xff]
        %v423 = vld [vmem:[#allocation8 + $0x108] sm:$0xff]
        %v424 = vld [vmem:[#allocation8 + $0x110] sm:$0xff]
        %v425 = vld [vmem:[#allocation8 + $0x118] sm:$0xff]
        %v426 = vld [vmem:[#allocation8 + $0x120] sm:$0xff]
        %v427 = vld [vmem:[#allocation8 + $0x128] sm:$0xff]
        %v428 = vld [vmem:[#allocation8 + $0x130] sm:$0xff]
        %v429 = vld [vmem:[#allocation8 + $0x138] sm:$0xff]
        %v430 = vld [vmem:[#allocation8 + $0x140] sm:$0xff]
        %v431 = vld [vmem:[#allocation8 + $0x148] sm:$0xff]
        %v432 = vld [vmem:[#allocation8 + $0x150] sm:$0xff]
        %v433 = vld [vmem:[#allocation8 + $0x158] sm:$0xff]
        %v434 = vld [vmem:[#allocation8 + $0x160] sm:$0xff]
        %v435 = vld [vmem:[#allocation8 + $0x168] sm:$0xff]
        %v436 = vld [vmem:[#allocation8 + $0x170] sm:$0xff]
        %v437 = vld [vmem:[#allocation8 + $0x178] sm:$0xff]
        %v438 = vld [vmem:[#allocation8 + $0x180] sm:$0xff]
        %v439 = vld [vmem:[#allocation8 + $0x188] sm:$0xff]
        %v440 = vld [vmem:[#allocation8 + $0x190] sm:$0xff]
        %v441 = vld [vmem:[#allocation8 + $0x198] sm:$0xff]
        %v442 = vld [vmem:[#allocation8 + $0x1a0] sm:$0xff]
        %v443 = vld [vmem:[#allocation8 + $0x1a8] sm:$0xff]
        %v444 = vld [vmem:[#allocation8 + $0x1b0] sm:$0xff]
        %v445 = vld [vmem:[#allocation8 + $0x1b8] sm:$0xff]
        %v446 = vld [vmem:[#allocation8 + $0x1c0] sm:$0xff]
        %v447 = vld [vmem:[#allocation8 + $0x1c8] sm:$0xff]
        %v448 = vld [vmem:[#allocation8 + $0x1d0] sm:$0xff]
        %v449 = vld [vmem:[#allocation8 + $0x1d8] sm:$0xff]
        %v450 = vld [vmem:[#allocation8 + $0x1e0] sm:$0xff]
        %v451 = vld [vmem:[#allocation8 + $0x1e8] sm:$0xff]
        %v452 = vld [vmem:[#allocation8 + $0x1f0] sm:$0xff]
        %v453 = vld [vmem:[#allocation8 + $0x1f8] sm:$0xff]
        %v454 = vld [vmem:[#allocation2] sm:$0xfe]
        %v455 = vld [vmem:[#allocation2 + $0x8] sm:$0xfe]
        %v456 = vld [vmem:[#allocation2 + $0x20] sm:$0x1]
        %v457 = vld [vmem:[#allocation2 + $0x28] sm:$0x1]
        %v458 = vld [vmem:[#allocation2 + $0x30] sm:$0xfe]
        %v459 = vld [vmem:[#allocation2 + $0x38] sm:$0xfe]
        %v460 = vld [vmem:[#allocation2 + $0x50] sm:$0x1]
        %v461 = vld [vmem:[#allocation2 + $0x58] sm:$0x1]
        %vm474 = vcmask 1046528
        %v475 = vrot.slane %v454, 1
        %v476 = vrot.slane %v384, 1
        %v477 = vsel %vm474, %v475, %v476
        %v478 = vrot.slane %v455, 1
        %v479 = vrot.slane %v385, 1
        %v480 = vsel %vm474, %v478, %v479
        %v481 = vrot.slane %v456, 1
        %v482 = vsel %vm474, %v476, %v481
        %v483 = vrot.slane %v457, 1
        %v484 = vsel %vm474, %v479, %v483
        %v485 = vrot.slane %v458, 1
        %v486 = vrot.slane %v388, 1
        %v487 = vsel %vm474, %v485, %v486
        %v488 = vrot.slane %v459, 1
        %v489 = vrot.slane %v389, 1
        %v490 = vsel %vm474, %v488, %v489
        %v491 = vrot.slane %v460, 1
        %v492 = vsel %vm474, %v486, %v491
        %v493 = vrot.slane %v461, 1
        %v494 = vsel %vm474, %v489, %v493
        %s503 = scalar_lea.vmem [#allocation8], 512
        %v504 = vld [vmem:[%s503] sm:$0xff]
        %v505 = vld [vmem:[%s503 + $0x8] sm:$0xff]
        %v506 = vld [vmem:[%s503 + $0x10] sm:$0xff]
        %v507 = vld [vmem:[%s503 + $0x18] sm:$0xff]
        %v508 = vld [vmem:[%s503 + $0x20] sm:$0xff]
        %v509 = vld [vmem:[%s503 + $0x28] sm:$0xff]
        %v510 = vld [vmem:[%s503 + $0x30] sm:$0xff]
        %v511 = vld [vmem:[%s503 + $0x38] sm:$0xff]
        %v512 = vld [vmem:[%s503 + $0x40] sm:$0xff]
        %v513 = vld [vmem:[%s503 + $0x48] sm:$0xff]
        %v514 = vld [vmem:[%s503 + $0x50] sm:$0xff]
        %v515 = vld [vmem:[%s503 + $0x58] sm:$0xff]
        %v516 = vld [vmem:[%s503 + $0x60] sm:$0xff]
        %v517 = vld [vmem:[%s503 + $0x68] sm:$0xff]
        %v518 = vld [vmem:[%s503 + $0x70] sm:$0xff]
        %v519 = vld [vmem:[%s503 + $0x78] sm:$0xff]
        %v520 = vld [vmem:[%s503 + $0x80] sm:$0xff]
        %v521 = vld [vmem:[%s503 + $0x88] sm:$0xff]
        %v522 = vld [vmem:[%s503 + $0x90] sm:$0xff]
        %v523 = vld [vmem:[%s503 + $0x98] sm:$0xff]
        %v524 = vld [vmem:[%s503 + $0xa0] sm:$0xff]
        %v525 = vld [vmem:[%s503 + $0xa8] sm:$0xff]
        %v526 = vld [vmem:[%s503 + $0xb0] sm:$0xff]
        %v527 = vld [vmem:[%s503 + $0xb8] sm:$0xff]
        %v528 = vld [vmem:[%s503 + $0xc0] sm:$0xff]
        %v529 = vld [vmem:[%s503 + $0xc8] sm:$0xff]
        %v530 = vld [vmem:[%s503 + $0xd0] sm:$0xff]
        %v531 = vld [vmem:[%s503 + $0xd8] sm:$0xff]
        %v532 = vld [vmem:[%s503 + $0xe0] sm:$0xff]
        %v533 = vld [vmem:[%s503 + $0xe8] sm:$0xff]
        %v534 = vld [vmem:[%s503 + $0xf0] sm:$0xff]
        %v535 = vld [vmem:[%s503 + $0xf8] sm:$0xff]
        %v536 = vld [vmem:[%s503 + $0x100] sm:$0xff]
        %v537 = vld [vmem:[%s503 + $0x108] sm:$0xff]
        %v538 = vld [vmem:[%s503 + $0x110] sm:$0xff]
        %v539 = vld [vmem:[%s503 + $0x118] sm:$0xff]
        %v540 = vld [vmem:[%s503 + $0x120] sm:$0xff]
        %v541 = vld [vmem:[%s503 + $0x128] sm:$0xff]
        %v542 = vld [vmem:[%s503 + $0x130] sm:$0xff]
        %v543 = vld [vmem:[%s503 + $0x138] sm:$0xff]
        %v544 = vld [vmem:[%s503 + $0x140] sm:$0xff]
        %v545 = vld [vmem:[%s503 + $0x148] sm:$0xff]
        %v546 = vld [vmem:[%s503 + $0x150] sm:$0xff]
        %v547 = vld [vmem:[%s503 + $0x158] sm:$0xff]
        %v548 = vld [vmem:[%s503 + $0x160] sm:$0xff]
        %v549 = vld [vmem:[%s503 + $0x168] sm:$0xff]
        %v550 = vld [vmem:[%s503 + $0x170] sm:$0xff]
        %v551 = vld [vmem:[%s503 + $0x178] sm:$0xff]
        %v552 = vld [vmem:[%s503 + $0x180] sm:$0xff]
        %v553 = vld [vmem:[%s503 + $0x188] sm:$0xff]
        %v554 = vld [vmem:[%s503 + $0x190] sm:$0xff]
        %v555 = vld [vmem:[%s503 + $0x198] sm:$0xff]
        %v556 = vld [vmem:[%s503 + $0x1a0] sm:$0xff]
        %v557 = vld [vmem:[%s503 + $0x1a8] sm:$0xff]
        %v558 = vld [vmem:[%s503 + $0x1b0] sm:$0xff]
        %v559 = vld [vmem:[%s503 + $0x1b8] sm:$0xff]
        %v560 = vld [vmem:[%s503 + $0x1c0] sm:$0xff]
        %v561 = vld [vmem:[%s503 + $0x1c8] sm:$0xff]
        %v562 = vld [vmem:[%s503 + $0x1d0] sm:$0xff]
        %v563 = vld [vmem:[%s503 + $0x1d8] sm:$0xff]
        %v564 = vld [vmem:[%s503 + $0x1e0] sm:$0xff]
        %v565 = vld [vmem:[%s503 + $0x1e8] sm:$0xff]
        %v566 = vld [vmem:[%s503 + $0x1f0] sm:$0xff]
        %v567 = vld [vmem:[%s503 + $0x1f8] sm:$0xff]
        %568 = vmatprep.subr.mxu0 %v505
        %569 = vmatpush1.msra.mxu0 %v504
        %570 = vmatprep.subr.mxu0 %v507
        %571 = vmatpush1.msra.mxu0 %v506
        %572 = vmatprep.subr.mxu0 %v509
        %573 = vmatpush1.msra.mxu0 %v508
        %574 = vmatprep.subr.mxu0 %v511
        %575 = vmatpush1.msra.mxu0 %v510
        %576 = vmatprep.subr.mxu0 %v513
        %577 = vmatpush1.msra.mxu0 %v512
        %578 = vmatprep.subr.mxu0 %v515
        %579 = vmatpush1.msra.mxu0 %v514
        %580 = vmatprep.subr.mxu0 %v517
        %581 = vmatpush1.msra.mxu0 %v516
        %582 = vmatprep.subr.mxu0 %v519
        %583 = vmatpush1.msra.mxu0 %v518
        %584 = vmatprep.subr.mxu0 %v521
        %585 = vmatpush1.msra.mxu0 %v520
        %586 = vmatprep.subr.mxu0 %v523
        %587 = vmatpush1.msra.mxu0 %v522
        %588 = vmatprep.subr.mxu0 %v525
        %589 = vmatpush1.msra.mxu0 %v524
        %590 = vmatprep.subr.mxu0 %v527
        %591 = vmatpush1.msra.mxu0 %v526
        %592 = vmatprep.subr.mxu0 %v529
        %593 = vmatpush1.msra.mxu0 %v528
        %594 = vmatprep.subr.mxu0 %v531
        %595 = vmatpush1.msra.mxu0 %v530
        %596 = vmatprep.subr.mxu0 %v533
        %597 = vmatpush1.msra.mxu0 %v532
        %598 = vmatprep.subr.mxu0 %v535
        %599 = vmatpush1.msra.mxu0 %v534
        %600 = vmatprep.subr.mxu0 %v537
        %601 = vmatpush1.msra.mxu0 %v536
        %602 = vmatprep.subr.mxu0 %v539
        %603 = vmatpush1.msra.mxu0 %v538
        %604 = vmatprep.subr.mxu0 %v541
        %605 = vmatpush1.msra.mxu0 %v540
        %606 = vmatprep.subr.mxu0 %v543
        %607 = vmatpush1.msra.mxu0 %v542
        %608 = vmatprep.subr.mxu0 %v545
        %609 = vmatpush1.msra.mxu0 %v544
        %610 = vmatprep.subr.mxu0 %v547
        %611 = vmatpush1.msra.mxu0 %v546
        %612 = vmatprep.subr.mxu0 %v549
        %613 = vmatpush1.msra.mxu0 %v548
        %614 = vmatprep.subr.mxu0 %v551
        %615 = vmatpush1.msra.mxu0 %v550
        %616 = vmatprep.subr.mxu0 %v553
        %617 = vmatpush1.msra.mxu0 %v552
        %618 = vmatprep.subr.mxu0 %v555
        %619 = vmatpush1.msra.mxu0 %v554
        %620 = vmatprep.subr.mxu0 %v557
        %621 = vmatpush1.msra.mxu0 %v556
        %622 = vmatprep.subr.mxu0 %v559
        %623 = vmatpush1.msra.mxu0 %v558
        %624 = vmatprep.subr.mxu0 %v561
        %625 = vmatpush1.msra.mxu0 %v560
        %626 = vmatprep.subr.mxu0 %v563
        %627 = vmatpush1.msra.mxu0 %v562
        %628 = vmatprep.subr.mxu0 %v565
        %629 = vmatpush1.msra.mxu0 %v564
        %630 = vmatprep.subr.mxu0 %v567
        %631 = vmatpush1.msra.mxu0 %v566
        %632 = vmatprep.mubr.f32.mxu0 %v480
        %633 = vmatmul.mubr.f32.gmra.mrb[0].mxu0 %v477
        %v634 = vpop.f32.mrb[0].mxu0
        %v635 = vadd.f32 0.0, %v634
        %v636 = vpop.f32.mrb[0].mxu0
        %v637 = vadd.f32 0.0, %v636
        %638 = vmatprep.mubr.f32.mxu0 %v484
        %639 = vmatmul.mubr.f32.gmra.mrb[0].mxu0 %v482
        %v640 = vpop.f32.mrb[0].mxu0
        %v641 = vadd.f32 0.0, %v640
        %v642 = vpop.f32.mrb[0].mxu0
        %v643 = vadd.f32 0.0, %v642
        %644 = vmatprep.mubr.f32.mxu0 %v490
        %645 = vmatmul.mubr.f32.gmra.mrb[0].mxu0 %v487
        %v646 = vpop.f32.mrb[0].mxu0
        %v647 = vadd.f32 0.0, %v646
        %v648 = vpop.f32.mrb[0].mxu0
        %v649 = vadd.f32 0.0, %v648
        %650 = vmatprep.mubr.f32.mxu0 %v494
        %651 = vmatmul.mubr.f32.gmra.mrb[0].mxu0 %v492
        %v652 = vpop.f32.mrb[0].mxu0
        %v653 = vadd.f32 0.0, %v652
        %v654 = vpop.f32.mrb[0].mxu0
        %v655 = vadd.f32 0.0, %v654
        %656 = vdwg.mxu0
        %657 = vmatprep.subr.mxu0 %v391
        %658 = vmatpush1.msra.mxu0 %v390
        %659 = vmatprep.subr.mxu0 %v393
        %660 = vmatpush1.msra.mxu0 %v392
        %661 = vmatprep.subr.mxu0 %v395
        %662 = vmatpush1.msra.mxu0 %v394
        %663 = vmatprep.subr.mxu0 %v397
        %664 = vmatpush1.msra.mxu0 %v396
        %665 = vmatprep.subr.mxu0 %v399
        %666 = vmatpush1.msra.mxu0 %v398
        %667 = vmatprep.subr.mxu0 %v401
        %668 = vmatpush1.msra.mxu0 %v400
        %669 = vmatprep.subr.mxu0 %v403
        %670 = vmatpush1.msra.mxu0 %v402
        %671 = vmatprep.subr.mxu0 %v405
        %672 = vmatpush1.msra.mxu0 %v404
        %673 = vmatprep.subr.mxu0 %v407
        %674 = vmatpush1.msra.mxu0 %v406
        %675 = vmatprep.subr.mxu0 %v409
        %676 = vmatpush1.msra.mxu0 %v408
        %677 = vmatprep.subr.mxu0 %v411
        %678 = vmatpush1.msra.mxu0 %v410
        %679 = vmatprep.subr.mxu0 %v413
        %680 = vmatpush1.msra.mxu0 %v412
        %681 = vmatprep.subr.mxu0 %v415
        %682 = vmatpush1.msra.mxu0 %v414
        %683 = vmatprep.subr.mxu0 %v417
        %684 = vmatpush1.msra.mxu0 %v416
        %685 = vmatprep.subr.mxu0 %v419
        %686 = vmatpush1.msra.mxu0 %v418
        %687 = vmatprep.subr.mxu0 %v421
        %688 = vmatpush1.msra.mxu0 %v420
        %689 = vmatprep.subr.mxu0 %v423
        %690 = vmatpush1.msra.mxu0 %v422
        %691 = vmatprep.subr.mxu0 %v425
        %692 = vmatpush1.msra.mxu0 %v424
        %693 = vmatprep.subr.mxu0 %v427
        %694 = vmatpush1.msra.mxu0 %v426
        %695 = vmatprep.subr.mxu0 %v429
        %696 = vmatpush1.msra.mxu0 %v428
        %697 = vmatprep.subr.mxu0 %v431
        %698 = vmatpush1.msra.mxu0 %v430
        %699 = vmatprep.subr.mxu0 %v433
        %700 = vmatpush1.msra.mxu0 %v432
        %701 = vmatprep.subr.mxu0 %v435
        %702 = vmatpush1.msra.mxu0 %v434
        %703 = vmatprep.subr.mxu0 %v437
        %704 = vmatpush1.msra.mxu0 %v436
        %705 = vmatprep.subr.mxu0 %v439
        %706 = vmatpush1.msra.mxu0 %v438
        %707 = vmatprep.subr.mxu0 %v441
        %708 = vmatpush1.msra.mxu0 %v440
        %709 = vmatprep.subr.mxu0 %v443
        %710 = vmatpush1.msra.mxu0 %v442
        %711 = vmatprep.subr.mxu0 %v445
        %712 = vmatpush1.msra.mxu0 %v444
        %713 = vmatprep.subr.mxu0 %v447
        %714 = vmatpush1.msra.mxu0 %v446
        %715 = vmatprep.subr.mxu0 %v449
        %716 = vmatpush1.msra.mxu0 %v448
        %717 = vmatprep.subr.mxu0 %v451
        %718 = vmatpush1.msra.mxu0 %v450
        %719 = vmatprep.subr.mxu0 %v453
        %720 = vmatpush1.msra.mxu0 %v452
        %721 = vmatprep.mubr.f32.mxu0 %v383
        %722 = vmatmul.mubr.f32.gmra.mrb[0].mxu0 %v382
        %v723 = vpop.f32.mrb[0].mxu0
        %v724 = vadd.f32 %v635, %v723
        %v725 = vpop.f32.mrb[0].mxu0
        %v726 = vadd.f32 %v637, %v725
        %727 = vmatprep.mubr.f32.mxu0 %v385
        %728 = vmatmul.mubr.f32.gmra.mrb[0].mxu0 %v384
        %v729 = vpop.f32.mrb[0].mxu0
        %v730 = vadd.f32 %v641, %v729
        %v731 = vpop.f32.mrb[0].mxu0
        %v732 = vadd.f32 %v643, %v731
        %733 = vmatprep.mubr.f32.mxu0 %v387
        %734 = vmatmul.mubr.f32.gmra.mrb[0].mxu0 %v386
        %v735 = vpop.f32.mrb[0].mxu0
        %v736 = vadd.f32 %v647, %v735
        %v737 = vpop.f32.mrb[0].mxu0
        %v738 = vadd.f32 %v649, %v737
        %739 = vmatprep.mubr.f32.mxu0 %v389
        %740 = vmatmul.mubr.f32.gmra.mrb[0].mxu0 %v388
        %v741 = vpop.f32.mrb[0].mxu0
        %v742 = vadd.f32 %v653, %v741
        %v743 = vpop.f32.mrb[0].mxu0
        %v744 = vadd.f32 %v655, %v743
        %745 = vdwg.mxu0
        %v746 = vld [vmem:[#allocation2] sm:$0xfc]
        %v747 = vld [vmem:[#allocation2 + $0x8] sm:$0xfc]
        %v748 = vld [vmem:[#allocation2 + $0x20] sm:$0x3]
        %v749 = vld [vmem:[#allocation2 + $0x28] sm:$0x3]
        %v750 = vld [vmem:[#allocation2 + $0x30] sm:$0xfc]
        %v751 = vld [vmem:[#allocation2 + $0x38] sm:$0xfc]
        %v752 = vld [vmem:[#allocation2 + $0x50] sm:$0x3]
        %v753 = vld [vmem:[#allocation2 + $0x58] sm:$0x3]
        %vm762 = vcmask 1045504
        %v763 = vrot.slane %v746, 2
        %v764 = vrot.slane %v384, 2
        %v765 = vsel %vm762, %v763, %v764
        %v766 = vrot.slane %v747, 2
        %v767 = vrot.slane %v385, 2
        %v768 = vsel %vm762, %v766, %v767
        %v769 = vrot.slane %v748, 2
        %v770 = vsel %vm762, %v764, %v769
        %v771 = vrot.slane %v749, 2
        %v772 = vsel %vm762, %v767, %v771
        %v773 = vrot.slane %v750, 2
        %v774 = vrot.slane %v388, 2
        %v775 = vsel %vm762, %v773, %v774
        %v776 = vrot.slane %v751, 2
        %v777 = vrot.slane %v389, 2
        %v778 = vsel %vm762, %v776, %v777
        %v779 = vrot.slane %v752, 2
        %v780 = vsel %vm762, %v774, %v779
        %v781 = vrot.slane %v753, 2
        %v782 = vsel %vm762, %v777, %v781
        %s791 = scalar_lea.vmem [#allocation8], 1024
        %v792 = vld [vmem:[%s791] sm:$0xff]
        %v793 = vld [vmem:[%s791 + $0x8] sm:$0xff]
        %v794 = vld [vmem:[%s791 + $0x10] sm:$0xff]
        %v795 = vld [vmem:[%s791 + $0x18] sm:$0xff]
        %v796 = vld [vmem:[%s791 + $0x20] sm:$0xff]
        %v797 = vld [vmem:[%s791 + $0x28] sm:$0xff]
        %v798 = vld [vmem:[%s791 + $0x30] sm:$0xff]
        %v799 = vld [vmem:[%s791 + $0x38] sm:$0xff]
        %v800 = vld [vmem:[%s791 + $0x40] sm:$0xff]
        %v801 = vld [vmem:[%s791 + $0x48] sm:$0xff]
        %v802 = vld [vmem:[%s791 + $0x50] sm:$0xff]
        %v803 = vld [vmem:[%s791 + $0x58] sm:$0xff]
        %v804 = vld [vmem:[%s791 + $0x60] sm:$0xff]
        %v805 = vld [vmem:[%s791 + $0x68] sm:$0xff]
        %v806 = vld [vmem:[%s791 + $0x70] sm:$0xff]
        %v807 = vld [vmem:[%s791 + $0x78] sm:$0xff]
        %v808 = vld [vmem:[%s791 + $0x80] sm:$0xff]
        %v809 = vld [vmem:[%s791 + $0x88] sm:$0xff]
        %v810 = vld [vmem:[%s791 + $0x90] sm:$0xff]
        %v811 = vld [vmem:[%s791 + $0x98] sm:$0xff]
        %v812 = vld [vmem:[%s791 + $0xa0] sm:$0xff]
        %v813 = vld [vmem:[%s791 + $0xa8] sm:$0xff]
        %v814 = vld [vmem:[%s791 + $0xb0] sm:$0xff]
        %v815 = vld [vmem:[%s791 + $0xb8] sm:$0xff]
        %v816 = vld [vmem:[%s791 + $0xc0] sm:$0xff]
        %v817 = vld [vmem:[%s791 + $0xc8] sm:$0xff]
        %v818 = vld [vmem:[%s791 + $0xd0] sm:$0xff]
        %v819 = vld [vmem:[%s791 + $0xd8] sm:$0xff]
        %v820 = vld [vmem:[%s791 + $0xe0] sm:$0xff]
        %v821 = vld [vmem:[%s791 + $0xe8] sm:$0xff]
        %v822 = vld [vmem:[%s791 + $0xf0] sm:$0xff]
        %v823 = vld [vmem:[%s791 + $0xf8] sm:$0xff]
        %v824 = vld [vmem:[%s791 + $0x100] sm:$0xff]
        %v825 = vld [vmem:[%s791 + $0x108] sm:$0xff]
        %v826 = vld [vmem:[%s791 + $0x110] sm:$0xff]
        %v827 = vld [vmem:[%s791 + $0x118] sm:$0xff]
        %v828 = vld [vmem:[%s791 + $0x120] sm:$0xff]
        %v829 = vld [vmem:[%s791 + $0x128] sm:$0xff]
        %v830 = vld [vmem:[%s791 + $0x130] sm:$0xff]
        %v831 = vld [vmem:[%s791 + $0x138] sm:$0xff]
        %v832 = vld [vmem:[%s791 + $0x140] sm:$0xff]
        %v833 = vld [vmem:[%s791 + $0x148] sm:$0xff]
        %v834 = vld [vmem:[%s791 + $0x150] sm:$0xff]
        %v835 = vld [vmem:[%s791 + $0x158] sm:$0xff]
        %v836 = vld [vmem:[%s791 + $0x160] sm:$0xff]
        %v837 = vld [vmem:[%s791 + $0x168] sm:$0xff]
        %v838 = vld [vmem:[%s791 + $0x170] sm:$0xff]
        %v839 = vld [vmem:[%s791 + $0x178] sm:$0xff]
        %v840 = vld [vmem:[%s791 + $0x180] sm:$0xff]
        %v841 = vld [vmem:[%s791 + $0x188] sm:$0xff]
        %v842 = vld [vmem:[%s791 + $0x190] sm:$0xff]
        %v843 = vld [vmem:[%s791 + $0x198] sm:$0xff]
        %v844 = vld [vmem:[%s791 + $0x1a0] sm:$0xff]
        %v845 = vld [vmem:[%s791 + $0x1a8] sm:$0xff]
        %v846 = vld [vmem:[%s791 + $0x1b0] sm:$0xff]
        %v847 = vld [vmem:[%s791 + $0x1b8] sm:$0xff]
        %v848 = vld [vmem:[%s791 + $0x1c0] sm:$0xff]
        %v849 = vld [vmem:[%s791 + $0x1c8] sm:$0xff]
        %v850 = vld [vmem:[%s791 + $0x1d0] sm:$0xff]
        %v851 = vld [vmem:[%s791 + $0x1d8] sm:$0xff]
        %v852 = vld [vmem:[%s791 + $0x1e0] sm:$0xff]
        %v853 = vld [vmem:[%s791 + $0x1e8] sm:$0xff]
        %v854 = vld [vmem:[%s791 + $0x1f0] sm:$0xff]
        %v855 = vld [vmem:[%s791 + $0x1f8] sm:$0xff]
        %856 = vmatprep.subr.mxu0 %v793
        %857 = vmatpush1.msra.mxu0 %v792
        %858 = vmatprep.subr.mxu0 %v795
        %859 = vmatpush1.msra.mxu0 %v794
        %860 = vmatprep.subr.mxu0 %v797
        %861 = vmatpush1.msra.mxu0 %v796
        %862 = vmatprep.subr.mxu0 %v799
        %863 = vmatpush1.msra.mxu0 %v798
        %864 = vmatprep.subr.mxu0 %v801
        %865 = vmatpush1.msra.mxu0 %v800
        %866 = vmatprep.subr.mxu0 %v803
        %867 = vmatpush1.msra.mxu0 %v802
        %868 = vmatprep.subr.mxu0 %v805
        %869 = vmatpush1.msra.mxu0 %v804
        %870 = vmatprep.subr.mxu0 %v807
        %871 = vmatpush1.msra.mxu0 %v806
        %872 = vmatprep.subr.mxu0 %v809
        %873 = vmatpush1.msra.mxu0 %v808
        %874 = vmatprep.subr.mxu0 %v811
        %875 = vmatpush1.msra.mxu0 %v810
        %876 = vmatprep.subr.mxu0 %v813
        %877 = vmatpush1.msra.mxu0 %v812
        %878 = vmatprep.subr.mxu0 %v815
        %879 = vmatpush1.msra.mxu0 %v814
        %880 = vmatprep.subr.mxu0 %v817
        %881 = vmatpush1.msra.mxu0 %v816
        %882 = vmatprep.subr.mxu0 %v819
        %883 = vmatpush1.msra.mxu0 %v818
        %884 = vmatprep.subr.mxu0 %v821
        %885 = vmatpush1.msra.mxu0 %v820
        %886 = vmatprep.subr.mxu0 %v823
        %887 = vmatpush1.msra.mxu0 %v822
        %888 = vmatprep.subr.mxu0 %v825
        %889 = vmatpush1.msra.mxu0 %v824
        %890 = vmatprep.subr.mxu0 %v827
        %891 = vmatpush1.msra.mxu0 %v826
        %892 = vmatprep.subr.mxu0 %v829
        %893 = vmatpush1.msra.mxu0 %v828
        %894 = vmatprep.subr.mxu0 %v831
        %895 = vmatpush1.msra.mxu0 %v830
        %896 = vmatprep.subr.mxu0 %v833
        %897 = vmatpush1.msra.mxu0 %v832
        %898 = vmatprep.subr.mxu0 %v835
        %899 = vmatpush1.msra.mxu0 %v834
        %900 = vmatprep.subr.mxu0 %v837
        %901 = vmatpush1.msra.mxu0 %v836
        %902 = vmatprep.subr.mxu0 %v839
        %903 = vmatpush1.msra.mxu0 %v838
        %904 = vmatprep.subr.mxu0 %v841
        %905 = vmatpush1.msra.mxu0 %v840
        %906 = vmatprep.subr.mxu0 %v843
        %907 = vmatpush1.msra.mxu0 %v842
        %908 = vmatprep.subr.mxu0 %v845
        %909 = vmatpush1.msra.mxu0 %v844
        %910 = vmatprep.subr.mxu0 %v847
        %911 = vmatpush1.msra.mxu0 %v846
        %912 = vmatprep.subr.mxu0 %v849
        %913 = vmatpush1.msra.mxu0 %v848
        %914 = vmatprep.subr.mxu0 %v851
        %915 = vmatpush1.msra.mxu0 %v850
        %916 = vmatprep.subr.mxu0 %v853
        %917 = vmatpush1.msra.mxu0 %v852
        %918 = vmatprep.subr.mxu0 %v855
        %919 = vmatpush1.msra.mxu0 %v854
        %920 = vmatprep.mubr.f32.mxu0 %v768
        %921 = vmatmul.mubr.f32.gmra.mrb[0].mxu0 %v765
        %v922 = vpop.f32.mrb[0].mxu0
        %v923 = vadd.f32 0.0, %v922
        %v924 = vpop.f32.mrb[0].mxu0
        %v925 = vadd.f32 0.0, %v924
        %926 = vmatprep.mubr.f32.mxu0 %v772
        %927 = vmatmul.mubr.f32.gmra.mrb[0].mxu0 %v770
        %v928 = vpop.f32.mrb[0].mxu0
        %v929 = vadd.f32 0.0, %v928
        %v930 = vpop.f32.mrb[0].mxu0
        %v931 = vadd.f32 0.0, %v930
        %932 = vmatprep.mubr.f32.mxu0 %v778
        %933 = vmatmul.mubr.f32.gmra.mrb[0].mxu0 %v775
        %v934 = vpop.f32.mrb[0].mxu0
        %v935 = vadd.f32 0.0, %v934
        %v936 = vpop.f32.mrb[0].mxu0
        %v937 = vadd.f32 0.0, %v936
        %938 = vmatprep.mubr.f32.mxu0 %v782
        %939 = vmatmul.mubr.f32.gmra.mrb[0].mxu0 %v780
        %v940 = vpop.f32.mrb[0].mxu0
        %v941 = vadd.f32 0.0, %v940
        %v942 = vpop.f32.mrb[0].mxu0
        %v943 = vadd.f32 0.0, %v942
        %944 = vdwg.mxu0
        %v945 = vadd.f32 %v724, %v923
        %v946 = vadd.f32 %v726, %v925
        %v947 = vadd.f32 %v730, %v929
        %v948 = vadd.f32 %v732, %v931
        %v949 = vadd.f32 %v736, %v935
        %v950 = vadd.f32 %v738, %v937
        %v951 = vadd.f32 %v742, %v941
        %v952 = vadd.f32 %v744, %v943
        %v954 = vlaneseq
        %v955 = vshrl.u32 %v954, 7
        %v956 = vsub.s32 0, %v955
        %v957 = vrot.slane %v326, %v956
        %v958 = vlaneseq
        %v959 = vshrl.u32 %v958, 7
        %v960 = vsub.s32 1, %v959
        %v961 = vrot.slane %v326, %v960
        %v964 = vadd.f32 %v945, %v957
        %v965 = vadd.f32 %v946, %v961
        %v966 = vadd.f32 %v947, %v957
        %v967 = vadd.f32 %v948, %v961
        %v968 = vadd.f32 %v949, %v957
        %v969 = vadd.f32 %v950, %v961
        %v970 = vadd.f32 %v951, %v957
        %v971 = vadd.f32 %v952, %v961
        %v972 = vld [vmem:[#allocation3] sm:$0xff]
        %v973 = vld [vmem:[#allocation3 + $0x8] sm:$0xff]
        %v974 = vld [vmem:[#allocation3 + $0x10] sm:$0xff]
        %v975 = vld [vmem:[#allocation3 + $0x18] sm:$0xff]
        %v976 = vld [vmem:[#allocation3 + $0x20] sm:$0xff]
        %v977 = vld [vmem:[#allocation3 + $0x28] sm:$0xff]
        %v978 = vld [vmem:[#allocation3 + $0x30] sm:$0xff]
        %v979 = vld [vmem:[#allocation3 + $0x38] sm:$0xff]
        %v980 = vsub.f32 %v964, %v972
        %v981 = vsub.f32 %v965, %v973
        %v982 = vsub.f32 %v966, %v974
        %v983 = vsub.f32 %v967, %v975
        %v984 = vsub.f32 %v968, %v976
        %v985 = vsub.f32 %v969, %v977
        %v986 = vsub.f32 %v970, %v978
        %v987 = vsub.f32 %v971, %v979
        %v988 = vmul.f32 %v980, 0.5
        %v989 = vmul.f32 %v981, 0.5
        %v990 = vmul.f32 %v982, 0.5
        %v991 = vmul.f32 %v983, 0.5
        %v992 = vmul.f32 %v984, 0.5
        %v993 = vmul.f32 %v985, 0.5
        %v994 = vmul.f32 %v986, 0.5
        %v995 = vmul.f32 %v987, 0.5
        %v996 = vadd.f32 %v972, %v988
        %v997 = vadd.f32 %v973, %v989
        %v998 = vadd.f32 %v974, %v990
        %v999 = vadd.f32 %v975, %v991
        %v1000 = vadd.f32 %v976, %v992
        %v1001 = vadd.f32 %v977, %v993
        %v1002 = vadd.f32 %v978, %v994
        %v1003 = vadd.f32 %v979, %v995
        %vm1004 = vcmp.ge.f32.partialorder %v996, 1.0
        %vm1005 = vcmp.ge.f32.partialorder %v997, 1.0
        %vm1006 = vcmp.ge.f32.partialorder %v998, 1.0
        %vm1007 = vcmp.ge.f32.partialorder %v999, 1.0
        %vm1008 = vcmp.ge.f32.partialorder %v1000, 1.0
        %vm1009 = vcmp.ge.f32.partialorder %v1001, 1.0
        %vm1010 = vcmp.ge.f32.partialorder %v1002, 1.0
        %vm1011 = vcmp.ge.f32.partialorder %v1003, 1.0
        %v1012 = vsel %vm1004, 1, 0
        %v1013 = vsel %vm1005, 1, 0
        %v1014 = vsel %vm1006, 1, 0
        %v1015 = vsel %vm1007, 1, 0
        %v1016 = vsel %vm1008, 1, 0
        %v1017 = vsel %vm1009, 1, 0
        %v1018 = vsel %vm1010, 1, 0
        %v1019 = vsel %vm1011, 1, 0
        %v1020 = vcvt.s32.f32 %v1012
        %v1021 = vcvt.s32.f32 %v1013
        %v1022 = vcvt.s32.f32 %v1014
        %v1023 = vcvt.s32.f32 %v1015
        %v1024 = vcvt.s32.f32 %v1016
        %v1025 = vcvt.s32.f32 %v1017
        %v1026 = vcvt.s32.f32 %v1018
        %v1027 = vcvt.s32.f32 %v1019
        %v1028 = vsub.f32 1.0, %v1020
        %v1029 = vsub.f32 1.0, %v1021
        %v1030 = vsub.f32 1.0, %v1022
        %v1031 = vsub.f32 1.0, %v1023
        %v1032 = vsub.f32 1.0, %v1024
        %v1033 = vsub.f32 1.0, %v1025
        %v1034 = vsub.f32 1.0, %v1026
        %v1035 = vsub.f32 1.0, %v1027
        %v1036 = vmul.f32 %v996, %v1028
        %v1037 = vmul.f32 %v997, %v1029
        %v1038 = vmul.f32 %v998, %v1030
        %v1039 = vmul.f32 %v999, %v1031
        %v1040 = vmul.f32 %v1000, %v1032
        %v1041 = vmul.f32 %v1001, %v1033
        %v1042 = vmul.f32 %v1002, %v1034
        %v1043 = vmul.f32 %v1003, %v1035
        %1044 = vst [vmem:[#allocation3] sm:$0xff] %v1036
        %1045 = vst [vmem:[#allocation3 + $0x8] sm:$0xff] %v1037
        %1046 = vst [vmem:[#allocation3 + $0x10] sm:$0xff] %v1038
        %1047 = vst [vmem:[#allocation3 + $0x18] sm:$0xff] %v1039
        %1048 = vst [vmem:[#allocation3 + $0x20] sm:$0xff] %v1040
        %1049 = vst [vmem:[#allocation3 + $0x28] sm:$0xff] %v1041
        %1050 = vst [vmem:[#allocation3 + $0x30] sm:$0xff] %v1042
        %1051 = vst [vmem:[#allocation3 + $0x38] sm:$0xff] %v1043
        %v1060 = vrot.slane %v1020, 7
        %v1061 = vrot.slane %v1021, 7
        %v1062 = vrot.slane %v1022, 7
        %v1063 = vsel %vm345, %v1060, %v1062
        %v1064 = vrot.slane %v1023, 7
        %v1065 = vsel %vm345, %v1061, %v1064
        %v1066 = vrot.slane %v1024, 7
        %v1067 = vrot.slane %v1025, 7
        %v1068 = vrot.slane %v1026, 7
        %v1069 = vsel %vm345, %v1066, %v1068
        %v1070 = vrot.slane %v1027, 7
        %v1071 = vsel %vm345, %v1067, %v1070
        %1084 = vst [vmem:[#allocation2] sm:$0xfe] %v1060
        %1085 = vst [vmem:[#allocation2 + $0x8] sm:$0xfe] %v1061
        %1086 = vst [vmem:[#allocation2 + $0x10] sm:$0xff] %v1063
        %1087 = vst [vmem:[#allocation2 + $0x18] sm:$0xff] %v1065
        %1088 = vst [vmem:[#allocation2 + $0x20] sm:$0x1] %v1062
        %1089 = vst [vmem:[#allocation2 + $0x28] sm:$0x1] %v1064
        %1090 = vst [vmem:[#allocation2 + $0x30] sm:$0xfe] %v1066
        %1091 = vst [vmem:[#allocation2 + $0x38] sm:$0xfe] %v1067
        %1092 = vst [vmem:[#allocation2 + $0x40] sm:$0xff] %v1069
        %1093 = vst [vmem:[#allocation2 + $0x48] sm:$0xff] %v1071
        %1094 = vst [vmem:[#allocation2 + $0x50] sm:$0x1] %v1068
        %1095 = vst [vmem:[#allocation2 + $0x58] sm:$0x1] %v1070
        %v1096 = vld [vmem:[#allocation2] sm:$0xff]
        %v1097 = vld [vmem:[#allocation2 + $0x8] sm:$0xff]
        %v1098 = vld [vmem:[#allocation2 + $0x10] sm:$0xff]
        %v1099 = vld [vmem:[#allocation2 + $0x18] sm:$0xff]
        %v1100 = vld [vmem:[#allocation2 + $0x30] sm:$0xff]
        %v1101 = vld [vmem:[#allocation2 + $0x38] sm:$0xff]
        %v1102 = vld [vmem:[#allocation2 + $0x40] sm:$0xff]
        %v1103 = vld [vmem:[#allocation2 + $0x48] sm:$0xff]
        %v1104 = vld [vmem:[#allocation10] sm:$0xff]
        %v1105 = vld [vmem:[#allocation10 + $0x8] sm:$0xff]
        %v1106 = vld [vmem:[#allocation10 + $0x10] sm:$0xff]
        %v1107 = vld [vmem:[#allocation10 + $0x18] sm:$0xff]
        %v1108 = vld [vmem:[#allocation10 + $0x20] sm:$0xff]
        %v1109 = vld [vmem:[#allocation10 + $0x28] sm:$0xff]
        %v1110 = vld [vmem:[#allocation10 + $0x30] sm:$0xff]
        %v1111 = vld [vmem:[#allocation10 + $0x38] sm:$0xff]
        %v1112 = vld [vmem:[#allocation10 + $0x40] sm:$0xff]
        %v1113 = vld [vmem:[#allocation10 + $0x48] sm:$0xff]
        %v1114 = vld [vmem:[#allocation10 + $0x50] sm:$0xff]
        %v1115 = vld [vmem:[#allocation10 + $0x58] sm:$0xff]
        %v1116 = vld [vmem:[#allocation10 + $0x60] sm:$0xff]
        %v1117 = vld [vmem:[#allocation10 + $0x68] sm:$0xff]
        %v1118 = vld [vmem:[#allocation10 + $0x70] sm:$0xff]
        %v1119 = vld [vmem:[#allocation10 + $0x78] sm:$0xff]
        %v1120 = vld [vmem:[#allocation10 + $0x80] sm:$0xff]
        %v1121 = vld [vmem:[#allocation10 + $0x88] sm:$0xff]
        %v1122 = vld [vmem:[#allocation10 + $0x90] sm:$0xff]
        %v1123 = vld [vmem:[#allocation10 + $0x98] sm:$0xff]
        %v1124 = vld [vmem:[#allocation10 + $0xa0] sm:$0xff]
        %v1125 = vld [vmem:[#allocation10 + $0xa8] sm:$0xff]
        %v1126 = vld [vmem:[#allocation10 + $0xb0] sm:$0xff]
        %v1127 = vld [vmem:[#allocation10 + $0xb8] sm:$0xff]
        %v1128 = vld [vmem:[#allocation10 + $0xc0] sm:$0xff]
        %v1129 = vld [vmem:[#allocation10 + $0xc8] sm:$0xff]
        %v1130 = vld [vmem:[#allocation10 + $0xd0] sm:$0xff]
        %v1131 = vld [vmem:[#allocation10 + $0xd8] sm:$0xff]
        %v1132 = vld [vmem:[#allocation10 + $0xe0] sm:$0xff]
        %v1133 = vld [vmem:[#allocation10 + $0xe8] sm:$0xff]
        %v1134 = vld [vmem:[#allocation10 + $0xf0] sm:$0xff]
        %v1135 = vld [vmem:[#allocation10 + $0xf8] sm:$0xff]
        %v1136 = vld [vmem:[#allocation10 + $0x100] sm:$0xff]
        %v1137 = vld [vmem:[#allocation10 + $0x108] sm:$0xff]
        %v1138 = vld [vmem:[#allocation10 + $0x110] sm:$0xff]
        %v1139 = vld [vmem:[#allocation10 + $0x118] sm:$0xff]
        %v1140 = vld [vmem:[#allocation10 + $0x120] sm:$0xff]
        %v1141 = vld [vmem:[#allocation10 + $0x128] sm:$0xff]
        %v1142 = vld [vmem:[#allocation10 + $0x130] sm:$0xff]
        %v1143 = vld [vmem:[#allocation10 + $0x138] sm:$0xff]
        %v1144 = vld [vmem:[#allocation10 + $0x140] sm:$0xff]
        %v1145 = vld [vmem:[#allocation10 + $0x148] sm:$0xff]
        %v1146 = vld [vmem:[#allocation10 + $0x150] sm:$0xff]
        %v1147 = vld [vmem:[#allocation10 + $0x158] sm:$0xff]
        %v1148 = vld [vmem:[#allocation10 + $0x160] sm:$0xff]
        %v1149 = vld [vmem:[#allocation10 + $0x168] sm:$0xff]
        %v1150 = vld [vmem:[#allocation10 + $0x170] sm:$0xff]
        %v1151 = vld [vmem:[#allocation10 + $0x178] sm:$0xff]
        %v1152 = vld [vmem:[#allocation10 + $0x180] sm:$0xff]
        %v1153 = vld [vmem:[#allocation10 + $0x188] sm:$0xff]
        %v1154 = vld [vmem:[#allocation10 + $0x190] sm:$0xff]
        %v1155 = vld [vmem:[#allocation10 + $0x198] sm:$0xff]
        %v1156 = vld [vmem:[#allocation10 + $0x1a0] sm:$0xff]
        %v1157 = vld [vmem:[#allocation10 + $0x1a8] sm:$0xff]
        %v1158 = vld [vmem:[#allocation10 + $0x1b0] sm:$0xff]
        %v1159 = vld [vmem:[#allocation10 + $0x1b8] sm:$0xff]
        %v1160 = vld [vmem:[#allocation10 + $0x1c0] sm:$0xff]
        %v1161 = vld [vmem:[#allocation10 + $0x1c8] sm:$0xff]
        %v1162 = vld [vmem:[#allocation10 + $0x1d0] sm:$0xff]
        %v1163 = vld [vmem:[#allocation10 + $0x1d8] sm:$0xff]
        %v1164 = vld [vmem:[#allocation10 + $0x1e0] sm:$0xff]
        %v1165 = vld [vmem:[#allocation10 + $0x1e8] sm:$0xff]
        %v1166 = vld [vmem:[#allocation10 + $0x1f0] sm:$0xff]
        %v1167 = vld [vmem:[#allocation10 + $0x1f8] sm:$0xff]
        %v1168 = vld [vmem:[#allocation2] sm:$0xfe]
        %v1169 = vld [vmem:[#allocation2 + $0x8] sm:$0xfe]
        %v1170 = vld [vmem:[#allocation2 + $0x20] sm:$0x1]
        %v1171 = vld [vmem:[#allocation2 + $0x28] sm:$0x1]
        %v1172 = vld [vmem:[#allocation2 + $0x30] sm:$0xfe]
        %v1173 = vld [vmem:[#allocation2 + $0x38] sm:$0xfe]
        %v1174 = vld [vmem:[#allocation2 + $0x50] sm:$0x1]
        %v1175 = vld [vmem:[#allocation2 + $0x58] sm:$0x1]
        %v1188 = vrot.slane %v1168, 1
        %v1189 = vrot.slane %v1098, 1
        %v1190 = vsel %vm474, %v1188, %v1189
        %v1191 = vrot.slane %v1169, 1
        %v1192 = vrot.slane %v1099, 1
        %v1193 = vsel %vm474, %v1191, %v1192
        %v1194 = vrot.slane %v1170, 1
        %v1195 = vsel %vm474, %v1189, %v1194
        %v1196 = vrot.slane %v1171, 1
        %v1197 = vsel %vm474, %v1192, %v1196
        %v1198 = vrot.slane %v1172, 1
        %v1199 = vrot.slane %v1102, 1
        %v1200 = vsel %vm474, %v1198, %v1199
        %v1201 = vrot.slane %v1173, 1
        %v1202 = vrot.slane %v1103, 1
        %v1203 = vsel %vm474, %v1201, %v1202
        %v1204 = vrot.slane %v1174, 1
        %v1205 = vsel %vm474, %v1199, %v1204
        %v1206 = vrot.slane %v1175, 1
        %v1207 = vsel %vm474, %v1202, %v1206
        %s1216 = scalar_lea.vmem [#allocation10], 512
        %v1217 = vld [vmem:[%s1216] sm:$0xff]
        %v1218 = vld [vmem:[%s1216 + $0x8] sm:$0xff]
        %v1219 = vld [vmem:[%s1216 + $0x10] sm:$0xff]
        %v1220 = vld [vmem:[%s1216 + $0x18] sm:$0xff]
        %v1221 = vld [vmem:[%s1216 + $0x20] sm:$0xff]
        %v1222 = vld [vmem:[%s1216 + $0x28] sm:$0xff]
        %v1223 = vld [vmem:[%s1216 + $0x30] sm:$0xff]
        %v1224 = vld [vmem:[%s1216 + $0x38] sm:$0xff]
        %v1225 = vld [vmem:[%s1216 + $0x40] sm:$0xff]
        %v1226 = vld [vmem:[%s1216 + $0x48] sm:$0xff]
        %v1227 = vld [vmem:[%s1216 + $0x50] sm:$0xff]
        %v1228 = vld [vmem:[%s1216 + $0x58] sm:$0xff]
        %v1229 = vld [vmem:[%s1216 + $0x60] sm:$0xff]
        %v1230 = vld [vmem:[%s1216 + $0x68] sm:$0xff]
        %v1231 = vld [vmem:[%s1216 + $0x70] sm:$0xff]
        %v1232 = vld [vmem:[%s1216 + $0x78] sm:$0xff]
        %v1233 = vld [vmem:[%s1216 + $0x80] sm:$0xff]
        %v1234 = vld [vmem:[%s1216 + $0x88] sm:$0xff]
        %v1235 = vld [vmem:[%s1216 + $0x90] sm:$0xff]
        %v1236 = vld [vmem:[%s1216 + $0x98] sm:$0xff]
        %v1237 = vld [vmem:[%s1216 + $0xa0] sm:$0xff]
        %v1238 = vld [vmem:[%s1216 + $0xa8] sm:$0xff]
        %v1239 = vld [vmem:[%s1216 + $0xb0] sm:$0xff]
        %v1240 = vld [vmem:[%s1216 + $0xb8] sm:$0xff]
        %v1241 = vld [vmem:[%s1216 + $0xc0] sm:$0xff]
        %v1242 = vld [vmem:[%s1216 + $0xc8] sm:$0xff]
        %v1243 = vld [vmem:[%s1216 + $0xd0] sm:$0xff]
        %v1244 = vld [vmem:[%s1216 + $0xd8] sm:$0xff]
        %v1245 = vld [vmem:[%s1216 + $0xe0] sm:$0xff]
        %v1246 = vld [vmem:[%s1216 + $0xe8] sm:$0xff]
        %v1247 = vld [vmem:[%s1216 + $0xf0] sm:$0xff]
        %v1248 = vld [vmem:[%s1216 + $0xf8] sm:$0xff]
        %v1249 = vld [vmem:[%s1216 + $0x100] sm:$0xff]
        %v1250 = vld [vmem:[%s1216 + $0x108] sm:$0xff]
        %v1251 = vld [vmem:[%s1216 + $0x110] sm:$0xff]
        %v1252 = vld [vmem:[%s1216 + $0x118] sm:$0xff]
        %v1253 = vld [vmem:[%s1216 + $0x120] sm:$0xff]
        %v1254 = vld [vmem:[%s1216 + $0x128] sm:$0xff]
        %v1255 = vld [vmem:[%s1216 + $0x130] sm:$0xff]
        %v1256 = vld [vmem:[%s1216 + $0x138] sm:$0xff]
        %v1257 = vld [vmem:[%s1216 + $0x140] sm:$0xff]
        %v1258 = vld [vmem:[%s1216 + $0x148] sm:$0xff]
        %v1259 = vld [vmem:[%s1216 + $0x150] sm:$0xff]
        %v1260 = vld [vmem:[%s1216 + $0x158] sm:$0xff]
        %v1261 = vld [vmem:[%s1216 + $0x160] sm:$0xff]
        %v1262 = vld [vmem:[%s1216 + $0x168] sm:$0xff]
        %v1263 = vld [vmem:[%s1216 + $0x170] sm:$0xff]
        %v1264 = vld [vmem:[%s1216 + $0x178] sm:$0xff]
        %v1265 = vld [vmem:[%s1216 + $0x180] sm:$0xff]
        %v1266 = vld [vmem:[%s1216 + $0x188] sm:$0xff]
        %v1267 = vld [vmem:[%s1216 + $0x190] sm:$0xff]
        %v1268 = vld [vmem:[%s1216 + $0x198] sm:$0xff]
        %v1269 = vld [vmem:[%s1216 + $0x1a0] sm:$0xff]
        %v1270 = vld [vmem:[%s1216 + $0x1a8] sm:$0xff]
        %v1271 = vld [vmem:[%s1216 + $0x1b0] sm:$0xff]
        %v1272 = vld [vmem:[%s1216 + $0x1b8] sm:$0xff]
        %v1273 = vld [vmem:[%s1216 + $0x1c0] sm:$0xff]
        %v1274 = vld [vmem:[%s1216 + $0x1c8] sm:$0xff]
        %v1275 = vld [vmem:[%s1216 + $0x1d0] sm:$0xff]
        %v1276 = vld [vmem:[%s1216 + $0x1d8] sm:$0xff]
        %v1277 = vld [vmem:[%s1216 + $0x1e0] sm:$0xff]
        %v1278 = vld [vmem:[%s1216 + $0x1e8] sm:$0xff]
        %v1279 = vld [vmem:[%s1216 + $0x1f0] sm:$0xff]
        %v1280 = vld [vmem:[%s1216 + $0x1f8] sm:$0xff]
        %1281 = vmatprep.subr.mxu0 %v1218
        %1282 = vmatpush1.msra.mxu0 %v1217
        %1283 = vmatprep.subr.mxu0 %v1220
        %1284 = vmatpush1.msra.mxu0 %v1219
        %1285 = vmatprep.subr.mxu0 %v1222
        %1286 = vmatpush1.msra.mxu0 %v1221
        %1287 = vmatprep.subr.mxu0 %v1224
        %1288 = vmatpush1.msra.mxu0 %v1223
        %1289 = vmatprep.subr.mxu0 %v1226
        %1290 = vmatpush1.msra.mxu0 %v1225
        %1291 = vmatprep.subr.mxu0 %v1228
        %1292 = vmatpush1.msra.mxu0 %v1227
        %1293 = vmatprep.subr.mxu0 %v1230
        %1294 = vmatpush1.msra.mxu0 %v1229
        %1295 = vmatprep.subr.mxu0 %v1232
        %1296 = vmatpush1.msra.mxu0 %v1231
        %1297 = vmatprep.subr.mxu0 %v1234
        %1298 = vmatpush1.msra.mxu0 %v1233
        %1299 = vmatprep.subr.mxu0 %v1236
        %1300 = vmatpush1.msra.mxu0 %v1235
        %1301 = vmatprep.subr.mxu0 %v1238
        %1302 = vmatpush1.msra.mxu0 %v1237
        %1303 = vmatprep.subr.mxu0 %v1240
        %1304 = vmatpush1.msra.mxu0 %v1239
        %1305 = vmatprep.subr.mxu0 %v1242
        %1306 = vmatpush1.msra.mxu0 %v1241
        %1307 = vmatprep.subr.mxu0 %v1244
        %1308 = vmatpush1.msra.mxu0 %v1243
        %1309 = vmatprep.subr.mxu0 %v1246
        %1310 = vmatpush1.msra.mxu0 %v1245
        %1311 = vmatprep.subr.mxu0 %v1248
        %1312 = vmatpush1.msra.mxu0 %v1247
        %1313 = vmatprep.subr.mxu0 %v1250
        %1314 = vmatpush1.msra.mxu0 %v1249
        %1315 = vmatprep.subr.mxu0 %v1252
        %1316 = vmatpush1.msra.mxu0 %v1251
        %1317 = vmatprep.subr.mxu0 %v1254
        %1318 = vmatpush1.msra.mxu0 %v1253
        %1319 = vmatprep.subr.mxu0 %v1256
        %1320 = vmatpush1.msra.mxu0 %v1255
        %1321 = vmatprep.subr.mxu0 %v1258
        %1322 = vmatpush1.msra.mxu0 %v1257
        %1323 = vmatprep.subr.mxu0 %v1260
        %1324 = vmatpush1.msra.mxu0 %v1259
        %1325 = vmatprep.subr.mxu0 %v1262
        %1326 = vmatpush1.msra.mxu0 %v1261
        %1327 = vmatprep.subr.mxu0 %v1264
        %1328 = vmatpush1.msra.mxu0 %v1263
        %1329 = vmatprep.subr.mxu0 %v1266
        %1330 = vmatpush1.msra.mxu0 %v1265
        %1331 = vmatprep.subr.mxu0 %v1268
        %1332 = vmatpush1.msra.mxu0 %v1267
        %1333 = vmatprep.subr.mxu0 %v1270
        %1334 = vmatpush1.msra.mxu0 %v1269
        %1335 = vmatprep.subr.mxu0 %v1272
        %1336 = vmatpush1.msra.mxu0 %v1271
        %1337 = vmatprep.subr.mxu0 %v1274
        %1338 = vmatpush1.msra.mxu0 %v1273
        %1339 = vmatprep.subr.mxu0 %v1276
        %1340 = vmatpush1.msra.mxu0 %v1275
        %1341 = vmatprep.subr.mxu0 %v1278
        %1342 = vmatpush1.msra.mxu0 %v1277
        %1343 = vmatprep.subr.mxu0 %v1280
        %1344 = vmatpush1.msra.mxu0 %v1279
        %1345 = vmatprep.mubr.f32.mxu0 %v1193
        %1346 = vmatmul.mubr.f32.gmra.mrb[0].mxu0 %v1190
        %v1347 = vpop.f32.mrb[0].mxu0
        %v1348 = vadd.f32 0.0, %v1347
        %v1349 = vpop.f32.mrb[0].mxu0
        %v1350 = vadd.f32 0.0, %v1349
        %1351 = vmatprep.mubr.f32.mxu0 %v1197
        %1352 = vmatmul.mubr.f32.gmra.mrb[0].mxu0 %v1195
        %v1353 = vpop.f32.mrb[0].mxu0
        %v1354 = vadd.f32 0.0, %v1353
        %v1355 = vpop.f32.mrb[0].mxu0
        %v1356 = vadd.f32 0.0, %v1355
        %1357 = vmatprep.mubr.f32.mxu0 %v1203
        %1358 = vmatmul.mubr.f32.gmra.mrb[0].mxu0 %v1200
        %v1359 = vpop.f32.mrb[0].mxu0
        %v1360 = vadd.f32 0.0, %v1359
        %v1361 = vpop.f32.mrb[0].mxu0
        %v1362 = vadd.f32 0.0, %v1361
        %1363 = vmatprep.mubr.f32.mxu0 %v1207
        %1364 = vmatmul.mubr.f32.gmra.mrb[0].mxu0 %v1205
        %v1365 = vpop.f32.mrb[0].mxu0
        %v1366 = vadd.f32 0.0, %v1365
        %v1367 = vpop.f32.mrb[0].mxu0
        %v1368 = vadd.f32 0.0, %v1367
        %1369 = vdwg.mxu0
        %1370 = vmatprep.subr.mxu0 %v1105
        %1371 = vmatpush1.msra.mxu0 %v1104
        %1372 = vmatprep.subr.mxu0 %v1107
        %1373 = vmatpush1.msra.mxu0 %v1106
        %1374 = vmatprep.subr.mxu0 %v1109
        %1375 = vmatpush1.msra.mxu0 %v1108
        %1376 = vmatprep.subr.mxu0 %v1111
        %1377 = vmatpush1.msra.mxu0 %v1110
        %1378 = vmatprep.subr.mxu0 %v1113
        %1379 = vmatpush1.msra.mxu0 %v1112
        %1380 = vmatprep.subr.mxu0 %v1115
        %1381 = vmatpush1.msra.mxu0 %v1114
        %1382 = vmatprep.subr.mxu0 %v1117
        %1383 = vmatpush1.msra.mxu0 %v1116
        %1384 = vmatprep.subr.mxu0 %v1119
        %1385 = vmatpush1.msra.mxu0 %v1118
        %1386 = vmatprep.subr.mxu0 %v1121
        %1387 = vmatpush1.msra.mxu0 %v1120
        %1388 = vmatprep.subr.mxu0 %v1123
        %1389 = vmatpush1.msra.mxu0 %v1122
        %1390 = vmatprep.subr.mxu0 %v1125
        %1391 = vmatpush1.msra.mxu0 %v1124
        %1392 = vmatprep.subr.mxu0 %v1127
        %1393 = vmatpush1.msra.mxu0 %v1126
        %1394 = vmatprep.subr.mxu0 %v1129
        %1395 = vmatpush1.msra.mxu0 %v1128
        %1396 = vmatprep.subr.mxu0 %v1131
        %1397 = vmatpush1.msra.mxu0 %v1130
        %1398 = vmatprep.subr.mxu0 %v1133
        %1399 = vmatpush1.msra.mxu0 %v1132
        %1400 = vmatprep.subr.mxu0 %v1135
        %1401 = vmatpush1.msra.mxu0 %v1134
        %1402 = vmatprep.subr.mxu0 %v1137
        %1403 = vmatpush1.msra.mxu0 %v1136
        %1404 = vmatprep.subr.mxu0 %v1139
        %1405 = vmatpush1.msra.mxu0 %v1138
        %1406 = vmatprep.subr.mxu0 %v1141
        %1407 = vmatpush1.msra.mxu0 %v1140
        %1408 = vmatprep.subr.mxu0 %v1143
        %1409 = vmatpush1.msra.mxu0 %v1142
        %1410 = vmatprep.subr.mxu0 %v1145
        %1411 = vmatpush1.msra.mxu0 %v1144
        %1412 = vmatprep.subr.mxu0 %v1147
        %1413 = vmatpush1.msra.mxu0 %v1146
        %1414 = vmatprep.subr.mxu0 %v1149
        %1415 = vmatpush1.msra.mxu0 %v1148
        %1416 = vmatprep.subr.mxu0 %v1151
        %1417 = vmatpush1.msra.mxu0 %v1150
        %1418 = vmatprep.subr.mxu0 %v1153
        %1419 = vmatpush1.msra.mxu0 %v1152
        %1420 = vmatprep.subr.mxu0 %v1155
        %1421 = vmatpush1.msra.mxu0 %v1154
        %1422 = vmatprep.subr.mxu0 %v1157
        %1423 = vmatpush1.msra.mxu0 %v1156
        %1424 = vmatprep.subr.mxu0 %v1159
        %1425 = vmatpush1.msra.mxu0 %v1158
        %1426 = vmatprep.subr.mxu0 %v1161
        %1427 = vmatpush1.msra.mxu0 %v1160
        %1428 = vmatprep.subr.mxu0 %v1163
        %1429 = vmatpush1.msra.mxu0 %v1162
        %1430 = vmatprep.subr.mxu0 %v1165
        %1431 = vmatpush1.msra.mxu0 %v1164
        %1432 = vmatprep.subr.mxu0 %v1167
        %1433 = vmatpush1.msra.mxu0 %v1166
        %1434 = vmatprep.mubr.f32.mxu0 %v1097
        %1435 = vmatmul.mubr.f32.gmra.mrb[0].mxu0 %v1096
        %v1436 = vpop.f32.mrb[0].mxu0
        %v1437 = vadd.f32 %v1348, %v1436
        %v1438 = vpop.f32.mrb[0].mxu0
        %v1439 = vadd.f32 %v1350, %v1438
        %1440 = vmatprep.mubr.f32.mxu0 %v1099
        %1441 = vmatmul.mubr.f32.gmra.mrb[0].mxu0 %v1098
        %v1442 = vpop.f32.mrb[0].mxu0
        %v1443 = vadd.f32 %v1354, %v1442
        %v1444 = vpop.f32.mrb[0].mxu0
        %v1445 = vadd.f32 %v1356, %v1444
        %1446 = vmatprep.mubr.f32.mxu0 %v1101
        %1447 = vmatmul.mubr.f32.gmra.mrb[0].mxu0 %v1100
        %v1448 = vpop.f32.mrb[0].mxu0
        %v1449 = vadd.f32 %v1360, %v1448
        %v1450 = vpop.f32.mrb[0].mxu0
        %v1451 = vadd.f32 %v1362, %v1450
        %1452 = vmatprep.mubr.f32.mxu0 %v1103
        %1453 = vmatmul.mubr.f32.gmra.mrb[0].mxu0 %v1102
        %v1454 = vpop.f32.mrb[0].mxu0
        %v1455 = vadd.f32 %v1366, %v1454
        %v1456 = vpop.f32.mrb[0].mxu0
        %v1457 = vadd.f32 %v1368, %v1456
        %1458 = vdwg.mxu0
        %v1459 = vld [vmem:[#allocation2] sm:$0xfc]
        %v1460 = vld [vmem:[#allocation2 + $0x8] sm:$0xfc]
        %v1461 = vld [vmem:[#allocation2 + $0x20] sm:$0x3]
        %v1462 = vld [vmem:[#allocation2 + $0x28] sm:$0x3]
        %v1463 = vld [vmem:[#allocation2 + $0x30] sm:$0xfc]
        %v1464 = vld [vmem:[#allocation2 + $0x38] sm:$0xfc]
        %v1465 = vld [vmem:[#allocation2 + $0x50] sm:$0x3]
        %v1466 = vld [vmem:[#allocation2 + $0x58] sm:$0x3]
        %v1475 = vrot.slane %v1459, 2
        %v1476 = vrot.slane %v1098, 2
        %v1477 = vsel %vm762, %v1475, %v1476
        %v1478 = vrot.slane %v1460, 2
        %v1479 = vrot.slane %v1099, 2
        %v1480 = vsel %vm762, %v1478, %v1479
        %v1481 = vrot.slane %v1461, 2
        %v1482 = vsel %vm762, %v1476, %v1481
        %v1483 = vrot.slane %v1462, 2
        %v1484 = vsel %vm762, %v1479, %v1483
        %v1485 = vrot.slane %v1463, 2
        %v1486 = vrot.slane %v1102, 2
        %v1487 = vsel %vm762, %v1485, %v1486
        %v1488 = vrot.slane %v1464, 2
        %v1489 = vrot.slane %v1103, 2
        %v1490 = vsel %vm762, %v1488, %v1489
        %v1491 = vrot.slane %v1465, 2
        %v1492 = vsel %vm762, %v1486, %v1491
        %v1493 = vrot.slane %v1466, 2
        %v1494 = vsel %vm762, %v1489, %v1493
        %s1503 = scalar_lea.vmem [#allocation10], 1024
        %v1504 = vld [vmem:[%s1503] sm:$0xff]
        %v1505 = vld [vmem:[%s1503 + $0x8] sm:$0xff]
        %v1506 = vld [vmem:[%s1503 + $0x10] sm:$0xff]
        %v1507 = vld [vmem:[%s1503 + $0x18] sm:$0xff]
        %v1508 = vld [vmem:[%s1503 + $0x20] sm:$0xff]
        %v1509 = vld [vmem:[%s1503 + $0x28] sm:$0xff]
        %v1510 = vld [vmem:[%s1503 + $0x30] sm:$0xff]
        %v1511 = vld [vmem:[%s1503 + $0x38] sm:$0xff]
        %v1512 = vld [vmem:[%s1503 + $0x40] sm:$0xff]
        %v1513 = vld [vmem:[%s1503 + $0x48] sm:$0xff]
        %v1514 = vld [vmem:[%s1503 + $0x50] sm:$0xff]
        %v1515 = vld [vmem:[%s1503 + $0x58] sm:$0xff]
        %v1516 = vld [vmem:[%s1503 + $0x60] sm:$0xff]
        %v1517 = vld [vmem:[%s1503 + $0x68] sm:$0xff]
        %v1518 = vld [vmem:[%s1503 + $0x70] sm:$0xff]
        %v1519 = vld [vmem:[%s1503 + $0x78] sm:$0xff]
        %v1520 = vld [vmem:[%s1503 + $0x80] sm:$0xff]
        %v1521 = vld [vmem:[%s1503 + $0x88] sm:$0xff]
        %v1522 = vld [vmem:[%s1503 + $0x90] sm:$0xff]
        %v1523 = vld [vmem:[%s1503 + $0x98] sm:$0xff]
        %v1524 = vld [vmem:[%s1503 + $0xa0] sm:$0xff]
        %v1525 = vld [vmem:[%s1503 + $0xa8] sm:$0xff]
        %v1526 = vld [vmem:[%s1503 + $0xb0] sm:$0xff]
        %v1527 = vld [vmem:[%s1503 + $0xb8] sm:$0xff]
        %v1528 = vld [vmem:[%s1503 + $0xc0] sm:$0xff]
        %v1529 = vld [vmem:[%s1503 + $0xc8] sm:$0xff]
        %v1530 = vld [vmem:[%s1503 + $0xd0] sm:$0xff]
        %v1531 = vld [vmem:[%s1503 + $0xd8] sm:$0xff]
        %v1532 = vld [vmem:[%s1503 + $0xe0] sm:$0xff]
        %v1533 = vld [vmem:[%s1503 + $0xe8] sm:$0xff]
        %v1534 = vld [vmem:[%s1503 + $0xf0] sm:$0xff]
        %v1535 = vld [vmem:[%s1503 + $0xf8] sm:$0xff]
        %v1536 = vld [vmem:[%s1503 + $0x100] sm:$0xff]
        %v1537 = vld [vmem:[%s1503 + $0x108] sm:$0xff]
        %v1538 = vld [vmem:[%s1503 + $0x110] sm:$0xff]
        %v1539 = vld [vmem:[%s1503 + $0x118] sm:$0xff]
        %v1540 = vld [vmem:[%s1503 + $0x120] sm:$0xff]
        %v1541 = vld [vmem:[%s1503 + $0x128] sm:$0xff]
        %v1542 = vld [vmem:[%s1503 + $0x130] sm:$0xff]
        %v1543 = vld [vmem:[%s1503 + $0x138] sm:$0xff]
        %v1544 = vld [vmem:[%s1503 + $0x140] sm:$0xff]
        %v1545 = vld [vmem:[%s1503 + $0x148] sm:$0xff]
        %v1546 = vld [vmem:[%s1503 + $0x150] sm:$0xff]
        %v1547 = vld [vmem:[%s1503 + $0x158] sm:$0xff]
        %v1548 = vld [vmem:[%s1503 + $0x160] sm:$0xff]
        %v1549 = vld [vmem:[%s1503 + $0x168] sm:$0xff]
        %v1550 = vld [vmem:[%s1503 + $0x170] sm:$0xff]
        %v1551 = vld [vmem:[%s1503 + $0x178] sm:$0xff]
        %v1552 = vld [vmem:[%s1503 + $0x180] sm:$0xff]
        %v1553 = vld [vmem:[%s1503 + $0x188] sm:$0xff]
        %v1554 = vld [vmem:[%s1503 + $0x190] sm:$0xff]
        %v1555 = vld [vmem:[%s1503 + $0x198] sm:$0xff]
        %v1556 = vld [vmem:[%s1503 + $0x1a0] sm:$0xff]
        %v1557 = vld [vmem:[%s1503 + $0x1a8] sm:$0xff]
        %v1558 = vld [vmem:[%s1503 + $0x1b0] sm:$0xff]
        %v1559 = vld [vmem:[%s1503 + $0x1b8] sm:$0xff]
        %v1560 = vld [vmem:[%s1503 + $0x1c0] sm:$0xff]
        %v1561 = vld [vmem:[%s1503 + $0x1c8] sm:$0xff]
        %v1562 = vld [vmem:[%s1503 + $0x1d0] sm:$0xff]
        %v1563 = vld [vmem:[%s1503 + $0x1d8] sm:$0xff]
        %v1564 = vld [vmem:[%s1503 + $0x1e0] sm:$0xff]
        %v1565 = vld [vmem:[%s1503 + $0x1e8] sm:$0xff]
        %v1566 = vld [vmem:[%s1503 + $0x1f0] sm:$0xff]
        %v1567 = vld [vmem:[%s1503 + $0x1f8] sm:$0xff]
        %1568 = vmatprep.subr.mxu0 %v1505
        %1569 = vmatpush1.msra.mxu0 %v1504
        %1570 = vmatprep.subr.mxu0 %v1507
        %1571 = vmatpush1.msra.mxu0 %v1506
        %1572 = vmatprep.subr.mxu0 %v1509
        %1573 = vmatpush1.msra.mxu0 %v1508
        %1574 = vmatprep.subr.mxu0 %v1511
        %1575 = vmatpush1.msra.mxu0 %v1510
        %1576 = vmatprep.subr.mxu0 %v1513
        %1577 = vmatpush1.msra.mxu0 %v1512
        %1578 = vmatprep.subr.mxu0 %v1515
        %1579 = vmatpush1.msra.mxu0 %v1514
        %1580 = vmatprep.subr.mxu0 %v1517
        %1581 = vmatpush1.msra.mxu0 %v1516
        %1582 = vmatprep.subr.mxu0 %v1519
        %1583 = vmatpush1.msra.mxu0 %v1518
        %1584 = vmatprep.subr.mxu0 %v1521
        %1585 = vmatpush1.msra.mxu0 %v1520
        %1586 = vmatprep.subr.mxu0 %v1523
        %1587 = vmatpush1.msra.mxu0 %v1522
        %1588 = vmatprep.subr.mxu0 %v1525
        %1589 = vmatpush1.msra.mxu0 %v1524
        %1590 = vmatprep.subr.mxu0 %v1527
        %1591 = vmatpush1.msra.mxu0 %v1526
        %1592 = vmatprep.subr.mxu0 %v1529
        %1593 = vmatpush1.msra.mxu0 %v1528
        %1594 = vmatprep.subr.mxu0 %v1531
        %1595 = vmatpush1.msra.mxu0 %v1530
        %1596 = vmatprep.subr.mxu0 %v1533
        %1597 = vmatpush1.msra.mxu0 %v1532
        %1598 = vmatprep.subr.mxu0 %v1535
        %1599 = vmatpush1.msra.mxu0 %v1534
        %1600 = vmatprep.subr.mxu0 %v1537
        %1601 = vmatpush1.msra.mxu0 %v1536
        %1602 = vmatprep.subr.mxu0 %v1539
        %1603 = vmatpush1.msra.mxu0 %v1538
        %1604 = vmatprep.subr.mxu0 %v1541
        %1605 = vmatpush1.msra.mxu0 %v1540
        %1606 = vmatprep.subr.mxu0 %v1543
        %1607 = vmatpush1.msra.mxu0 %v1542
        %1608 = vmatprep.subr.mxu0 %v1545
        %1609 = vmatpush1.msra.mxu0 %v1544
        %1610 = vmatprep.subr.mxu0 %v1547
        %1611 = vmatpush1.msra.mxu0 %v1546
        %1612 = vmatprep.subr.mxu0 %v1549
        %1613 = vmatpush1.msra.mxu0 %v1548
        %1614 = vmatprep.subr.mxu0 %v1551
        %1615 = vmatpush1.msra.mxu0 %v1550
        %1616 = vmatprep.subr.mxu0 %v1553
        %1617 = vmatpush1.msra.mxu0 %v1552
        %1618 = vmatprep.subr.mxu0 %v1555
        %1619 = vmatpush1.msra.mxu0 %v1554
        %1620 = vmatprep.subr.mxu0 %v1557
        %1621 = vmatpush1.msra.mxu0 %v1556
        %1622 = vmatprep.subr.mxu0 %v1559
        %1623 = vmatpush1.msra.mxu0 %v1558
        %1624 = vmatprep.subr.mxu0 %v1561
        %1625 = vmatpush1.msra.mxu0 %v1560
        %1626 = vmatprep.subr.mxu0 %v1563
        %1627 = vmatpush1.msra.mxu0 %v1562
        %1628 = vmatprep.subr.mxu0 %v1565
        %1629 = vmatpush1.msra.mxu0 %v1564
        %1630 = vmatprep.subr.mxu0 %v1567
        %1631 = vmatpush1.msra.mxu0 %v1566
        %1632 = vmatprep.mubr.f32.mxu0 %v1480
        %1633 = vmatmul.mubr.f32.gmra.mrb[0].mxu0 %v1477
        %v1634 = vpop.f32.mrb[0].mxu0
        %v1635 = vadd.f32 0.0, %v1634
        %v1636 = vpop.f32.mrb[0].mxu0
        %v1637 = vadd.f32 0.0, %v1636
        %1638 = vmatprep.mubr.f32.mxu0 %v1484
        %1639 = vmatmul.mubr.f32.gmra.mrb[0].mxu0 %v1482
        %v1640 = vpop.f32.mrb[0].mxu0
        %v1641 = vadd.f32 0.0, %v1640
        %v1642 = vpop.f32.mrb[0].mxu0
        %v1643 = vadd.f32 0.0, %v1642
        %1644 = vmatprep.mubr.f32.mxu0 %v1490
        %1645 = vmatmul.mubr.f32.gmra.mrb[0].mxu0 %v1487
        %v1646 = vpop.f32.mrb[0].mxu0
        %v1647 = vadd.f32 0.0, %v1646
        %v1648 = vpop.f32.mrb[0].mxu0
        %v1649 = vadd.f32 0.0, %v1648
        %1650 = vmatprep.mubr.f32.mxu0 %v1494
        %1651 = vmatmul.mubr.f32.gmra.mrb[0].mxu0 %v1492
        %v1652 = vpop.f32.mrb[0].mxu0
        %v1653 = vadd.f32 0.0, %v1652
        %v1654 = vpop.f32.mrb[0].mxu0
        %v1655 = vadd.f32 0.0, %v1654
        %1656 = vdwg.mxu0
        %v1657 = vadd.f32 %v1437, %v1635
        %v1658 = vadd.f32 %v1439, %v1637
        %v1659 = vadd.f32 %v1443, %v1641
        %v1660 = vadd.f32 %v1445, %v1643
        %v1661 = vadd.f32 %v1449, %v1647
        %v1662 = vadd.f32 %v1451, %v1649
        %v1663 = vadd.f32 %v1455, %v1653
        %v1664 = vadd.f32 %v1457, %v1655
        %v1666 = vlaneseq
        %v1667 = vshrl.u32 %v1666, 7
        %v1668 = vsub.s32 0, %v1667
        %v1669 = vrot.slane %v328, %v1668
        %v1670 = vlaneseq
        %v1671 = vshrl.u32 %v1670, 7
        %v1672 = vsub.s32 1, %v1671
        %v1673 = vrot.slane %v328, %v1672
        %v1676 = vadd.f32 %v1657, %v1669
        %v1677 = vadd.f32 %v1658, %v1673
        %v1678 = vadd.f32 %v1659, %v1669
        %v1679 = vadd.f32 %v1660, %v1673
        %v1680 = vadd.f32 %v1661, %v1669
        %v1681 = vadd.f32 %v1662, %v1673
        %v1682 = vadd.f32 %v1663, %v1669
        %v1683 = vadd.f32 %v1664, %v1673
        %v1684 = vld [vmem:[#allocation4] sm:$0xff]
        %v1685 = vld [vmem:[#allocation4 + $0x8] sm:$0xff]
        %v1686 = vld [vmem:[#allocation4 + $0x10] sm:$0xff]
        %v1687 = vld [vmem:[#allocation4 + $0x18] sm:$0xff]
        %v1688 = vld [vmem:[#allocation4 + $0x20] sm:$0xff]
        %v1689 = vld [vmem:[#allocation4 + $0x28] sm:$0xff]
        %v1690 = vld [vmem:[#allocation4 + $0x30] sm:$0xff]
        %v1691 = vld [vmem:[#allocation4 + $0x38] sm:$0xff]
        %v1692 = vsub.f32 %v1676, %v1684
        %v1693 = vsub.f32 %v1677, %v1685
        %v1694 = vsub.f32 %v1678, %v1686
        %v1695 = vsub.f32 %v1679, %v1687
        %v1696 = vsub.f32 %v1680, %v1688
        %v1697 = vsub.f32 %v1681, %v1689
        %v1698 = vsub.f32 %v1682, %v1690
        %v1699 = vsub.f32 %v1683, %v1691
        %v1700 = vmul.f32 %v1692, 0.5
        %v1701 = vmul.f32 %v1693, 0.5
        %v1702 = vmul.f32 %v1694, 0.5
        %v1703 = vmul.f32 %v1695, 0.5
        %v1704 = vmul.f32 %v1696, 0.5
        %v1705 = vmul.f32 %v1697, 0.5
        %v1706 = vmul.f32 %v1698, 0.5
        %v1707 = vmul.f32 %v1699, 0.5
        %v1708 = vadd.f32 %v1684, %v1700
        %v1709 = vadd.f32 %v1685, %v1701
        %v1710 = vadd.f32 %v1686, %v1702
        %v1711 = vadd.f32 %v1687, %v1703
        %v1712 = vadd.f32 %v1688, %v1704
        %v1713 = vadd.f32 %v1689, %v1705
        %v1714 = vadd.f32 %v1690, %v1706
        %v1715 = vadd.f32 %v1691, %v1707
        %vm1716 = vcmp.ge.f32.partialorder %v1708, 1.0
        %vm1717 = vcmp.ge.f32.partialorder %v1709, 1.0
        %vm1718 = vcmp.ge.f32.partialorder %v1710, 1.0
        %vm1719 = vcmp.ge.f32.partialorder %v1711, 1.0
        %vm1720 = vcmp.ge.f32.partialorder %v1712, 1.0
        %vm1721 = vcmp.ge.f32.partialorder %v1713, 1.0
        %vm1722 = vcmp.ge.f32.partialorder %v1714, 1.0
        %vm1723 = vcmp.ge.f32.partialorder %v1715, 1.0
        %v1724 = vsel %vm1716, 1, 0
        %v1725 = vsel %vm1717, 1, 0
        %v1726 = vsel %vm1718, 1, 0
        %v1727 = vsel %vm1719, 1, 0
        %v1728 = vsel %vm1720, 1, 0
        %v1729 = vsel %vm1721, 1, 0
        %v1730 = vsel %vm1722, 1, 0
        %v1731 = vsel %vm1723, 1, 0
        %v1732 = vcvt.s32.f32 %v1724
        %v1733 = vcvt.s32.f32 %v1725
        %v1734 = vcvt.s32.f32 %v1726
        %v1735 = vcvt.s32.f32 %v1727
        %v1736 = vcvt.s32.f32 %v1728
        %v1737 = vcvt.s32.f32 %v1729
        %v1738 = vcvt.s32.f32 %v1730
        %v1739 = vcvt.s32.f32 %v1731
        %v1740 = vsub.f32 1.0, %v1732
        %v1741 = vsub.f32 1.0, %v1733
        %v1742 = vsub.f32 1.0, %v1734
        %v1743 = vsub.f32 1.0, %v1735
        %v1744 = vsub.f32 1.0, %v1736
        %v1745 = vsub.f32 1.0, %v1737
        %v1746 = vsub.f32 1.0, %v1738
        %v1747 = vsub.f32 1.0, %v1739
        %v1748 = vmul.f32 %v1708, %v1740
        %v1749 = vmul.f32 %v1709, %v1741
        %v1750 = vmul.f32 %v1710, %v1742
        %v1751 = vmul.f32 %v1711, %v1743
        %v1752 = vmul.f32 %v1712, %v1744
        %v1753 = vmul.f32 %v1713, %v1745
        %v1754 = vmul.f32 %v1714, %v1746
        %v1755 = vmul.f32 %v1715, %v1747
        %1756 = vst [vmem:[#allocation4] sm:$0xff] %v1748
        %1757 = vst [vmem:[#allocation4 + $0x8] sm:$0xff] %v1749
        %1758 = vst [vmem:[#allocation4 + $0x10] sm:$0xff] %v1750
        %1759 = vst [vmem:[#allocation4 + $0x18] sm:$0xff] %v1751
        %1760 = vst [vmem:[#allocation4 + $0x20] sm:$0xff] %v1752
        %1761 = vst [vmem:[#allocation4 + $0x28] sm:$0xff] %v1753
        %1762 = vst [vmem:[#allocation4 + $0x30] sm:$0xff] %v1754
        %1763 = vst [vmem:[#allocation4 + $0x38] sm:$0xff] %v1755
        %v1764 = vadd.f32 %v1732, %v329
        %v1765 = vadd.f32 %v1733, %v330
        %v1766 = vadd.f32 %v1734, %v331
        %v1767 = vadd.f32 %v1735, %v332
        %v1768 = vadd.f32 %v1736, %v333
        %v1769 = vadd.f32 %v1737, %v334
        %v1770 = vadd.f32 %v1738, %v335
        %v1771 = vadd.f32 %v1739, %v336
        %1772 = vst [vmem:[%s289] sm:$0xff] %v1764
        %1773 = vst [vmem:[%s289 + $0x8] sm:$0xff] %v1765
        %1774 = vst [vmem:[%s289 + $0x10] sm:$0xff] %v1766
        %1775 = vst [vmem:[%s289 + $0x18] sm:$0xff] %v1767
        %1776 = vst [vmem:[%s289 + $0x20] sm:$0xff] %v1768
        %1777 = vst [vmem:[%s289 + $0x28] sm:$0xff] %v1769
        %1778 = vst [vmem:[%s289 + $0x30] sm:$0xff] %v1770
        %1779 = vst [vmem:[%s289 + $0x38] sm:$0xff] %v1771
        %s1780 = scalar_lea.vmem %s257, 64 [#allocation5]
        %v1781 = vld [vmem:[%s1780] sm:$0xff]
        %v1782 = vld [vmem:[%s1780 + $0x8] sm:$0xff]
        %v1783 = vld [vmem:[%s1780 + $0x10] sm:$0xff]
        %v1784 = vld [vmem:[%s1780 + $0x18] sm:$0xff]
        %v1785 = vld [vmem:[%s1780 + $0x20] sm:$0xff]
        %v1786 = vld [vmem:[%s1780 + $0x28] sm:$0xff]
        %v1787 = vld [vmem:[%s1780 + $0x30] sm:$0xff]
        %v1788 = vld [vmem:[%s1780 + $0x38] sm:$0xff]
        %v1797 = vrot.slane %v1781, 7
        %v1798 = vrot.slane %v1782, 7
        %v1799 = vrot.slane %v1783, 7
        %v1800 = vsel %vm345, %v1797, %v1799
        %v1801 = vrot.slane %v1784, 7
        %v1802 = vsel %vm345, %v1798, %v1801
        %v1803 = vrot.slane %v1785, 7
        %v1804 = vrot.slane %v1786, 7
        %v1805 = vrot.slane %v1787, 7
        %v1806 = vsel %vm345, %v1803, %v1805
        %v1807 = vrot.slane %v1788, 7
        %v1808 = vsel %vm345, %v1804, %v1807
        %1821 = vst [vmem:[#allocation2] sm:$0xfe] %v1797
        %1822 = vst [vmem:[#allocation2 + $0x8] sm:$0xfe] %v1798
        %1823 = vst [vmem:[#allocation2 + $0x10] sm:$0xff] %v1800
        %1824 = vst [vmem:[#allocation2 + $0x18] sm:$0xff] %v1802
        %1825 = vst [vmem:[#allocation2 + $0x20] sm:$0x1] %v1799
        %1826 = vst [vmem:[#allocation2 + $0x28] sm:$0x1] %v1801
        %1827 = vst [vmem:[#allocation2 + $0x30] sm:$0xfe] %v1803
        %1828 = vst [vmem:[#allocation2 + $0x38] sm:$0xfe] %v1804
        %1829 = vst [vmem:[#allocation2 + $0x40] sm:$0xff] %v1806
        %1830 = vst [vmem:[#allocation2 + $0x48] sm:$0xff] %v1808
        %1831 = vst [vmem:[#allocation2 + $0x50] sm:$0x1] %v1805
        %1832 = vst [vmem:[#allocation2 + $0x58] sm:$0x1] %v1807
        %v1833 = vld [vmem:[#allocation2] sm:$0xff]
        %v1834 = vld [vmem:[#allocation2 + $0x8] sm:$0xff]
        %v1835 = vld [vmem:[#allocation2 + $0x10] sm:$0xff]
        %v1836 = vld [vmem:[#allocation2 + $0x18] sm:$0xff]
        %v1837 = vld [vmem:[#allocation2 + $0x30] sm:$0xff]
        %v1838 = vld [vmem:[#allocation2 + $0x38] sm:$0xff]
        %v1839 = vld [vmem:[#allocation2 + $0x40] sm:$0xff]
        %v1840 = vld [vmem:[#allocation2 + $0x48] sm:$0xff]
        %v1841 = vld [vmem:[#allocation8] sm:$0xff]
        %v1842 = vld [vmem:[#allocation8 + $0x8] sm:$0xff]
        %v1843 = vld [vmem:[#allocation8 + $0x10] sm:$0xff]
        %v1844 = vld [vmem:[#allocation8 + $0x18] sm:$0xff]
        %v1845 = vld [vmem:[#allocation8 + $0x20] sm:$0xff]
        %v1846 = vld [vmem:[#allocation8 + $0x28] sm:$0xff]
        %v1847 = vld [vmem:[#allocation8 + $0x30] sm:$0xff]
        %v1848 = vld [vmem:[#allocation8 + $0x38] sm:$0xff]
        %v1849 = vld [vmem:[#allocation8 + $0x40] sm:$0xff]
        %v1850 = vld [vmem:[#allocation8 + $0x48] sm:$0xff]
        %v1851 = vld [vmem:[#allocation8 + $0x50] sm:$0xff]
        %v1852 = vld [vmem:[#allocation8 + $0x58] sm:$0xff]
        %v1853 = vld [vmem:[#allocation8 + $0x60] sm:$0xff]
        %v1854 = vld [vmem:[#allocation8 + $0x68] sm:$0xff]
        %v1855 = vld [vmem:[#allocation8 + $0x70] sm:$0xff]
        %v1856 = vld [vmem:[#allocation8 + $0x78] sm:$0xff]
        %v1857 = vld [vmem:[#allocation8 + $0x80] sm:$0xff]
        %v1858 = vld [vmem:[#allocation8 + $0x88] sm:$0xff]
        %v1859 = vld [vmem:[#allocation8 + $0x90] sm:$0xff]
        %v1860 = vld [vmem:[#allocation8 + $0x98] sm:$0xff]
        %v1861 = vld [vmem:[#allocation8 + $0xa0] sm:$0xff]
        %v1862 = vld [vmem:[#allocation8 + $0xa8] sm:$0xff]
        %v1863 = vld [vmem:[#allocation8 + $0xb0] sm:$0xff]
        %v1864 = vld [vmem:[#allocation8 + $0xb8] sm:$0xff]
        %v1865 = vld [vmem:[#allocation8 + $0xc0] sm:$0xff]
        %v1866 = vld [vmem:[#allocation8 + $0xc8] sm:$0xff]
        %v1867 = vld [vmem:[#allocation8 + $0xd0] sm:$0xff]
        %v1868 = vld [vmem:[#allocation8 + $0xd8] sm:$0xff]
        %v1869 = vld [vmem:[#allocation8 + $0xe0] sm:$0xff]
        %v1870 = vld [vmem:[#allocation8 + $0xe8] sm:$0xff]
        %v1871 = vld [vmem:[#allocation8 + $0xf0] sm:$0xff]
        %v1872 = vld [vmem:[#allocation8 + $0xf8] sm:$0xff]
        %v1873 = vld [vmem:[#allocation8 + $0x100] sm:$0xff]
        %v1874 = vld [vmem:[#allocation8 + $0x108] sm:$0xff]
        %v1875 = vld [vmem:[#allocation8 + $0x110] sm:$0xff]
        %v1876 = vld [vmem:[#allocation8 + $0x118] sm:$0xff]
        %v1877 = vld [vmem:[#allocation8 + $0x120] sm:$0xff]
        %v1878 = vld [vmem:[#allocation8 + $0x128] sm:$0xff]
        %v1879 = vld [vmem:[#allocation8 + $0x130] sm:$0xff]
        %v1880 = vld [vmem:[#allocation8 + $0x138] sm:$0xff]
        %v1881 = vld [vmem:[#allocation8 + $0x140] sm:$0xff]
        %v1882 = vld [vmem:[#allocation8 + $0x148] sm:$0xff]
        %v1883 = vld [vmem:[#allocation8 + $0x150] sm:$0xff]
        %v1884 = vld [vmem:[#allocation8 + $0x158] sm:$0xff]
        %v1885 = vld [vmem:[#allocation8 + $0x160] sm:$0xff]
        %v1886 = vld [vmem:[#allocation8 + $0x168] sm:$0xff]
        %v1887 = vld [vmem:[#allocation8 + $0x170] sm:$0xff]
        %v1888 = vld [vmem:[#allocation8 + $0x178] sm:$0xff]
        %v1889 = vld [vmem:[#allocation8 + $0x180] sm:$0xff]
        %v1890 = vld [vmem:[#allocation8 + $0x188] sm:$0xff]
        %v1891 = vld [vmem:[#allocation8 + $0x190] sm:$0xff]
        %v1892 = vld [vmem:[#allocation8 + $0x198] sm:$0xff]
        %v1893 = vld [vmem:[#allocation8 + $0x1a0] sm:$0xff]
        %v1894 = vld [vmem:[#allocation8 + $0x1a8] sm:$0xff]
        %v1895 = vld [vmem:[#allocation8 + $0x1b0] sm:$0xff]
        %v1896 = vld [vmem:[#allocation8 + $0x1b8] sm:$0xff]
        %v1897 = vld [vmem:[#allocation8 + $0x1c0] sm:$0xff]
        %v1898 = vld [vmem:[#allocation8 + $0x1c8] sm:$0xff]
        %v1899 = vld [vmem:[#allocation8 + $0x1d0] sm:$0xff]
        %v1900 = vld [vmem:[#allocation8 + $0x1d8] sm:$0xff]
        %v1901 = vld [vmem:[#allocation8 + $0x1e0] sm:$0xff]
        %v1902 = vld [vmem:[#allocation8 + $0x1e8] sm:$0xff]
        %v1903 = vld [vmem:[#allocation8 + $0x1f0] sm:$0xff]
        %v1904 = vld [vmem:[#allocation8 + $0x1f8] sm:$0xff]
        %v1905 = vld [vmem:[#allocation2] sm:$0xfe]
        %v1906 = vld [vmem:[#allocation2 + $0x8] sm:$0xfe]
        %v1907 = vld [vmem:[#allocation2 + $0x20] sm:$0x1]
        %v1908 = vld [vmem:[#allocation2 + $0x28] sm:$0x1]
        %v1909 = vld [vmem:[#allocation2 + $0x30] sm:$0xfe]
        %v1910 = vld [vmem:[#allocation2 + $0x38] sm:$0xfe]
        %v1911 = vld [vmem:[#allocation2 + $0x50] sm:$0x1]
        %v1912 = vld [vmem:[#allocation2 + $0x58] sm:$0x1]
        %v1925 = vrot.slane %v1905, 1
        %v1926 = vrot.slane %v1835, 1
        %v1927 = vsel %vm474, %v1925, %v1926
        %v1928 = vrot.slane %v1906, 1
        %v1929 = vrot.slane %v1836, 1
        %v1930 = vsel %vm474, %v1928, %v1929
        %v1931 = vrot.slane %v1907, 1
        %v1932 = vsel %vm474, %v1926, %v1931
        %v1933 = vrot.slane %v1908, 1
        %v1934 = vsel %vm474, %v1929, %v1933
        %v1935 = vrot.slane %v1909, 1
        %v1936 = vrot.slane %v1839, 1
        %v1937 = vsel %vm474, %v1935, %v1936
        %v1938 = vrot.slane %v1910, 1
        %v1939 = vrot.slane %v1840, 1
        %v1940 = vsel %vm474, %v1938, %v1939
        %v1941 = vrot.slane %v1911, 1
        %v1942 = vsel %vm474, %v1936, %v1941
        %v1943 = vrot.slane %v1912, 1
        %v1944 = vsel %vm474, %v1939, %v1943
        %v1953 = vld [vmem:[%s503] sm:$0xff]
        %v1954 = vld [vmem:[%s503 + $0x8] sm:$0xff]
        %v1955 = vld [vmem:[%s503 + $0x10] sm:$0xff]
        %v1956 = vld [vmem:[%s503 + $0x18] sm:$0xff]
        %v1957 = vld [vmem:[%s503 + $0x20] sm:$0xff]
        %v1958 = vld [vmem:[%s503 + $0x28] sm:$0xff]
        %v1959 = vld [vmem:[%s503 + $0x30] sm:$0xff]
        %v1960 = vld [vmem:[%s503 + $0x38] sm:$0xff]
        %v1961 = vld [vmem:[%s503 + $0x40] sm:$0xff]
        %v1962 = vld [vmem:[%s503 + $0x48] sm:$0xff]
        %v1963 = vld [vmem:[%s503 + $0x50] sm:$0xff]
        %v1964 = vld [vmem:[%s503 + $0x58] sm:$0xff]
        %v1965 = vld [vmem:[%s503 + $0x60] sm:$0xff]
        %v1966 = vld [vmem:[%s503 + $0x68] sm:$0xff]
        %v1967 = vld [vmem:[%s503 + $0x70] sm:$0xff]
        %v1968 = vld [vmem:[%s503 + $0x78] sm:$0xff]
        %v1969 = vld [vmem:[%s503 + $0x80] sm:$0xff]
        %v1970 = vld [vmem:[%s503 + $0x88] sm:$0xff]
        %v1971 = vld [vmem:[%s503 + $0x90] sm:$0xff]
        %v1972 = vld [vmem:[%s503 + $0x98] sm:$0xff]
        %v1973 = vld [vmem:[%s503 + $0xa0] sm:$0xff]
        %v1974 = vld [vmem:[%s503 + $0xa8] sm:$0xff]
        %v1975 = vld [vmem:[%s503 + $0xb0] sm:$0xff]
        %v1976 = vld [vmem:[%s503 + $0xb8] sm:$0xff]
        %v1977 = vld [vmem:[%s503 + $0xc0] sm:$0xff]
        %v1978 = vld [vmem:[%s503 + $0xc8] sm:$0xff]
        %v1979 = vld [vmem:[%s503 + $0xd0] sm:$0xff]
        %v1980 = vld [vmem:[%s503 + $0xd8] sm:$0xff]
        %v1981 = vld [vmem:[%s503 + $0xe0] sm:$0xff]
        %v1982 = vld [vmem:[%s503 + $0xe8] sm:$0xff]
        %v1983 = vld [vmem:[%s503 + $0xf0] sm:$0xff]
        %v1984 = vld [vmem:[%s503 + $0xf8] sm:$0xff]
        %v1985 = vld [vmem:[%s503 + $0x100] sm:$0xff]
        %v1986 = vld [vmem:[%s503 + $0x108] sm:$0xff]
        %v1987 = vld [vmem:[%s503 + $0x110] sm:$0xff]
        %v1988 = vld [vmem:[%s503 + $0x118] sm:$0xff]
        %v1989 = vld [vmem:[%s503 + $0x120] sm:$0xff]
        %v1990 = vld [vmem:[%s503 + $0x128] sm:$0xff]
        %v1991 = vld [vmem:[%s503 + $0x130] sm:$0xff]
        %v1992 = vld [vmem:[%s503 + $0x138] sm:$0xff]
        %v1993 = vld [vmem:[%s503 + $0x140] sm:$0xff]
        %v1994 = vld [vmem:[%s503 + $0x148] sm:$0xff]
        %v1995 = vld [vmem:[%s503 + $0x150] sm:$0xff]
        %v1996 = vld [vmem:[%s503 + $0x158] sm:$0xff]
        %v1997 = vld [vmem:[%s503 + $0x160] sm:$0xff]
        %v1998 = vld [vmem:[%s503 + $0x168] sm:$0xff]
        %v1999 = vld [vmem:[%s503 + $0x170] sm:$0xff]
        %v2000 = vld [vmem:[%s503 + $0x178] sm:$0xff]
        %v2001 = vld [vmem:[%s503 + $0x180] sm:$0xff]
        %v2002 = vld [vmem:[%s503 + $0x188] sm:$0xff]
        %v2003 = vld [vmem:[%s503 + $0x190] sm:$0xff]
        %v2004 = vld [vmem:[%s503 + $0x198] sm:$0xff]
        %v2005 = vld [vmem:[%s503 + $0x1a0] sm:$0xff]
        %v2006 = vld [vmem:[%s503 + $0x1a8] sm:$0xff]
        %v2007 = vld [vmem:[%s503 + $0x1b0] sm:$0xff]
        %v2008 = vld [vmem:[%s503 + $0x1b8] sm:$0xff]
        %v2009 = vld [vmem:[%s503 + $0x1c0] sm:$0xff]
        %v2010 = vld [vmem:[%s503 + $0x1c8] sm:$0xff]
        %v2011 = vld [vmem:[%s503 + $0x1d0] sm:$0xff]
        %v2012 = vld [vmem:[%s503 + $0x1d8] sm:$0xff]
        %v2013 = vld [vmem:[%s503 + $0x1e0] sm:$0xff]
        %v2014 = vld [vmem:[%s503 + $0x1e8] sm:$0xff]
        %v2015 = vld [vmem:[%s503 + $0x1f0] sm:$0xff]
        %v2016 = vld [vmem:[%s503 + $0x1f8] sm:$0xff]
        %2017 = vmatprep.subr.mxu0 %v1954
        %2018 = vmatpush1.msra.mxu0 %v1953
        %2019 = vmatprep.subr.mxu0 %v1956
        %2020 = vmatpush1.msra.mxu0 %v1955
        %2021 = vmatprep.subr.mxu0 %v1958
        %2022 = vmatpush1.msra.mxu0 %v1957
        %2023 = vmatprep.subr.mxu0 %v1960
        %2024 = vmatpush1.msra.mxu0 %v1959
        %2025 = vmatprep.subr.mxu0 %v1962
        %2026 = vmatpush1.msra.mxu0 %v1961
        %2027 = vmatprep.subr.mxu0 %v1964
        %2028 = vmatpush1.msra.mxu0 %v1963
        %2029 = vmatprep.subr.mxu0 %v1966
        %2030 = vmatpush1.msra.mxu0 %v1965
        %2031 = vmatprep.subr.mxu0 %v1968
        %2032 = vmatpush1.msra.mxu0 %v1967
        %2033 = vmatprep.subr.mxu0 %v1970
        %2034 = vmatpush1.msra.mxu0 %v1969
        %2035 = vmatprep.subr.mxu0 %v1972
        %2036 = vmatpush1.msra.mxu0 %v1971
        %2037 = vmatprep.subr.mxu0 %v1974
        %2038 = vmatpush1.msra.mxu0 %v1973
        %2039 = vmatprep.subr.mxu0 %v1976
        %2040 = vmatpush1.msra.mxu0 %v1975
        %2041 = vmatprep.subr.mxu0 %v1978
        %2042 = vmatpush1.msra.mxu0 %v1977
        %2043 = vmatprep.subr.mxu0 %v1980
        %2044 = vmatpush1.msra.mxu0 %v1979
        %2045 = vmatprep.subr.mxu0 %v1982
        %2046 = vmatpush1.msra.mxu0 %v1981
        %2047 = vmatprep.subr.mxu0 %v1984
        %2048 = vmatpush1.msra.mxu0 %v1983
        %2049 = vmatprep.subr.mxu0 %v1986
        %2050 = vmatpush1.msra.mxu0 %v1985
        %2051 = vmatprep.subr.mxu0 %v1988
        %2052 = vmatpush1.msra.mxu0 %v1987
        %2053 = vmatprep.subr.mxu0 %v1990
        %2054 = vmatpush1.msra.mxu0 %v1989
        %2055 = vmatprep.subr.mxu0 %v1992
        %2056 = vmatpush1.msra.mxu0 %v1991
        %2057 = vmatprep.subr.mxu0 %v1994
        %2058 = vmatpush1.msra.mxu0 %v1993
        %2059 = vmatprep.subr.mxu0 %v1996
        %2060 = vmatpush1.msra.mxu0 %v1995
        %2061 = vmatprep.subr.mxu0 %v1998
        %2062 = vmatpush1.msra.mxu0 %v1997
        %2063 = vmatprep.subr.mxu0 %v2000
        %2064 = vmatpush1.msra.mxu0 %v1999
        %2065 = vmatprep.subr.mxu0 %v2002
        %2066 = vmatpush1.msra.mxu0 %v2001
        %2067 = vmatprep.subr.mxu0 %v2004
        %2068 = vmatpush1.msra.mxu0 %v2003
        %2069 = vmatprep.subr.mxu0 %v2006
        %2070 = vmatpush1.msra.mxu0 %v2005
        %2071 = vmatprep.subr.mxu0 %v2008
        %2072 = vmatpush1.msra.mxu0 %v2007
        %2073 = vmatprep.subr.mxu0 %v2010
        %2074 = vmatpush1.msra.mxu0 %v2009
        %2075 = vmatprep.subr.mxu0 %v2012
        %2076 = vmatpush1.msra.mxu0 %v2011
        %2077 = vmatprep.subr.mxu0 %v2014
        %2078 = vmatpush1.msra.mxu0 %v2013
        %2079 = vmatprep.subr.mxu0 %v2016
        %2080 = vmatpush1.msra.mxu0 %v2015
        %2081 = vmatprep.mubr.f32.mxu0 %v1930
        %2082 = vmatmul.mubr.f32.gmra.mrb[0].mxu0 %v1927
        %v2083 = vpop.f32.mrb[0].mxu0
        %v2084 = vadd.f32 0.0, %v2083
        %v2085 = vpop.f32.mrb[0].mxu0
        %v2086 = vadd.f32 0.0, %v2085
        %2087 = vmatprep.mubr.f32.mxu0 %v1934
        %2088 = vmatmul.mubr.f32.gmra.mrb[0].mxu0 %v1932
        %v2089 = vpop.f32.mrb[0].mxu0
        %v2090 = vadd.f32 0.0, %v2089
        %v2091 = vpop.f32.mrb[0].mxu0
        %v2092 = vadd.f32 0.0, %v2091
        %2093 = vmatprep.mubr.f32.mxu0 %v1940
        %2094 = vmatmul.mubr.f32.gmra.mrb[0].mxu0 %v1937
        %v2095 = vpop.f32.mrb[0].mxu0
        %v2096 = vadd.f32 0.0, %v2095
        %v2097 = vpop.f32.mrb[0].mxu0
        %v2098 = vadd.f32 0.0, %v2097
        %2099 = vmatprep.mubr.f32.mxu0 %v1944
        %2100 = vmatmul.mubr.f32.gmra.mrb[0].mxu0 %v1942
        %v2101 = vpop.f32.mrb[0].mxu0
        %v2102 = vadd.f32 0.0, %v2101
        %v2103 = vpop.f32.mrb[0].mxu0
        %v2104 = vadd.f32 0.0, %v2103
        %2105 = vdwg.mxu0
        %2106 = vmatprep.subr.mxu0 %v1842
        %2107 = vmatpush1.msra.mxu0 %v1841
        %2108 = vmatprep.subr.mxu0 %v1844
        %2109 = vmatpush1.msra.mxu0 %v1843
        %2110 = vmatprep.subr.mxu0 %v1846
        %2111 = vmatpush1.msra.mxu0 %v1845
        %2112 = vmatprep.subr.mxu0 %v1848
        %2113 = vmatpush1.msra.mxu0 %v1847
        %2114 = vmatprep.subr.mxu0 %v1850
        %2115 = vmatpush1.msra.mxu0 %v1849
        %2116 = vmatprep.subr.mxu0 %v1852
        %2117 = vmatpush1.msra.mxu0 %v1851
        %2118 = vmatprep.subr.mxu0 %v1854
        %2119 = vmatpush1.msra.mxu0 %v1853
        %2120 = vmatprep.subr.mxu0 %v1856
        %2121 = vmatpush1.msra.mxu0 %v1855
        %2122 = vmatprep.subr.mxu0 %v1858
        %2123 = vmatpush1.msra.mxu0 %v1857
        %2124 = vmatprep.subr.mxu0 %v1860
        %2125 = vmatpush1.msra.mxu0 %v1859
        %2126 = vmatprep.subr.mxu0 %v1862
        %2127 = vmatpush1.msra.mxu0 %v1861
        %2128 = vmatprep.subr.mxu0 %v1864
        %2129 = vmatpush1.msra.mxu0 %v1863
        %2130 = vmatprep.subr.mxu0 %v1866
        %2131 = vmatpush1.msra.mxu0 %v1865
        %2132 = vmatprep.subr.mxu0 %v1868
        %2133 = vmatpush1.msra.mxu0 %v1867
        %2134 = vmatprep.subr.mxu0 %v1870
        %2135 = vmatpush1.msra.mxu0 %v1869
        %2136 = vmatprep.subr.mxu0 %v1872
        %2137 = vmatpush1.msra.mxu0 %v1871
        %2138 = vmatprep.subr.mxu0 %v1874
        %2139 = vmatpush1.msra.mxu0 %v1873
        %2140 = vmatprep.subr.mxu0 %v1876
        %2141 = vmatpush1.msra.mxu0 %v1875
        %2142 = vmatprep.subr.mxu0 %v1878
        %2143 = vmatpush1.msra.mxu0 %v1877
        %2144 = vmatprep.subr.mxu0 %v1880
        %2145 = vmatpush1.msra.mxu0 %v1879
        %2146 = vmatprep.subr.mxu0 %v1882
        %2147 = vmatpush1.msra.mxu0 %v1881
        %2148 = vmatprep.subr.mxu0 %v1884
        %2149 = vmatpush1.msra.mxu0 %v1883
        %2150 = vmatprep.subr.mxu0 %v1886
        %2151 = vmatpush1.msra.mxu0 %v1885
        %2152 = vmatprep.subr.mxu0 %v1888
        %2153 = vmatpush1.msra.mxu0 %v1887
        %2154 = vmatprep.subr.mxu0 %v1890
        %2155 = vmatpush1.msra.mxu0 %v1889
        %2156 = vmatprep.subr.mxu0 %v1892
        %2157 = vmatpush1.msra.mxu0 %v1891
        %2158 = vmatprep.subr.mxu0 %v1894
        %2159 = vmatpush1.msra.mxu0 %v1893
        %2160 = vmatprep.subr.mxu0 %v1896
        %2161 = vmatpush1.msra.mxu0 %v1895
        %2162 = vmatprep.subr.mxu0 %v1898
        %2163 = vmatpush1.msra.mxu0 %v1897
        %2164 = vmatprep.subr.mxu0 %v1900
        %2165 = vmatpush1.msra.mxu0 %v1899
        %2166 = vmatprep.subr.mxu0 %v1902
        %2167 = vmatpush1.msra.mxu0 %v1901
        %2168 = vmatprep.subr.mxu0 %v1904
        %2169 = vmatpush1.msra.mxu0 %v1903
        %2170 = vmatprep.mubr.f32.mxu0 %v1834
        %2171 = vmatmul.mubr.f32.gmra.mrb[0].mxu0 %v1833
        %v2172 = vpop.f32.mrb[0].mxu0
        %v2173 = vadd.f32 %v2084, %v2172
        %v2174 = vpop.f32.mrb[0].mxu0
        %v2175 = vadd.f32 %v2086, %v2174
        %2176 = vmatprep.mubr.f32.mxu0 %v1836
        %2177 = vmatmul.mubr.f32.gmra.mrb[0].mxu0 %v1835
        %v2178 = vpop.f32.mrb[0].mxu0
        %v2179 = vadd.f32 %v2090, %v2178
        %v2180 = vpop.f32.mrb[0].mxu0
        %v2181 = vadd.f32 %v2092, %v2180
        %2182 = vmatprep.mubr.f32.mxu0 %v1838
        %2183 = vmatmul.mubr.f32.gmra.mrb[0].mxu0 %v1837
        %v2184 = vpop.f32.mrb[0].mxu0
        %v2185 = vadd.f32 %v2096, %v2184
        %v2186 = vpop.f32.mrb[0].mxu0
        %v2187 = vadd.f32 %v2098, %v2186
        %2188 = vmatprep.mubr.f32.mxu0 %v1840
        %2189 = vmatmul.mubr.f32.gmra.mrb[0].mxu0 %v1839
        %v2190 = vpop.f32.mrb[0].mxu0
        %v2191 = vadd.f32 %v2102, %v2190
        %v2192 = vpop.f32.mrb[0].mxu0
        %v2193 = vadd.f32 %v2104, %v2192
        %2194 = vdwg.mxu0
        %v2195 = vld [vmem:[#allocation2] sm:$0xfc]
        %v2196 = vld [vmem:[#allocation2 + $0x8] sm:$0xfc]
        %v2197 = vld [vmem:[#allocation2 + $0x20] sm:$0x3]
        %v2198 = vld [vmem:[#allocation2 + $0x28] sm:$0x3]
        %v2199 = vld [vmem:[#allocation2 + $0x30] sm:$0xfc]
        %v2200 = vld [vmem:[#allocation2 + $0x38] sm:$0xfc]
        %v2201 = vld [vmem:[#allocation2 + $0x50] sm:$0x3]
        %v2202 = vld [vmem:[#allocation2 + $0x58] sm:$0x3]
        %v2211 = vrot.slane %v2195, 2
        %v2212 = vrot.slane %v1835, 2
        %v2213 = vsel %vm762, %v2211, %v2212
        %v2214 = vrot.slane %v2196, 2
        %v2215 = vrot.slane %v1836, 2
        %v2216 = vsel %vm762, %v2214, %v2215
        %v2217 = vrot.slane %v2197, 2
        %v2218 = vsel %vm762, %v2212, %v2217
        %v2219 = vrot.slane %v2198, 2
        %v2220 = vsel %vm762, %v2215, %v2219
        %v2221 = vrot.slane %v2199, 2
        %v2222 = vrot.slane %v1839, 2
        %v2223 = vsel %vm762, %v2221, %v2222
        %v2224 = vrot.slane %v2200, 2
        %v2225 = vrot.slane %v1840, 2
        %v2226 = vsel %vm762, %v2224, %v2225
        %v2227 = vrot.slane %v2201, 2
        %v2228 = vsel %vm762, %v2222, %v2227
        %v2229 = vrot.slane %v2202, 2
        %v2230 = vsel %vm762, %v2225, %v2229
        %v2239 = vld [vmem:[%s791] sm:$0xff]
        %v2240 = vld [vmem:[%s791 + $0x8] sm:$0xff]
        %v2241 = vld [vmem:[%s791 + $0x10] sm:$0xff]
        %v2242 = vld [vmem:[%s791 + $0x18] sm:$0xff]
        %v2243 = vld [vmem:[%s791 + $0x20] sm:$0xff]
        %v2244 = vld [vmem:[%s791 + $0x28] sm:$0xff]
        %v2245 = vld [vmem:[%s791 + $0x30] sm:$0xff]
        %v2246 = vld [vmem:[%s791 + $0x38] sm:$0xff]
        %v2247 = vld [vmem:[%s791 + $0x40] sm:$0xff]
        %v2248 = vld [vmem:[%s791 + $0x48] sm:$0xff]
        %v2249 = vld [vmem:[%s791 + $0x50] sm:$0xff]
        %v2250 = vld [vmem:[%s791 + $0x58] sm:$0xff]
        %v2251 = vld [vmem:[%s791 + $0x60] sm:$0xff]
        %v2252 = vld [vmem:[%s791 + $0x68] sm:$0xff]
        %v2253 = vld [vmem:[%s791 + $0x70] sm:$0xff]
        %v2254 = vld [vmem:[%s791 + $0x78] sm:$0xff]
        %v2255 = vld [vmem:[%s791 + $0x80] sm:$0xff]
        %v2256 = vld [vmem:[%s791 + $0x88] sm:$0xff]
        %v2257 = vld [vmem:[%s791 + $0x90] sm:$0xff]
        %v2258 = vld [vmem:[%s791 + $0x98] sm:$0xff]
        %v2259 = vld [vmem:[%s791 + $0xa0] sm:$0xff]
        %v2260 = vld [vmem:[%s791 + $0xa8] sm:$0xff]
        %v2261 = vld [vmem:[%s791 + $0xb0] sm:$0xff]
        %v2262 = vld [vmem:[%s791 + $0xb8] sm:$0xff]
        %v2263 = vld [vmem:[%s791 + $0xc0] sm:$0xff]
        %v2264 = vld [vmem:[%s791 + $0xc8] sm:$0xff]
        %v2265 = vld [vmem:[%s791 + $0xd0] sm:$0xff]
        %v2266 = vld [vmem:[%s791 + $0xd8] sm:$0xff]
        %v2267 = vld [vmem:[%s791 + $0xe0] sm:$0xff]
        %v2268 = vld [vmem:[%s791 + $0xe8] sm:$0xff]
        %v2269 = vld [vmem:[%s791 + $0xf0] sm:$0xff]
        %v2270 = vld [vmem:[%s791 + $0xf8] sm:$0xff]
        %v2271 = vld [vmem:[%s791 + $0x100] sm:$0xff]
        %v2272 = vld [vmem:[%s791 + $0x108] sm:$0xff]
        %v2273 = vld [vmem:[%s791 + $0x110] sm:$0xff]
        %v2274 = vld [vmem:[%s791 + $0x118] sm:$0xff]
        %v2275 = vld [vmem:[%s791 + $0x120] sm:$0xff]
        %v2276 = vld [vmem:[%s791 + $0x128] sm:$0xff]
        %v2277 = vld [vmem:[%s791 + $0x130] sm:$0xff]
        %v2278 = vld [vmem:[%s791 + $0x138] sm:$0xff]
        %v2279 = vld [vmem:[%s791 + $0x140] sm:$0xff]
        %v2280 = vld [vmem:[%s791 + $0x148] sm:$0xff]
        %v2281 = vld [vmem:[%s791 + $0x150] sm:$0xff]
        %v2282 = vld [vmem:[%s791 + $0x158] sm:$0xff]
        %v2283 = vld [vmem:[%s791 + $0x160] sm:$0xff]
        %v2284 = vld [vmem:[%s791 + $0x168] sm:$0xff]
        %v2285 = vld [vmem:[%s791 + $0x170] sm:$0xff]
        %v2286 = vld [vmem:[%s791 + $0x178] sm:$0xff]
        %v2287 = vld [vmem:[%s791 + $0x180] sm:$0xff]
        %v2288 = vld [vmem:[%s791 + $0x188] sm:$0xff]
        %v2289 = vld [vmem:[%s791 + $0x190] sm:$0xff]
        %v2290 = vld [vmem:[%s791 + $0x198] sm:$0xff]
        %v2291 = vld [vmem:[%s791 + $0x1a0] sm:$0xff]
        %v2292 = vld [vmem:[%s791 + $0x1a8] sm:$0xff]
        %v2293 = vld [vmem:[%s791 + $0x1b0] sm:$0xff]
        %v2294 = vld [vmem:[%s791 + $0x1b8] sm:$0xff]
        %v2295 = vld [vmem:[%s791 + $0x1c0] sm:$0xff]
        %v2296 = vld [vmem:[%s791 + $0x1c8] sm:$0xff]
        %v2297 = vld [vmem:[%s791 + $0x1d0] sm:$0xff]
        %v2298 = vld [vmem:[%s791 + $0x1d8] sm:$0xff]
        %v2299 = vld [vmem:[%s791 + $0x1e0] sm:$0xff]
        %v2300 = vld [vmem:[%s791 + $0x1e8] sm:$0xff]
        %v2301 = vld [vmem:[%s791 + $0x1f0] sm:$0xff]
        %v2302 = vld [vmem:[%s791 + $0x1f8] sm:$0xff]
        %2303 = vmatprep.subr.mxu0 %v2240
        %2304 = vmatpush1.msra.mxu0 %v2239
        %2305 = vmatprep.subr.mxu0 %v2242
        %2306 = vmatpush1.msra.mxu0 %v2241
        %2307 = vmatprep.subr.mxu0 %v2244
        %2308 = vmatpush1.msra.mxu0 %v2243
        %2309 = vmatprep.subr.mxu0 %v2246
        %2310 = vmatpush1.msra.mxu0 %v2245
        %2311 = vmatprep.subr.mxu0 %v2248
        %2312 = vmatpush1.msra.mxu0 %v2247
        %2313 = vmatprep.subr.mxu0 %v2250
        %2314 = vmatpush1.msra.mxu0 %v2249
        %2315 = vmatprep.subr.mxu0 %v2252
        %2316 = vmatpush1.msra.mxu0 %v2251
        %2317 = vmatprep.subr.mxu0 %v2254
        %2318 = vmatpush1.msra.mxu0 %v2253
        %2319 = vmatprep.subr.mxu0 %v2256
        %2320 = vmatpush1.msra.mxu0 %v2255
        %2321 = vmatprep.subr.mxu0 %v2258
        %2322 = vmatpush1.msra.mxu0 %v2257
        %2323 = vmatprep.subr.mxu0 %v2260
        %2324 = vmatpush1.msra.mxu0 %v2259
        %2325 = vmatprep.subr.mxu0 %v2262
        %2326 = vmatpush1.msra.mxu0 %v2261
        %2327 = vmatprep.subr.mxu0 %v2264
        %2328 = vmatpush1.msra.mxu0 %v2263
        %2329 = vmatprep.subr.mxu0 %v2266
        %2330 = vmatpush1.msra.mxu0 %v2265
        %2331 = vmatprep.subr.mxu0 %v2268
        %2332 = vmatpush1.msra.mxu0 %v2267
        %2333 = vmatprep.subr.mxu0 %v2270
        %2334 = vmatpush1.msra.mxu0 %v2269
        %2335 = vmatprep.subr.mxu0 %v2272
        %2336 = vmatpush1.msra.mxu0 %v2271
        %2337 = vmatprep.subr.mxu0 %v2274
        %2338 = vmatpush1.msra.mxu0 %v2273
        %2339 = vmatprep.subr.mxu0 %v2276
        %2340 = vmatpush1.msra.mxu0 %v2275
        %2341 = vmatprep.subr.mxu0 %v2278
        %2342 = vmatpush1.msra.mxu0 %v2277
        %2343 = vmatprep.subr.mxu0 %v2280
        %2344 = vmatpush1.msra.mxu0 %v2279
        %2345 = vmatprep.subr.mxu0 %v2282
        %2346 = vmatpush1.msra.mxu0 %v2281
        %2347 = vmatprep.subr.mxu0 %v2284
        %2348 = vmatpush1.msra.mxu0 %v2283
        %2349 = vmatprep.subr.mxu0 %v2286
        %2350 = vmatpush1.msra.mxu0 %v2285
        %2351 = vmatprep.subr.mxu0 %v2288
        %2352 = vmatpush1.msra.mxu0 %v2287
        %2353 = vmatprep.subr.mxu0 %v2290
        %2354 = vmatpush1.msra.mxu0 %v2289
        %2355 = vmatprep.subr.mxu0 %v2292
        %2356 = vmatpush1.msra.mxu0 %v2291
        %2357 = vmatprep.subr.mxu0 %v2294
        %2358 = vmatpush1.msra.mxu0 %v2293
        %2359 = vmatprep.subr.mxu0 %v2296
        %2360 = vmatpush1.msra.mxu0 %v2295
        %2361 = vmatprep.subr.mxu0 %v2298
        %2362 = vmatpush1.msra.mxu0 %v2297
        %2363 = vmatprep.subr.mxu0 %v2300
        %2364 = vmatpush1.msra.mxu0 %v2299
        %2365 = vmatprep.subr.mxu0 %v2302
        %2366 = vmatpush1.msra.mxu0 %v2301
        %2367 = vmatprep.mubr.f32.mxu0 %v2216
        %2368 = vmatmul.mubr.f32.gmra.mrb[0].mxu0 %v2213
        %v2369 = vpop.f32.mrb[0].mxu0
        %v2370 = vadd.f32 0.0, %v2369
        %v2371 = vpop.f32.mrb[0].mxu0
        %v2372 = vadd.f32 0.0, %v2371
        %2373 = vmatprep.mubr.f32.mxu0 %v2220
        %2374 = vmatmul.mubr.f32.gmra.mrb[0].mxu0 %v2218
        %v2375 = vpop.f32.mrb[0].mxu0
        %v2376 = vadd.f32 0.0, %v2375
        %v2377 = vpop.f32.mrb[0].mxu0
        %v2378 = vadd.f32 0.0, %v2377
        %2379 = vmatprep.mubr.f32.mxu0 %v2226
        %2380 = vmatmul.mubr.f32.gmra.mrb[0].mxu0 %v2223
        %v2381 = vpop.f32.mrb[0].mxu0
        %v2382 = vadd.f32 0.0, %v2381
        %v2383 = vpop.f32.mrb[0].mxu0
        %v2384 = vadd.f32 0.0, %v2383
        %2385 = vmatprep.mubr.f32.mxu0 %v2230
        %2386 = vmatmul.mubr.f32.gmra.mrb[0].mxu0 %v2228
        %v2387 = vpop.f32.mrb[0].mxu0
        %v2388 = vadd.f32 0.0, %v2387
        %v2389 = vpop.f32.mrb[0].mxu0
        %v2390 = vadd.f32 0.0, %v2389
        %2391 = vdwg.mxu0
        %v2392 = vadd.f32 %v2173, %v2370
        %v2393 = vadd.f32 %v2175, %v2372
        %v2394 = vadd.f32 %v2179, %v2376
        %v2395 = vadd.f32 %v2181, %v2378
        %v2396 = vadd.f32 %v2185, %v2382
        %v2397 = vadd.f32 %v2187, %v2384
        %v2398 = vadd.f32 %v2191, %v2388
        %v2399 = vadd.f32 %v2193, %v2390
        %v2400 = vadd.f32 %v2392, %v957
        %v2401 = vadd.f32 %v2393, %v961
        %v2402 = vadd.f32 %v2394, %v957
        %v2403 = vadd.f32 %v2395, %v961
        %v2404 = vadd.f32 %v2396, %v957
        %v2405 = vadd.f32 %v2397, %v961
        %v2406 = vadd.f32 %v2398, %v957
        %v2407 = vadd.f32 %v2399, %v961
        %v2408 = vld [vmem:[#allocation3] sm:$0xff]
        %v2409 = vld [vmem:[#allocation3 + $0x8] sm:$0xff]
        %v2410 = vld [vmem:[#allocation3 + $0x10] sm:$0xff]
        %v2411 = vld [vmem:[#allocation3 + $0x18] sm:$0xff]
        %v2412 = vld [vmem:[#allocation3 + $0x20] sm:$0xff]
        %v2413 = vld [vmem:[#allocation3 + $0x28] sm:$0xff]
        %v2414 = vld [vmem:[#allocation3 + $0x30] sm:$0xff]
        %v2415 = vld [vmem:[#allocation3 + $0x38] sm:$0xff]
        %v2416 = vsub.f32 %v2400, %v2408
        %v2417 = vsub.f32 %v2401, %v2409
        %v2418 = vsub.f32 %v2402, %v2410
        %v2419 = vsub.f32 %v2403, %v2411
        %v2420 = vsub.f32 %v2404, %v2412
        %v2421 = vsub.f32 %v2405, %v2413
        %v2422 = vsub.f32 %v2406, %v2414
        %v2423 = vsub.f32 %v2407, %v2415
        %v2424 = vmul.f32 %v2416, 0.5
        %v2425 = vmul.f32 %v2417, 0.5
        %v2426 = vmul.f32 %v2418, 0.5
        %v2427 = vmul.f32 %v2419, 0.5
        %v2428 = vmul.f32 %v2420, 0.5
        %v2429 = vmul.f32 %v2421, 0.5
        %v2430 = vmul.f32 %v2422, 0.5
        %v2431 = vmul.f32 %v2423, 0.5
        %v2432 = vadd.f32 %v2408, %v2424
        %v2433 = vadd.f32 %v2409, %v2425
        %v2434 = vadd.f32 %v2410, %v2426
        %v2435 = vadd.f32 %v2411, %v2427
        %v2436 = vadd.f32 %v2412, %v2428
        %v2437 = vadd.f32 %v2413, %v2429
        %v2438 = vadd.f32 %v2414, %v2430
        %v2439 = vadd.f32 %v2415, %v2431
        %vm2440 = vcmp.ge.f32.partialorder %v2432, 1.0
        %vm2441 = vcmp.ge.f32.partialorder %v2433, 1.0
        %vm2442 = vcmp.ge.f32.partialorder %v2434, 1.0
        %vm2443 = vcmp.ge.f32.partialorder %v2435, 1.0
        %vm2444 = vcmp.ge.f32.partialorder %v2436, 1.0
        %vm2445 = vcmp.ge.f32.partialorder %v2437, 1.0
        %vm2446 = vcmp.ge.f32.partialorder %v2438, 1.0
        %vm2447 = vcmp.ge.f32.partialorder %v2439, 1.0
        %v2448 = vsel %vm2440, 1, 0
        %v2449 = vsel %vm2441, 1, 0
        %v2450 = vsel %vm2442, 1, 0
        %v2451 = vsel %vm2443, 1, 0
        %v2452 = vsel %vm2444, 1, 0
        %v2453 = vsel %vm2445, 1, 0
        %v2454 = vsel %vm2446, 1, 0
        %v2455 = vsel %vm2447, 1, 0
        %v2456 = vcvt.s32.f32 %v2448
        %v2457 = vcvt.s32.f32 %v2449
        %v2458 = vcvt.s32.f32 %v2450
        %v2459 = vcvt.s32.f32 %v2451
        %v2460 = vcvt.s32.f32 %v2452
        %v2461 = vcvt.s32.f32 %v2453
        %v2462 = vcvt.s32.f32 %v2454
        %v2463 = vcvt.s32.f32 %v2455
        %v2464 = vsub.f32 1.0, %v2456
        %v2465 = vsub.f32 1.0, %v2457
        %v2466 = vsub.f32 1.0, %v2458
        %v2467 = vsub.f32 1.0, %v2459
        %v2468 = vsub.f32 1.0, %v2460
        %v2469 = vsub.f32 1.0, %v2461
        %v2470 = vsub.f32 1.0, %v2462
        %v2471 = vsub.f32 1.0, %v2463
        %v2472 = vmul.f32 %v2432, %v2464
        %v2473 = vmul.f32 %v2433, %v2465
        %v2474 = vmul.f32 %v2434, %v2466
        %v2475 = vmul.f32 %v2435, %v2467
        %v2476 = vmul.f32 %v2436, %v2468
        %v2477 = vmul.f32 %v2437, %v2469
        %v2478 = vmul.f32 %v2438, %v2470
        %v2479 = vmul.f32 %v2439, %v2471
        %2480 = vst [vmem:[#allocation3] sm:$0xff] %v2472
        %2481 = vst [vmem:[#allocation3 + $0x8] sm:$0xff] %v2473
        %2482 = vst [vmem:[#allocation3 + $0x10] sm:$0xff] %v2474
        %2483 = vst [vmem:[#allocation3 + $0x18] sm:$0xff] %v2475
        %2484 = vst [vmem:[#allocation3 + $0x20] sm:$0xff] %v2476
        %2485 = vst [vmem:[#allocation3 + $0x28] sm:$0xff] %v2477
        %2486 = vst [vmem:[#allocation3 + $0x30] sm:$0xff] %v2478
        %2487 = vst [vmem:[#allocation3 + $0x38] sm:$0xff] %v2479
        %v2496 = vrot.slane %v2456, 7
        %v2497 = vrot.slane %v2457, 7
        %v2498 = vrot.slane %v2458, 7
        %v2499 = vsel %vm345, %v2496, %v2498
        %v2500 = vrot.slane %v2459, 7
        %v2501 = vsel %vm345, %v2497, %v2500
        %v2502 = vrot.slane %v2460, 7
        %v2503 = vrot.slane %v2461, 7
        %v2504 = vrot.slane %v2462, 7
        %v2505 = vsel %vm345, %v2502, %v2504
        %v2506 = vrot.slane %v2463, 7
        %v2507 = vsel %vm345, %v2503, %v2506
        %2520 = vst [vmem:[#allocation2] sm:$0xfe] %v2496
        %2521 = vst [vmem:[#allocation2 + $0x8] sm:$0xfe] %v2497
        %2522 = vst [vmem:[#allocation2 + $0x10] sm:$0xff] %v2499
        %2523 = vst [vmem:[#allocation2 + $0x18] sm:$0xff] %v2501
        %2524 = vst [vmem:[#allocation2 + $0x20] sm:$0x1] %v2498
        %2525 = vst [vmem:[#allocation2 + $0x28] sm:$0x1] %v2500
        %2526 = vst [vmem:[#allocation2 + $0x30] sm:$0xfe] %v2502
        %2527 = vst [vmem:[#allocation2 + $0x38] sm:$0xfe] %v2503
        %2528 = vst [vmem:[#allocation2 + $0x40] sm:$0xff] %v2505
        %2529 = vst [vmem:[#allocation2 + $0x48] sm:$0xff] %v2507
        %2530 = vst [vmem:[#allocation2 + $0x50] sm:$0x1] %v2504
        %2531 = vst [vmem:[#allocation2 + $0x58] sm:$0x1] %v2506
        %v2532 = vld [vmem:[#allocation2] sm:$0xff]
        %v2533 = vld [vmem:[#allocation2 + $0x8] sm:$0xff]
        %v2534 = vld [vmem:[#allocation2 + $0x10] sm:$0xff]
        %v2535 = vld [vmem:[#allocation2 + $0x18] sm:$0xff]
        %v2536 = vld [vmem:[#allocation2 + $0x30] sm:$0xff]
        %v2537 = vld [vmem:[#allocation2 + $0x38] sm:$0xff]
        %v2538 = vld [vmem:[#allocation2 + $0x40] sm:$0xff]
        %v2539 = vld [vmem:[#allocation2 + $0x48] sm:$0xff]
        %v2540 = vld [vmem:[#allocation10] sm:$0xff]
        %v2541 = vld [vmem:[#allocation10 + $0x8] sm:$0xff]
        %v2542 = vld [vmem:[#allocation10 + $0x10] sm:$0xff]
        %v2543 = vld [vmem:[#allocation10 + $0x18] sm:$0xff]
        %v2544 = vld [vmem:[#allocation10 + $0x20] sm:$0xff]
        %v2545 = vld [vmem:[#allocation10 + $0x28] sm:$0xff]
        %v2546 = vld [vmem:[#allocation10 + $0x30] sm:$0xff]
        %v2547 = vld [vmem:[#allocation10 + $0x38] sm:$0xff]
        %v2548 = vld [vmem:[#allocation10 + $0x40] sm:$0xff]
        %v2549 = vld [vmem:[#allocation10 + $0x48] sm:$0xff]
        %v2550 = vld [vmem:[#allocation10 + $0x50] sm:$0xff]
        %v2551 = vld [vmem:[#allocation10 + $0x58] sm:$0xff]
        %v2552 = vld [vmem:[#allocation10 + $0x60] sm:$0xff]
        %v2553 = vld [vmem:[#allocation10 + $0x68] sm:$0xff]
        %v2554 = vld [vmem:[#allocation10 + $0x70] sm:$0xff]
        %v2555 = vld [vmem:[#allocation10 + $0x78] sm:$0xff]
        %v2556 = vld [vmem:[#allocation10 + $0x80] sm:$0xff]
        %v2557 = vld [vmem:[#allocation10 + $0x88] sm:$0xff]
        %v2558 = vld [vmem:[#allocation10 + $0x90] sm:$0xff]
        %v2559 = vld [vmem:[#allocation10 + $0x98] sm:$0xff]
        %v2560 = vld [vmem:[#allocation10 + $0xa0] sm:$0xff]
        %v2561 = vld [vmem:[#allocation10 + $0xa8] sm:$0xff]
        %v2562 = vld [vmem:[#allocation10 + $0xb0] sm:$0xff]
        %v2563 = vld [vmem:[#allocation10 + $0xb8] sm:$0xff]
        %v2564 = vld [vmem:[#allocation10 + $0xc0] sm:$0xff]
        %v2565 = vld [vmem:[#allocation10 + $0xc8] sm:$0xff]
        %v2566 = vld [vmem:[#allocation10 + $0xd0] sm:$0xff]
        %v2567 = vld [vmem:[#allocation10 + $0xd8] sm:$0xff]
        %v2568 = vld [vmem:[#allocation10 + $0xe0] sm:$0xff]
        %v2569 = vld [vmem:[#allocation10 + $0xe8] sm:$0xff]
        %v2570 = vld [vmem:[#allocation10 + $0xf0] sm:$0xff]
        %v2571 = vld [vmem:[#allocation10 + $0xf8] sm:$0xff]
        %v2572 = vld [vmem:[#allocation10 + $0x100] sm:$0xff]
        %v2573 = vld [vmem:[#allocation10 + $0x108] sm:$0xff]
        %v2574 = vld [vmem:[#allocation10 + $0x110] sm:$0xff]
        %v2575 = vld [vmem:[#allocation10 + $0x118] sm:$0xff]
        %v2576 = vld [vmem:[#allocation10 + $0x120] sm:$0xff]
        %v2577 = vld [vmem:[#allocation10 + $0x128] sm:$0xff]
        %v2578 = vld [vmem:[#allocation10 + $0x130] sm:$0xff]
        %v2579 = vld [vmem:[#allocation10 + $0x138] sm:$0xff]
        %v2580 = vld [vmem:[#allocation10 + $0x140] sm:$0xff]
        %v2581 = vld [vmem:[#allocation10 + $0x148] sm:$0xff]
        %v2582 = vld [vmem:[#allocation10 + $0x150] sm:$0xff]
        %v2583 = vld [vmem:[#allocation10 + $0x158] sm:$0xff]
        %v2584 = vld [vmem:[#allocation10 + $0x160] sm:$0xff]
        %v2585 = vld [vmem:[#allocation10 + $0x168] sm:$0xff]
        %v2586 = vld [vmem:[#allocation10 + $0x170] sm:$0xff]
        %v2587 = vld [vmem:[#allocation10 + $0x178] sm:$0xff]
        %v2588 = vld [vmem:[#allocation10 + $0x180] sm:$0xff]
        %v2589 = vld [vmem:[#allocation10 + $0x188] sm:$0xff]
        %v2590 = vld [vmem:[#allocation10 + $0x190] sm:$0xff]
        %v2591 = vld [vmem:[#allocation10 + $0x198] sm:$0xff]
        %v2592 = vld [vmem:[#allocation10 + $0x1a0] sm:$0xff]
        %v2593 = vld [vmem:[#allocation10 + $0x1a8] sm:$0xff]
        %v2594 = vld [vmem:[#allocation10 + $0x1b0] sm:$0xff]
        %v2595 = vld [vmem:[#allocation10 + $0x1b8] sm:$0xff]
        %v2596 = vld [vmem:[#allocation10 + $0x1c0] sm:$0xff]
        %v2597 = vld [vmem:[#allocation10 + $0x1c8] sm:$0xff]
        %v2598 = vld [vmem:[#allocation10 + $0x1d0] sm:$0xff]
        %v2599 = vld [vmem:[#allocation10 + $0x1d8] sm:$0xff]
        %v2600 = vld [vmem:[#allocation10 + $0x1e0] sm:$0xff]
        %v2601 = vld [vmem:[#allocation10 + $0x1e8] sm:$0xff]
        %v2602 = vld [vmem:[#allocation10 + $0x1f0] sm:$0xff]
        %v2603 = vld [vmem:[#allocation10 + $0x1f8] sm:$0xff]
        %v2604 = vld [vmem:[#allocation2] sm:$0xfe]
        %v2605 = vld [vmem:[#allocation2 + $0x8] sm:$0xfe]
        %v2606 = vld [vmem:[#allocation2 + $0x20] sm:$0x1]
        %v2607 = vld [vmem:[#allocation2 + $0x28] sm:$0x1]
        %v2608 = vld [vmem:[#allocation2 + $0x30] sm:$0xfe]
        %v2609 = vld [vmem:[#allocation2 + $0x38] sm:$0xfe]
        %v2610 = vld [vmem:[#allocation2 + $0x50] sm:$0x1]
        %v2611 = vld [vmem:[#allocation2 + $0x58] sm:$0x1]
        %v2624 = vrot.slane %v2604, 1
        %v2625 = vrot.slane %v2534, 1
        %v2626 = vsel %vm474, %v2624, %v2625
        %v2627 = vrot.slane %v2605, 1
        %v2628 = vrot.slane %v2535, 1
        %v2629 = vsel %vm474, %v2627, %v2628
        %v2630 = vrot.slane %v2606, 1
        %v2631 = vsel %vm474, %v2625, %v2630
        %v2632 = vrot.slane %v2607, 1
        %v2633 = vsel %vm474, %v2628, %v2632
        %v2634 = vrot.slane %v2608, 1
        %v2635 = vrot.slane %v2538, 1
        %v2636 = vsel %vm474, %v2634, %v2635
        %v2637 = vrot.slane %v2609, 1
        %v2638 = vrot.slane %v2539, 1
        %v2639 = vsel %vm474, %v2637, %v2638
        %v2640 = vrot.slane %v2610, 1
        %v2641 = vsel %vm474, %v2635, %v2640
        %v2642 = vrot.slane %v2611, 1
        %v2643 = vsel %vm474, %v2638, %v2642
        %v2652 = vld [vmem:[%s1216] sm:$0xff]
        %v2653 = vld [vmem:[%s1216 + $0x8] sm:$0xff]
        %v2654 = vld [vmem:[%s1216 + $0x10] sm:$0xff]
        %v2655 = vld [vmem:[%s1216 + $0x18] sm:$0xff]
        %v2656 = vld [vmem:[%s1216 + $0x20] sm:$0xff]
        %v2657 = vld [vmem:[%s1216 + $0x28] sm:$0xff]
        %v2658 = vld [vmem:[%s1216 + $0x30] sm:$0xff]
        %v2659 = vld [vmem:[%s1216 + $0x38] sm:$0xff]
        %v2660 = vld [vmem:[%s1216 + $0x40] sm:$0xff]
        %v2661 = vld [vmem:[%s1216 + $0x48] sm:$0xff]
        %v2662 = vld [vmem:[%s1216 + $0x50] sm:$0xff]
        %v2663 = vld [vmem:[%s1216 + $0x58] sm:$0xff]
        %v2664 = vld [vmem:[%s1216 + $0x60] sm:$0xff]
        %v2665 = vld [vmem:[%s1216 + $0x68] sm:$0xff]
        %v2666 = vld [vmem:[%s1216 + $0x70] sm:$0xff]
        %v2667 = vld [vmem:[%s1216 + $0x78] sm:$0xff]
        %v2668 = vld [vmem:[%s1216 + $0x80] sm:$0xff]
        %v2669 = vld [vmem:[%s1216 + $0x88] sm:$0xff]
        %v2670 = vld [vmem:[%s1216 + $0x90] sm:$0xff]
        %v2671 = vld [vmem:[%s1216 + $0x98] sm:$0xff]
        %v2672 = vld [vmem:[%s1216 + $0xa0] sm:$0xff]
        %v2673 = vld [vmem:[%s1216 + $0xa8] sm:$0xff]
        %v2674 = vld [vmem:[%s1216 + $0xb0] sm:$0xff]
        %v2675 = vld [vmem:[%s1216 + $0xb8] sm:$0xff]
        %v2676 = vld [vmem:[%s1216 + $0xc0] sm:$0xff]
        %v2677 = vld [vmem:[%s1216 + $0xc8] sm:$0xff]
        %v2678 = vld [vmem:[%s1216 + $0xd0] sm:$0xff]
        %v2679 = vld [vmem:[%s1216 + $0xd8] sm:$0xff]
        %v2680 = vld [vmem:[%s1216 + $0xe0] sm:$0xff]
        %v2681 = vld [vmem:[%s1216 + $0xe8] sm:$0xff]
        %v2682 = vld [vmem:[%s1216 + $0xf0] sm:$0xff]
        %v2683 = vld [vmem:[%s1216 + $0xf8] sm:$0xff]
        %v2684 = vld [vmem:[%s1216 + $0x100] sm:$0xff]
        %v2685 = vld [vmem:[%s1216 + $0x108] sm:$0xff]
        %v2686 = vld [vmem:[%s1216 + $0x110] sm:$0xff]
        %v2687 = vld [vmem:[%s1216 + $0x118] sm:$0xff]
        %v2688 = vld [vmem:[%s1216 + $0x120] sm:$0xff]
        %v2689 = vld [vmem:[%s1216 + $0x128] sm:$0xff]
        %v2690 = vld [vmem:[%s1216 + $0x130] sm:$0xff]
        %v2691 = vld [vmem:[%s1216 + $0x138] sm:$0xff]
        %v2692 = vld [vmem:[%s1216 + $0x140] sm:$0xff]
        %v2693 = vld [vmem:[%s1216 + $0x148] sm:$0xff]
        %v2694 = vld [vmem:[%s1216 + $0x150] sm:$0xff]
        %v2695 = vld [vmem:[%s1216 + $0x158] sm:$0xff]
        %v2696 = vld [vmem:[%s1216 + $0x160] sm:$0xff]
        %v2697 = vld [vmem:[%s1216 + $0x168] sm:$0xff]
        %v2698 = vld [vmem:[%s1216 + $0x170] sm:$0xff]
        %v2699 = vld [vmem:[%s1216 + $0x178] sm:$0xff]
        %v2700 = vld [vmem:[%s1216 + $0x180] sm:$0xff]
        %v2701 = vld [vmem:[%s1216 + $0x188] sm:$0xff]
        %v2702 = vld [vmem:[%s1216 + $0x190] sm:$0xff]
        %v2703 = vld [vmem:[%s1216 + $0x198] sm:$0xff]
        %v2704 = vld [vmem:[%s1216 + $0x1a0] sm:$0xff]
        %v2705 = vld [vmem:[%s1216 + $0x1a8] sm:$0xff]
        %v2706 = vld [vmem:[%s1216 + $0x1b0] sm:$0xff]
        %v2707 = vld [vmem:[%s1216 + $0x1b8] sm:$0xff]
        %v2708 = vld [vmem:[%s1216 + $0x1c0] sm:$0xff]
        %v2709 = vld [vmem:[%s1216 + $0x1c8] sm:$0xff]
        %v2710 = vld [vmem:[%s1216 + $0x1d0] sm:$0xff]
        %v2711 = vld [vmem:[%s1216 + $0x1d8] sm:$0xff]
        %v2712 = vld [vmem:[%s1216 + $0x1e0] sm:$0xff]
        %v2713 = vld [vmem:[%s1216 + $0x1e8] sm:$0xff]
        %v2714 = vld [vmem:[%s1216 + $0x1f0] sm:$0xff]
        %v2715 = vld [vmem:[%s1216 + $0x1f8] sm:$0xff]
        %2716 = vmatprep.subr.mxu0 %v2653
        %2717 = vmatpush1.msra.mxu0 %v2652
        %2718 = vmatprep.subr.mxu0 %v2655
        %2719 = vmatpush1.msra.mxu0 %v2654
        %2720 = vmatprep.subr.mxu0 %v2657
        %2721 = vmatpush1.msra.mxu0 %v2656
        %2722 = vmatprep.subr.mxu0 %v2659
        %2723 = vmatpush1.msra.mxu0 %v2658
        %2724 = vmatprep.subr.mxu0 %v2661
        %2725 = vmatpush1.msra.mxu0 %v2660
        %2726 = vmatprep.subr.mxu0 %v2663
        %2727 = vmatpush1.msra.mxu0 %v2662
        %2728 = vmatprep.subr.mxu0 %v2665
        %2729 = vmatpush1.msra.mxu0 %v2664
        %2730 = vmatprep.subr.mxu0 %v2667
        %2731 = vmatpush1.msra.mxu0 %v2666
        %2732 = vmatprep.subr.mxu0 %v2669
        %2733 = vmatpush1.msra.mxu0 %v2668
        %2734 = vmatprep.subr.mxu0 %v2671
        %2735 = vmatpush1.msra.mxu0 %v2670
        %2736 = vmatprep.subr.mxu0 %v2673
        %2737 = vmatpush1.msra.mxu0 %v2672
        %2738 = vmatprep.subr.mxu0 %v2675
        %2739 = vmatpush1.msra.mxu0 %v2674
        %2740 = vmatprep.subr.mxu0 %v2677
        %2741 = vmatpush1.msra.mxu0 %v2676
        %2742 = vmatprep.subr.mxu0 %v2679
        %2743 = vmatpush1.msra.mxu0 %v2678
        %2744 = vmatprep.subr.mxu0 %v2681
        %2745 = vmatpush1.msra.mxu0 %v2680
        %2746 = vmatprep.subr.mxu0 %v2683
        %2747 = vmatpush1.msra.mxu0 %v2682
        %2748 = vmatprep.subr.mxu0 %v2685
        %2749 = vmatpush1.msra.mxu0 %v2684
        %2750 = vmatprep.subr.mxu0 %v2687
        %2751 = vmatpush1.msra.mxu0 %v2686
        %2752 = vmatprep.subr.mxu0 %v2689
        %2753 = vmatpush1.msra.mxu0 %v2688
        %2754 = vmatprep.subr.mxu0 %v2691
        %2755 = vmatpush1.msra.mxu0 %v2690
        %2756 = vmatprep.subr.mxu0 %v2693
        %2757 = vmatpush1.msra.mxu0 %v2692
        %2758 = vmatprep.subr.mxu0 %v2695
        %2759 = vmatpush1.msra.mxu0 %v2694
        %2760 = vmatprep.subr.mxu0 %v2697
        %2761 = vmatpush1.msra.mxu0 %v2696
        %2762 = vmatprep.subr.mxu0 %v2699
        %2763 = vmatpush1.msra.mxu0 %v2698
        %2764 = vmatprep.subr.mxu0 %v2701
        %2765 = vmatpush1.msra.mxu0 %v2700
        %2766 = vmatprep.subr.mxu0 %v2703
        %2767 = vmatpush1.msra.mxu0 %v2702
        %2768 = vmatprep.subr.mxu0 %v2705
        %2769 = vmatpush1.msra.mxu0 %v2704
        %2770 = vmatprep.subr.mxu0 %v2707
        %2771 = vmatpush1.msra.mxu0 %v2706
        %2772 = vmatprep.subr.mxu0 %v2709
        %2773 = vmatpush1.msra.mxu0 %v2708
        %2774 = vmatprep.subr.mxu0 %v2711
        %2775 = vmatpush1.msra.mxu0 %v2710
        %2776 = vmatprep.subr.mxu0 %v2713
        %2777 = vmatpush1.msra.mxu0 %v2712
        %2778 = vmatprep.subr.mxu0 %v2715
        %2779 = vmatpush1.msra.mxu0 %v2714
        %2780 = vmatprep.mubr.f32.mxu0 %v2629
        %2781 = vmatmul.mubr.f32.gmra.mrb[0].mxu0 %v2626
        %v2782 = vpop.f32.mrb[0].mxu0
        %v2783 = vadd.f32 0.0, %v2782
        %v2784 = vpop.f32.mrb[0].mxu0
        %v2785 = vadd.f32 0.0, %v2784
        %2786 = vmatprep.mubr.f32.mxu0 %v2633
        %2787 = vmatmul.mubr.f32.gmra.mrb[0].mxu0 %v2631
        %v2788 = vpop.f32.mrb[0].mxu0
        %v2789 = vadd.f32 0.0, %v2788
        %v2790 = vpop.f32.mrb[0].mxu0
        %v2791 = vadd.f32 0.0, %v2790
        %2792 = vmatprep.mubr.f32.mxu0 %v2639
        %2793 = vmatmul.mubr.f32.gmra.mrb[0].mxu0 %v2636
        %v2794 = vpop.f32.mrb[0].mxu0
        %v2795 = vadd.f32 0.0, %v2794
        %v2796 = vpop.f32.mrb[0].mxu0
        %v2797 = vadd.f32 0.0, %v2796
        %2798 = vmatprep.mubr.f32.mxu0 %v2643
        %2799 = vmatmul.mubr.f32.gmra.mrb[0].mxu0 %v2641
        %v2800 = vpop.f32.mrb[0].mxu0
        %v2801 = vadd.f32 0.0, %v2800
        %v2802 = vpop.f32.mrb[0].mxu0
        %v2803 = vadd.f32 0.0, %v2802
        %2804 = vdwg.mxu0
        %2805 = vmatprep.subr.mxu0 %v2541
        %2806 = vmatpush1.msra.mxu0 %v2540
        %2807 = vmatprep.subr.mxu0 %v2543
        %2808 = vmatpush1.msra.mxu0 %v2542
        %2809 = vmatprep.subr.mxu0 %v2545
        %2810 = vmatpush1.msra.mxu0 %v2544
        %2811 = vmatprep.subr.mxu0 %v2547
        %2812 = vmatpush1.msra.mxu0 %v2546
        %2813 = vmatprep.subr.mxu0 %v2549
        %2814 = vmatpush1.msra.mxu0 %v2548
        %2815 = vmatprep.subr.mxu0 %v2551
        %2816 = vmatpush1.msra.mxu0 %v2550
        %2817 = vmatprep.subr.mxu0 %v2553
        %2818 = vmatpush1.msra.mxu0 %v2552
        %2819 = vmatprep.subr.mxu0 %v2555
        %2820 = vmatpush1.msra.mxu0 %v2554
        %2821 = vmatprep.subr.mxu0 %v2557
        %2822 = vmatpush1.msra.mxu0 %v2556
        %2823 = vmatprep.subr.mxu0 %v2559
        %2824 = vmatpush1.msra.mxu0 %v2558
        %2825 = vmatprep.subr.mxu0 %v2561
        %2826 = vmatpush1.msra.mxu0 %v2560
        %2827 = vmatprep.subr.mxu0 %v2563
        %2828 = vmatpush1.msra.mxu0 %v2562
        %2829 = vmatprep.subr.mxu0 %v2565
        %2830 = vmatpush1.msra.mxu0 %v2564
        %2831 = vmatprep.subr.mxu0 %v2567
        %2832 = vmatpush1.msra.mxu0 %v2566
        %2833 = vmatprep.subr.mxu0 %v2569
        %2834 = vmatpush1.msra.mxu0 %v2568
        %2835 = vmatprep.subr.mxu0 %v2571
        %2836 = vmatpush1.msra.mxu0 %v2570
        %2837 = vmatprep.subr.mxu0 %v2573
        %2838 = vmatpush1.msra.mxu0 %v2572
        %2839 = vmatprep.subr.mxu0 %v2575
        %2840 = vmatpush1.msra.mxu0 %v2574
        %2841 = vmatprep.subr.mxu0 %v2577
        %2842 = vmatpush1.msra.mxu0 %v2576
        %2843 = vmatprep.subr.mxu0 %v2579
        %2844 = vmatpush1.msra.mxu0 %v2578
        %2845 = vmatprep.subr.mxu0 %v2581
        %2846 = vmatpush1.msra.mxu0 %v2580
        %2847 = vmatprep.subr.mxu0 %v2583
        %2848 = vmatpush1.msra.mxu0 %v2582
        %2849 = vmatprep.subr.mxu0 %v2585
        %2850 = vmatpush1.msra.mxu0 %v2584
        %2851 = vmatprep.subr.mxu0 %v2587
        %2852 = vmatpush1.msra.mxu0 %v2586
        %2853 = vmatprep.subr.mxu0 %v2589
        %2854 = vmatpush1.msra.mxu0 %v2588
        %2855 = vmatprep.subr.mxu0 %v2591
        %2856 = vmatpush1.msra.mxu0 %v2590
        %2857 = vmatprep.subr.mxu0 %v2593
        %2858 = vmatpush1.msra.mxu0 %v2592
        %2859 = vmatprep.subr.mxu0 %v2595
        %2860 = vmatpush1.msra.mxu0 %v2594
        %2861 = vmatprep.subr.mxu0 %v2597
        %2862 = vmatpush1.msra.mxu0 %v2596
        %2863 = vmatprep.subr.mxu0 %v2599
        %2864 = vmatpush1.msra.mxu0 %v2598
        %2865 = vmatprep.subr.mxu0 %v2601
        %2866 = vmatpush1.msra.mxu0 %v2600
        %2867 = vmatprep.subr.mxu0 %v2603
        %2868 = vmatpush1.msra.mxu0 %v2602
        %2869 = vmatprep.mubr.f32.mxu0 %v2533
        %2870 = vmatmul.mubr.f32.gmra.mrb[0].mxu0 %v2532
        %v2871 = vpop.f32.mrb[0].mxu0
        %v2872 = vadd.f32 %v2783, %v2871
        %v2873 = vpop.f32.mrb[0].mxu0
        %v2874 = vadd.f32 %v2785, %v2873
        %2875 = vmatprep.mubr.f32.mxu0 %v2535
        %2876 = vmatmul.mubr.f32.gmra.mrb[0].mxu0 %v2534
        %v2877 = vpop.f32.mrb[0].mxu0
        %v2878 = vadd.f32 %v2789, %v2877
        %v2879 = vpop.f32.mrb[0].mxu0
        %v2880 = vadd.f32 %v2791, %v2879
        %2881 = vmatprep.mubr.f32.mxu0 %v2537
        %2882 = vmatmul.mubr.f32.gmra.mrb[0].mxu0 %v2536
        %v2883 = vpop.f32.mrb[0].mxu0
        %v2884 = vadd.f32 %v2795, %v2883
        %v2885 = vpop.f32.mrb[0].mxu0
        %v2886 = vadd.f32 %v2797, %v2885
        %2887 = vmatprep.mubr.f32.mxu0 %v2539
        %2888 = vmatmul.mubr.f32.gmra.mrb[0].mxu0 %v2538
        %v2889 = vpop.f32.mrb[0].mxu0
        %v2890 = vadd.f32 %v2801, %v2889
        %v2891 = vpop.f32.mrb[0].mxu0
        %v2892 = vadd.f32 %v2803, %v2891
        %2893 = vdwg.mxu0
        %v2894 = vld [vmem:[#allocation2] sm:$0xfc]
        %v2895 = vld [vmem:[#allocation2 + $0x8] sm:$0xfc]
        %v2896 = vld [vmem:[#allocation2 + $0x20] sm:$0x3]
        %v2897 = vld [vmem:[#allocation2 + $0x28] sm:$0x3]
        %v2898 = vld [vmem:[#allocation2 + $0x30] sm:$0xfc]
        %v2899 = vld [vmem:[#allocation2 + $0x38] sm:$0xfc]
        %v2900 = vld [vmem:[#allocation2 + $0x50] sm:$0x3]
        %v2901 = vld [vmem:[#allocation2 + $0x58] sm:$0x3]
        %v2910 = vrot.slane %v2894, 2
        %v2911 = vrot.slane %v2534, 2
        %v2912 = vsel %vm762, %v2910, %v2911
        %v2913 = vrot.slane %v2895, 2
        %v2914 = vrot.slane %v2535, 2
        %v2915 = vsel %vm762, %v2913, %v2914
        %v2916 = vrot.slane %v2896, 2
        %v2917 = vsel %vm762, %v2911, %v2916
        %v2918 = vrot.slane %v2897, 2
        %v2919 = vsel %vm762, %v2914, %v2918
        %v2920 = vrot.slane %v2898, 2
        %v2921 = vrot.slane %v2538, 2
        %v2922 = vsel %vm762, %v2920, %v2921
        %v2923 = vrot.slane %v2899, 2
        %v2924 = vrot.slane %v2539, 2
        %v2925 = vsel %vm762, %v2923, %v2924
        %v2926 = vrot.slane %v2900, 2
        %v2927 = vsel %vm762, %v2921, %v2926
        %v2928 = vrot.slane %v2901, 2
        %v2929 = vsel %vm762, %v2924, %v2928
        %v2938 = vld [vmem:[%s1503] sm:$0xff]
        %v2939 = vld [vmem:[%s1503 + $0x8] sm:$0xff]
        %v2940 = vld [vmem:[%s1503 + $0x10] sm:$0xff]
        %v2941 = vld [vmem:[%s1503 + $0x18] sm:$0xff]
        %v2942 = vld [vmem:[%s1503 + $0x20] sm:$0xff]
        %v2943 = vld [vmem:[%s1503 + $0x28] sm:$0xff]
        %v2944 = vld [vmem:[%s1503 + $0x30] sm:$0xff]
        %v2945 = vld [vmem:[%s1503 + $0x38] sm:$0xff]
        %v2946 = vld [vmem:[%s1503 + $0x40] sm:$0xff]
        %v2947 = vld [vmem:[%s1503 + $0x48] sm:$0xff]
        %v2948 = vld [vmem:[%s1503 + $0x50] sm:$0xff]
        %v2949 = vld [vmem:[%s1503 + $0x58] sm:$0xff]
        %v2950 = vld [vmem:[%s1503 + $0x60] sm:$0xff]
        %v2951 = vld [vmem:[%s1503 + $0x68] sm:$0xff]
        %v2952 = vld [vmem:[%s1503 + $0x70] sm:$0xff]
        %v2953 = vld [vmem:[%s1503 + $0x78] sm:$0xff]
        %v2954 = vld [vmem:[%s1503 + $0x80] sm:$0xff]
        %v2955 = vld [vmem:[%s1503 + $0x88] sm:$0xff]
        %v2956 = vld [vmem:[%s1503 + $0x90] sm:$0xff]
        %v2957 = vld [vmem:[%s1503 + $0x98] sm:$0xff]
        %v2958 = vld [vmem:[%s1503 + $0xa0] sm:$0xff]
        %v2959 = vld [vmem:[%s1503 + $0xa8] sm:$0xff]
        %v2960 = vld [vmem:[%s1503 + $0xb0] sm:$0xff]
        %v2961 = vld [vmem:[%s1503 + $0xb8] sm:$0xff]
        %v2962 = vld [vmem:[%s1503 + $0xc0] sm:$0xff]
        %v2963 = vld [vmem:[%s1503 + $0xc8] sm:$0xff]
        %v2964 = vld [vmem:[%s1503 + $0xd0] sm:$0xff]
        %v2965 = vld [vmem:[%s1503 + $0xd8] sm:$0xff]
        %v2966 = vld [vmem:[%s1503 + $0xe0] sm:$0xff]
        %v2967 = vld [vmem:[%s1503 + $0xe8] sm:$0xff]
        %v2968 = vld [vmem:[%s1503 + $0xf0] sm:$0xff]
        %v2969 = vld [vmem:[%s1503 + $0xf8] sm:$0xff]
        %v2970 = vld [vmem:[%s1503 + $0x100] sm:$0xff]
        %v2971 = vld [vmem:[%s1503 + $0x108] sm:$0xff]
        %v2972 = vld [vmem:[%s1503 + $0x110] sm:$0xff]
        %v2973 = vld [vmem:[%s1503 + $0x118] sm:$0xff]
        %v2974 = vld [vmem:[%s1503 + $0x120] sm:$0xff]
        %v2975 = vld [vmem:[%s1503 + $0x128] sm:$0xff]
        %v2976 = vld [vmem:[%s1503 + $0x130] sm:$0xff]
        %v2977 = vld [vmem:[%s1503 + $0x138] sm:$0xff]
        %v2978 = vld [vmem:[%s1503 + $0x140] sm:$0xff]
        %v2979 = vld [vmem:[%s1503 + $0x148] sm:$0xff]
        %v2980 = vld [vmem:[%s1503 + $0x150] sm:$0xff]
        %v2981 = vld [vmem:[%s1503 + $0x158] sm:$0xff]
        %v2982 = vld [vmem:[%s1503 + $0x160] sm:$0xff]
        %v2983 = vld [vmem:[%s1503 + $0x168] sm:$0xff]
        %v2984 = vld [vmem:[%s1503 + $0x170] sm:$0xff]
        %v2985 = vld [vmem:[%s1503 + $0x178] sm:$0xff]
        %v2986 = vld [vmem:[%s1503 + $0x180] sm:$0xff]
        %v2987 = vld [vmem:[%s1503 + $0x188] sm:$0xff]
        %v2988 = vld [vmem:[%s1503 + $0x190] sm:$0xff]
        %v2989 = vld [vmem:[%s1503 + $0x198] sm:$0xff]
        %v2990 = vld [vmem:[%s1503 + $0x1a0] sm:$0xff]
        %v2991 = vld [vmem:[%s1503 + $0x1a8] sm:$0xff]
        %v2992 = vld [vmem:[%s1503 + $0x1b0] sm:$0xff]
        %v2993 = vld [vmem:[%s1503 + $0x1b8] sm:$0xff]
        %v2994 = vld [vmem:[%s1503 + $0x1c0] sm:$0xff]
        %v2995 = vld [vmem:[%s1503 + $0x1c8] sm:$0xff]
        %v2996 = vld [vmem:[%s1503 + $0x1d0] sm:$0xff]
        %v2997 = vld [vmem:[%s1503 + $0x1d8] sm:$0xff]
        %v2998 = vld [vmem:[%s1503 + $0x1e0] sm:$0xff]
        %v2999 = vld [vmem:[%s1503 + $0x1e8] sm:$0xff]
        %v3000 = vld [vmem:[%s1503 + $0x1f0] sm:$0xff]
        %v3001 = vld [vmem:[%s1503 + $0x1f8] sm:$0xff]
        %3002 = vmatprep.subr.mxu0 %v2939
        %3003 = vmatpush1.msra.mxu0 %v2938
        %3004 = vmatprep.subr.mxu0 %v2941
        %3005 = vmatpush1.msra.mxu0 %v2940
        %3006 = vmatprep.subr.mxu0 %v2943
        %3007 = vmatpush1.msra.mxu0 %v2942
        %3008 = vmatprep.subr.mxu0 %v2945
        %3009 = vmatpush1.msra.mxu0 %v2944
        %3010 = vmatprep.subr.mxu0 %v2947
        %3011 = vmatpush1.msra.mxu0 %v2946
        %3012 = vmatprep.subr.mxu0 %v2949
        %3013 = vmatpush1.msra.mxu0 %v2948
        %3014 = vmatprep.subr.mxu0 %v2951
        %3015 = vmatpush1.msra.mxu0 %v2950
        %3016 = vmatprep.subr.mxu0 %v2953
        %3017 = vmatpush1.msra.mxu0 %v2952
        %3018 = vmatprep.subr.mxu0 %v2955
        %3019 = vmatpush1.msra.mxu0 %v2954
        %3020 = vmatprep.subr.mxu0 %v2957
        %3021 = vmatpush1.msra.mxu0 %v2956
        %3022 = vmatprep.subr.mxu0 %v2959
        %3023 = vmatpush1.msra.mxu0 %v2958
        %3024 = vmatprep.subr.mxu0 %v2961
        %3025 = vmatpush1.msra.mxu0 %v2960
        %3026 = vmatprep.subr.mxu0 %v2963
        %3027 = vmatpush1.msra.mxu0 %v2962
        %3028 = vmatprep.subr.mxu0 %v2965
        %3029 = vmatpush1.msra.mxu0 %v2964
        %3030 = vmatprep.subr.mxu0 %v2967
        %3031 = vmatpush1.msra.mxu0 %v2966
        %3032 = vmatprep.subr.mxu0 %v2969
        %3033 = vmatpush1.msra.mxu0 %v2968
        %3034 = vmatprep.subr.mxu0 %v2971
        %3035 = vmatpush1.msra.mxu0 %v2970
        %3036 = vmatprep.subr.mxu0 %v2973
        %3037 = vmatpush1.msra.mxu0 %v2972
        %3038 = vmatprep.subr.mxu0 %v2975
        %3039 = vmatpush1.msra.mxu0 %v2974
        %3040 = vmatprep.subr.mxu0 %v2977
        %3041 = vmatpush1.msra.mxu0 %v2976
        %3042 = vmatprep.subr.mxu0 %v2979
        %3043 = vmatpush1.msra.mxu0 %v2978
        %3044 = vmatprep.subr.mxu0 %v2981
        %3045 = vmatpush1.msra.mxu0 %v2980
        %3046 = vmatprep.subr.mxu0 %v2983
        %3047 = vmatpush1.msra.mxu0 %v2982
        %3048 = vmatprep.subr.mxu0 %v2985
        %3049 = vmatpush1.msra.mxu0 %v2984
        %3050 = vmatprep.subr.mxu0 %v2987
        %3051 = vmatpush1.msra.mxu0 %v2986
        %3052 = vmatprep.subr.mxu0 %v2989
        %3053 = vmatpush1.msra.mxu0 %v2988
        %3054 = vmatprep.subr.mxu0 %v2991
        %3055 = vmatpush1.msra.mxu0 %v2990
        %3056 = vmatprep.subr.mxu0 %v2993
        %3057 = vmatpush1.msra.mxu0 %v2992
        %3058 = vmatprep.subr.mxu0 %v2995
        %3059 = vmatpush1.msra.mxu0 %v2994
        %3060 = vmatprep.subr.mxu0 %v2997
        %3061 = vmatpush1.msra.mxu0 %v2996
        %3062 = vmatprep.subr.mxu0 %v2999
        %3063 = vmatpush1.msra.mxu0 %v2998
        %3064 = vmatprep.subr.mxu0 %v3001
        %3065 = vmatpush1.msra.mxu0 %v3000
        %3066 = vmatprep.mubr.f32.mxu0 %v2915
        %3067 = vmatmul.mubr.f32.gmra.mrb[0].mxu0 %v2912
        %v3068 = vpop.f32.mrb[0].mxu0
        %v3069 = vadd.f32 0.0, %v3068
        %v3070 = vpop.f32.mrb[0].mxu0
        %v3071 = vadd.f32 0.0, %v3070
        %3072 = vmatprep.mubr.f32.mxu0 %v2919
        %3073 = vmatmul.mubr.f32.gmra.mrb[0].mxu0 %v2917
        %v3074 = vpop.f32.mrb[0].mxu0
        %v3075 = vadd.f32 0.0, %v3074
        %v3076 = vpop.f32.mrb[0].mxu0
        %v3077 = vadd.f32 0.0, %v3076
        %3078 = vmatprep.mubr.f32.mxu0 %v2925
        %3079 = vmatmul.mubr.f32.gmra.mrb[0].mxu0 %v2922
        %v3080 = vpop.f32.mrb[0].mxu0
        %v3081 = vadd.f32 0.0, %v3080
        %v3082 = vpop.f32.mrb[0].mxu0
        %v3083 = vadd.f32 0.0, %v3082
        %3084 = vmatprep.mubr.f32.mxu0 %v2929
        %3085 = vmatmul.mubr.f32.gmra.mrb[0].mxu0 %v2927
        %v3086 = vpop.f32.mrb[0].mxu0
        %v3087 = vadd.f32 0.0, %v3086
        %v3088 = vpop.f32.mrb[0].mxu0
        %v3089 = vadd.f32 0.0, %v3088
        %3090 = vdwg.mxu0
        %v3091 = vadd.f32 %v2872, %v3069
        %v3092 = vadd.f32 %v2874, %v3071
        %v3093 = vadd.f32 %v2878, %v3075
        %v3094 = vadd.f32 %v2880, %v3077
        %v3095 = vadd.f32 %v2884, %v3081
        %v3096 = vadd.f32 %v2886, %v3083
        %v3097 = vadd.f32 %v2890, %v3087
        %v3098 = vadd.f32 %v2892, %v3089
        %v3099 = vadd.f32 %v3091, %v1669
        %v3100 = vadd.f32 %v3092, %v1673
        %v3101 = vadd.f32 %v3093, %v1669
        %v3102 = vadd.f32 %v3094, %v1673
        %v3103 = vadd.f32 %v3095, %v1669
        %v3104 = vadd.f32 %v3096, %v1673
        %v3105 = vadd.f32 %v3097, %v1669
        %v3106 = vadd.f32 %v3098, %v1673
        %v3107 = vld [vmem:[#allocation4] sm:$0xff]
        %v3108 = vld [vmem:[#allocation4 + $0x8] sm:$0xff]
        %v3109 = vld [vmem:[#allocation4 + $0x10] sm:$0xff]
        %v3110 = vld [vmem:[#allocation4 + $0x18] sm:$0xff]
        %v3111 = vld [vmem:[#allocation4 + $0x20] sm:$0xff]
        %v3112 = vld [vmem:[#allocation4 + $0x28] sm:$0xff]
        %v3113 = vld [vmem:[#allocation4 + $0x30] sm:$0xff]
        %v3114 = vld [vmem:[#allocation4 + $0x38] sm:$0xff]
        %v3115 = vsub.f32 %v3099, %v3107
        %v3116 = vsub.f32 %v3100, %v3108
        %v3117 = vsub.f32 %v3101, %v3109
        %v3118 = vsub.f32 %v3102, %v3110
        %v3119 = vsub.f32 %v3103, %v3111
        %v3120 = vsub.f32 %v3104, %v3112
        %v3121 = vsub.f32 %v3105, %v3113
        %v3122 = vsub.f32 %v3106, %v3114
        %v3123 = vmul.f32 %v3115, 0.5
        %v3124 = vmul.f32 %v3116, 0.5
        %v3125 = vmul.f32 %v3117, 0.5
        %v3126 = vmul.f32 %v3118, 0.5
        %v3127 = vmul.f32 %v3119, 0.5
        %v3128 = vmul.f32 %v3120, 0.5
        %v3129 = vmul.f32 %v3121, 0.5
        %v3130 = vmul.f32 %v3122, 0.5
        %v3131 = vadd.f32 %v3107, %v3123
        %v3132 = vadd.f32 %v3108, %v3124
        %v3133 = vadd.f32 %v3109, %v3125
        %v3134 = vadd.f32 %v3110, %v3126
        %v3135 = vadd.f32 %v3111, %v3127
        %v3136 = vadd.f32 %v3112, %v3128
        %v3137 = vadd.f32 %v3113, %v3129
        %v3138 = vadd.f32 %v3114, %v3130
        %vm3139 = vcmp.ge.f32.partialorder %v3131, 1.0
        %vm3140 = vcmp.ge.f32.partialorder %v3132, 1.0
        %vm3141 = vcmp.ge.f32.partialorder %v3133, 1.0
        %vm3142 = vcmp.ge.f32.partialorder %v3134, 1.0
        %vm3143 = vcmp.ge.f32.partialorder %v3135, 1.0
        %vm3144 = vcmp.ge.f32.partialorder %v3136, 1.0
        %vm3145 = vcmp.ge.f32.partialorder %v3137, 1.0
        %vm3146 = vcmp.ge.f32.partialorder %v3138, 1.0
        %v3147 = vsel %vm3139, 1, 0
        %v3148 = vsel %vm3140, 1, 0
        %v3149 = vsel %vm3141, 1, 0
        %v3150 = vsel %vm3142, 1, 0
        %v3151 = vsel %vm3143, 1, 0
        %v3152 = vsel %vm3144, 1, 0
        %v3153 = vsel %vm3145, 1, 0
        %v3154 = vsel %vm3146, 1, 0
        %v3155 = vcvt.s32.f32 %v3147
        %v3156 = vcvt.s32.f32 %v3148
        %v3157 = vcvt.s32.f32 %v3149
        %v3158 = vcvt.s32.f32 %v3150
        %v3159 = vcvt.s32.f32 %v3151
        %v3160 = vcvt.s32.f32 %v3152
        %v3161 = vcvt.s32.f32 %v3153
        %v3162 = vcvt.s32.f32 %v3154
        %v3163 = vsub.f32 1.0, %v3155
        %v3164 = vsub.f32 1.0, %v3156
        %v3165 = vsub.f32 1.0, %v3157
        %v3166 = vsub.f32 1.0, %v3158
        %v3167 = vsub.f32 1.0, %v3159
        %v3168 = vsub.f32 1.0, %v3160
        %v3169 = vsub.f32 1.0, %v3161
        %v3170 = vsub.f32 1.0, %v3162
        %v3171 = vmul.f32 %v3131, %v3163
        %v3172 = vmul.f32 %v3132, %v3164
        %v3173 = vmul.f32 %v3133, %v3165
        %v3174 = vmul.f32 %v3134, %v3166
        %v3175 = vmul.f32 %v3135, %v3167
        %v3176 = vmul.f32 %v3136, %v3168
        %v3177 = vmul.f32 %v3137, %v3169
        %v3178 = vmul.f32 %v3138, %v3170
        %3179 = vst [vmem:[#allocation4] sm:$0xff] %v3171
        %3180 = vst [vmem:[#allocation4 + $0x8] sm:$0xff] %v3172
        %3181 = vst [vmem:[#allocation4 + $0x10] sm:$0xff] %v3173
        %3182 = vst [vmem:[#allocation4 + $0x18] sm:$0xff] %v3174
        %3183 = vst [vmem:[#allocation4 + $0x20] sm:$0xff] %v3175
        %3184 = vst [vmem:[#allocation4 + $0x28] sm:$0xff] %v3176
        %3185 = vst [vmem:[#allocation4 + $0x30] sm:$0xff] %v3177
        %3186 = vst [vmem:[#allocation4 + $0x38] sm:$0xff] %v3178
        %v3187 = vadd.f32 %v3155, %v1781
        %v3188 = vadd.f32 %v3156, %v1782
        %v3189 = vadd.f32 %v3157, %v1783
        %v3190 = vadd.f32 %v3158, %v1784
        %v3191 = vadd.f32 %v3159, %v1785
        %v3192 = vadd.f32 %v3160, %v1786
        %v3193 = vadd.f32 %v3161, %v1787
        %v3194 = vadd.f32 %v3162, %v1788
        %s3195 = scalar_lea.vmem %s289, 64 [#allocation11]
        %3196 = vst [vmem:[%s3195] sm:$0xff] %v3187
        %3197 = vst [vmem:[%s3195 + $0x8] sm:$0xff] %v3188
        %3198 = vst [vmem:[%s3195 + $0x10] sm:$0xff] %v3189
        %3199 = vst [vmem:[%s3195 + $0x18] sm:$0xff] %v3190
        %3200 = vst [vmem:[%s3195 + $0x20] sm:$0xff] %v3191
        %3201 = vst [vmem:[%s3195 + $0x28] sm:$0xff] %v3192
        %3202 = vst [vmem:[%s3195 + $0x30] sm:$0xff] %v3193
        %3203 = vst [vmem:[%s3195 + $0x38] sm:$0xff] %v3194
        %s3204 = scalar_lea.vmem %s257, 128 [#allocation5]
        %v3205 = vld [vmem:[%s3204] sm:$0xff]
        %v3206 = vld [vmem:[%s3204 + $0x8] sm:$0xff]
        %v3207 = vld [vmem:[%s3204 + $0x10] sm:$0xff]
        %v3208 = vld [vmem:[%s3204 + $0x18] sm:$0xff]
        %v3209 = vld [vmem:[%s3204 + $0x20] sm:$0xff]
        %v3210 = vld [vmem:[%s3204 + $0x28] sm:$0xff]
        %v3211 = vld [vmem:[%s3204 + $0x30] sm:$0xff]
        %v3212 = vld [vmem:[%s3204 + $0x38] sm:$0xff]
        %v3221 = vrot.slane %v3205, 7
        %v3222 = vrot.slane %v3206, 7
        %v3223 = vrot.slane %v3207, 7
        %v3224 = vsel %vm345, %v3221, %v3223
        %v3225 = vrot.slane %v3208, 7
        %v3226 = vsel %vm345, %v3222, %v3225
        %v3227 = vrot.slane %v3209, 7
        %v3228 = vrot.slane %v3210, 7
        %v3229 = vrot.slane %v3211, 7
        %v3230 = vsel %vm345, %v3227, %v3229
        %v3231 = vrot.slane %v3212, 7
        %v3232 = vsel %vm345, %v3228, %v3231
        %3245 = vst [vmem:[#allocation2] sm:$0xfe] %v3221
        %3246 = vst [vmem:[#allocation2 + $0x8] sm:$0xfe] %v3222
        %3247 = vst [vmem:[#allocation2 + $0x10] sm:$0xff] %v3224
        %3248 = vst [vmem:[#allocation2 + $0x18] sm:$0xff] %v3226
        %3249 = vst [vmem:[#allocation2 + $0x20] sm:$0x1] %v3223
        %3250 = vst [vmem:[#allocation2 + $0x28] sm:$0x1] %v3225
        %3251 = vst [vmem:[#allocation2 + $0x30] sm:$0xfe] %v3227
        %3252 = vst [vmem:[#allocation2 + $0x38] sm:$0xfe] %v3228
        %3253 = vst [vmem:[#allocation2 + $0x40] sm:$0xff] %v3230
        %3254 = vst [vmem:[#allocation2 + $0x48] sm:$0xff] %v3232
        %3255 = vst [vmem:[#allocation2 + $0x50] sm:$0x1] %v3229
        %3256 = vst [vmem:[#allocation2 + $0x58] sm:$0x1] %v3231
        %v3257 = vld [vmem:[#allocation2] sm:$0xff]
        %v3258 = vld [vmem:[#allocation2 + $0x8] sm:$0xff]
        %v3259 = vld [vmem:[#allocation2 + $0x10] sm:$0xff]
        %v3260 = vld [vmem:[#allocation2 + $0x18] sm:$0xff]
        %v3261 = vld [vmem:[#allocation2 + $0x30] sm:$0xff]
        %v3262 = vld [vmem:[#allocation2 + $0x38] sm:$0xff]
        %v3263 = vld [vmem:[#allocation2 + $0x40] sm:$0xff]
        %v3264 = vld [vmem:[#allocation2 + $0x48] sm:$0xff]
        %v3265 = vld [vmem:[#allocation8] sm:$0xff]
        %v3266 = vld [vmem:[#allocation8 + $0x8] sm:$0xff]
        %v3267 = vld [vmem:[#allocation8 + $0x10] sm:$0xff]
        %v3268 = vld [vmem:[#allocation8 + $0x18] sm:$0xff]
        %v3269 = vld [vmem:[#allocation8 + $0x20] sm:$0xff]
        %v3270 = vld [vmem:[#allocation8 + $0x28] sm:$0xff]
        %v3271 = vld [vmem:[#allocation8 + $0x30] sm:$0xff]
        %v3272 = vld [vmem:[#allocation8 + $0x38] sm:$0xff]
        %v3273 = vld [vmem:[#allocation8 + $0x40] sm:$0xff]
        %v3274 = vld [vmem:[#allocation8 + $0x48] sm:$0xff]
        %v3275 = vld [vmem:[#allocation8 + $0x50] sm:$0xff]
        %v3276 = vld [vmem:[#allocation8 + $0x58] sm:$0xff]
        %v3277 = vld [vmem:[#allocation8 + $0x60] sm:$0xff]
        %v3278 = vld [vmem:[#allocation8 + $0x68] sm:$0xff]
        %v3279 = vld [vmem:[#allocation8 + $0x70] sm:$0xff]
        %v3280 = vld [vmem:[#allocation8 + $0x78] sm:$0xff]
        %v3281 = vld [vmem:[#allocation8 + $0x80] sm:$0xff]
        %v3282 = vld [vmem:[#allocation8 + $0x88] sm:$0xff]
        %v3283 = vld [vmem:[#allocation8 + $0x90] sm:$0xff]
        %v3284 = vld [vmem:[#allocation8 + $0x98] sm:$0xff]
        %v3285 = vld [vmem:[#allocation8 + $0xa0] sm:$0xff]
        %v3286 = vld [vmem:[#allocation8 + $0xa8] sm:$0xff]
        %v3287 = vld [vmem:[#allocation8 + $0xb0] sm:$0xff]
        %v3288 = vld [vmem:[#allocation8 + $0xb8] sm:$0xff]
        %v3289 = vld [vmem:[#allocation8 + $0xc0] sm:$0xff]
        %v3290 = vld [vmem:[#allocation8 + $0xc8] sm:$0xff]
        %v3291 = vld [vmem:[#allocation8 + $0xd0] sm:$0xff]
        %v3292 = vld [vmem:[#allocation8 + $0xd8] sm:$0xff]
        %v3293 = vld [vmem:[#allocation8 + $0xe0] sm:$0xff]
        %v3294 = vld [vmem:[#allocation8 + $0xe8] sm:$0xff]
        %v3295 = vld [vmem:[#allocation8 + $0xf0] sm:$0xff]
        %v3296 = vld [vmem:[#allocation8 + $0xf8] sm:$0xff]
        %v3297 = vld [vmem:[#allocation8 + $0x100] sm:$0xff]
        %v3298 = vld [vmem:[#allocation8 + $0x108] sm:$0xff]
        %v3299 = vld [vmem:[#allocation8 + $0x110] sm:$0xff]
        %v3300 = vld [vmem:[#allocation8 + $0x118] sm:$0xff]
        %v3301 = vld [vmem:[#allocation8 + $0x120] sm:$0xff]
        %v3302 = vld [vmem:[#allocation8 + $0x128] sm:$0xff]
        %v3303 = vld [vmem:[#allocation8 + $0x130] sm:$0xff]
        %v3304 = vld [vmem:[#allocation8 + $0x138] sm:$0xff]
        %v3305 = vld [vmem:[#allocation8 + $0x140] sm:$0xff]
        %v3306 = vld [vmem:[#allocation8 + $0x148] sm:$0xff]
        %v3307 = vld [vmem:[#allocation8 + $0x150] sm:$0xff]
        %v3308 = vld [vmem:[#allocation8 + $0x158] sm:$0xff]
        %v3309 = vld [vmem:[#allocation8 + $0x160] sm:$0xff]
        %v3310 = vld [vmem:[#allocation8 + $0x168] sm:$0xff]
        %v3311 = vld [vmem:[#allocation8 + $0x170] sm:$0xff]
        %v3312 = vld [vmem:[#allocation8 + $0x178] sm:$0xff]
        %v3313 = vld [vmem:[#allocation8 + $0x180] sm:$0xff]
        %v3314 = vld [vmem:[#allocation8 + $0x188] sm:$0xff]
        %v3315 = vld [vmem:[#allocation8 + $0x190] sm:$0xff]
        %v3316 = vld [vmem:[#allocation8 + $0x198] sm:$0xff]
        %v3317 = vld [vmem:[#allocation8 + $0x1a0] sm:$0xff]
        %v3318 = vld [vmem:[#allocation8 + $0x1a8] sm:$0xff]
        %v3319 = vld [vmem:[#allocation8 + $0x1b0] sm:$0xff]
        %v3320 = vld [vmem:[#allocation8 + $0x1b8] sm:$0xff]
        %v3321 = vld [vmem:[#allocation8 + $0x1c0] sm:$0xff]
        %v3322 = vld [vmem:[#allocation8 + $0x1c8] sm:$0xff]
        %v3323 = vld [vmem:[#allocation8 + $0x1d0] sm:$0xff]
        %v3324 = vld [vmem:[#allocation8 + $0x1d8] sm:$0xff]
        %v3325 = vld [vmem:[#allocation8 + $0x1e0] sm:$0xff]
        %v3326 = vld [vmem:[#allocation8 + $0x1e8] sm:$0xff]
        %v3327 = vld [vmem:[#allocation8 + $0x1f0] sm:$0xff]
        %v3328 = vld [vmem:[#allocation8 + $0x1f8] sm:$0xff]
        %v3329 = vld [vmem:[#allocation2] sm:$0xfe]
        %v3330 = vld [vmem:[#allocation2 + $0x8] sm:$0xfe]
        %v3331 = vld [vmem:[#allocation2 + $0x20] sm:$0x1]
        %v3332 = vld [vmem:[#allocation2 + $0x28] sm:$0x1]
        %v3333 = vld [vmem:[#allocation2 + $0x30] sm:$0xfe]
        %v3334 = vld [vmem:[#allocation2 + $0x38] sm:$0xfe]
        %v3335 = vld [vmem:[#allocation2 + $0x50] sm:$0x1]
        %v3336 = vld [vmem:[#allocation2 + $0x58] sm:$0x1]
        %v3349 = vrot.slane %v3329, 1
        %v3350 = vrot.slane %v3259, 1
        %v3351 = vsel %vm474, %v3349, %v3350
        %v3352 = vrot.slane %v3330, 1
        %v3353 = vrot.slane %v3260, 1
        %v3354 = vsel %vm474, %v3352, %v3353
        %v3355 = vrot.slane %v3331, 1
        %v3356 = vsel %vm474, %v3350, %v3355
        %v3357 = vrot.slane %v3332, 1
        %v3358 = vsel %vm474, %v3353, %v3357
        %v3359 = vrot.slane %v3333, 1
        %v3360 = vrot.slane %v3263, 1
        %v3361 = vsel %vm474, %v3359, %v3360
        %v3362 = vrot.slane %v3334, 1
        %v3363 = vrot.slane %v3264, 1
        %v3364 = vsel %vm474, %v3362, %v3363
        %v3365 = vrot.slane %v3335, 1
        %v3366 = vsel %vm474, %v3360, %v3365
        %v3367 = vrot.slane %v3336, 1
        %v3368 = vsel %vm474, %v3363, %v3367
        %v3377 = vld [vmem:[%s503] sm:$0xff]
        %v3378 = vld [vmem:[%s503 + $0x8] sm:$0xff]
        %v3379 = vld [vmem:[%s503 + $0x10] sm:$0xff]
        %v3380 = vld [vmem:[%s503 + $0x18] sm:$0xff]
        %v3381 = vld [vmem:[%s503 + $0x20] sm:$0xff]
        %v3382 = vld [vmem:[%s503 + $0x28] sm:$0xff]
        %v3383 = vld [vmem:[%s503 + $0x30] sm:$0xff]
        %v3384 = vld [vmem:[%s503 + $0x38] sm:$0xff]
        %v3385 = vld [vmem:[%s503 + $0x40] sm:$0xff]
        %v3386 = vld [vmem:[%s503 + $0x48] sm:$0xff]
        %v3387 = vld [vmem:[%s503 + $0x50] sm:$0xff]
        %v3388 = vld [vmem:[%s503 + $0x58] sm:$0xff]
        %v3389 = vld [vmem:[%s503 + $0x60] sm:$0xff]
        %v3390 = vld [vmem:[%s503 + $0x68] sm:$0xff]
        %v3391 = vld [vmem:[%s503 + $0x70] sm:$0xff]
        %v3392 = vld [vmem:[%s503 + $0x78] sm:$0xff]
        %v3393 = vld [vmem:[%s503 + $0x80] sm:$0xff]
        %v3394 = vld [vmem:[%s503 + $0x88] sm:$0xff]
        %v3395 = vld [vmem:[%s503 + $0x90] sm:$0xff]
        %v3396 = vld [vmem:[%s503 + $0x98] sm:$0xff]
        %v3397 = vld [vmem:[%s503 + $0xa0] sm:$0xff]
        %v3398 = vld [vmem:[%s503 + $0xa8] sm:$0xff]
        %v3399 = vld [vmem:[%s503 + $0xb0] sm:$0xff]
        %v3400 = vld [vmem:[%s503 + $0xb8] sm:$0xff]
        %v3401 = vld [vmem:[%s503 + $0xc0] sm:$0xff]
        %v3402 = vld [vmem:[%s503 + $0xc8] sm:$0xff]
        %v3403 = vld [vmem:[%s503 + $0xd0] sm:$0xff]
        %v3404 = vld [vmem:[%s503 + $0xd8] sm:$0xff]
        %v3405 = vld [vmem:[%s503 + $0xe0] sm:$0xff]
        %v3406 = vld [vmem:[%s503 + $0xe8] sm:$0xff]
        %v3407 = vld [vmem:[%s503 + $0xf0] sm:$0xff]
        %v3408 = vld [vmem:[%s503 + $0xf8] sm:$0xff]
        %v3409 = vld [vmem:[%s503 + $0x100] sm:$0xff]
        %v3410 = vld [vmem:[%s503 + $0x108] sm:$0xff]
        %v3411 = vld [vmem:[%s503 + $0x110] sm:$0xff]
        %v3412 = vld [vmem:[%s503 + $0x118] sm:$0xff]
        %v3413 = vld [vmem:[%s503 + $0x120] sm:$0xff]
        %v3414 = vld [vmem:[%s503 + $0x128] sm:$0xff]
        %v3415 = vld [vmem:[%s503 + $0x130] sm:$0xff]
        %v3416 = vld [vmem:[%s503 + $0x138] sm:$0xff]
        %v3417 = vld [vmem:[%s503 + $0x140] sm:$0xff]
        %v3418 = vld [vmem:[%s503 + $0x148] sm:$0xff]
        %v3419 = vld [vmem:[%s503 + $0x150] sm:$0xff]
        %v3420 = vld [vmem:[%s503 + $0x158] sm:$0xff]
        %v3421 = vld [vmem:[%s503 + $0x160] sm:$0xff]
        %v3422 = vld [vmem:[%s503 + $0x168] sm:$0xff]
        %v3423 = vld [vmem:[%s503 + $0x170] sm:$0xff]
        %v3424 = vld [vmem:[%s503 + $0x178] sm:$0xff]
        %v3425 = vld [vmem:[%s503 + $0x180] sm:$0xff]
        %v3426 = vld [vmem:[%s503 + $0x188] sm:$0xff]
        %v3427 = vld [vmem:[%s503 + $0x190] sm:$0xff]
        %v3428 = vld [vmem:[%s503 + $0x198] sm:$0xff]
        %v3429 = vld [vmem:[%s503 + $0x1a0] sm:$0xff]
        %v3430 = vld [vmem:[%s503 + $0x1a8] sm:$0xff]
        %v3431 = vld [vmem:[%s503 + $0x1b0] sm:$0xff]
        %v3432 = vld [vmem:[%s503 + $0x1b8] sm:$0xff]
        %v3433 = vld [vmem:[%s503 + $0x1c0] sm:$0xff]
        %v3434 = vld [vmem:[%s503 + $0x1c8] sm:$0xff]
        %v3435 = vld [vmem:[%s503 + $0x1d0] sm:$0xff]
        %v3436 = vld [vmem:[%s503 + $0x1d8] sm:$0xff]
        %v3437 = vld [vmem:[%s503 + $0x1e0] sm:$0xff]
        %v3438 = vld [vmem:[%s503 + $0x1e8] sm:$0xff]
        %v3439 = vld [vmem:[%s503 + $0x1f0] sm:$0xff]
        %v3440 = vld [vmem:[%s503 + $0x1f8] sm:$0xff]
        %3441 = vmatprep.subr.mxu0 %v3378
        %3442 = vmatpush1.msra.mxu0 %v3377
        %3443 = vmatprep.subr.mxu0 %v3380
        %3444 = vmatpush1.msra.mxu0 %v3379
        %3445 = vmatprep.subr.mxu0 %v3382
        %3446 = vmatpush1.msra.mxu0 %v3381
        %3447 = vmatprep.subr.mxu0 %v3384
        %3448 = vmatpush1.msra.mxu0 %v3383
        %3449 = vmatprep.subr.mxu0 %v3386
        %3450 = vmatpush1.msra.mxu0 %v3385
        %3451 = vmatprep.subr.mxu0 %v3388
        %3452 = vmatpush1.msra.mxu0 %v3387
        %3453 = vmatprep.subr.mxu0 %v3390
        %3454 = vmatpush1.msra.mxu0 %v3389
        %3455 = vmatprep.subr.mxu0 %v3392
        %3456 = vmatpush1.msra.mxu0 %v3391
        %3457 = vmatprep.subr.mxu0 %v3394
        %3458 = vmatpush1.msra.mxu0 %v3393
        %3459 = vmatprep.subr.mxu0 %v3396
        %3460 = vmatpush1.msra.mxu0 %v3395
        %3461 = vmatprep.subr.mxu0 %v3398
        %3462 = vmatpush1.msra.mxu0 %v3397
        %3463 = vmatprep.subr.mxu0 %v3400
        %3464 = vmatpush1.msra.mxu0 %v3399
        %3465 = vmatprep.subr.mxu0 %v3402
        %3466 = vmatpush1.msra.mxu0 %v3401
        %3467 = vmatprep.subr.mxu0 %v3404
        %3468 = vmatpush1.msra.mxu0 %v3403
        %3469 = vmatprep.subr.mxu0 %v3406
        %3470 = vmatpush1.msra.mxu0 %v3405
        %3471 = vmatprep.subr.mxu0 %v3408
        %3472 = vmatpush1.msra.mxu0 %v3407
        %3473 = vmatprep.subr.mxu0 %v3410
        %3474 = vmatpush1.msra.mxu0 %v3409
        %3475 = vmatprep.subr.mxu0 %v3412
        %3476 = vmatpush1.msra.mxu0 %v3411
        %3477 = vmatprep.subr.mxu0 %v3414
        %3478 = vmatpush1.msra.mxu0 %v3413
        %3479 = vmatprep.subr.mxu0 %v3416
        %3480 = vmatpush1.msra.mxu0 %v3415
        %3481 = vmatprep.subr.mxu0 %v3418
        %3482 = vmatpush1.msra.mxu0 %v3417
        %3483 = vmatprep.subr.mxu0 %v3420
        %3484 = vmatpush1.msra.mxu0 %v3419
        %3485 = vmatprep.subr.mxu0 %v3422
        %3486 = vmatpush1.msra.mxu0 %v3421
        %3487 = vmatprep.subr.mxu0 %v3424
        %3488 = vmatpush1.msra.mxu0 %v3423
        %3489 = vmatprep.subr.mxu0 %v3426
        %3490 = vmatpush1.msra.mxu0 %v3425
        %3491 = vmatprep.subr.mxu0 %v3428
        %3492 = vmatpush1.msra.mxu0 %v3427
        %3493 = vmatprep.subr.mxu0 %v3430
        %3494 = vmatpush1.msra.mxu0 %v3429
        %3495 = vmatprep.subr.mxu0 %v3432
        %3496 = vmatpush1.msra.mxu0 %v3431
        %3497 = vmatprep.subr.mxu0 %v3434
        %3498 = vmatpush1.msra.mxu0 %v3433
        %3499 = vmatprep.subr.mxu0 %v3436
        %3500 = vmatpush1.msra.mxu0 %v3435
        %3501 = vmatprep.subr.mxu0 %v3438
        %3502 = vmatpush1.msra.mxu0 %v3437
        %3503 = vmatprep.subr.mxu0 %v3440
        %3504 = vmatpush1.msra.mxu0 %v3439
        %3505 = vmatprep.mubr.f32.mxu0 %v3354
        %3506 = vmatmul.mubr.f32.gmra.mrb[0].mxu0 %v3351
        %v3507 = vpop.f32.mrb[0].mxu0
        %v3508 = vadd.f32 0.0, %v3507
        %v3509 = vpop.f32.mrb[0].mxu0
        %v3510 = vadd.f32 0.0, %v3509
        %3511 = vmatprep.mubr.f32.mxu0 %v3358
        %3512 = vmatmul.mubr.f32.gmra.mrb[0].mxu0 %v3356
        %v3513 = vpop.f32.mrb[0].mxu0
        %v3514 = vadd.f32 0.0, %v3513
        %v3515 = vpop.f32.mrb[0].mxu0
        %v3516 = vadd.f32 0.0, %v3515
        %3517 = vmatprep.mubr.f32.mxu0 %v3364
        %3518 = vmatmul.mubr.f32.gmra.mrb[0].mxu0 %v3361
        %v3519 = vpop.f32.mrb[0].mxu0
        %v3520 = vadd.f32 0.0, %v3519
        %v3521 = vpop.f32.mrb[0].mxu0
        %v3522 = vadd.f32 0.0, %v3521
        %3523 = vmatprep.mubr.f32.mxu0 %v3368
        %3524 = vmatmul.mubr.f32.gmra.mrb[0].mxu0 %v3366
        %v3525 = vpop.f32.mrb[0].mxu0
        %v3526 = vadd.f32 0.0, %v3525
        %v3527 = vpop.f32.mrb[0].mxu0
        %v3528 = vadd.f32 0.0, %v3527
        %3529 = vdwg.mxu0
        %3530 = vmatprep.subr.mxu0 %v3266
        %3531 = vmatpush1.msra.mxu0 %v3265
        %3532 = vmatprep.subr.mxu0 %v3268
        %3533 = vmatpush1.msra.mxu0 %v3267
        %3534 = vmatprep.subr.mxu0 %v3270
        %3535 = vmatpush1.msra.mxu0 %v3269
        %3536 = vmatprep.subr.mxu0 %v3272
        %3537 = vmatpush1.msra.mxu0 %v3271
        %3538 = vmatprep.subr.mxu0 %v3274
        %3539 = vmatpush1.msra.mxu0 %v3273
        %3540 = vmatprep.subr.mxu0 %v3276
        %3541 = vmatpush1.msra.mxu0 %v3275
        %3542 = vmatprep.subr.mxu0 %v3278
        %3543 = vmatpush1.msra.mxu0 %v3277
        %3544 = vmatprep.subr.mxu0 %v3280
        %3545 = vmatpush1.msra.mxu0 %v3279
        %3546 = vmatprep.subr.mxu0 %v3282
        %3547 = vmatpush1.msra.mxu0 %v3281
        %3548 = vmatprep.subr.mxu0 %v3284
        %3549 = vmatpush1.msra.mxu0 %v3283
        %3550 = vmatprep.subr.mxu0 %v3286
        %3551 = vmatpush1.msra.mxu0 %v3285
        %3552 = vmatprep.subr.mxu0 %v3288
        %3553 = vmatpush1.msra.mxu0 %v3287
        %3554 = vmatprep.subr.mxu0 %v3290
        %3555 = vmatpush1.msra.mxu0 %v3289
        %3556 = vmatprep.subr.mxu0 %v3292
        %3557 = vmatpush1.msra.mxu0 %v3291
        %3558 = vmatprep.subr.mxu0 %v3294
        %3559 = vmatpush1.msra.mxu0 %v3293
        %3560 = vmatprep.subr.mxu0 %v3296
        %3561 = vmatpush1.msra.mxu0 %v3295
        %3562 = vmatprep.subr.mxu0 %v3298
        %3563 = vmatpush1.msra.mxu0 %v3297
        %3564 = vmatprep.subr.mxu0 %v3300
        %3565 = vmatpush1.msra.mxu0 %v3299
        %3566 = vmatprep.subr.mxu0 %v3302
        %3567 = vmatpush1.msra.mxu0 %v3301
        %3568 = vmatprep.subr.mxu0 %v3304
        %3569 = vmatpush1.msra.mxu0 %v3303
        %3570 = vmatprep.subr.mxu0 %v3306
        %3571 = vmatpush1.msra.mxu0 %v3305
        %3572 = vmatprep.subr.mxu0 %v3308
        %3573 = vmatpush1.msra.mxu0 %v3307
        %3574 = vmatprep.subr.mxu0 %v3310
        %3575 = vmatpush1.msra.mxu0 %v3309
        %3576 = vmatprep.subr.mxu0 %v3312
        %3577 = vmatpush1.msra.mxu0 %v3311
        %3578 = vmatprep.subr.mxu0 %v3314
        %3579 = vmatpush1.msra.mxu0 %v3313
        %3580 = vmatprep.subr.mxu0 %v3316
        %3581 = vmatpush1.msra.mxu0 %v3315
        %3582 = vmatprep.subr.mxu0 %v3318
        %3583 = vmatpush1.msra.mxu0 %v3317
        %3584 = vmatprep.subr.mxu0 %v3320
        %3585 = vmatpush1.msra.mxu0 %v3319
        %3586 = vmatprep.subr.mxu0 %v3322
        %3587 = vmatpush1.msra.mxu0 %v3321
        %3588 = vmatprep.subr.mxu0 %v3324
        %3589 = vmatpush1.msra.mxu0 %v3323
        %3590 = vmatprep.subr.mxu0 %v3326
        %3591 = vmatpush1.msra.mxu0 %v3325
        %3592 = vmatprep.subr.mxu0 %v3328
        %3593 = vmatpush1.msra.mxu0 %v3327
        %3594 = vmatprep.mubr.f32.mxu0 %v3258
        %3595 = vmatmul.mubr.f32.gmra.mrb[0].mxu0 %v3257
        %v3596 = vpop.f32.mrb[0].mxu0
        %v3597 = vadd.f32 %v3508, %v3596
        %v3598 = vpop.f32.mrb[0].mxu0
        %v3599 = vadd.f32 %v3510, %v3598
        %3600 = vmatprep.mubr.f32.mxu0 %v3260
        %3601 = vmatmul.mubr.f32.gmra.mrb[0].mxu0 %v3259
        %v3602 = vpop.f32.mrb[0].mxu0
        %v3603 = vadd.f32 %v3514, %v3602
        %v3604 = vpop.f32.mrb[0].mxu0
        %v3605 = vadd.f32 %v3516, %v3604
        %3606 = vmatprep.mubr.f32.mxu0 %v3262
        %3607 = vmatmul.mubr.f32.gmra.mrb[0].mxu0 %v3261
        %v3608 = vpop.f32.mrb[0].mxu0
        %v3609 = vadd.f32 %v3520, %v3608
        %v3610 = vpop.f32.mrb[0].mxu0
        %v3611 = vadd.f32 %v3522, %v3610
        %3612 = vmatprep.mubr.f32.mxu0 %v3264
        %3613 = vmatmul.mubr.f32.gmra.mrb[0].mxu0 %v3263
        %v3614 = vpop.f32.mrb[0].mxu0
        %v3615 = vadd.f32 %v3526, %v3614
        %v3616 = vpop.f32.mrb[0].mxu0
        %v3617 = vadd.f32 %v3528, %v3616
        %3618 = vdwg.mxu0
        %v3619 = vld [vmem:[#allocation2] sm:$0xfc]
        %v3620 = vld [vmem:[#allocation2 + $0x8] sm:$0xfc]
        %v3621 = vld [vmem:[#allocation2 + $0x20] sm:$0x3]
        %v3622 = vld [vmem:[#allocation2 + $0x28] sm:$0x3]
        %v3623 = vld [vmem:[#allocation2 + $0x30] sm:$0xfc]
        %v3624 = vld [vmem:[#allocation2 + $0x38] sm:$0xfc]
        %v3625 = vld [vmem:[#allocation2 + $0x50] sm:$0x3]
        %v3626 = vld [vmem:[#allocation2 + $0x58] sm:$0x3]
        %v3635 = vrot.slane %v3619, 2
        %v3636 = vrot.slane %v3259, 2
        %v3637 = vsel %vm762, %v3635, %v3636
        %v3638 = vrot.slane %v3620, 2
        %v3639 = vrot.slane %v3260, 2
        %v3640 = vsel %vm762, %v3638, %v3639
        %v3641 = vrot.slane %v3621, 2
        %v3642 = vsel %vm762, %v3636, %v3641
        %v3643 = vrot.slane %v3622, 2
        %v3644 = vsel %vm762, %v3639, %v3643
        %v3645 = vrot.slane %v3623, 2
        %v3646 = vrot.slane %v3263, 2
        %v3647 = vsel %vm762, %v3645, %v3646
        %v3648 = vrot.slane %v3624, 2
        %v3649 = vrot.slane %v3264, 2
        %v3650 = vsel %vm762, %v3648, %v3649
        %v3651 = vrot.slane %v3625, 2
        %v3652 = vsel %vm762, %v3646, %v3651
        %v3653 = vrot.slane %v3626, 2
        %v3654 = vsel %vm762, %v3649, %v3653
        %v3663 = vld [vmem:[%s791] sm:$0xff]
        %v3664 = vld [vmem:[%s791 + $0x8] sm:$0xff]
        %v3665 = vld [vmem:[%s791 + $0x10] sm:$0xff]
        %v3666 = vld [vmem:[%s791 + $0x18] sm:$0xff]
        %v3667 = vld [vmem:[%s791 + $0x20] sm:$0xff]
        %v3668 = vld [vmem:[%s791 + $0x28] sm:$0xff]
        %v3669 = vld [vmem:[%s791 + $0x30] sm:$0xff]
        %v3670 = vld [vmem:[%s791 + $0x38] sm:$0xff]
        %v3671 = vld [vmem:[%s791 + $0x40] sm:$0xff]
        %v3672 = vld [vmem:[%s791 + $0x48] sm:$0xff]
        %v3673 = vld [vmem:[%s791 + $0x50] sm:$0xff]
        %v3674 = vld [vmem:[%s791 + $0x58] sm:$0xff]
        %v3675 = vld [vmem:[%s791 + $0x60] sm:$0xff]
        %v3676 = vld [vmem:[%s791 + $0x68] sm:$0xff]
        %v3677 = vld [vmem:[%s791 + $0x70] sm:$0xff]
        %v3678 = vld [vmem:[%s791 + $0x78] sm:$0xff]
        %v3679 = vld [vmem:[%s791 + $0x80] sm:$0xff]
        %v3680 = vld [vmem:[%s791 + $0x88] sm:$0xff]
        %v3681 = vld [vmem:[%s791 + $0x90] sm:$0xff]
        %v3682 = vld [vmem:[%s791 + $0x98] sm:$0xff]
        %v3683 = vld [vmem:[%s791 + $0xa0] sm:$0xff]
        %v3684 = vld [vmem:[%s791 + $0xa8] sm:$0xff]
        %v3685 = vld [vmem:[%s791 + $0xb0] sm:$0xff]
        %v3686 = vld [vmem:[%s791 + $0xb8] sm:$0xff]
        %v3687 = vld [vmem:[%s791 + $0xc0] sm:$0xff]
        %v3688 = vld [vmem:[%s791 + $0xc8] sm:$0xff]
        %v3689 = vld [vmem:[%s791 + $0xd0] sm:$0xff]
        %v3690 = vld [vmem:[%s791 + $0xd8] sm:$0xff]
        %v3691 = vld [vmem:[%s791 + $0xe0] sm:$0xff]
        %v3692 = vld [vmem:[%s791 + $0xe8] sm:$0xff]
        %v3693 = vld [vmem:[%s791 + $0xf0] sm:$0xff]
        %v3694 = vld [vmem:[%s791 + $0xf8] sm:$0xff]
        %v3695 = vld [vmem:[%s791 + $0x100] sm:$0xff]
        %v3696 = vld [vmem:[%s791 + $0x108] sm:$0xff]
        %v3697 = vld [vmem:[%s791 + $0x110] sm:$0xff]
        %v3698 = vld [vmem:[%s791 + $0x118] sm:$0xff]
        %v3699 = vld [vmem:[%s791 + $0x120] sm:$0xff]
        %v3700 = vld [vmem:[%s791 + $0x128] sm:$0xff]
        %v3701 = vld [vmem:[%s791 + $0x130] sm:$0xff]
        %v3702 = vld [vmem:[%s791 + $0x138] sm:$0xff]
        %v3703 = vld [vmem:[%s791 + $0x140] sm:$0xff]
        %v3704 = vld [vmem:[%s791 + $0x148] sm:$0xff]
        %v3705 = vld [vmem:[%s791 + $0x150] sm:$0xff]
        %v3706 = vld [vmem:[%s791 + $0x158] sm:$0xff]
        %v3707 = vld [vmem:[%s791 + $0x160] sm:$0xff]
        %v3708 = vld [vmem:[%s791 + $0x168] sm:$0xff]
        %v3709 = vld [vmem:[%s791 + $0x170] sm:$0xff]
        %v3710 = vld [vmem:[%s791 + $0x178] sm:$0xff]
        %v3711 = vld [vmem:[%s791 + $0x180] sm:$0xff]
        %v3712 = vld [vmem:[%s791 + $0x188] sm:$0xff]
        %v3713 = vld [vmem:[%s791 + $0x190] sm:$0xff]
        %v3714 = vld [vmem:[%s791 + $0x198] sm:$0xff]
        %v3715 = vld [vmem:[%s791 + $0x1a0] sm:$0xff]
        %v3716 = vld [vmem:[%s791 + $0x1a8] sm:$0xff]
        %v3717 = vld [vmem:[%s791 + $0x1b0] sm:$0xff]
        %v3718 = vld [vmem:[%s791 + $0x1b8] sm:$0xff]
        %v3719 = vld [vmem:[%s791 + $0x1c0] sm:$0xff]
        %v3720 = vld [vmem:[%s791 + $0x1c8] sm:$0xff]
        %v3721 = vld [vmem:[%s791 + $0x1d0] sm:$0xff]
        %v3722 = vld [vmem:[%s791 + $0x1d8] sm:$0xff]
        %v3723 = vld [vmem:[%s791 + $0x1e0] sm:$0xff]
        %v3724 = vld [vmem:[%s791 + $0x1e8] sm:$0xff]
        %v3725 = vld [vmem:[%s791 + $0x1f0] sm:$0xff]
        %v3726 = vld [vmem:[%s791 + $0x1f8] sm:$0xff]
        %3727 = vmatprep.subr.mxu0 %v3664
        %3728 = vmatpush1.msra.mxu0 %v3663
        %3729 = vmatprep.subr.mxu0 %v3666
        %3730 = vmatpush1.msra.mxu0 %v3665
        %3731 = vmatprep.subr.mxu0 %v3668
        %3732 = vmatpush1.msra.mxu0 %v3667
        %3733 = vmatprep.subr.mxu0 %v3670
        %3734 = vmatpush1.msra.mxu0 %v3669
        %3735 = vmatprep.subr.mxu0 %v3672
        %3736 = vmatpush1.msra.mxu0 %v3671
        %3737 = vmatprep.subr.mxu0 %v3674
        %3738 = vmatpush1.msra.mxu0 %v3673
        %3739 = vmatprep.subr.mxu0 %v3676
        %3740 = vmatpush1.msra.mxu0 %v3675
        %3741 = vmatprep.subr.mxu0 %v3678
        %3742 = vmatpush1.msra.mxu0 %v3677
        %3743 = vmatprep.subr.mxu0 %v3680
        %3744 = vmatpush1.msra.mxu0 %v3679
        %3745 = vmatprep.subr.mxu0 %v3682
        %3746 = vmatpush1.msra.mxu0 %v3681
        %3747 = vmatprep.subr.mxu0 %v3684
        %3748 = vmatpush1.msra.mxu0 %v3683
        %3749 = vmatprep.subr.mxu0 %v3686
        %3750 = vmatpush1.msra.mxu0 %v3685
        %3751 = vmatprep.subr.mxu0 %v3688
        %3752 = vmatpush1.msra.mxu0 %v3687
        %3753 = vmatprep.subr.mxu0 %v3690
        %3754 = vmatpush1.msra.mxu0 %v3689
        %3755 = vmatprep.subr.mxu0 %v3692
        %3756 = vmatpush1.msra.mxu0 %v3691
        %3757 = vmatprep.subr.mxu0 %v3694
        %3758 = vmatpush1.msra.mxu0 %v3693
        %3759 = vmatprep.subr.mxu0 %v3696
        %3760 = vmatpush1.msra.mxu0 %v3695
        %3761 = vmatprep.subr.mxu0 %v3698
        %3762 = vmatpush1.msra.mxu0 %v3697
        %3763 = vmatprep.subr.mxu0 %v3700
        %3764 = vmatpush1.msra.mxu0 %v3699
        %3765 = vmatprep.subr.mxu0 %v3702
        %3766 = vmatpush1.msra.mxu0 %v3701
        %3767 = vmatprep.subr.mxu0 %v3704
        %3768 = vmatpush1.msra.mxu0 %v3703
        %3769 = vmatprep.subr.mxu0 %v3706
        %3770 = vmatpush1.msra.mxu0 %v3705
        %3771 = vmatprep.subr.mxu0 %v3708
        %3772 = vmatpush1.msra.mxu0 %v3707
        %3773 = vmatprep.subr.mxu0 %v3710
        %3774 = vmatpush1.msra.mxu0 %v3709
        %3775 = vmatprep.subr.mxu0 %v3712
        %3776 = vmatpush1.msra.mxu0 %v3711
        %3777 = vmatprep.subr.mxu0 %v3714
        %3778 = vmatpush1.msra.mxu0 %v3713
        %3779 = vmatprep.subr.mxu0 %v3716
        %3780 = vmatpush1.msra.mxu0 %v3715
        %3781 = vmatprep.subr.mxu0 %v3718
        %3782 = vmatpush1.msra.mxu0 %v3717
        %3783 = vmatprep.subr.mxu0 %v3720
        %3784 = vmatpush1.msra.mxu0 %v3719
        %3785 = vmatprep.subr.mxu0 %v3722
        %3786 = vmatpush1.msra.mxu0 %v3721
        %3787 = vmatprep.subr.mxu0 %v3724
        %3788 = vmatpush1.msra.mxu0 %v3723
        %3789 = vmatprep.subr.mxu0 %v3726
        %3790 = vmatpush1.msra.mxu0 %v3725
        %3791 = vmatprep.mubr.f32.mxu0 %v3640
        %3792 = vmatmul.mubr.f32.gmra.mrb[0].mxu0 %v3637
        %v3793 = vpop.f32.mrb[0].mxu0
        %v3794 = vadd.f32 0.0, %v3793
        %v3795 = vpop.f32.mrb[0].mxu0
        %v3796 = vadd.f32 0.0, %v3795
        %3797 = vmatprep.mubr.f32.mxu0 %v3644
        %3798 = vmatmul.mubr.f32.gmra.mrb[0].mxu0 %v3642
        %v3799 = vpop.f32.mrb[0].mxu0
        %v3800 = vadd.f32 0.0, %v3799
        %v3801 = vpop.f32.mrb[0].mxu0
        %v3802 = vadd.f32 0.0, %v3801
        %3803 = vmatprep.mubr.f32.mxu0 %v3650
        %3804 = vmatmul.mubr.f32.gmra.mrb[0].mxu0 %v3647
        %v3805 = vpop.f32.mrb[0].mxu0
        %v3806 = vadd.f32 0.0, %v3805
        %v3807 = vpop.f32.mrb[0].mxu0
        %v3808 = vadd.f32 0.0, %v3807
        %3809 = vmatprep.mubr.f32.mxu0 %v3654
        %3810 = vmatmul.mubr.f32.gmra.mrb[0].mxu0 %v3652
        %v3811 = vpop.f32.mrb[0].mxu0
        %v3812 = vadd.f32 0.0, %v3811
        %v3813 = vpop.f32.mrb[0].mxu0
        %v3814 = vadd.f32 0.0, %v3813
        %3815 = vdwg.mxu0
        %v3816 = vadd.f32 %v3597, %v3794
        %v3817 = vadd.f32 %v3599, %v3796
        %v3818 = vadd.f32 %v3603, %v3800
        %v3819 = vadd.f32 %v3605, %v3802
        %v3820 = vadd.f32 %v3609, %v3806
        %v3821 = vadd.f32 %v3611, %v3808
        %v3822 = vadd.f32 %v3615, %v3812
        %v3823 = vadd.f32 %v3617, %v3814
        %v3824 = vadd.f32 %v3816, %v957
        %v3825 = vadd.f32 %v3817, %v961
        %v3826 = vadd.f32 %v3818, %v957
        %v3827 = vadd.f32 %v3819, %v961
        %v3828 = vadd.f32 %v3820, %v957
        %v3829 = vadd.f32 %v3821, %v961
        %v3830 = vadd.f32 %v3822, %v957
        %v3831 = vadd.f32 %v3823, %v961
        %v3832 = vld [vmem:[#allocation3] sm:$0xff]
        %v3833 = vld [vmem:[#allocation3 + $0x8] sm:$0xff]
        %v3834 = vld [vmem:[#allocation3 + $0x10] sm:$0xff]
        %v3835 = vld [vmem:[#allocation3 + $0x18] sm:$0xff]
        %v3836 = vld [vmem:[#allocation3 + $0x20] sm:$0xff]
        %v3837 = vld [vmem:[#allocation3 + $0x28] sm:$0xff]
        %v3838 = vld [vmem:[#allocation3 + $0x30] sm:$0xff]
        %v3839 = vld [vmem:[#allocation3 + $0x38] sm:$0xff]
        %v3840 = vsub.f32 %v3824, %v3832
        %v3841 = vsub.f32 %v3825, %v3833
        %v3842 = vsub.f32 %v3826, %v3834
        %v3843 = vsub.f32 %v3827, %v3835
        %v3844 = vsub.f32 %v3828, %v3836
        %v3845 = vsub.f32 %v3829, %v3837
        %v3846 = vsub.f32 %v3830, %v3838
        %v3847 = vsub.f32 %v3831, %v3839
        %v3848 = vmul.f32 %v3840, 0.5
        %v3849 = vmul.f32 %v3841, 0.5
        %v3850 = vmul.f32 %v3842, 0.5
        %v3851 = vmul.f32 %v3843, 0.5
        %v3852 = vmul.f32 %v3844, 0.5
        %v3853 = vmul.f32 %v3845, 0.5
        %v3854 = vmul.f32 %v3846, 0.5
        %v3855 = vmul.f32 %v3847, 0.5
        %v3856 = vadd.f32 %v3832, %v3848
        %v3857 = vadd.f32 %v3833, %v3849
        %v3858 = vadd.f32 %v3834, %v3850
        %v3859 = vadd.f32 %v3835, %v3851
        %v3860 = vadd.f32 %v3836, %v3852
        %v3861 = vadd.f32 %v3837, %v3853
        %v3862 = vadd.f32 %v3838, %v3854
        %v3863 = vadd.f32 %v3839, %v3855
        %vm3864 = vcmp.ge.f32.partialorder %v3856, 1.0
        %vm3865 = vcmp.ge.f32.partialorder %v3857, 1.0
        %vm3866 = vcmp.ge.f32.partialorder %v3858, 1.0
        %vm3867 = vcmp.ge.f32.partialorder %v3859, 1.0
        %vm3868 = vcmp.ge.f32.partialorder %v3860, 1.0
        %vm3869 = vcmp.ge.f32.partialorder %v3861, 1.0
        %vm3870 = vcmp.ge.f32.partialorder %v3862, 1.0
        %vm3871 = vcmp.ge.f32.partialorder %v3863, 1.0
        %v3872 = vsel %vm3864, 1, 0
        %v3873 = vsel %vm3865, 1, 0
        %v3874 = vsel %vm3866, 1, 0
        %v3875 = vsel %vm3867, 1, 0
        %v3876 = vsel %vm3868, 1, 0
        %v3877 = vsel %vm3869, 1, 0
        %v3878 = vsel %vm3870, 1, 0
        %v3879 = vsel %vm3871, 1, 0
        %v3880 = vcvt.s32.f32 %v3872
        %v3881 = vcvt.s32.f32 %v3873
        %v3882 = vcvt.s32.f32 %v3874
        %v3883 = vcvt.s32.f32 %v3875
        %v3884 = vcvt.s32.f32 %v3876
        %v3885 = vcvt.s32.f32 %v3877
        %v3886 = vcvt.s32.f32 %v3878
        %v3887 = vcvt.s32.f32 %v3879
        %v3888 = vsub.f32 1.0, %v3880
        %v3889 = vsub.f32 1.0, %v3881
        %v3890 = vsub.f32 1.0, %v3882
        %v3891 = vsub.f32 1.0, %v3883
        %v3892 = vsub.f32 1.0, %v3884
        %v3893 = vsub.f32 1.0, %v3885
        %v3894 = vsub.f32 1.0, %v3886
        %v3895 = vsub.f32 1.0, %v3887
        %v3896 = vmul.f32 %v3856, %v3888
        %v3897 = vmul.f32 %v3857, %v3889
        %v3898 = vmul.f32 %v3858, %v3890
        %v3899 = vmul.f32 %v3859, %v3891
        %v3900 = vmul.f32 %v3860, %v3892
        %v3901 = vmul.f32 %v3861, %v3893
        %v3902 = vmul.f32 %v3862, %v3894
        %v3903 = vmul.f32 %v3863, %v3895
        %3904 = vst [vmem:[#allocation3] sm:$0xff] %v3896
        %3905 = vst [vmem:[#allocation3 + $0x8] sm:$0xff] %v3897
        %3906 = vst [vmem:[#allocation3 + $0x10] sm:$0xff] %v3898
        %3907 = vst [vmem:[#allocation3 + $0x18] sm:$0xff] %v3899
        %3908 = vst [vmem:[#allocation3 + $0x20] sm:$0xff] %v3900
        %3909 = vst [vmem:[#allocation3 + $0x28] sm:$0xff] %v3901
        %3910 = vst [vmem:[#allocation3 + $0x30] sm:$0xff] %v3902
        %3911 = vst [vmem:[#allocation3 + $0x38] sm:$0xff] %v3903
        %v3920 = vrot.slane %v3880, 7
        %v3921 = vrot.slane %v3881, 7
        %v3922 = vrot.slane %v3882, 7
        %v3923 = vsel %vm345, %v3920, %v3922
        %v3924 = vrot.slane %v3883, 7
        %v3925 = vsel %vm345, %v3921, %v3924
        %v3926 = vrot.slane %v3884, 7
        %v3927 = vrot.slane %v3885, 7
        %v3928 = vrot.slane %v3886, 7
        %v3929 = vsel %vm345, %v3926, %v3928
        %v3930 = vrot.slane %v3887, 7
        %v3931 = vsel %vm345, %v3927, %v3930
        %3944 = vst [vmem:[#allocation2] sm:$0xfe] %v3920
        %3945 = vst [vmem:[#allocation2 + $0x8] sm:$0xfe] %v3921
        %3946 = vst [vmem:[#allocation2 + $0x10] sm:$0xff] %v3923
        %3947 = vst [vmem:[#allocation2 + $0x18] sm:$0xff] %v3925
        %3948 = vst [vmem:[#allocation2 + $0x20] sm:$0x1] %v3922
        %3949 = vst [vmem:[#allocation2 + $0x28] sm:$0x1] %v3924
        %3950 = vst [vmem:[#allocation2 + $0x30] sm:$0xfe] %v3926
        %3951 = vst [vmem:[#allocation2 + $0x38] sm:$0xfe] %v3927
        %3952 = vst [vmem:[#allocation2 + $0x40] sm:$0xff] %v3929
        %3953 = vst [vmem:[#allocation2 + $0x48] sm:$0xff] %v3931
        %3954 = vst [vmem:[#allocation2 + $0x50] sm:$0x1] %v3928
        %3955 = vst [vmem:[#allocation2 + $0x58] sm:$0x1] %v3930
        %v3956 = vld [vmem:[#allocation2] sm:$0xff]
        %v3957 = vld [vmem:[#allocation2 + $0x8] sm:$0xff]
        %v3958 = vld [vmem:[#allocation2 + $0x10] sm:$0xff]
        %v3959 = vld [vmem:[#allocation2 + $0x18] sm:$0xff]
        %v3960 = vld [vmem:[#allocation2 + $0x30] sm:$0xff]
        %v3961 = vld [vmem:[#allocation2 + $0x38] sm:$0xff]
        %v3962 = vld [vmem:[#allocation2 + $0x40] sm:$0xff]
        %v3963 = vld [vmem:[#allocation2 + $0x48] sm:$0xff]
        %v3964 = vld [vmem:[#allocation10] sm:$0xff]
        %v3965 = vld [vmem:[#allocation10 + $0x8] sm:$0xff]
        %v3966 = vld [vmem:[#allocation10 + $0x10] sm:$0xff]
        %v3967 = vld [vmem:[#allocation10 + $0x18] sm:$0xff]
        %v3968 = vld [vmem:[#allocation10 + $0x20] sm:$0xff]
        %v3969 = vld [vmem:[#allocation10 + $0x28] sm:$0xff]
        %v3970 = vld [vmem:[#allocation10 + $0x30] sm:$0xff]
        %v3971 = vld [vmem:[#allocation10 + $0x38] sm:$0xff]
        %v3972 = vld [vmem:[#allocation10 + $0x40] sm:$0xff]
        %v3973 = vld [vmem:[#allocation10 + $0x48] sm:$0xff]
        %v3974 = vld [vmem:[#allocation10 + $0x50] sm:$0xff]
        %v3975 = vld [vmem:[#allocation10 + $0x58] sm:$0xff]
        %v3976 = vld [vmem:[#allocation10 + $0x60] sm:$0xff]
        %v3977 = vld [vmem:[#allocation10 + $0x68] sm:$0xff]
        %v3978 = vld [vmem:[#allocation10 + $0x70] sm:$0xff]
        %v3979 = vld [vmem:[#allocation10 + $0x78] sm:$0xff]
        %v3980 = vld [vmem:[#allocation10 + $0x80] sm:$0xff]
        %v3981 = vld [vmem:[#allocation10 + $0x88] sm:$0xff]
        %v3982 = vld [vmem:[#allocation10 + $0x90] sm:$0xff]
        %v3983 = vld [vmem:[#allocation10 + $0x98] sm:$0xff]
        %v3984 = vld [vmem:[#allocation10 + $0xa0] sm:$0xff]
        %v3985 = vld [vmem:[#allocation10 + $0xa8] sm:$0xff]
        %v3986 = vld [vmem:[#allocation10 + $0xb0] sm:$0xff]
        %v3987 = vld [vmem:[#allocation10 + $0xb8] sm:$0xff]
        %v3988 = vld [vmem:[#allocation10 + $0xc0] sm:$0xff]
        %v3989 = vld [vmem:[#allocation10 + $0xc8] sm:$0xff]
        %v3990 = vld [vmem:[#allocation10 + $0xd0] sm:$0xff]
        %v3991 = vld [vmem:[#allocation10 + $0xd8] sm:$0xff]
        %v3992 = vld [vmem:[#allocation10 + $0xe0] sm:$0xff]
        %v3993 = vld [vmem:[#allocation10 + $0xe8] sm:$0xff]
        %v3994 = vld [vmem:[#allocation10 + $0xf0] sm:$0xff]
        %v3995 = vld [vmem:[#allocation10 + $0xf8] sm:$0xff]
        %v3996 = vld [vmem:[#allocation10 + $0x100] sm:$0xff]
        %v3997 = vld [vmem:[#allocation10 + $0x108] sm:$0xff]
        %v3998 = vld [vmem:[#allocation10 + $0x110] sm:$0xff]
        %v3999 = vld [vmem:[#allocation10 + $0x118] sm:$0xff]
        %v4000 = vld [vmem:[#allocation10 + $0x120] sm:$0xff]
        %v4001 = vld [vmem:[#allocation10 + $0x128] sm:$0xff]
        %v4002 = vld [vmem:[#allocation10 + $0x130] sm:$0xff]
        %v4003 = vld [vmem:[#allocation10 + $0x138] sm:$0xff]
        %v4004 = vld [vmem:[#allocation10 + $0x140] sm:$0xff]
        %v4005 = vld [vmem:[#allocation10 + $0x148] sm:$0xff]
        %v4006 = vld [vmem:[#allocation10 + $0x150] sm:$0xff]
        %v4007 = vld [vmem:[#allocation10 + $0x158] sm:$0xff]
        %v4008 = vld [vmem:[#allocation10 + $0x160] sm:$0xff]
        %v4009 = vld [vmem:[#allocation10 + $0x168] sm:$0xff]
        %v4010 = vld [vmem:[#allocation10 + $0x170] sm:$0xff]
        %v4011 = vld [vmem:[#allocation10 + $0x178] sm:$0xff]
        %v4012 = vld [vmem:[#allocation10 + $0x180] sm:$0xff]
        %v4013 = vld [vmem:[#allocation10 + $0x188] sm:$0xff]
        %v4014 = vld [vmem:[#allocation10 + $0x190] sm:$0xff]
        %v4015 = vld [vmem:[#allocation10 + $0x198] sm:$0xff]
        %v4016 = vld [vmem:[#allocation10 + $0x1a0] sm:$0xff]
        %v4017 = vld [vmem:[#allocation10 + $0x1a8] sm:$0xff]
        %v4018 = vld [vmem:[#allocation10 + $0x1b0] sm:$0xff]
        %v4019 = vld [vmem:[#allocation10 + $0x1b8] sm:$0xff]
        %v4020 = vld [vmem:[#allocation10 + $0x1c0] sm:$0xff]
        %v4021 = vld [vmem:[#allocation10 + $0x1c8] sm:$0xff]
        %v4022 = vld [vmem:[#allocation10 + $0x1d0] sm:$0xff]
        %v4023 = vld [vmem:[#allocation10 + $0x1d8] sm:$0xff]
        %v4024 = vld [vmem:[#allocation10 + $0x1e0] sm:$0xff]
        %v4025 = vld [vmem:[#allocation10 + $0x1e8] sm:$0xff]
        %v4026 = vld [vmem:[#allocation10 + $0x1f0] sm:$0xff]
        %v4027 = vld [vmem:[#allocation10 + $0x1f8] sm:$0xff]
        %v4028 = vld [vmem:[#allocation2] sm:$0xfe]
        %v4029 = vld [vmem:[#allocation2 + $0x8] sm:$0xfe]
        %v4030 = vld [vmem:[#allocation2 + $0x20] sm:$0x1]
        %v4031 = vld [vmem:[#allocation2 + $0x28] sm:$0x1]
        %v4032 = vld [vmem:[#allocation2 + $0x30] sm:$0xfe]
        %v4033 = vld [vmem:[#allocation2 + $0x38] sm:$0xfe]
        %v4034 = vld [vmem:[#allocation2 + $0x50] sm:$0x1]
        %v4035 = vld [vmem:[#allocation2 + $0x58] sm:$0x1]
        %v4048 = vrot.slane %v4028, 1
        %v4049 = vrot.slane %v3958, 1
        %v4050 = vsel %vm474, %v4048, %v4049
        %v4051 = vrot.slane %v4029, 1
        %v4052 = vrot.slane %v3959, 1
        %v4053 = vsel %vm474, %v4051, %v4052
        %v4054 = vrot.slane %v4030, 1
        %v4055 = vsel %vm474, %v4049, %v4054
        %v4056 = vrot.slane %v4031, 1
        %v4057 = vsel %vm474, %v4052, %v4056
        %v4058 = vrot.slane %v4032, 1
        %v4059 = vrot.slane %v3962, 1
        %v4060 = vsel %vm474, %v4058, %v4059
        %v4061 = vrot.slane %v4033, 1
        %v4062 = vrot.slane %v3963, 1
        %v4063 = vsel %vm474, %v4061, %v4062
        %v4064 = vrot.slane %v4034, 1
        %v4065 = vsel %vm474, %v4059, %v4064
        %v4066 = vrot.slane %v4035, 1
        %v4067 = vsel %vm474, %v4062, %v4066
        %v4076 = vld [vmem:[%s1216] sm:$0xff]
        %v4077 = vld [vmem:[%s1216 + $0x8] sm:$0xff]
        %v4078 = vld [vmem:[%s1216 + $0x10] sm:$0xff]
        %v4079 = vld [vmem:[%s1216 + $0x18] sm:$0xff]
        %v4080 = vld [vmem:[%s1216 + $0x20] sm:$0xff]
        %v4081 = vld [vmem:[%s1216 + $0x28] sm:$0xff]
        %v4082 = vld [vmem:[%s1216 + $0x30] sm:$0xff]
        %v4083 = vld [vmem:[%s1216 + $0x38] sm:$0xff]
        %v4084 = vld [vmem:[%s1216 + $0x40] sm:$0xff]
        %v4085 = vld [vmem:[%s1216 + $0x48] sm:$0xff]
        %v4086 = vld [vmem:[%s1216 + $0x50] sm:$0xff]
        %v4087 = vld [vmem:[%s1216 + $0x58] sm:$0xff]
        %v4088 = vld [vmem:[%s1216 + $0x60] sm:$0xff]
        %v4089 = vld [vmem:[%s1216 + $0x68] sm:$0xff]
        %v4090 = vld [vmem:[%s1216 + $0x70] sm:$0xff]
        %v4091 = vld [vmem:[%s1216 + $0x78] sm:$0xff]
        %v4092 = vld [vmem:[%s1216 + $0x80] sm:$0xff]
        %v4093 = vld [vmem:[%s1216 + $0x88] sm:$0xff]
        %v4094 = vld [vmem:[%s1216 + $0x90] sm:$0xff]
        %v4095 = vld [vmem:[%s1216 + $0x98] sm:$0xff]
        %v4096 = vld [vmem:[%s1216 + $0xa0] sm:$0xff]
        %v4097 = vld [vmem:[%s1216 + $0xa8] sm:$0xff]
        %v4098 = vld [vmem:[%s1216 + $0xb0] sm:$0xff]
        %v4099 = vld [vmem:[%s1216 + $0xb8] sm:$0xff]
        %v4100 = vld [vmem:[%s1216 + $0xc0] sm:$0xff]
        %v4101 = vld [vmem:[%s1216 + $0xc8] sm:$0xff]
        %v4102 = vld [vmem:[%s1216 + $0xd0] sm:$0xff]
        %v4103 = vld [vmem:[%s1216 + $0xd8] sm:$0xff]
        %v4104 = vld [vmem:[%s1216 + $0xe0] sm:$0xff]
        %v4105 = vld [vmem:[%s1216 + $0xe8] sm:$0xff]
        %v4106 = vld [vmem:[%s1216 + $0xf0] sm:$0xff]
        %v4107 = vld [vmem:[%s1216 + $0xf8] sm:$0xff]
        %v4108 = vld [vmem:[%s1216 + $0x100] sm:$0xff]
        %v4109 = vld [vmem:[%s1216 + $0x108] sm:$0xff]
        %v4110 = vld [vmem:[%s1216 + $0x110] sm:$0xff]
        %v4111 = vld [vmem:[%s1216 + $0x118] sm:$0xff]
        %v4112 = vld [vmem:[%s1216 + $0x120] sm:$0xff]
        %v4113 = vld [vmem:[%s1216 + $0x128] sm:$0xff]
        %v4114 = vld [vmem:[%s1216 + $0x130] sm:$0xff]
        %v4115 = vld [vmem:[%s1216 + $0x138] sm:$0xff]
        %v4116 = vld [vmem:[%s1216 + $0x140] sm:$0xff]
        %v4117 = vld [vmem:[%s1216 + $0x148] sm:$0xff]
        %v4118 = vld [vmem:[%s1216 + $0x150] sm:$0xff]
        %v4119 = vld [vmem:[%s1216 + $0x158] sm:$0xff]
        %v4120 = vld [vmem:[%s1216 + $0x160] sm:$0xff]
        %v4121 = vld [vmem:[%s1216 + $0x168] sm:$0xff]
        %v4122 = vld [vmem:[%s1216 + $0x170] sm:$0xff]
        %v4123 = vld [vmem:[%s1216 + $0x178] sm:$0xff]
        %v4124 = vld [vmem:[%s1216 + $0x180] sm:$0xff]
        %v4125 = vld [vmem:[%s1216 + $0x188] sm:$0xff]
        %v4126 = vld [vmem:[%s1216 + $0x190] sm:$0xff]
        %v4127 = vld [vmem:[%s1216 + $0x198] sm:$0xff]
        %v4128 = vld [vmem:[%s1216 + $0x1a0] sm:$0xff]
        %v4129 = vld [vmem:[%s1216 + $0x1a8] sm:$0xff]
        %v4130 = vld [vmem:[%s1216 + $0x1b0] sm:$0xff]
        %v4131 = vld [vmem:[%s1216 + $0x1b8] sm:$0xff]
        %v4132 = vld [vmem:[%s1216 + $0x1c0] sm:$0xff]
        %v4133 = vld [vmem:[%s1216 + $0x1c8] sm:$0xff]
        %v4134 = vld [vmem:[%s1216 + $0x1d0] sm:$0xff]
        %v4135 = vld [vmem:[%s1216 + $0x1d8] sm:$0xff]
        %v4136 = vld [vmem:[%s1216 + $0x1e0] sm:$0xff]
        %v4137 = vld [vmem:[%s1216 + $0x1e8] sm:$0xff]
        %v4138 = vld [vmem:[%s1216 + $0x1f0] sm:$0xff]
        %v4139 = vld [vmem:[%s1216 + $0x1f8] sm:$0xff]
        %4140 = vmatprep.subr.mxu0 %v4077
        %4141 = vmatpush1.msra.mxu0 %v4076
        %4142 = vmatprep.subr.mxu0 %v4079
        %4143 = vmatpush1.msra.mxu0 %v4078
        %4144 = vmatprep.subr.mxu0 %v4081
        %4145 = vmatpush1.msra.mxu0 %v4080
        %4146 = vmatprep.subr.mxu0 %v4083
        %4147 = vmatpush1.msra.mxu0 %v4082
        %4148 = vmatprep.subr.mxu0 %v4085
        %4149 = vmatpush1.msra.mxu0 %v4084
        %4150 = vmatprep.subr.mxu0 %v4087
        %4151 = vmatpush1.msra.mxu0 %v4086
        %4152 = vmatprep.subr.mxu0 %v4089
        %4153 = vmatpush1.msra.mxu0 %v4088
        %4154 = vmatprep.subr.mxu0 %v4091
        %4155 = vmatpush1.msra.mxu0 %v4090
        %4156 = vmatprep.subr.mxu0 %v4093
        %4157 = vmatpush1.msra.mxu0 %v4092
        %4158 = vmatprep.subr.mxu0 %v4095
        %4159 = vmatpush1.msra.mxu0 %v4094
        %4160 = vmatprep.subr.mxu0 %v4097
        %4161 = vmatpush1.msra.mxu0 %v4096
        %4162 = vmatprep.subr.mxu0 %v4099
        %4163 = vmatpush1.msra.mxu0 %v4098
        %4164 = vmatprep.subr.mxu0 %v4101
        %4165 = vmatpush1.msra.mxu0 %v4100
        %4166 = vmatprep.subr.mxu0 %v4103
        %4167 = vmatpush1.msra.mxu0 %v4102
        %4168 = vmatprep.subr.mxu0 %v4105
        %4169 = vmatpush1.msra.mxu0 %v4104
        %4170 = vmatprep.subr.mxu0 %v4107
        %4171 = vmatpush1.msra.mxu0 %v4106
        %4172 = vmatprep.subr.mxu0 %v4109
        %4173 = vmatpush1.msra.mxu0 %v4108
        %4174 = vmatprep.subr.mxu0 %v4111
        %4175 = vmatpush1.msra.mxu0 %v4110
        %4176 = vmatprep.subr.mxu0 %v4113
        %4177 = vmatpush1.msra.mxu0 %v4112
        %4178 = vmatprep.subr.mxu0 %v4115
        %4179 = vmatpush1.msra.mxu0 %v4114
        %4180 = vmatprep.subr.mxu0 %v4117
        %4181 = vmatpush1.msra.mxu0 %v4116
        %4182 = vmatprep.subr.mxu0 %v4119
        %4183 = vmatpush1.msra.mxu0 %v4118
        %4184 = vmatprep.subr.mxu0 %v4121
        %4185 = vmatpush1.msra.mxu0 %v4120
        %4186 = vmatprep.subr.mxu0 %v4123
        %4187 = vmatpush1.msra.mxu0 %v4122
        %4188 = vmatprep.subr.mxu0 %v4125
        %4189 = vmatpush1.msra.mxu0 %v4124
        %4190 = vmatprep.subr.mxu0 %v4127
        %4191 = vmatpush1.msra.mxu0 %v4126
        %4192 = vmatprep.subr.mxu0 %v4129
        %4193 = vmatpush1.msra.mxu0 %v4128
        %4194 = vmatprep.subr.mxu0 %v4131
        %4195 = vmatpush1.msra.mxu0 %v4130
        %4196 = vmatprep.subr.mxu0 %v4133
        %4197 = vmatpush1.msra.mxu0 %v4132
        %4198 = vmatprep.subr.mxu0 %v4135
        %4199 = vmatpush1.msra.mxu0 %v4134
        %4200 = vmatprep.subr.mxu0 %v4137
        %4201 = vmatpush1.msra.mxu0 %v4136
        %4202 = vmatprep.subr.mxu0 %v4139
        %4203 = vmatpush1.msra.mxu0 %v4138
        %4204 = vmatprep.mubr.f32.mxu0 %v4053
        %4205 = vmatmul.mubr.f32.gmra.mrb[0].mxu0 %v4050
        %v4206 = vpop.f32.mrb[0].mxu0
        %v4207 = vadd.f32 0.0, %v4206
        %v4208 = vpop.f32.mrb[0].mxu0
        %v4209 = vadd.f32 0.0, %v4208
        %4210 = vmatprep.mubr.f32.mxu0 %v4057
        %4211 = vmatmul.mubr.f32.gmra.mrb[0].mxu0 %v4055
        %v4212 = vpop.f32.mrb[0].mxu0
        %v4213 = vadd.f32 0.0, %v4212
        %v4214 = vpop.f32.mrb[0].mxu0
        %v4215 = vadd.f32 0.0, %v4214
        %4216 = vmatprep.mubr.f32.mxu0 %v4063
        %4217 = vmatmul.mubr.f32.gmra.mrb[0].mxu0 %v4060
        %v4218 = vpop.f32.mrb[0].mxu0
        %v4219 = vadd.f32 0.0, %v4218
        %v4220 = vpop.f32.mrb[0].mxu0
        %v4221 = vadd.f32 0.0, %v4220
        %4222 = vmatprep.mubr.f32.mxu0 %v4067
        %4223 = vmatmul.mubr.f32.gmra.mrb[0].mxu0 %v4065
        %v4224 = vpop.f32.mrb[0].mxu0
        %v4225 = vadd.f32 0.0, %v4224
        %v4226 = vpop.f32.mrb[0].mxu0
        %v4227 = vadd.f32 0.0, %v4226
        %4228 = vdwg.mxu0
        %4229 = vmatprep.subr.mxu0 %v3965
        %4230 = vmatpush1.msra.mxu0 %v3964
        %4231 = vmatprep.subr.mxu0 %v3967
        %4232 = vmatpush1.msra.mxu0 %v3966
        %4233 = vmatprep.subr.mxu0 %v3969
        %4234 = vmatpush1.msra.mxu0 %v3968
        %4235 = vmatprep.subr.mxu0 %v3971
        %4236 = vmatpush1.msra.mxu0 %v3970
        %4237 = vmatprep.subr.mxu0 %v3973
        %4238 = vmatpush1.msra.mxu0 %v3972
        %4239 = vmatprep.subr.mxu0 %v3975
        %4240 = vmatpush1.msra.mxu0 %v3974
        %4241 = vmatprep.subr.mxu0 %v3977
        %4242 = vmatpush1.msra.mxu0 %v3976
        %4243 = vmatprep.subr.mxu0 %v3979
        %4244 = vmatpush1.msra.mxu0 %v3978
        %4245 = vmatprep.subr.mxu0 %v3981
        %4246 = vmatpush1.msra.mxu0 %v3980
        %4247 = vmatprep.subr.mxu0 %v3983
        %4248 = vmatpush1.msra.mxu0 %v3982
        %4249 = vmatprep.subr.mxu0 %v3985
        %4250 = vmatpush1.msra.mxu0 %v3984
        %4251 = vmatprep.subr.mxu0 %v3987
        %4252 = vmatpush1.msra.mxu0 %v3986
        %4253 = vmatprep.subr.mxu0 %v3989
        %4254 = vmatpush1.msra.mxu0 %v3988
        %4255 = vmatprep.subr.mxu0 %v3991
        %4256 = vmatpush1.msra.mxu0 %v3990
        %4257 = vmatprep.subr.mxu0 %v3993
        %4258 = vmatpush1.msra.mxu0 %v3992
        %4259 = vmatprep.subr.mxu0 %v3995
        %4260 = vmatpush1.msra.mxu0 %v3994
        %4261 = vmatprep.subr.mxu0 %v3997
        %4262 = vmatpush1.msra.mxu0 %v3996
        %4263 = vmatprep.subr.mxu0 %v3999
        %4264 = vmatpush1.msra.mxu0 %v3998
        %4265 = vmatprep.subr.mxu0 %v4001
        %4266 = vmatpush1.msra.mxu0 %v4000
        %4267 = vmatprep.subr.mxu0 %v4003
        %4268 = vmatpush1.msra.mxu0 %v4002
        %4269 = vmatprep.subr.mxu0 %v4005
        %4270 = vmatpush1.msra.mxu0 %v4004
        %4271 = vmatprep.subr.mxu0 %v4007
        %4272 = vmatpush1.msra.mxu0 %v4006
        %4273 = vmatprep.subr.mxu0 %v4009
        %4274 = vmatpush1.msra.mxu0 %v4008
        %4275 = vmatprep.subr.mxu0 %v4011
        %4276 = vmatpush1.msra.mxu0 %v4010
        %4277 = vmatprep.subr.mxu0 %v4013
        %4278 = vmatpush1.msra.mxu0 %v4012
        %4279 = vmatprep.subr.mxu0 %v4015
        %4280 = vmatpush1.msra.mxu0 %v4014
        %4281 = vmatprep.subr.mxu0 %v4017
        %4282 = vmatpush1.msra.mxu0 %v4016
        %4283 = vmatprep.subr.mxu0 %v4019
        %4284 = vmatpush1.msra.mxu0 %v4018
        %4285 = vmatprep.subr.mxu0 %v4021
        %4286 = vmatpush1.msra.mxu0 %v4020
        %4287 = vmatprep.subr.mxu0 %v4023
        %4288 = vmatpush1.msra.mxu0 %v4022
        %4289 = vmatprep.subr.mxu0 %v4025
        %4290 = vmatpush1.msra.mxu0 %v4024
        %4291 = vmatprep.subr.mxu0 %v4027
        %4292 = vmatpush1.msra.mxu0 %v4026
        %4293 = vmatprep.mubr.f32.mxu0 %v3957
        %4294 = vmatmul.mubr.f32.gmra.mrb[0].mxu0 %v3956
        %v4295 = vpop.f32.mrb[0].mxu0
        %v4296 = vadd.f32 %v4207, %v4295
        %v4297 = vpop.f32.mrb[0].mxu0
        %v4298 = vadd.f32 %v4209, %v4297
        %4299 = vmatprep.mubr.f32.mxu0 %v3959
        %4300 = vmatmul.mubr.f32.gmra.mrb[0].mxu0 %v3958
        %v4301 = vpop.f32.mrb[0].mxu0
        %v4302 = vadd.f32 %v4213, %v4301
        %v4303 = vpop.f32.mrb[0].mxu0
        %v4304 = vadd.f32 %v4215, %v4303
        %4305 = vmatprep.mubr.f32.mxu0 %v3961
        %4306 = vmatmul.mubr.f32.gmra.mrb[0].mxu0 %v3960
        %v4307 = vpop.f32.mrb[0].mxu0
        %v4308 = vadd.f32 %v4219, %v4307
        %v4309 = vpop.f32.mrb[0].mxu0
        %v4310 = vadd.f32 %v4221, %v4309
        %4311 = vmatprep.mubr.f32.mxu0 %v3963
        %4312 = vmatmul.mubr.f32.gmra.mrb[0].mxu0 %v3962
        %v4313 = vpop.f32.mrb[0].mxu0
        %v4314 = vadd.f32 %v4225, %v4313
        %v4315 = vpop.f32.mrb[0].mxu0
        %v4316 = vadd.f32 %v4227, %v4315
        %4317 = vdwg.mxu0
        %v4318 = vld [vmem:[#allocation2] sm:$0xfc]
        %v4319 = vld [vmem:[#allocation2 + $0x8] sm:$0xfc]
        %v4320 = vld [vmem:[#allocation2 + $0x20] sm:$0x3]
        %v4321 = vld [vmem:[#allocation2 + $0x28] sm:$0x3]
        %v4322 = vld [vmem:[#allocation2 + $0x30] sm:$0xfc]
        %v4323 = vld [vmem:[#allocation2 + $0x38] sm:$0xfc]
        %v4324 = vld [vmem:[#allocation2 + $0x50] sm:$0x3]
        %v4325 = vld [vmem:[#allocation2 + $0x58] sm:$0x3]
        %v4334 = vrot.slane %v4318, 2
        %v4335 = vrot.slane %v3958, 2
        %v4336 = vsel %vm762, %v4334, %v4335
        %v4337 = vrot.slane %v4319, 2
        %v4338 = vrot.slane %v3959, 2
        %v4339 = vsel %vm762, %v4337, %v4338
        %v4340 = vrot.slane %v4320, 2
        %v4341 = vsel %vm762, %v4335, %v4340
        %v4342 = vrot.slane %v4321, 2
        %v4343 = vsel %vm762, %v4338, %v4342
        %v4344 = vrot.slane %v4322, 2
        %v4345 = vrot.slane %v3962, 2
        %v4346 = vsel %vm762, %v4344, %v4345
        %v4347 = vrot.slane %v4323, 2
        %v4348 = vrot.slane %v3963, 2
        %v4349 = vsel %vm762, %v4347, %v4348
        %v4350 = vrot.slane %v4324, 2
        %v4351 = vsel %vm762, %v4345, %v4350
        %v4352 = vrot.slane %v4325, 2
        %v4353 = vsel %vm762, %v4348, %v4352
        %v4362 = vld [vmem:[%s1503] sm:$0xff]
        %v4363 = vld [vmem:[%s1503 + $0x8] sm:$0xff]
        %v4364 = vld [vmem:[%s1503 + $0x10] sm:$0xff]
        %v4365 = vld [vmem:[%s1503 + $0x18] sm:$0xff]
        %v4366 = vld [vmem:[%s1503 + $0x20] sm:$0xff]
        %v4367 = vld [vmem:[%s1503 + $0x28] sm:$0xff]
        %v4368 = vld [vmem:[%s1503 + $0x30] sm:$0xff]
        %v4369 = vld [vmem:[%s1503 + $0x38] sm:$0xff]
        %v4370 = vld [vmem:[%s1503 + $0x40] sm:$0xff]
        %v4371 = vld [vmem:[%s1503 + $0x48] sm:$0xff]
        %v4372 = vld [vmem:[%s1503 + $0x50] sm:$0xff]
        %v4373 = vld [vmem:[%s1503 + $0x58] sm:$0xff]
        %v4374 = vld [vmem:[%s1503 + $0x60] sm:$0xff]
        %v4375 = vld [vmem:[%s1503 + $0x68] sm:$0xff]
        %v4376 = vld [vmem:[%s1503 + $0x70] sm:$0xff]
        %v4377 = vld [vmem:[%s1503 + $0x78] sm:$0xff]
        %v4378 = vld [vmem:[%s1503 + $0x80] sm:$0xff]
        %v4379 = vld [vmem:[%s1503 + $0x88] sm:$0xff]
        %v4380 = vld [vmem:[%s1503 + $0x90] sm:$0xff]
        %v4381 = vld [vmem:[%s1503 + $0x98] sm:$0xff]
        %v4382 = vld [vmem:[%s1503 + $0xa0] sm:$0xff]
        %v4383 = vld [vmem:[%s1503 + $0xa8] sm:$0xff]
        %v4384 = vld [vmem:[%s1503 + $0xb0] sm:$0xff]
        %v4385 = vld [vmem:[%s1503 + $0xb8] sm:$0xff]
        %v4386 = vld [vmem:[%s1503 + $0xc0] sm:$0xff]
        %v4387 = vld [vmem:[%s1503 + $0xc8] sm:$0xff]
        %v4388 = vld [vmem:[%s1503 + $0xd0] sm:$0xff]
        %v4389 = vld [vmem:[%s1503 + $0xd8] sm:$0xff]
        %v4390 = vld [vmem:[%s1503 + $0xe0] sm:$0xff]
        %v4391 = vld [vmem:[%s1503 + $0xe8] sm:$0xff]
        %v4392 = vld [vmem:[%s1503 + $0xf0] sm:$0xff]
        %v4393 = vld [vmem:[%s1503 + $0xf8] sm:$0xff]
        %v4394 = vld [vmem:[%s1503 + $0x100] sm:$0xff]
        %v4395 = vld [vmem:[%s1503 + $0x108] sm:$0xff]
        %v4396 = vld [vmem:[%s1503 + $0x110] sm:$0xff]
        %v4397 = vld [vmem:[%s1503 + $0x118] sm:$0xff]
        %v4398 = vld [vmem:[%s1503 + $0x120] sm:$0xff]
        %v4399 = vld [vmem:[%s1503 + $0x128] sm:$0xff]
        %v4400 = vld [vmem:[%s1503 + $0x130] sm:$0xff]
        %v4401 = vld [vmem:[%s1503 + $0x138] sm:$0xff]
        %v4402 = vld [vmem:[%s1503 + $0x140] sm:$0xff]
        %v4403 = vld [vmem:[%s1503 + $0x148] sm:$0xff]
        %v4404 = vld [vmem:[%s1503 + $0x150] sm:$0xff]
        %v4405 = vld [vmem:[%s1503 + $0x158] sm:$0xff]
        %v4406 = vld [vmem:[%s1503 + $0x160] sm:$0xff]
        %v4407 = vld [vmem:[%s1503 + $0x168] sm:$0xff]
        %v4408 = vld [vmem:[%s1503 + $0x170] sm:$0xff]
        %v4409 = vld [vmem:[%s1503 + $0x178] sm:$0xff]
        %v4410 = vld [vmem:[%s1503 + $0x180] sm:$0xff]
        %v4411 = vld [vmem:[%s1503 + $0x188] sm:$0xff]
        %v4412 = vld [vmem:[%s1503 + $0x190] sm:$0xff]
        %v4413 = vld [vmem:[%s1503 + $0x198] sm:$0xff]
        %v4414 = vld [vmem:[%s1503 + $0x1a0] sm:$0xff]
        %v4415 = vld [vmem:[%s1503 + $0x1a8] sm:$0xff]
        %v4416 = vld [vmem:[%s1503 + $0x1b0] sm:$0xff]
        %v4417 = vld [vmem:[%s1503 + $0x1b8] sm:$0xff]
        %v4418 = vld [vmem:[%s1503 + $0x1c0] sm:$0xff]
        %v4419 = vld [vmem:[%s1503 + $0x1c8] sm:$0xff]
        %v4420 = vld [vmem:[%s1503 + $0x1d0] sm:$0xff]
        %v4421 = vld [vmem:[%s1503 + $0x1d8] sm:$0xff]
        %v4422 = vld [vmem:[%s1503 + $0x1e0] sm:$0xff]
        %v4423 = vld [vmem:[%s1503 + $0x1e8] sm:$0xff]
        %v4424 = vld [vmem:[%s1503 + $0x1f0] sm:$0xff]
        %v4425 = vld [vmem:[%s1503 + $0x1f8] sm:$0xff]
        %4426 = vmatprep.subr.mxu0 %v4363
        %4427 = vmatpush1.msra.mxu0 %v4362
        %4428 = vmatprep.subr.mxu0 %v4365
        %4429 = vmatpush1.msra.mxu0 %v4364
        %4430 = vmatprep.subr.mxu0 %v4367
        %4431 = vmatpush1.msra.mxu0 %v4366
        %4432 = vmatprep.subr.mxu0 %v4369
        %4433 = vmatpush1.msra.mxu0 %v4368
        %4434 = vmatprep.subr.mxu0 %v4371
        %4435 = vmatpush1.msra.mxu0 %v4370
        %4436 = vmatprep.subr.mxu0 %v4373
        %4437 = vmatpush1.msra.mxu0 %v4372
        %4438 = vmatprep.subr.mxu0 %v4375
        %4439 = vmatpush1.msra.mxu0 %v4374
        %4440 = vmatprep.subr.mxu0 %v4377
        %4441 = vmatpush1.msra.mxu0 %v4376
        %4442 = vmatprep.subr.mxu0 %v4379
        %4443 = vmatpush1.msra.mxu0 %v4378
        %4444 = vmatprep.subr.mxu0 %v4381
        %4445 = vmatpush1.msra.mxu0 %v4380
        %4446 = vmatprep.subr.mxu0 %v4383
        %4447 = vmatpush1.msra.mxu0 %v4382
        %4448 = vmatprep.subr.mxu0 %v4385
        %4449 = vmatpush1.msra.mxu0 %v4384
        %4450 = vmatprep.subr.mxu0 %v4387
        %4451 = vmatpush1.msra.mxu0 %v4386
        %4452 = vmatprep.subr.mxu0 %v4389
        %4453 = vmatpush1.msra.mxu0 %v4388
        %4454 = vmatprep.subr.mxu0 %v4391
        %4455 = vmatpush1.msra.mxu0 %v4390
        %4456 = vmatprep.subr.mxu0 %v4393
        %4457 = vmatpush1.msra.mxu0 %v4392
        %4458 = vmatprep.subr.mxu0 %v4395
        %4459 = vmatpush1.msra.mxu0 %v4394
        %4460 = vmatprep.subr.mxu0 %v4397
        %4461 = vmatpush1.msra.mxu0 %v4396
        %4462 = vmatprep.subr.mxu0 %v4399
        %4463 = vmatpush1.msra.mxu0 %v4398
        %4464 = vmatprep.subr.mxu0 %v4401
        %4465 = vmatpush1.msra.mxu0 %v4400
        %4466 = vmatprep.subr.mxu0 %v4403
        %4467 = vmatpush1.msra.mxu0 %v4402
        %4468 = vmatprep.subr.mxu0 %v4405
        %4469 = vmatpush1.msra.mxu0 %v4404
        %4470 = vmatprep.subr.mxu0 %v4407
        %4471 = vmatpush1.msra.mxu0 %v4406
        %4472 = vmatprep.subr.mxu0 %v4409
        %4473 = vmatpush1.msra.mxu0 %v4408
        %4474 = vmatprep.subr.mxu0 %v4411
        %4475 = vmatpush1.msra.mxu0 %v4410
        %4476 = vmatprep.subr.mxu0 %v4413
        %4477 = vmatpush1.msra.mxu0 %v4412
        %4478 = vmatprep.subr.mxu0 %v4415
        %4479 = vmatpush1.msra.mxu0 %v4414
        %4480 = vmatprep.subr.mxu0 %v4417
        %4481 = vmatpush1.msra.mxu0 %v4416
        %4482 = vmatprep.subr.mxu0 %v4419
        %4483 = vmatpush1.msra.mxu0 %v4418
        %4484 = vmatprep.subr.mxu0 %v4421
        %4485 = vmatpush1.msra.mxu0 %v4420
        %4486 = vmatprep.subr.mxu0 %v4423
        %4487 = vmatpush1.msra.mxu0 %v4422
        %4488 = vmatprep.subr.mxu0 %v4425
        %4489 = vmatpush1.msra.mxu0 %v4424
        %4490 = vmatprep.mubr.f32.mxu0 %v4339
        %4491 = vmatmul.mubr.f32.gmra.mrb[0].mxu0 %v4336
        %v4492 = vpop.f32.mrb[0].mxu0
        %v4493 = vadd.f32 0.0, %v4492
        %v4494 = vpop.f32.mrb[0].mxu0
        %v4495 = vadd.f32 0.0, %v4494
        %4496 = vmatprep.mubr.f32.mxu0 %v4343
        %4497 = vmatmul.mubr.f32.gmra.mrb[0].mxu0 %v4341
        %v4498 = vpop.f32.mrb[0].mxu0
        %v4499 = vadd.f32 0.0, %v4498
        %v4500 = vpop.f32.mrb[0].mxu0
        %v4501 = vadd.f32 0.0, %v4500
        %4502 = vmatprep.mubr.f32.mxu0 %v4349
        %4503 = vmatmul.mubr.f32.gmra.mrb[0].mxu0 %v4346
        %v4504 = vpop.f32.mrb[0].mxu0
        %v4505 = vadd.f32 0.0, %v4504
        %v4506 = vpop.f32.mrb[0].mxu0
        %v4507 = vadd.f32 0.0, %v4506
        %4508 = vmatprep.mubr.f32.mxu0 %v4353
        %4509 = vmatmul.mubr.f32.gmra.mrb[0].mxu0 %v4351
        %v4510 = vpop.f32.mrb[0].mxu0
        %v4511 = vadd.f32 0.0, %v4510
        %v4512 = vpop.f32.mrb[0].mxu0
        %v4513 = vadd.f32 0.0, %v4512
        %4514 = vdwg.mxu0
        %v4515 = vadd.f32 %v4296, %v4493
        %v4516 = vadd.f32 %v4298, %v4495
        %v4517 = vadd.f32 %v4302, %v4499
        %v4518 = vadd.f32 %v4304, %v4501
        %v4519 = vadd.f32 %v4308, %v4505
        %v4520 = vadd.f32 %v4310, %v4507
        %v4521 = vadd.f32 %v4314, %v4511
        %v4522 = vadd.f32 %v4316, %v4513
        %v4523 = vadd.f32 %v4515, %v1669
        %v4524 = vadd.f32 %v4516, %v1673
        %v4525 = vadd.f32 %v4517, %v1669
        %v4526 = vadd.f32 %v4518, %v1673
        %v4527 = vadd.f32 %v4519, %v1669
        %v4528 = vadd.f32 %v4520, %v1673
        %v4529 = vadd.f32 %v4521, %v1669
        %v4530 = vadd.f32 %v4522, %v1673
        %v4531 = vld [vmem:[#allocation4] sm:$0xff]
        %v4532 = vld [vmem:[#allocation4 + $0x8] sm:$0xff]
        %v4533 = vld [vmem:[#allocation4 + $0x10] sm:$0xff]
        %v4534 = vld [vmem:[#allocation4 + $0x18] sm:$0xff]
        %v4535 = vld [vmem:[#allocation4 + $0x20] sm:$0xff]
        %v4536 = vld [vmem:[#allocation4 + $0x28] sm:$0xff]
        %v4537 = vld [vmem:[#allocation4 + $0x30] sm:$0xff]
        %v4538 = vld [vmem:[#allocation4 + $0x38] sm:$0xff]
        %v4539 = vsub.f32 %v4523, %v4531
        %v4540 = vsub.f32 %v4524, %v4532
        %v4541 = vsub.f32 %v4525, %v4533
        %v4542 = vsub.f32 %v4526, %v4534
        %v4543 = vsub.f32 %v4527, %v4535
        %v4544 = vsub.f32 %v4528, %v4536
        %v4545 = vsub.f32 %v4529, %v4537
        %v4546 = vsub.f32 %v4530, %v4538
        %v4547 = vmul.f32 %v4539, 0.5
        %v4548 = vmul.f32 %v4540, 0.5
        %v4549 = vmul.f32 %v4541, 0.5
        %v4550 = vmul.f32 %v4542, 0.5
        %v4551 = vmul.f32 %v4543, 0.5
        %v4552 = vmul.f32 %v4544, 0.5
        %v4553 = vmul.f32 %v4545, 0.5
        %v4554 = vmul.f32 %v4546, 0.5
        %v4555 = vadd.f32 %v4531, %v4547
        %v4556 = vadd.f32 %v4532, %v4548
        %v4557 = vadd.f32 %v4533, %v4549
        %v4558 = vadd.f32 %v4534, %v4550
        %v4559 = vadd.f32 %v4535, %v4551
        %v4560 = vadd.f32 %v4536, %v4552
        %v4561 = vadd.f32 %v4537, %v4553
        %v4562 = vadd.f32 %v4538, %v4554
        %vm4563 = vcmp.ge.f32.partialorder %v4555, 1.0
        %vm4564 = vcmp.ge.f32.partialorder %v4556, 1.0
        %vm4565 = vcmp.ge.f32.partialorder %v4557, 1.0
        %vm4566 = vcmp.ge.f32.partialorder %v4558, 1.0
        %vm4567 = vcmp.ge.f32.partialorder %v4559, 1.0
        %vm4568 = vcmp.ge.f32.partialorder %v4560, 1.0
        %vm4569 = vcmp.ge.f32.partialorder %v4561, 1.0
        %vm4570 = vcmp.ge.f32.partialorder %v4562, 1.0
        %v4571 = vsel %vm4563, 1, 0
        %v4572 = vsel %vm4564, 1, 0
        %v4573 = vsel %vm4565, 1, 0
        %v4574 = vsel %vm4566, 1, 0
        %v4575 = vsel %vm4567, 1, 0
        %v4576 = vsel %vm4568, 1, 0
        %v4577 = vsel %vm4569, 1, 0
        %v4578 = vsel %vm4570, 1, 0
        %v4579 = vcvt.s32.f32 %v4571
        %v4580 = vcvt.s32.f32 %v4572
        %v4581 = vcvt.s32.f32 %v4573
        %v4582 = vcvt.s32.f32 %v4574
        %v4583 = vcvt.s32.f32 %v4575
        %v4584 = vcvt.s32.f32 %v4576
        %v4585 = vcvt.s32.f32 %v4577
        %v4586 = vcvt.s32.f32 %v4578
        %v4587 = vsub.f32 1.0, %v4579
        %v4588 = vsub.f32 1.0, %v4580
        %v4589 = vsub.f32 1.0, %v4581
        %v4590 = vsub.f32 1.0, %v4582
        %v4591 = vsub.f32 1.0, %v4583
        %v4592 = vsub.f32 1.0, %v4584
        %v4593 = vsub.f32 1.0, %v4585
        %v4594 = vsub.f32 1.0, %v4586
        %v4595 = vmul.f32 %v4555, %v4587
        %v4596 = vmul.f32 %v4556, %v4588
        %v4597 = vmul.f32 %v4557, %v4589
        %v4598 = vmul.f32 %v4558, %v4590
        %v4599 = vmul.f32 %v4559, %v4591
        %v4600 = vmul.f32 %v4560, %v4592
        %v4601 = vmul.f32 %v4561, %v4593
        %v4602 = vmul.f32 %v4562, %v4594
        %4603 = vst [vmem:[#allocation4] sm:$0xff] %v4595
        %4604 = vst [vmem:[#allocation4 + $0x8] sm:$0xff] %v4596
        %4605 = vst [vmem:[#allocation4 + $0x10] sm:$0xff] %v4597
        %4606 = vst [vmem:[#allocation4 + $0x18] sm:$0xff] %v4598
        %4607 = vst [vmem:[#allocation4 + $0x20] sm:$0xff] %v4599
        %4608 = vst [vmem:[#allocation4 + $0x28] sm:$0xff] %v4600
        %4609 = vst [vmem:[#allocation4 + $0x30] sm:$0xff] %v4601
        %4610 = vst [vmem:[#allocation4 + $0x38] sm:$0xff] %v4602
        %v4611 = vadd.f32 %v4579, %v3205
        %v4612 = vadd.f32 %v4580, %v3206
        %v4613 = vadd.f32 %v4581, %v3207
        %v4614 = vadd.f32 %v4582, %v3208
        %v4615 = vadd.f32 %v4583, %v3209
        %v4616 = vadd.f32 %v4584, %v3210
        %v4617 = vadd.f32 %v4585, %v3211
        %v4618 = vadd.f32 %v4586, %v3212
        %s4619 = scalar_lea.vmem %s289, 128 [#allocation11]
        %4620 = vst [vmem:[%s4619] sm:$0xff] %v4611
        %4621 = vst [vmem:[%s4619 + $0x8] sm:$0xff] %v4612
        %4622 = vst [vmem:[%s4619 + $0x10] sm:$0xff] %v4613
        %4623 = vst [vmem:[%s4619 + $0x18] sm:$0xff] %v4614
        %4624 = vst [vmem:[%s4619 + $0x20] sm:$0xff] %v4615
        %4625 = vst [vmem:[%s4619 + $0x28] sm:$0xff] %v4616
        %4626 = vst [vmem:[%s4619 + $0x30] sm:$0xff] %v4617
        %4627 = vst [vmem:[%s4619 + $0x38] sm:$0xff] %v4618
        %s4628 = scalar_lea.vmem %s257, 192 [#allocation5]
        %v4629 = vld [vmem:[%s4628] sm:$0xff]
        %v4630 = vld [vmem:[%s4628 + $0x8] sm:$0xff]
        %v4631 = vld [vmem:[%s4628 + $0x10] sm:$0xff]
        %v4632 = vld [vmem:[%s4628 + $0x18] sm:$0xff]
        %v4633 = vld [vmem:[%s4628 + $0x20] sm:$0xff]
        %v4634 = vld [vmem:[%s4628 + $0x28] sm:$0xff]
        %v4635 = vld [vmem:[%s4628 + $0x30] sm:$0xff]
        %v4636 = vld [vmem:[%s4628 + $0x38] sm:$0xff]
        %v4645 = vrot.slane %v4629, 7
        %v4646 = vrot.slane %v4630, 7
        %v4647 = vrot.slane %v4631, 7
        %v4648 = vsel %vm345, %v4645, %v4647
        %v4649 = vrot.slane %v4632, 7
        %v4650 = vsel %vm345, %v4646, %v4649
        %v4651 = vrot.slane %v4633, 7
        %v4652 = vrot.slane %v4634, 7
        %v4653 = vrot.slane %v4635, 7
        %v4654 = vsel %vm345, %v4651, %v4653
        %v4655 = vrot.slane %v4636, 7
        %v4656 = vsel %vm345, %v4652, %v4655
        %4669 = vst [vmem:[#allocation2] sm:$0xfe] %v4645
        %4670 = vst [vmem:[#allocation2 + $0x8] sm:$0xfe] %v4646
        %4671 = vst [vmem:[#allocation2 + $0x10] sm:$0xff] %v4648
        %4672 = vst [vmem:[#allocation2 + $0x18] sm:$0xff] %v4650
        %4673 = vst [vmem:[#allocation2 + $0x20] sm:$0x1] %v4647
        %4674 = vst [vmem:[#allocation2 + $0x28] sm:$0x1] %v4649
        %4675 = vst [vmem:[#allocation2 + $0x30] sm:$0xfe] %v4651
        %4676 = vst [vmem:[#allocation2 + $0x38] sm:$0xfe] %v4652
        %4677 = vst [vmem:[#allocation2 + $0x40] sm:$0xff] %v4654
        %4678 = vst [vmem:[#allocation2 + $0x48] sm:$0xff] %v4656
        %4679 = vst [vmem:[#allocation2 + $0x50] sm:$0x1] %v4653
        %4680 = vst [vmem:[#allocation2 + $0x58] sm:$0x1] %v4655
        %v4681 = vld [vmem:[#allocation2] sm:$0xff]
        %v4682 = vld [vmem:[#allocation2 + $0x8] sm:$0xff]
        %v4683 = vld [vmem:[#allocation2 + $0x10] sm:$0xff]
        %v4684 = vld [vmem:[#allocation2 + $0x18] sm:$0xff]
        %v4685 = vld [vmem:[#allocation2 + $0x30] sm:$0xff]
        %v4686 = vld [vmem:[#allocation2 + $0x38] sm:$0xff]
        %v4687 = vld [vmem:[#allocation2 + $0x40] sm:$0xff]
        %v4688 = vld [vmem:[#allocation2 + $0x48] sm:$0xff]
        %v4689 = vld [vmem:[#allocation8] sm:$0xff]
        %v4690 = vld [vmem:[#allocation8 + $0x8] sm:$0xff]
        %v4691 = vld [vmem:[#allocation8 + $0x10] sm:$0xff]
        %v4692 = vld [vmem:[#allocation8 + $0x18] sm:$0xff]
        %v4693 = vld [vmem:[#allocation8 + $0x20] sm:$0xff]
        %v4694 = vld [vmem:[#allocation8 + $0x28] sm:$0xff]
        %v4695 = vld [vmem:[#allocation8 + $0x30] sm:$0xff]
        %v4696 = vld [vmem:[#allocation8 + $0x38] sm:$0xff]
        %v4697 = vld [vmem:[#allocation8 + $0x40] sm:$0xff]
        %v4698 = vld [vmem:[#allocation8 + $0x48] sm:$0xff]
        %v4699 = vld [vmem:[#allocation8 + $0x50] sm:$0xff]
        %v4700 = vld [vmem:[#allocation8 + $0x58] sm:$0xff]
        %v4701 = vld [vmem:[#allocation8 + $0x60] sm:$0xff]
        %v4702 = vld [vmem:[#allocation8 + $0x68] sm:$0xff]
        %v4703 = vld [vmem:[#allocation8 + $0x70] sm:$0xff]
        %v4704 = vld [vmem:[#allocation8 + $0x78] sm:$0xff]
        %v4705 = vld [vmem:[#allocation8 + $0x80] sm:$0xff]
        %v4706 = vld [vmem:[#allocation8 + $0x88] sm:$0xff]
        %v4707 = vld [vmem:[#allocation8 + $0x90] sm:$0xff]
        %v4708 = vld [vmem:[#allocation8 + $0x98] sm:$0xff]
        %v4709 = vld [vmem:[#allocation8 + $0xa0] sm:$0xff]
        %v4710 = vld [vmem:[#allocation8 + $0xa8] sm:$0xff]
        %v4711 = vld [vmem:[#allocation8 + $0xb0] sm:$0xff]
        %v4712 = vld [vmem:[#allocation8 + $0xb8] sm:$0xff]
        %v4713 = vld [vmem:[#allocation8 + $0xc0] sm:$0xff]
        %v4714 = vld [vmem:[#allocation8 + $0xc8] sm:$0xff]
        %v4715 = vld [vmem:[#allocation8 + $0xd0] sm:$0xff]
        %v4716 = vld [vmem:[#allocation8 + $0xd8] sm:$0xff]
        %v4717 = vld [vmem:[#allocation8 + $0xe0] sm:$0xff]
        %v4718 = vld [vmem:[#allocation8 + $0xe8] sm:$0xff]
        %v4719 = vld [vmem:[#allocation8 + $0xf0] sm:$0xff]
        %v4720 = vld [vmem:[#allocation8 + $0xf8] sm:$0xff]
        %v4721 = vld [vmem:[#allocation8 + $0x100] sm:$0xff]
        %v4722 = vld [vmem:[#allocation8 + $0x108] sm:$0xff]
        %v4723 = vld [vmem:[#allocation8 + $0x110] sm:$0xff]
        %v4724 = vld [vmem:[#allocation8 + $0x118] sm:$0xff]
        %v4725 = vld [vmem:[#allocation8 + $0x120] sm:$0xff]
        %v4726 = vld [vmem:[#allocation8 + $0x128] sm:$0xff]
        %v4727 = vld [vmem:[#allocation8 + $0x130] sm:$0xff]
        %v4728 = vld [vmem:[#allocation8 + $0x138] sm:$0xff]
        %v4729 = vld [vmem:[#allocation8 + $0x140] sm:$0xff]
        %v4730 = vld [vmem:[#allocation8 + $0x148] sm:$0xff]
        %v4731 = vld [vmem:[#allocation8 + $0x150] sm:$0xff]
        %v4732 = vld [vmem:[#allocation8 + $0x158] sm:$0xff]
        %v4733 = vld [vmem:[#allocation8 + $0x160] sm:$0xff]
        %v4734 = vld [vmem:[#allocation8 + $0x168] sm:$0xff]
        %v4735 = vld [vmem:[#allocation8 + $0x170] sm:$0xff]
        %v4736 = vld [vmem:[#allocation8 + $0x178] sm:$0xff]
        %v4737 = vld [vmem:[#allocation8 + $0x180] sm:$0xff]
        %v4738 = vld [vmem:[#allocation8 + $0x188] sm:$0xff]
        %v4739 = vld [vmem:[#allocation8 + $0x190] sm:$0xff]
        %v4740 = vld [vmem:[#allocation8 + $0x198] sm:$0xff]
        %v4741 = vld [vmem:[#allocation8 + $0x1a0] sm:$0xff]
        %v4742 = vld [vmem:[#allocation8 + $0x1a8] sm:$0xff]
        %v4743 = vld [vmem:[#allocation8 + $0x1b0] sm:$0xff]
        %v4744 = vld [vmem:[#allocation8 + $0x1b8] sm:$0xff]
        %v4745 = vld [vmem:[#allocation8 + $0x1c0] sm:$0xff]
        %v4746 = vld [vmem:[#allocation8 + $0x1c8] sm:$0xff]
        %v4747 = vld [vmem:[#allocation8 + $0x1d0] sm:$0xff]
        %v4748 = vld [vmem:[#allocation8 + $0x1d8] sm:$0xff]
        %v4749 = vld [vmem:[#allocation8 + $0x1e0] sm:$0xff]
        %v4750 = vld [vmem:[#allocation8 + $0x1e8] sm:$0xff]
        %v4751 = vld [vmem:[#allocation8 + $0x1f0] sm:$0xff]
        %v4752 = vld [vmem:[#allocation8 + $0x1f8] sm:$0xff]
        %v4753 = vld [vmem:[#allocation2] sm:$0xfe]
        %v4754 = vld [vmem:[#allocation2 + $0x8] sm:$0xfe]
        %v4755 = vld [vmem:[#allocation2 + $0x20] sm:$0x1]
        %v4756 = vld [vmem:[#allocation2 + $0x28] sm:$0x1]
        %v4757 = vld [vmem:[#allocation2 + $0x30] sm:$0xfe]
        %v4758 = vld [vmem:[#allocation2 + $0x38] sm:$0xfe]
        %v4759 = vld [vmem:[#allocation2 + $0x50] sm:$0x1]
        %v4760 = vld [vmem:[#allocation2 + $0x58] sm:$0x1]
        %v4773 = vrot.slane %v4753, 1
        %v4774 = vrot.slane %v4683, 1
        %v4775 = vsel %vm474, %v4773, %v4774
        %v4776 = vrot.slane %v4754, 1
        %v4777 = vrot.slane %v4684, 1
        %v4778 = vsel %vm474, %v4776, %v4777
        %v4779 = vrot.slane %v4755, 1
        %v4780 = vsel %vm474, %v4774, %v4779
        %v4781 = vrot.slane %v4756, 1
        %v4782 = vsel %vm474, %v4777, %v4781
        %v4783 = vrot.slane %v4757, 1
        %v4784 = vrot.slane %v4687, 1
        %v4785 = vsel %vm474, %v4783, %v4784
        %v4786 = vrot.slane %v4758, 1
        %v4787 = vrot.slane %v4688, 1
        %v4788 = vsel %vm474, %v4786, %v4787
        %v4789 = vrot.slane %v4759, 1
        %v4790 = vsel %vm474, %v4784, %v4789
        %v4791 = vrot.slane %v4760, 1
        %v4792 = vsel %vm474, %v4787, %v4791
        %v4801 = vld [vmem:[%s503] sm:$0xff]
        %v4802 = vld [vmem:[%s503 + $0x8] sm:$0xff]
        %v4803 = vld [vmem:[%s503 + $0x10] sm:$0xff]
        %v4804 = vld [vmem:[%s503 + $0x18] sm:$0xff]
        %v4805 = vld [vmem:[%s503 + $0x20] sm:$0xff]
        %v4806 = vld [vmem:[%s503 + $0x28] sm:$0xff]
        %v4807 = vld [vmem:[%s503 + $0x30] sm:$0xff]
        %v4808 = vld [vmem:[%s503 + $0x38] sm:$0xff]
        %v4809 = vld [vmem:[%s503 + $0x40] sm:$0xff]
        %v4810 = vld [vmem:[%s503 + $0x48] sm:$0xff]
        %v4811 = vld [vmem:[%s503 + $0x50] sm:$0xff]
        %v4812 = vld [vmem:[%s503 + $0x58] sm:$0xff]
        %v4813 = vld [vmem:[%s503 + $0x60] sm:$0xff]
        %v4814 = vld [vmem:[%s503 + $0x68] sm:$0xff]
        %v4815 = vld [vmem:[%s503 + $0x70] sm:$0xff]
        %v4816 = vld [vmem:[%s503 + $0x78] sm:$0xff]
        %v4817 = vld [vmem:[%s503 + $0x80] sm:$0xff]
        %v4818 = vld [vmem:[%s503 + $0x88] sm:$0xff]
        %v4819 = vld [vmem:[%s503 + $0x90] sm:$0xff]
        %v4820 = vld [vmem:[%s503 + $0x98] sm:$0xff]
        %v4821 = vld [vmem:[%s503 + $0xa0] sm:$0xff]
        %v4822 = vld [vmem:[%s503 + $0xa8] sm:$0xff]
        %v4823 = vld [vmem:[%s503 + $0xb0] sm:$0xff]
        %v4824 = vld [vmem:[%s503 + $0xb8] sm:$0xff]
        %v4825 = vld [vmem:[%s503 + $0xc0] sm:$0xff]
        %v4826 = vld [vmem:[%s503 + $0xc8] sm:$0xff]
        %v4827 = vld [vmem:[%s503 + $0xd0] sm:$0xff]
        %v4828 = vld [vmem:[%s503 + $0xd8] sm:$0xff]
        %v4829 = vld [vmem:[%s503 + $0xe0] sm:$0xff]
        %v4830 = vld [vmem:[%s503 + $0xe8] sm:$0xff]
        %v4831 = vld [vmem:[%s503 + $0xf0] sm:$0xff]
        %v4832 = vld [vmem:[%s503 + $0xf8] sm:$0xff]
        %v4833 = vld [vmem:[%s503 + $0x100] sm:$0xff]
        %v4834 = vld [vmem:[%s503 + $0x108] sm:$0xff]
        %v4835 = vld [vmem:[%s503 + $0x110] sm:$0xff]
        %v4836 = vld [vmem:[%s503 + $0x118] sm:$0xff]
        %v4837 = vld [vmem:[%s503 + $0x120] sm:$0xff]
        %v4838 = vld [vmem:[%s503 + $0x128] sm:$0xff]
        %v4839 = vld [vmem:[%s503 + $0x130] sm:$0xff]
        %v4840 = vld [vmem:[%s503 + $0x138] sm:$0xff]
        %v4841 = vld [vmem:[%s503 + $0x140] sm:$0xff]
        %v4842 = vld [vmem:[%s503 + $0x148] sm:$0xff]
        %v4843 = vld [vmem:[%s503 + $0x150] sm:$0xff]
        %v4844 = vld [vmem:[%s503 + $0x158] sm:$0xff]
        %v4845 = vld [vmem:[%s503 + $0x160] sm:$0xff]
        %v4846 = vld [vmem:[%s503 + $0x168] sm:$0xff]
        %v4847 = vld [vmem:[%s503 + $0x170] sm:$0xff]
        %v4848 = vld [vmem:[%s503 + $0x178] sm:$0xff]
        %v4849 = vld [vmem:[%s503 + $0x180] sm:$0xff]
        %v4850 = vld [vmem:[%s503 + $0x188] sm:$0xff]
        %v4851 = vld [vmem:[%s503 + $0x190] sm:$0xff]
        %v4852 = vld [vmem:[%s503 + $0x198] sm:$0xff]
        %v4853 = vld [vmem:[%s503 + $0x1a0] sm:$0xff]
        %v4854 = vld [vmem:[%s503 + $0x1a8] sm:$0xff]
        %v4855 = vld [vmem:[%s503 + $0x1b0] sm:$0xff]
        %v4856 = vld [vmem:[%s503 + $0x1b8] sm:$0xff]
        %v4857 = vld [vmem:[%s503 + $0x1c0] sm:$0xff]
        %v4858 = vld [vmem:[%s503 + $0x1c8] sm:$0xff]
        %v4859 = vld [vmem:[%s503 + $0x1d0] sm:$0xff]
        %v4860 = vld [vmem:[%s503 + $0x1d8] sm:$0xff]
        %v4861 = vld [vmem:[%s503 + $0x1e0] sm:$0xff]
        %v4862 = vld [vmem:[%s503 + $0x1e8] sm:$0xff]
        %v4863 = vld [vmem:[%s503 + $0x1f0] sm:$0xff]
        %v4864 = vld [vmem:[%s503 + $0x1f8] sm:$0xff]
        %4865 = vmatprep.subr.mxu0 %v4802
        %4866 = vmatpush1.msra.mxu0 %v4801
        %4867 = vmatprep.subr.mxu0 %v4804
        %4868 = vmatpush1.msra.mxu0 %v4803
        %4869 = vmatprep.subr.mxu0 %v4806
        %4870 = vmatpush1.msra.mxu0 %v4805
        %4871 = vmatprep.subr.mxu0 %v4808
        %4872 = vmatpush1.msra.mxu0 %v4807
        %4873 = vmatprep.subr.mxu0 %v4810
        %4874 = vmatpush1.msra.mxu0 %v4809
        %4875 = vmatprep.subr.mxu0 %v4812
        %4876 = vmatpush1.msra.mxu0 %v4811
        %4877 = vmatprep.subr.mxu0 %v4814
        %4878 = vmatpush1.msra.mxu0 %v4813
        %4879 = vmatprep.subr.mxu0 %v4816
        %4880 = vmatpush1.msra.mxu0 %v4815
        %4881 = vmatprep.subr.mxu0 %v4818
        %4882 = vmatpush1.msra.mxu0 %v4817
        %4883 = vmatprep.subr.mxu0 %v4820
        %4884 = vmatpush1.msra.mxu0 %v4819
        %4885 = vmatprep.subr.mxu0 %v4822
        %4886 = vmatpush1.msra.mxu0 %v4821
        %4887 = vmatprep.subr.mxu0 %v4824
        %4888 = vmatpush1.msra.mxu0 %v4823
        %4889 = vmatprep.subr.mxu0 %v4826
        %4890 = vmatpush1.msra.mxu0 %v4825
        %4891 = vmatprep.subr.mxu0 %v4828
        %4892 = vmatpush1.msra.mxu0 %v4827
        %4893 = vmatprep.subr.mxu0 %v4830
        %4894 = vmatpush1.msra.mxu0 %v4829
        %4895 = vmatprep.subr.mxu0 %v4832
        %4896 = vmatpush1.msra.mxu0 %v4831
        %4897 = vmatprep.subr.mxu0 %v4834
        %4898 = vmatpush1.msra.mxu0 %v4833
        %4899 = vmatprep.subr.mxu0 %v4836
        %4900 = vmatpush1.msra.mxu0 %v4835
        %4901 = vmatprep.subr.mxu0 %v4838
        %4902 = vmatpush1.msra.mxu0 %v4837
        %4903 = vmatprep.subr.mxu0 %v4840
        %4904 = vmatpush1.msra.mxu0 %v4839
        %4905 = vmatprep.subr.mxu0 %v4842
        %4906 = vmatpush1.msra.mxu0 %v4841
        %4907 = vmatprep.subr.mxu0 %v4844
        %4908 = vmatpush1.msra.mxu0 %v4843
        %4909 = vmatprep.subr.mxu0 %v4846
        %4910 = vmatpush1.msra.mxu0 %v4845
        %4911 = vmatprep.subr.mxu0 %v4848
        %4912 = vmatpush1.msra.mxu0 %v4847
        %4913 = vmatprep.subr.mxu0 %v4850
        %4914 = vmatpush1.msra.mxu0 %v4849
        %4915 = vmatprep.subr.mxu0 %v4852
        %4916 = vmatpush1.msra.mxu0 %v4851
        %4917 = vmatprep.subr.mxu0 %v4854
        %4918 = vmatpush1.msra.mxu0 %v4853
        %4919 = vmatprep.subr.mxu0 %v4856
        %4920 = vmatpush1.msra.mxu0 %v4855
        %4921 = vmatprep.subr.mxu0 %v4858
        %4922 = vmatpush1.msra.mxu0 %v4857
        %4923 = vmatprep.subr.mxu0 %v4860
        %4924 = vmatpush1.msra.mxu0 %v4859
        %4925 = vmatprep.subr.mxu0 %v4862
        %4926 = vmatpush1.msra.mxu0 %v4861
        %4927 = vmatprep.subr.mxu0 %v4864
        %4928 = vmatpush1.msra.mxu0 %v4863
        %4929 = vmatprep.mubr.f32.mxu0 %v4778
        %4930 = vmatmul.mubr.f32.gmra.mrb[0].mxu0 %v4775
        %v4931 = vpop.f32.mrb[0].mxu0
        %v4932 = vadd.f32 0.0, %v4931
        %v4933 = vpop.f32.mrb[0].mxu0
        %v4934 = vadd.f32 0.0, %v4933
        %4935 = vmatprep.mubr.f32.mxu0 %v4782
        %4936 = vmatmul.mubr.f32.gmra.mrb[0].mxu0 %v4780
        %v4937 = vpop.f32.mrb[0].mxu0
        %v4938 = vadd.f32 0.0, %v4937
        %v4939 = vpop.f32.mrb[0].mxu0
        %v4940 = vadd.f32 0.0, %v4939
        %4941 = vmatprep.mubr.f32.mxu0 %v4788
        %4942 = vmatmul.mubr.f32.gmra.mrb[0].mxu0 %v4785
        %v4943 = vpop.f32.mrb[0].mxu0
        %v4944 = vadd.f32 0.0, %v4943
        %v4945 = vpop.f32.mrb[0].mxu0
        %v4946 = vadd.f32 0.0, %v4945
        %4947 = vmatprep.mubr.f32.mxu0 %v4792
        %4948 = vmatmul.mubr.f32.gmra.mrb[0].mxu0 %v4790
        %v4949 = vpop.f32.mrb[0].mxu0
        %v4950 = vadd.f32 0.0, %v4949
        %v4951 = vpop.f32.mrb[0].mxu0
        %v4952 = vadd.f32 0.0, %v4951
        %4953 = vdwg.mxu0
        %4954 = vmatprep.subr.mxu0 %v4690
        %4955 = vmatpush1.msra.mxu0 %v4689
        %4956 = vmatprep.subr.mxu0 %v4692
        %4957 = vmatpush1.msra.mxu0 %v4691
        %4958 = vmatprep.subr.mxu0 %v4694
        %4959 = vmatpush1.msra.mxu0 %v4693
        %4960 = vmatprep.subr.mxu0 %v4696
        %4961 = vmatpush1.msra.mxu0 %v4695
        %4962 = vmatprep.subr.mxu0 %v4698
        %4963 = vmatpush1.msra.mxu0 %v4697
        %4964 = vmatprep.subr.mxu0 %v4700
        %4965 = vmatpush1.msra.mxu0 %v4699
        %4966 = vmatprep.subr.mxu0 %v4702
        %4967 = vmatpush1.msra.mxu0 %v4701
        %4968 = vmatprep.subr.mxu0 %v4704
        %4969 = vmatpush1.msra.mxu0 %v4703
        %4970 = vmatprep.subr.mxu0 %v4706
        %4971 = vmatpush1.msra.mxu0 %v4705
        %4972 = vmatprep.subr.mxu0 %v4708
        %4973 = vmatpush1.msra.mxu0 %v4707
        %4974 = vmatprep.subr.mxu0 %v4710
        %4975 = vmatpush1.msra.mxu0 %v4709
        %4976 = vmatprep.subr.mxu0 %v4712
        %4977 = vmatpush1.msra.mxu0 %v4711
        %4978 = vmatprep.subr.mxu0 %v4714
        %4979 = vmatpush1.msra.mxu0 %v4713
        %4980 = vmatprep.subr.mxu0 %v4716
        %4981 = vmatpush1.msra.mxu0 %v4715
        %4982 = vmatprep.subr.mxu0 %v4718
        %4983 = vmatpush1.msra.mxu0 %v4717
        %4984 = vmatprep.subr.mxu0 %v4720
        %4985 = vmatpush1.msra.mxu0 %v4719
        %4986 = vmatprep.subr.mxu0 %v4722
        %4987 = vmatpush1.msra.mxu0 %v4721
        %4988 = vmatprep.subr.mxu0 %v4724
        %4989 = vmatpush1.msra.mxu0 %v4723
        %4990 = vmatprep.subr.mxu0 %v4726
        %4991 = vmatpush1.msra.mxu0 %v4725
        %4992 = vmatprep.subr.mxu0 %v4728
        %4993 = vmatpush1.msra.mxu0 %v4727
        %4994 = vmatprep.subr.mxu0 %v4730
        %4995 = vmatpush1.msra.mxu0 %v4729
        %4996 = vmatprep.subr.mxu0 %v4732
        %4997 = vmatpush1.msra.mxu0 %v4731
        %4998 = vmatprep.subr.mxu0 %v4734
        %4999 = vmatpush1.msra.mxu0 %v4733
        %5000 = vmatprep.subr.mxu0 %v4736
        %5001 = vmatpush1.msra.mxu0 %v4735
        %5002 = vmatprep.subr.mxu0 %v4738
        %5003 = vmatpush1.msra.mxu0 %v4737
        %5004 = vmatprep.subr.mxu0 %v4740
        %5005 = vmatpush1.msra.mxu0 %v4739
        %5006 = vmatprep.subr.mxu0 %v4742
        %5007 = vmatpush1.msra.mxu0 %v4741
        %5008 = vmatprep.subr.mxu0 %v4744
        %5009 = vmatpush1.msra.mxu0 %v4743
        %5010 = vmatprep.subr.mxu0 %v4746
        %5011 = vmatpush1.msra.mxu0 %v4745
        %5012 = vmatprep.subr.mxu0 %v4748
        %5013 = vmatpush1.msra.mxu0 %v4747
        %5014 = vmatprep.subr.mxu0 %v4750
        %5015 = vmatpush1.msra.mxu0 %v4749
        %5016 = vmatprep.subr.mxu0 %v4752
        %5017 = vmatpush1.msra.mxu0 %v4751
        %5018 = vmatprep.mubr.f32.mxu0 %v4682
        %5019 = vmatmul.mubr.f32.gmra.mrb[0].mxu0 %v4681
        %v5020 = vpop.f32.mrb[0].mxu0
        %v5021 = vadd.f32 %v4932, %v5020
        %v5022 = vpop.f32.mrb[0].mxu0
        %v5023 = vadd.f32 %v4934, %v5022
        %5024 = vmatprep.mubr.f32.mxu0 %v4684
        %5025 = vmatmul.mubr.f32.gmra.mrb[0].mxu0 %v4683
        %v5026 = vpop.f32.mrb[0].mxu0
        %v5027 = vadd.f32 %v4938, %v5026
        %v5028 = vpop.f32.mrb[0].mxu0
        %v5029 = vadd.f32 %v4940, %v5028
        %5030 = vmatprep.mubr.f32.mxu0 %v4686
        %5031 = vmatmul.mubr.f32.gmra.mrb[0].mxu0 %v4685
        %v5032 = vpop.f32.mrb[0].mxu0
        %v5033 = vadd.f32 %v4944, %v5032
        %v5034 = vpop.f32.mrb[0].mxu0
        %v5035 = vadd.f32 %v4946, %v5034
        %5036 = vmatprep.mubr.f32.mxu0 %v4688
        %5037 = vmatmul.mubr.f32.gmra.mrb[0].mxu0 %v4687
        %v5038 = vpop.f32.mrb[0].mxu0
        %v5039 = vadd.f32 %v4950, %v5038
        %v5040 = vpop.f32.mrb[0].mxu0
        %v5041 = vadd.f32 %v4952, %v5040
        %5042 = vdwg.mxu0
        %v5043 = vld [vmem:[#allocation2] sm:$0xfc]
        %v5044 = vld [vmem:[#allocation2 + $0x8] sm:$0xfc]
        %v5045 = vld [vmem:[#allocation2 + $0x20] sm:$0x3]
        %v5046 = vld [vmem:[#allocation2 + $0x28] sm:$0x3]
        %v5047 = vld [vmem:[#allocation2 + $0x30] sm:$0xfc]
        %v5048 = vld [vmem:[#allocation2 + $0x38] sm:$0xfc]
        %v5049 = vld [vmem:[#allocation2 + $0x50] sm:$0x3]
        %v5050 = vld [vmem:[#allocation2 + $0x58] sm:$0x3]
        %v5059 = vrot.slane %v5043, 2
        %v5060 = vrot.slane %v4683, 2
        %v5061 = vsel %vm762, %v5059, %v5060
        %v5062 = vrot.slane %v5044, 2
        %v5063 = vrot.slane %v4684, 2
        %v5064 = vsel %vm762, %v5062, %v5063
        %v5065 = vrot.slane %v5045, 2
        %v5066 = vsel %vm762, %v5060, %v5065
        %v5067 = vrot.slane %v5046, 2
        %v5068 = vsel %vm762, %v5063, %v5067
        %v5069 = vrot.slane %v5047, 2
        %v5070 = vrot.slane %v4687, 2
        %v5071 = vsel %vm762, %v5069, %v5070
        %v5072 = vrot.slane %v5048, 2
        %v5073 = vrot.slane %v4688, 2
        %v5074 = vsel %vm762, %v5072, %v5073
        %v5075 = vrot.slane %v5049, 2
        %v5076 = vsel %vm762, %v5070, %v5075
        %v5077 = vrot.slane %v5050, 2
        %v5078 = vsel %vm762, %v5073, %v5077
        %v5087 = vld [vmem:[%s791] sm:$0xff]
        %v5088 = vld [vmem:[%s791 + $0x8] sm:$0xff]
        %v5089 = vld [vmem:[%s791 + $0x10] sm:$0xff]
        %v5090 = vld [vmem:[%s791 + $0x18] sm:$0xff]
        %v5091 = vld [vmem:[%s791 + $0x20] sm:$0xff]
        %v5092 = vld [vmem:[%s791 + $0x28] sm:$0xff]
        %v5093 = vld [vmem:[%s791 + $0x30] sm:$0xff]
        %v5094 = vld [vmem:[%s791 + $0x38] sm:$0xff]
        %v5095 = vld [vmem:[%s791 + $0x40] sm:$0xff]
        %v5096 = vld [vmem:[%s791 + $0x48] sm:$0xff]
        %v5097 = vld [vmem:[%s791 + $0x50] sm:$0xff]
        %v5098 = vld [vmem:[%s791 + $0x58] sm:$0xff]
        %v5099 = vld [vmem:[%s791 + $0x60] sm:$0xff]
        %v5100 = vld [vmem:[%s791 + $0x68] sm:$0xff]
        %v5101 = vld [vmem:[%s791 + $0x70] sm:$0xff]
        %v5102 = vld [vmem:[%s791 + $0x78] sm:$0xff]
        %v5103 = vld [vmem:[%s791 + $0x80] sm:$0xff]
        %v5104 = vld [vmem:[%s791 + $0x88] sm:$0xff]
        %v5105 = vld [vmem:[%s791 + $0x90] sm:$0xff]
        %v5106 = vld [vmem:[%s791 + $0x98] sm:$0xff]
        %v5107 = vld [vmem:[%s791 + $0xa0] sm:$0xff]
        %v5108 = vld [vmem:[%s791 + $0xa8] sm:$0xff]
        %v5109 = vld [vmem:[%s791 + $0xb0] sm:$0xff]
        %v5110 = vld [vmem:[%s791 + $0xb8] sm:$0xff]
        %v5111 = vld [vmem:[%s791 + $0xc0] sm:$0xff]
        %v5112 = vld [vmem:[%s791 + $0xc8] sm:$0xff]
        %v5113 = vld [vmem:[%s791 + $0xd0] sm:$0xff]
        %v5114 = vld [vmem:[%s791 + $0xd8] sm:$0xff]
        %v5115 = vld [vmem:[%s791 + $0xe0] sm:$0xff]
        %v5116 = vld [vmem:[%s791 + $0xe8] sm:$0xff]
        %v5117 = vld [vmem:[%s791 + $0xf0] sm:$0xff]
        %v5118 = vld [vmem:[%s791 + $0xf8] sm:$0xff]
        %v5119 = vld [vmem:[%s791 + $0x100] sm:$0xff]
        %v5120 = vld [vmem:[%s791 + $0x108] sm:$0xff]
        %v5121 = vld [vmem:[%s791 + $0x110] sm:$0xff]
        %v5122 = vld [vmem:[%s791 + $0x118] sm:$0xff]
        %v5123 = vld [vmem:[%s791 + $0x120] sm:$0xff]
        %v5124 = vld [vmem:[%s791 + $0x128] sm:$0xff]
        %v5125 = vld [vmem:[%s791 + $0x130] sm:$0xff]
        %v5126 = vld [vmem:[%s791 + $0x138] sm:$0xff]
        %v5127 = vld [vmem:[%s791 + $0x140] sm:$0xff]
        %v5128 = vld [vmem:[%s791 + $0x148] sm:$0xff]
        %v5129 = vld [vmem:[%s791 + $0x150] sm:$0xff]
        %v5130 = vld [vmem:[%s791 + $0x158] sm:$0xff]
        %v5131 = vld [vmem:[%s791 + $0x160] sm:$0xff]
        %v5132 = vld [vmem:[%s791 + $0x168] sm:$0xff]
        %v5133 = vld [vmem:[%s791 + $0x170] sm:$0xff]
        %v5134 = vld [vmem:[%s791 + $0x178] sm:$0xff]
        %v5135 = vld [vmem:[%s791 + $0x180] sm:$0xff]
        %v5136 = vld [vmem:[%s791 + $0x188] sm:$0xff]
        %v5137 = vld [vmem:[%s791 + $0x190] sm:$0xff]
        %v5138 = vld [vmem:[%s791 + $0x198] sm:$0xff]
        %v5139 = vld [vmem:[%s791 + $0x1a0] sm:$0xff]
        %v5140 = vld [vmem:[%s791 + $0x1a8] sm:$0xff]
        %v5141 = vld [vmem:[%s791 + $0x1b0] sm:$0xff]
        %v5142 = vld [vmem:[%s791 + $0x1b8] sm:$0xff]
        %v5143 = vld [vmem:[%s791 + $0x1c0] sm:$0xff]
        %v5144 = vld [vmem:[%s791 + $0x1c8] sm:$0xff]
        %v5145 = vld [vmem:[%s791 + $0x1d0] sm:$0xff]
        %v5146 = vld [vmem:[%s791 + $0x1d8] sm:$0xff]
        %v5147 = vld [vmem:[%s791 + $0x1e0] sm:$0xff]
        %v5148 = vld [vmem:[%s791 + $0x1e8] sm:$0xff]
        %v5149 = vld [vmem:[%s791 + $0x1f0] sm:$0xff]
        %v5150 = vld [vmem:[%s791 + $0x1f8] sm:$0xff]
        %5151 = vmatprep.subr.mxu0 %v5088
        %5152 = vmatpush1.msra.mxu0 %v5087
        %5153 = vmatprep.subr.mxu0 %v5090
        %5154 = vmatpush1.msra.mxu0 %v5089
        %5155 = vmatprep.subr.mxu0 %v5092
        %5156 = vmatpush1.msra.mxu0 %v5091
        %5157 = vmatprep.subr.mxu0 %v5094
        %5158 = vmatpush1.msra.mxu0 %v5093
        %5159 = vmatprep.subr.mxu0 %v5096
        %5160 = vmatpush1.msra.mxu0 %v5095
        %5161 = vmatprep.subr.mxu0 %v5098
        %5162 = vmatpush1.msra.mxu0 %v5097
        %5163 = vmatprep.subr.mxu0 %v5100
        %5164 = vmatpush1.msra.mxu0 %v5099
        %5165 = vmatprep.subr.mxu0 %v5102
        %5166 = vmatpush1.msra.mxu0 %v5101
        %5167 = vmatprep.subr.mxu0 %v5104
        %5168 = vmatpush1.msra.mxu0 %v5103
        %5169 = vmatprep.subr.mxu0 %v5106
        %5170 = vmatpush1.msra.mxu0 %v5105
        %5171 = vmatprep.subr.mxu0 %v5108
        %5172 = vmatpush1.msra.mxu0 %v5107
        %5173 = vmatprep.subr.mxu0 %v5110
        %5174 = vmatpush1.msra.mxu0 %v5109
        %5175 = vmatprep.subr.mxu0 %v5112
        %5176 = vmatpush1.msra.mxu0 %v5111
        %5177 = vmatprep.subr.mxu0 %v5114
        %5178 = vmatpush1.msra.mxu0 %v5113
        %5179 = vmatprep.subr.mxu0 %v5116
        %5180 = vmatpush1.msra.mxu0 %v5115
        %5181 = vmatprep.subr.mxu0 %v5118
        %5182 = vmatpush1.msra.mxu0 %v5117
        %5183 = vmatprep.subr.mxu0 %v5120
        %5184 = vmatpush1.msra.mxu0 %v5119
        %5185 = vmatprep.subr.mxu0 %v5122
        %5186 = vmatpush1.msra.mxu0 %v5121
        %5187 = vmatprep.subr.mxu0 %v5124
        %5188 = vmatpush1.msra.mxu0 %v5123
        %5189 = vmatprep.subr.mxu0 %v5126
        %5190 = vmatpush1.msra.mxu0 %v5125
        %5191 = vmatprep.subr.mxu0 %v5128
        %5192 = vmatpush1.msra.mxu0 %v5127
        %5193 = vmatprep.subr.mxu0 %v5130
        %5194 = vmatpush1.msra.mxu0 %v5129
        %5195 = vmatprep.subr.mxu0 %v5132
        %5196 = vmatpush1.msra.mxu0 %v5131
        %5197 = vmatprep.subr.mxu0 %v5134
        %5198 = vmatpush1.msra.mxu0 %v5133
        %5199 = vmatprep.subr.mxu0 %v5136
        %5200 = vmatpush1.msra.mxu0 %v5135
        %5201 = vmatprep.subr.mxu0 %v5138
        %5202 = vmatpush1.msra.mxu0 %v5137
        %5203 = vmatprep.subr.mxu0 %v5140
        %5204 = vmatpush1.msra.mxu0 %v5139
        %5205 = vmatprep.subr.mxu0 %v5142
        %5206 = vmatpush1.msra.mxu0 %v5141
        %5207 = vmatprep.subr.mxu0 %v5144
        %5208 = vmatpush1.msra.mxu0 %v5143
        %5209 = vmatprep.subr.mxu0 %v5146
        %5210 = vmatpush1.msra.mxu0 %v5145
        %5211 = vmatprep.subr.mxu0 %v5148
        %5212 = vmatpush1.msra.mxu0 %v5147
        %5213 = vmatprep.subr.mxu0 %v5150
        %5214 = vmatpush1.msra.mxu0 %v5149
        %5215 = vmatprep.mubr.f32.mxu0 %v5064
        %5216 = vmatmul.mubr.f32.gmra.mrb[0].mxu0 %v5061
        %v5217 = vpop.f32.mrb[0].mxu0
        %v5218 = vadd.f32 0.0, %v5217
        %v5219 = vpop.f32.mrb[0].mxu0
        %v5220 = vadd.f32 0.0, %v5219
        %5221 = vmatprep.mubr.f32.mxu0 %v5068
        %5222 = vmatmul.mubr.f32.gmra.mrb[0].mxu0 %v5066
        %v5223 = vpop.f32.mrb[0].mxu0
        %v5224 = vadd.f32 0.0, %v5223
        %v5225 = vpop.f32.mrb[0].mxu0
        %v5226 = vadd.f32 0.0, %v5225
        %5227 = vmatprep.mubr.f32.mxu0 %v5074
        %5228 = vmatmul.mubr.f32.gmra.mrb[0].mxu0 %v5071
        %v5229 = vpop.f32.mrb[0].mxu0
        %v5230 = vadd.f32 0.0, %v5229
        %v5231 = vpop.f32.mrb[0].mxu0
        %v5232 = vadd.f32 0.0, %v5231
        %5233 = vmatprep.mubr.f32.mxu0 %v5078
        %5234 = vmatmul.mubr.f32.gmra.mrb[0].mxu0 %v5076
        %v5235 = vpop.f32.mrb[0].mxu0
        %v5236 = vadd.f32 0.0, %v5235
        %v5237 = vpop.f32.mrb[0].mxu0
        %v5238 = vadd.f32 0.0, %v5237
        %5239 = vdwg.mxu0
        %v5240 = vadd.f32 %v5021, %v5218
        %v5241 = vadd.f32 %v5023, %v5220
        %v5242 = vadd.f32 %v5027, %v5224
        %v5243 = vadd.f32 %v5029, %v5226
        %v5244 = vadd.f32 %v5033, %v5230
        %v5245 = vadd.f32 %v5035, %v5232
        %v5246 = vadd.f32 %v5039, %v5236
        %v5247 = vadd.f32 %v5041, %v5238
        %v5248 = vadd.f32 %v5240, %v957
        %v5249 = vadd.f32 %v5241, %v961
        %v5250 = vadd.f32 %v5242, %v957
        %v5251 = vadd.f32 %v5243, %v961
        %v5252 = vadd.f32 %v5244, %v957
        %v5253 = vadd.f32 %v5245, %v961
        %v5254 = vadd.f32 %v5246, %v957
        %v5255 = vadd.f32 %v5247, %v961
        %v5256 = vld [vmem:[#allocation3] sm:$0xff]
        %v5257 = vld [vmem:[#allocation3 + $0x8] sm:$0xff]
        %v5258 = vld [vmem:[#allocation3 + $0x10] sm:$0xff]
        %v5259 = vld [vmem:[#allocation3 + $0x18] sm:$0xff]
        %v5260 = vld [vmem:[#allocation3 + $0x20] sm:$0xff]
        %v5261 = vld [vmem:[#allocation3 + $0x28] sm:$0xff]
        %v5262 = vld [vmem:[#allocation3 + $0x30] sm:$0xff]
        %v5263 = vld [vmem:[#allocation3 + $0x38] sm:$0xff]
        %v5264 = vsub.f32 %v5248, %v5256
        %v5265 = vsub.f32 %v5249, %v5257
        %v5266 = vsub.f32 %v5250, %v5258
        %v5267 = vsub.f32 %v5251, %v5259
        %v5268 = vsub.f32 %v5252, %v5260
        %v5269 = vsub.f32 %v5253, %v5261
        %v5270 = vsub.f32 %v5254, %v5262
        %v5271 = vsub.f32 %v5255, %v5263
        %v5272 = vmul.f32 %v5264, 0.5
        %v5273 = vmul.f32 %v5265, 0.5
        %v5274 = vmul.f32 %v5266, 0.5
        %v5275 = vmul.f32 %v5267, 0.5
        %v5276 = vmul.f32 %v5268, 0.5
        %v5277 = vmul.f32 %v5269, 0.5
        %v5278 = vmul.f32 %v5270, 0.5
        %v5279 = vmul.f32 %v5271, 0.5
        %v5280 = vadd.f32 %v5256, %v5272
        %v5281 = vadd.f32 %v5257, %v5273
        %v5282 = vadd.f32 %v5258, %v5274
        %v5283 = vadd.f32 %v5259, %v5275
        %v5284 = vadd.f32 %v5260, %v5276
        %v5285 = vadd.f32 %v5261, %v5277
        %v5286 = vadd.f32 %v5262, %v5278
        %v5287 = vadd.f32 %v5263, %v5279
        %vm5288 = vcmp.ge.f32.partialorder %v5280, 1.0
        %vm5289 = vcmp.ge.f32.partialorder %v5281, 1.0
        %vm5290 = vcmp.ge.f32.partialorder %v5282, 1.0
        %vm5291 = vcmp.ge.f32.partialorder %v5283, 1.0
        %vm5292 = vcmp.ge.f32.partialorder %v5284, 1.0
        %vm5293 = vcmp.ge.f32.partialorder %v5285, 1.0
        %vm5294 = vcmp.ge.f32.partialorder %v5286, 1.0
        %vm5295 = vcmp.ge.f32.partialorder %v5287, 1.0
        %v5296 = vsel %vm5288, 1, 0
        %v5297 = vsel %vm5289, 1, 0
        %v5298 = vsel %vm5290, 1, 0
        %v5299 = vsel %vm5291, 1, 0
        %v5300 = vsel %vm5292, 1, 0
        %v5301 = vsel %vm5293, 1, 0
        %v5302 = vsel %vm5294, 1, 0
        %v5303 = vsel %vm5295, 1, 0
        %v5304 = vcvt.s32.f32 %v5296
        %v5305 = vcvt.s32.f32 %v5297
        %v5306 = vcvt.s32.f32 %v5298
        %v5307 = vcvt.s32.f32 %v5299
        %v5308 = vcvt.s32.f32 %v5300
        %v5309 = vcvt.s32.f32 %v5301
        %v5310 = vcvt.s32.f32 %v5302
        %v5311 = vcvt.s32.f32 %v5303
        %v5312 = vsub.f32 1.0, %v5304
        %v5313 = vsub.f32 1.0, %v5305
        %v5314 = vsub.f32 1.0, %v5306
        %v5315 = vsub.f32 1.0, %v5307
        %v5316 = vsub.f32 1.0, %v5308
        %v5317 = vsub.f32 1.0, %v5309
        %v5318 = vsub.f32 1.0, %v5310
        %v5319 = vsub.f32 1.0, %v5311
        %v5320 = vmul.f32 %v5280, %v5312
        %v5321 = vmul.f32 %v5281, %v5313
        %v5322 = vmul.f32 %v5282, %v5314
        %v5323 = vmul.f32 %v5283, %v5315
        %v5324 = vmul.f32 %v5284, %v5316
        %v5325 = vmul.f32 %v5285, %v5317
        %v5326 = vmul.f32 %v5286, %v5318
        %v5327 = vmul.f32 %v5287, %v5319
        %5328 = vst [vmem:[#allocation3] sm:$0xff] %v5320
        %5329 = vst [vmem:[#allocation3 + $0x8] sm:$0xff] %v5321
        %5330 = vst [vmem:[#allocation3 + $0x10] sm:$0xff] %v5322
        %5331 = vst [vmem:[#allocation3 + $0x18] sm:$0xff] %v5323
        %5332 = vst [vmem:[#allocation3 + $0x20] sm:$0xff] %v5324
        %5333 = vst [vmem:[#allocation3 + $0x28] sm:$0xff] %v5325
        %5334 = vst [vmem:[#allocation3 + $0x30] sm:$0xff] %v5326
        %5335 = vst [vmem:[#allocation3 + $0x38] sm:$0xff] %v5327
        %v5344 = vrot.slane %v5304, 7
        %v5345 = vrot.slane %v5305, 7
        %v5346 = vrot.slane %v5306, 7
        %v5347 = vsel %vm345, %v5344, %v5346
        %v5348 = vrot.slane %v5307, 7
        %v5349 = vsel %vm345, %v5345, %v5348
        %v5350 = vrot.slane %v5308, 7
        %v5351 = vrot.slane %v5309, 7
        %v5352 = vrot.slane %v5310, 7
        %v5353 = vsel %vm345, %v5350, %v5352
        %v5354 = vrot.slane %v5311, 7
        %v5355 = vsel %vm345, %v5351, %v5354
        %5368 = vst [vmem:[#allocation2] sm:$0xfe] %v5344
        %5369 = vst [vmem:[#allocation2 + $0x8] sm:$0xfe] %v5345
        %5370 = vst [vmem:[#allocation2 + $0x10] sm:$0xff] %v5347
        %5371 = vst [vmem:[#allocation2 + $0x18] sm:$0xff] %v5349
        %5372 = vst [vmem:[#allocation2 + $0x20] sm:$0x1] %v5346
        %5373 = vst [vmem:[#allocation2 + $0x28] sm:$0x1] %v5348
        %5374 = vst [vmem:[#allocation2 + $0x30] sm:$0xfe] %v5350
        %5375 = vst [vmem:[#allocation2 + $0x38] sm:$0xfe] %v5351
        %5376 = vst [vmem:[#allocation2 + $0x40] sm:$0xff] %v5353
        %5377 = vst [vmem:[#allocation2 + $0x48] sm:$0xff] %v5355
        %5378 = vst [vmem:[#allocation2 + $0x50] sm:$0x1] %v5352
        %5379 = vst [vmem:[#allocation2 + $0x58] sm:$0x1] %v5354
        %v5380 = vld [vmem:[#allocation2] sm:$0xff]
        %v5381 = vld [vmem:[#allocation2 + $0x8] sm:$0xff]
        %v5382 = vld [vmem:[#allocation2 + $0x10] sm:$0xff]
        %v5383 = vld [vmem:[#allocation2 + $0x18] sm:$0xff]
        %v5384 = vld [vmem:[#allocation2 + $0x30] sm:$0xff]
        %v5385 = vld [vmem:[#allocation2 + $0x38] sm:$0xff]
        %v5386 = vld [vmem:[#allocation2 + $0x40] sm:$0xff]
        %v5387 = vld [vmem:[#allocation2 + $0x48] sm:$0xff]
        %v5388 = vld [vmem:[#allocation10] sm:$0xff]
        %v5389 = vld [vmem:[#allocation10 + $0x8] sm:$0xff]
        %v5390 = vld [vmem:[#allocation10 + $0x10] sm:$0xff]
        %v5391 = vld [vmem:[#allocation10 + $0x18] sm:$0xff]
        %v5392 = vld [vmem:[#allocation10 + $0x20] sm:$0xff]
        %v5393 = vld [vmem:[#allocation10 + $0x28] sm:$0xff]
        %v5394 = vld [vmem:[#allocation10 + $0x30] sm:$0xff]
        %v5395 = vld [vmem:[#allocation10 + $0x38] sm:$0xff]
        %v5396 = vld [vmem:[#allocation10 + $0x40] sm:$0xff]
        %v5397 = vld [vmem:[#allocation10 + $0x48] sm:$0xff]
        %v5398 = vld [vmem:[#allocation10 + $0x50] sm:$0xff]
        %v5399 = vld [vmem:[#allocation10 + $0x58] sm:$0xff]
        %v5400 = vld [vmem:[#allocation10 + $0x60] sm:$0xff]
        %v5401 = vld [vmem:[#allocation10 + $0x68] sm:$0xff]
        %v5402 = vld [vmem:[#allocation10 + $0x70] sm:$0xff]
        %v5403 = vld [vmem:[#allocation10 + $0x78] sm:$0xff]
        %v5404 = vld [vmem:[#allocation10 + $0x80] sm:$0xff]
        %v5405 = vld [vmem:[#allocation10 + $0x88] sm:$0xff]
        %v5406 = vld [vmem:[#allocation10 + $0x90] sm:$0xff]
        %v5407 = vld [vmem:[#allocation10 + $0x98] sm:$0xff]
        %v5408 = vld [vmem:[#allocation10 + $0xa0] sm:$0xff]
        %v5409 = vld [vmem:[#allocation10 + $0xa8] sm:$0xff]
        %v5410 = vld [vmem:[#allocation10 + $0xb0] sm:$0xff]
        %v5411 = vld [vmem:[#allocation10 + $0xb8] sm:$0xff]
        %v5412 = vld [vmem:[#allocation10 + $0xc0] sm:$0xff]
        %v5413 = vld [vmem:[#allocation10 + $0xc8] sm:$0xff]
        %v5414 = vld [vmem:[#allocation10 + $0xd0] sm:$0xff]
        %v5415 = vld [vmem:[#allocation10 + $0xd8] sm:$0xff]
        %v5416 = vld [vmem:[#allocation10 + $0xe0] sm:$0xff]
        %v5417 = vld [vmem:[#allocation10 + $0xe8] sm:$0xff]
        %v5418 = vld [vmem:[#allocation10 + $0xf0] sm:$0xff]
        %v5419 = vld [vmem:[#allocation10 + $0xf8] sm:$0xff]
        %v5420 = vld [vmem:[#allocation10 + $0x100] sm:$0xff]
        %v5421 = vld [vmem:[#allocation10 + $0x108] sm:$0xff]
        %v5422 = vld [vmem:[#allocation10 + $0x110] sm:$0xff]
        %v5423 = vld [vmem:[#allocation10 + $0x118] sm:$0xff]
        %v5424 = vld [vmem:[#allocation10 + $0x120] sm:$0xff]
        %v5425 = vld [vmem:[#allocation10 + $0x128] sm:$0xff]
        %v5426 = vld [vmem:[#allocation10 + $0x130] sm:$0xff]
        %v5427 = vld [vmem:[#allocation10 + $0x138] sm:$0xff]
        %v5428 = vld [vmem:[#allocation10 + $0x140] sm:$0xff]
        %v5429 = vld [vmem:[#allocation10 + $0x148] sm:$0xff]
        %v5430 = vld [vmem:[#allocation10 + $0x150] sm:$0xff]
        %v5431 = vld [vmem:[#allocation10 + $0x158] sm:$0xff]
        %v5432 = vld [vmem:[#allocation10 + $0x160] sm:$0xff]
        %v5433 = vld [vmem:[#allocation10 + $0x168] sm:$0xff]
        %v5434 = vld [vmem:[#allocation10 + $0x170] sm:$0xff]
        %v5435 = vld [vmem:[#allocation10 + $0x178] sm:$0xff]
        %v5436 = vld [vmem:[#allocation10 + $0x180] sm:$0xff]
        %v5437 = vld [vmem:[#allocation10 + $0x188] sm:$0xff]
        %v5438 = vld [vmem:[#allocation10 + $0x190] sm:$0xff]
        %v5439 = vld [vmem:[#allocation10 + $0x198] sm:$0xff]
        %v5440 = vld [vmem:[#allocation10 + $0x1a0] sm:$0xff]
        %v5441 = vld [vmem:[#allocation10 + $0x1a8] sm:$0xff]
        %v5442 = vld [vmem:[#allocation10 + $0x1b0] sm:$0xff]
        %v5443 = vld [vmem:[#allocation10 + $0x1b8] sm:$0xff]
        %v5444 = vld [vmem:[#allocation10 + $0x1c0] sm:$0xff]
        %v5445 = vld [vmem:[#allocation10 + $0x1c8] sm:$0xff]
        %v5446 = vld [vmem:[#allocation10 + $0x1d0] sm:$0xff]
        %v5447 = vld [vmem:[#allocation10 + $0x1d8] sm:$0xff]
        %v5448 = vld [vmem:[#allocation10 + $0x1e0] sm:$0xff]
        %v5449 = vld [vmem:[#allocation10 + $0x1e8] sm:$0xff]
        %v5450 = vld [vmem:[#allocation10 + $0x1f0] sm:$0xff]
        %v5451 = vld [vmem:[#allocation10 + $0x1f8] sm:$0xff]
        %v5452 = vld [vmem:[#allocation2] sm:$0xfe]
        %v5453 = vld [vmem:[#allocation2 + $0x8] sm:$0xfe]
        %v5454 = vld [vmem:[#allocation2 + $0x20] sm:$0x1]
        %v5455 = vld [vmem:[#allocation2 + $0x28] sm:$0x1]
        %v5456 = vld [vmem:[#allocation2 + $0x30] sm:$0xfe]
        %v5457 = vld [vmem:[#allocation2 + $0x38] sm:$0xfe]
        %v5458 = vld [vmem:[#allocation2 + $0x50] sm:$0x1]
        %v5459 = vld [vmem:[#allocation2 + $0x58] sm:$0x1]
        %v5472 = vrot.slane %v5452, 1
        %v5473 = vrot.slane %v5382, 1
        %v5474 = vsel %vm474, %v5472, %v5473
        %v5475 = vrot.slane %v5453, 1
        %v5476 = vrot.slane %v5383, 1
        %v5477 = vsel %vm474, %v5475, %v5476
        %v5478 = vrot.slane %v5454, 1
        %v5479 = vsel %vm474, %v5473, %v5478
        %v5480 = vrot.slane %v5455, 1
        %v5481 = vsel %vm474, %v5476, %v5480
        %v5482 = vrot.slane %v5456, 1
        %v5483 = vrot.slane %v5386, 1
        %v5484 = vsel %vm474, %v5482, %v5483
        %v5485 = vrot.slane %v5457, 1
        %v5486 = vrot.slane %v5387, 1
        %v5487 = vsel %vm474, %v5485, %v5486
        %v5488 = vrot.slane %v5458, 1
        %v5489 = vsel %vm474, %v5483, %v5488
        %v5490 = vrot.slane %v5459, 1
        %v5491 = vsel %vm474, %v5486, %v5490
        %v5500 = vld [vmem:[%s1216] sm:$0xff]
        %v5501 = vld [vmem:[%s1216 + $0x8] sm:$0xff]
        %v5502 = vld [vmem:[%s1216 + $0x10] sm:$0xff]
        %v5503 = vld [vmem:[%s1216 + $0x18] sm:$0xff]
        %v5504 = vld [vmem:[%s1216 + $0x20] sm:$0xff]
        %v5505 = vld [vmem:[%s1216 + $0x28] sm:$0xff]
        %v5506 = vld [vmem:[%s1216 + $0x30] sm:$0xff]
        %v5507 = vld [vmem:[%s1216 + $0x38] sm:$0xff]
        %v5508 = vld [vmem:[%s1216 + $0x40] sm:$0xff]
        %v5509 = vld [vmem:[%s1216 + $0x48] sm:$0xff]
        %v5510 = vld [vmem:[%s1216 + $0x50] sm:$0xff]
        %v5511 = vld [vmem:[%s1216 + $0x58] sm:$0xff]
        %v5512 = vld [vmem:[%s1216 + $0x60] sm:$0xff]
        %v5513 = vld [vmem:[%s1216 + $0x68] sm:$0xff]
        %v5514 = vld [vmem:[%s1216 + $0x70] sm:$0xff]
        %v5515 = vld [vmem:[%s1216 + $0x78] sm:$0xff]
        %v5516 = vld [vmem:[%s1216 + $0x80] sm:$0xff]
        %v5517 = vld [vmem:[%s1216 + $0x88] sm:$0xff]
        %v5518 = vld [vmem:[%s1216 + $0x90] sm:$0xff]
        %v5519 = vld [vmem:[%s1216 + $0x98] sm:$0xff]
        %v5520 = vld [vmem:[%s1216 + $0xa0] sm:$0xff]
        %v5521 = vld [vmem:[%s1216 + $0xa8] sm:$0xff]
        %v5522 = vld [vmem:[%s1216 + $0xb0] sm:$0xff]
        %v5523 = vld [vmem:[%s1216 + $0xb8] sm:$0xff]
        %v5524 = vld [vmem:[%s1216 + $0xc0] sm:$0xff]
        %v5525 = vld [vmem:[%s1216 + $0xc8] sm:$0xff]
        %v5526 = vld [vmem:[%s1216 + $0xd0] sm:$0xff]
        %v5527 = vld [vmem:[%s1216 + $0xd8] sm:$0xff]
        %v5528 = vld [vmem:[%s1216 + $0xe0] sm:$0xff]
        %v5529 = vld [vmem:[%s1216 + $0xe8] sm:$0xff]
        %v5530 = vld [vmem:[%s1216 + $0xf0] sm:$0xff]
        %v5531 = vld [vmem:[%s1216 + $0xf8] sm:$0xff]
        %v5532 = vld [vmem:[%s1216 + $0x100] sm:$0xff]
        %v5533 = vld [vmem:[%s1216 + $0x108] sm:$0xff]
        %v5534 = vld [vmem:[%s1216 + $0x110] sm:$0xff]
        %v5535 = vld [vmem:[%s1216 + $0x118] sm:$0xff]
        %v5536 = vld [vmem:[%s1216 + $0x120] sm:$0xff]
        %v5537 = vld [vmem:[%s1216 + $0x128] sm:$0xff]
        %v5538 = vld [vmem:[%s1216 + $0x130] sm:$0xff]
        %v5539 = vld [vmem:[%s1216 + $0x138] sm:$0xff]
        %v5540 = vld [vmem:[%s1216 + $0x140] sm:$0xff]
        %v5541 = vld [vmem:[%s1216 + $0x148] sm:$0xff]
        %v5542 = vld [vmem:[%s1216 + $0x150] sm:$0xff]
        %v5543 = vld [vmem:[%s1216 + $0x158] sm:$0xff]
        %v5544 = vld [vmem:[%s1216 + $0x160] sm:$0xff]
        %v5545 = vld [vmem:[%s1216 + $0x168] sm:$0xff]
        %v5546 = vld [vmem:[%s1216 + $0x170] sm:$0xff]
        %v5547 = vld [vmem:[%s1216 + $0x178] sm:$0xff]
        %v5548 = vld [vmem:[%s1216 + $0x180] sm:$0xff]
        %v5549 = vld [vmem:[%s1216 + $0x188] sm:$0xff]
        %v5550 = vld [vmem:[%s1216 + $0x190] sm:$0xff]
        %v5551 = vld [vmem:[%s1216 + $0x198] sm:$0xff]
        %v5552 = vld [vmem:[%s1216 + $0x1a0] sm:$0xff]
        %v5553 = vld [vmem:[%s1216 + $0x1a8] sm:$0xff]
        %v5554 = vld [vmem:[%s1216 + $0x1b0] sm:$0xff]
        %v5555 = vld [vmem:[%s1216 + $0x1b8] sm:$0xff]
        %v5556 = vld [vmem:[%s1216 + $0x1c0] sm:$0xff]
        %v5557 = vld [vmem:[%s1216 + $0x1c8] sm:$0xff]
        %v5558 = vld [vmem:[%s1216 + $0x1d0] sm:$0xff]
        %v5559 = vld [vmem:[%s1216 + $0x1d8] sm:$0xff]
        %v5560 = vld [vmem:[%s1216 + $0x1e0] sm:$0xff]
        %v5561 = vld [vmem:[%s1216 + $0x1e8] sm:$0xff]
        %v5562 = vld [vmem:[%s1216 + $0x1f0] sm:$0xff]
        %v5563 = vld [vmem:[%s1216 + $0x1f8] sm:$0xff]
        %5564 = vmatprep.subr.mxu0 %v5501
        %5565 = vmatpush1.msra.mxu0 %v5500
        %5566 = vmatprep.subr.mxu0 %v5503
        %5567 = vmatpush1.msra.mxu0 %v5502
        %5568 = vmatprep.subr.mxu0 %v5505
        %5569 = vmatpush1.msra.mxu0 %v5504
        %5570 = vmatprep.subr.mxu0 %v5507
        %5571 = vmatpush1.msra.mxu0 %v5506
        %5572 = vmatprep.subr.mxu0 %v5509
        %5573 = vmatpush1.msra.mxu0 %v5508
        %5574 = vmatprep.subr.mxu0 %v5511
        %5575 = vmatpush1.msra.mxu0 %v5510
        %5576 = vmatprep.subr.mxu0 %v5513
        %5577 = vmatpush1.msra.mxu0 %v5512
        %5578 = vmatprep.subr.mxu0 %v5515
        %5579 = vmatpush1.msra.mxu0 %v5514
        %5580 = vmatprep.subr.mxu0 %v5517
        %5581 = vmatpush1.msra.mxu0 %v5516
        %5582 = vmatprep.subr.mxu0 %v5519
        %5583 = vmatpush1.msra.mxu0 %v5518
        %5584 = vmatprep.subr.mxu0 %v5521
        %5585 = vmatpush1.msra.mxu0 %v5520
        %5586 = vmatprep.subr.mxu0 %v5523
        %5587 = vmatpush1.msra.mxu0 %v5522
        %5588 = vmatprep.subr.mxu0 %v5525
        %5589 = vmatpush1.msra.mxu0 %v5524
        %5590 = vmatprep.subr.mxu0 %v5527
        %5591 = vmatpush1.msra.mxu0 %v5526
        %5592 = vmatprep.subr.mxu0 %v5529
        %5593 = vmatpush1.msra.mxu0 %v5528
        %5594 = vmatprep.subr.mxu0 %v5531
        %5595 = vmatpush1.msra.mxu0 %v5530
        %5596 = vmatprep.subr.mxu0 %v5533
        %5597 = vmatpush1.msra.mxu0 %v5532
        %5598 = vmatprep.subr.mxu0 %v5535
        %5599 = vmatpush1.msra.mxu0 %v5534
        %5600 = vmatprep.subr.mxu0 %v5537
        %5601 = vmatpush1.msra.mxu0 %v5536
        %5602 = vmatprep.subr.mxu0 %v5539
        %5603 = vmatpush1.msra.mxu0 %v5538
        %5604 = vmatprep.subr.mxu0 %v5541
        %5605 = vmatpush1.msra.mxu0 %v5540
        %5606 = vmatprep.subr.mxu0 %v5543
        %5607 = vmatpush1.msra.mxu0 %v5542
        %5608 = vmatprep.subr.mxu0 %v5545
        %5609 = vmatpush1.msra.mxu0 %v5544
        %5610 = vmatprep.subr.mxu0 %v5547
        %5611 = vmatpush1.msra.mxu0 %v5546
        %5612 = vmatprep.subr.mxu0 %v5549
        %5613 = vmatpush1.msra.mxu0 %v5548
        %5614 = vmatprep.subr.mxu0 %v5551
        %5615 = vmatpush1.msra.mxu0 %v5550
        %5616 = vmatprep.subr.mxu0 %v5553
        %5617 = vmatpush1.msra.mxu0 %v5552
        %5618 = vmatprep.subr.mxu0 %v5555
        %5619 = vmatpush1.msra.mxu0 %v5554
        %5620 = vmatprep.subr.mxu0 %v5557
        %5621 = vmatpush1.msra.mxu0 %v5556
        %5622 = vmatprep.subr.mxu0 %v5559
        %5623 = vmatpush1.msra.mxu0 %v5558
        %5624 = vmatprep.subr.mxu0 %v5561
        %5625 = vmatpush1.msra.mxu0 %v5560
        %5626 = vmatprep.subr.mxu0 %v5563
        %5627 = vmatpush1.msra.mxu0 %v5562
        %5628 = vmatprep.mubr.f32.mxu0 %v5477
        %5629 = vmatmul.mubr.f32.gmra.mrb[0].mxu0 %v5474
        %v5630 = vpop.f32.mrb[0].mxu0
        %v5631 = vadd.f32 0.0, %v5630
        %v5632 = vpop.f32.mrb[0].mxu0
        %v5633 = vadd.f32 0.0, %v5632
        %5634 = vmatprep.mubr.f32.mxu0 %v5481
        %5635 = vmatmul.mubr.f32.gmra.mrb[0].mxu0 %v5479
        %v5636 = vpop.f32.mrb[0].mxu0
        %v5637 = vadd.f32 0.0, %v5636
        %v5638 = vpop.f32.mrb[0].mxu0
        %v5639 = vadd.f32 0.0, %v5638
        %5640 = vmatprep.mubr.f32.mxu0 %v5487
        %5641 = vmatmul.mubr.f32.gmra.mrb[0].mxu0 %v5484
        %v5642 = vpop.f32.mrb[0].mxu0
        %v5643 = vadd.f32 0.0, %v5642
        %v5644 = vpop.f32.mrb[0].mxu0
        %v5645 = vadd.f32 0.0, %v5644
        %5646 = vmatprep.mubr.f32.mxu0 %v5491
        %5647 = vmatmul.mubr.f32.gmra.mrb[0].mxu0 %v5489
        %v5648 = vpop.f32.mrb[0].mxu0
        %v5649 = vadd.f32 0.0, %v5648
        %v5650 = vpop.f32.mrb[0].mxu0
        %v5651 = vadd.f32 0.0, %v5650
        %5652 = vdwg.mxu0
        %5653 = vmatprep.subr.mxu0 %v5389
        %5654 = vmatpush1.msra.mxu0 %v5388
        %5655 = vmatprep.subr.mxu0 %v5391
        %5656 = vmatpush1.msra.mxu0 %v5390
        %5657 = vmatprep.subr.mxu0 %v5393
        %5658 = vmatpush1.msra.mxu0 %v5392
        %5659 = vmatprep.subr.mxu0 %v5395
        %5660 = vmatpush1.msra.mxu0 %v5394
        %5661 = vmatprep.subr.mxu0 %v5397
        %5662 = vmatpush1.msra.mxu0 %v5396
        %5663 = vmatprep.subr.mxu0 %v5399
        %5664 = vmatpush1.msra.mxu0 %v5398
        %5665 = vmatprep.subr.mxu0 %v5401
        %5666 = vmatpush1.msra.mxu0 %v5400
        %5667 = vmatprep.subr.mxu0 %v5403
        %5668 = vmatpush1.msra.mxu0 %v5402
        %5669 = vmatprep.subr.mxu0 %v5405
        %5670 = vmatpush1.msra.mxu0 %v5404
        %5671 = vmatprep.subr.mxu0 %v5407
        %5672 = vmatpush1.msra.mxu0 %v5406
        %5673 = vmatprep.subr.mxu0 %v5409
        %5674 = vmatpush1.msra.mxu0 %v5408
        %5675 = vmatprep.subr.mxu0 %v5411
        %5676 = vmatpush1.msra.mxu0 %v5410
        %5677 = vmatprep.subr.mxu0 %v5413
        %5678 = vmatpush1.msra.mxu0 %v5412
        %5679 = vmatprep.subr.mxu0 %v5415
        %5680 = vmatpush1.msra.mxu0 %v5414
        %5681 = vmatprep.subr.mxu0 %v5417
        %5682 = vmatpush1.msra.mxu0 %v5416
        %5683 = vmatprep.subr.mxu0 %v5419
        %5684 = vmatpush1.msra.mxu0 %v5418
        %5685 = vmatprep.subr.mxu0 %v5421
        %5686 = vmatpush1.msra.mxu0 %v5420
        %5687 = vmatprep.subr.mxu0 %v5423
        %5688 = vmatpush1.msra.mxu0 %v5422
        %5689 = vmatprep.subr.mxu0 %v5425
        %5690 = vmatpush1.msra.mxu0 %v5424
        %5691 = vmatprep.subr.mxu0 %v5427
        %5692 = vmatpush1.msra.mxu0 %v5426
        %5693 = vmatprep.subr.mxu0 %v5429
        %5694 = vmatpush1.msra.mxu0 %v5428
        %5695 = vmatprep.subr.mxu0 %v5431
        %5696 = vmatpush1.msra.mxu0 %v5430
        %5697 = vmatprep.subr.mxu0 %v5433
        %5698 = vmatpush1.msra.mxu0 %v5432
        %5699 = vmatprep.subr.mxu0 %v5435
        %5700 = vmatpush1.msra.mxu0 %v5434
        %5701 = vmatprep.subr.mxu0 %v5437
        %5702 = vmatpush1.msra.mxu0 %v5436
        %5703 = vmatprep.subr.mxu0 %v5439
        %5704 = vmatpush1.msra.mxu0 %v5438
        %5705 = vmatprep.subr.mxu0 %v5441
        %5706 = vmatpush1.msra.mxu0 %v5440
        %5707 = vmatprep.subr.mxu0 %v5443
        %5708 = vmatpush1.msra.mxu0 %v5442
        %5709 = vmatprep.subr.mxu0 %v5445
        %5710 = vmatpush1.msra.mxu0 %v5444
        %5711 = vmatprep.subr.mxu0 %v5447
        %5712 = vmatpush1.msra.mxu0 %v5446
        %5713 = vmatprep.subr.mxu0 %v5449
        %5714 = vmatpush1.msra.mxu0 %v5448
        %5715 = vmatprep.subr.mxu0 %v5451
        %5716 = vmatpush1.msra.mxu0 %v5450
        %5717 = vmatprep.mubr.f32.mxu0 %v5381
        %5718 = vmatmul.mubr.f32.gmra.mrb[0].mxu0 %v5380
        %v5719 = vpop.f32.mrb[0].mxu0
        %v5720 = vadd.f32 %v5631, %v5719
        %v5721 = vpop.f32.mrb[0].mxu0
        %v5722 = vadd.f32 %v5633, %v5721
        %5723 = vmatprep.mubr.f32.mxu0 %v5383
        %5724 = vmatmul.mubr.f32.gmra.mrb[0].mxu0 %v5382
        %v5725 = vpop.f32.mrb[0].mxu0
        %v5726 = vadd.f32 %v5637, %v5725
        %v5727 = vpop.f32.mrb[0].mxu0
        %v5728 = vadd.f32 %v5639, %v5727
        %5729 = vmatprep.mubr.f32.mxu0 %v5385
        %5730 = vmatmul.mubr.f32.gmra.mrb[0].mxu0 %v5384
        %v5731 = vpop.f32.mrb[0].mxu0
        %v5732 = vadd.f32 %v5643, %v5731
        %v5733 = vpop.f32.mrb[0].mxu0
        %v5734 = vadd.f32 %v5645, %v5733
        %5735 = vmatprep.mubr.f32.mxu0 %v5387
        %5736 = vmatmul.mubr.f32.gmra.mrb[0].mxu0 %v5386
        %v5737 = vpop.f32.mrb[0].mxu0
        %v5738 = vadd.f32 %v5649, %v5737
        %v5739 = vpop.f32.mrb[0].mxu0
        %v5740 = vadd.f32 %v5651, %v5739
        %5741 = vdwg.mxu0
        %v5742 = vld [vmem:[#allocation2] sm:$0xfc]
        %v5743 = vld [vmem:[#allocation2 + $0x8] sm:$0xfc]
        %v5744 = vld [vmem:[#allocation2 + $0x20] sm:$0x3]
        %v5745 = vld [vmem:[#allocation2 + $0x28] sm:$0x3]
        %v5746 = vld [vmem:[#allocation2 + $0x30] sm:$0xfc]
        %v5747 = vld [vmem:[#allocation2 + $0x38] sm:$0xfc]
        %v5748 = vld [vmem:[#allocation2 + $0x50] sm:$0x3]
        %v5749 = vld [vmem:[#allocation2 + $0x58] sm:$0x3]
        %v5758 = vrot.slane %v5742, 2
        %v5759 = vrot.slane %v5382, 2
        %v5760 = vsel %vm762, %v5758, %v5759
        %v5761 = vrot.slane %v5743, 2
        %v5762 = vrot.slane %v5383, 2
        %v5763 = vsel %vm762, %v5761, %v5762
        %v5764 = vrot.slane %v5744, 2
        %v5765 = vsel %vm762, %v5759, %v5764
        %v5766 = vrot.slane %v5745, 2
        %v5767 = vsel %vm762, %v5762, %v5766
        %v5768 = vrot.slane %v5746, 2
        %v5769 = vrot.slane %v5386, 2
        %v5770 = vsel %vm762, %v5768, %v5769
        %v5771 = vrot.slane %v5747, 2
        %v5772 = vrot.slane %v5387, 2
        %v5773 = vsel %vm762, %v5771, %v5772
        %v5774 = vrot.slane %v5748, 2
        %v5775 = vsel %vm762, %v5769, %v5774
        %v5776 = vrot.slane %v5749, 2
        %v5777 = vsel %vm762, %v5772, %v5776
        %v5786 = vld [vmem:[%s1503] sm:$0xff]
        %v5787 = vld [vmem:[%s1503 + $0x8] sm:$0xff]
        %v5788 = vld [vmem:[%s1503 + $0x10] sm:$0xff]
        %v5789 = vld [vmem:[%s1503 + $0x18] sm:$0xff]
        %v5790 = vld [vmem:[%s1503 + $0x20] sm:$0xff]
        %v5791 = vld [vmem:[%s1503 + $0x28] sm:$0xff]
        %v5792 = vld [vmem:[%s1503 + $0x30] sm:$0xff]
        %v5793 = vld [vmem:[%s1503 + $0x38] sm:$0xff]
        %v5794 = vld [vmem:[%s1503 + $0x40] sm:$0xff]
        %v5795 = vld [vmem:[%s1503 + $0x48] sm:$0xff]
        %v5796 = vld [vmem:[%s1503 + $0x50] sm:$0xff]
        %v5797 = vld [vmem:[%s1503 + $0x58] sm:$0xff]
        %v5798 = vld [vmem:[%s1503 + $0x60] sm:$0xff]
        %v5799 = vld [vmem:[%s1503 + $0x68] sm:$0xff]
        %v5800 = vld [vmem:[%s1503 + $0x70] sm:$0xff]
        %v5801 = vld [vmem:[%s1503 + $0x78] sm:$0xff]
        %v5802 = vld [vmem:[%s1503 + $0x80] sm:$0xff]
        %v5803 = vld [vmem:[%s1503 + $0x88] sm:$0xff]
        %v5804 = vld [vmem:[%s1503 + $0x90] sm:$0xff]
        %v5805 = vld [vmem:[%s1503 + $0x98] sm:$0xff]
        %v5806 = vld [vmem:[%s1503 + $0xa0] sm:$0xff]
        %v5807 = vld [vmem:[%s1503 + $0xa8] sm:$0xff]
        %v5808 = vld [vmem:[%s1503 + $0xb0] sm:$0xff]
        %v5809 = vld [vmem:[%s1503 + $0xb8] sm:$0xff]
        %v5810 = vld [vmem:[%s1503 + $0xc0] sm:$0xff]
        %v5811 = vld [vmem:[%s1503 + $0xc8] sm:$0xff]
        %v5812 = vld [vmem:[%s1503 + $0xd0] sm:$0xff]
        %v5813 = vld [vmem:[%s1503 + $0xd8] sm:$0xff]
        %v5814 = vld [vmem:[%s1503 + $0xe0] sm:$0xff]
        %v5815 = vld [vmem:[%s1503 + $0xe8] sm:$0xff]
        %v5816 = vld [vmem:[%s1503 + $0xf0] sm:$0xff]
        %v5817 = vld [vmem:[%s1503 + $0xf8] sm:$0xff]
        %v5818 = vld [vmem:[%s1503 + $0x100] sm:$0xff]
        %v5819 = vld [vmem:[%s1503 + $0x108] sm:$0xff]
        %v5820 = vld [vmem:[%s1503 + $0x110] sm:$0xff]
        %v5821 = vld [vmem:[%s1503 + $0x118] sm:$0xff]
        %v5822 = vld [vmem:[%s1503 + $0x120] sm:$0xff]
        %v5823 = vld [vmem:[%s1503 + $0x128] sm:$0xff]
        %v5824 = vld [vmem:[%s1503 + $0x130] sm:$0xff]
        %v5825 = vld [vmem:[%s1503 + $0x138] sm:$0xff]
        %v5826 = vld [vmem:[%s1503 + $0x140] sm:$0xff]
        %v5827 = vld [vmem:[%s1503 + $0x148] sm:$0xff]
        %v5828 = vld [vmem:[%s1503 + $0x150] sm:$0xff]
        %v5829 = vld [vmem:[%s1503 + $0x158] sm:$0xff]
        %v5830 = vld [vmem:[%s1503 + $0x160] sm:$0xff]
        %v5831 = vld [vmem:[%s1503 + $0x168] sm:$0xff]
        %v5832 = vld [vmem:[%s1503 + $0x170] sm:$0xff]
        %v5833 = vld [vmem:[%s1503 + $0x178] sm:$0xff]
        %v5834 = vld [vmem:[%s1503 + $0x180] sm:$0xff]
        %v5835 = vld [vmem:[%s1503 + $0x188] sm:$0xff]
        %v5836 = vld [vmem:[%s1503 + $0x190] sm:$0xff]
        %v5837 = vld [vmem:[%s1503 + $0x198] sm:$0xff]
        %v5838 = vld [vmem:[%s1503 + $0x1a0] sm:$0xff]
        %v5839 = vld [vmem:[%s1503 + $0x1a8] sm:$0xff]
        %v5840 = vld [vmem:[%s1503 + $0x1b0] sm:$0xff]
        %v5841 = vld [vmem:[%s1503 + $0x1b8] sm:$0xff]
        %v5842 = vld [vmem:[%s1503 + $0x1c0] sm:$0xff]
        %v5843 = vld [vmem:[%s1503 + $0x1c8] sm:$0xff]
        %v5844 = vld [vmem:[%s1503 + $0x1d0] sm:$0xff]
        %v5845 = vld [vmem:[%s1503 + $0x1d8] sm:$0xff]
        %v5846 = vld [vmem:[%s1503 + $0x1e0] sm:$0xff]
        %v5847 = vld [vmem:[%s1503 + $0x1e8] sm:$0xff]
        %v5848 = vld [vmem:[%s1503 + $0x1f0] sm:$0xff]
        %v5849 = vld [vmem:[%s1503 + $0x1f8] sm:$0xff]
        %5850 = vmatprep.subr.mxu0 %v5787
        %5851 = vmatpush1.msra.mxu0 %v5786
        %5852 = vmatprep.subr.mxu0 %v5789
        %5853 = vmatpush1.msra.mxu0 %v5788
        %5854 = vmatprep.subr.mxu0 %v5791
        %5855 = vmatpush1.msra.mxu0 %v5790
        %5856 = vmatprep.subr.mxu0 %v5793
        %5857 = vmatpush1.msra.mxu0 %v5792
        %5858 = vmatprep.subr.mxu0 %v5795
        %5859 = vmatpush1.msra.mxu0 %v5794
        %5860 = vmatprep.subr.mxu0 %v5797
        %5861 = vmatpush1.msra.mxu0 %v5796
        %5862 = vmatprep.subr.mxu0 %v5799
        %5863 = vmatpush1.msra.mxu0 %v5798
        %5864 = vmatprep.subr.mxu0 %v5801
        %5865 = vmatpush1.msra.mxu0 %v5800
        %5866 = vmatprep.subr.mxu0 %v5803
        %5867 = vmatpush1.msra.mxu0 %v5802
        %5868 = vmatprep.subr.mxu0 %v5805
        %5869 = vmatpush1.msra.mxu0 %v5804
        %5870 = vmatprep.subr.mxu0 %v5807
        %5871 = vmatpush1.msra.mxu0 %v5806
        %5872 = vmatprep.subr.mxu0 %v5809
        %5873 = vmatpush1.msra.mxu0 %v5808
        %5874 = vmatprep.subr.mxu0 %v5811
        %5875 = vmatpush1.msra.mxu0 %v5810
        %5876 = vmatprep.subr.mxu0 %v5813
        %5877 = vmatpush1.msra.mxu0 %v5812
        %5878 = vmatprep.subr.mxu0 %v5815
        %5879 = vmatpush1.msra.mxu0 %v5814
        %5880 = vmatprep.subr.mxu0 %v5817
        %5881 = vmatpush1.msra.mxu0 %v5816
        %5882 = vmatprep.subr.mxu0 %v5819
        %5883 = vmatpush1.msra.mxu0 %v5818
        %5884 = vmatprep.subr.mxu0 %v5821
        %5885 = vmatpush1.msra.mxu0 %v5820
        %5886 = vmatprep.subr.mxu0 %v5823
        %5887 = vmatpush1.msra.mxu0 %v5822
        %5888 = vmatprep.subr.mxu0 %v5825
        %5889 = vmatpush1.msra.mxu0 %v5824
        %5890 = vmatprep.subr.mxu0 %v5827
        %5891 = vmatpush1.msra.mxu0 %v5826
        %5892 = vmatprep.subr.mxu0 %v5829
        %5893 = vmatpush1.msra.mxu0 %v5828
        %5894 = vmatprep.subr.mxu0 %v5831
        %5895 = vmatpush1.msra.mxu0 %v5830
        %5896 = vmatprep.subr.mxu0 %v5833
        %5897 = vmatpush1.msra.mxu0 %v5832
        %5898 = vmatprep.subr.mxu0 %v5835
        %5899 = vmatpush1.msra.mxu0 %v5834
        %5900 = vmatprep.subr.mxu0 %v5837
        %5901 = vmatpush1.msra.mxu0 %v5836
        %5902 = vmatprep.subr.mxu0 %v5839
        %5903 = vmatpush1.msra.mxu0 %v5838
        %5904 = vmatprep.subr.mxu0 %v5841
        %5905 = vmatpush1.msra.mxu0 %v5840
        %5906 = vmatprep.subr.mxu0 %v5843
        %5907 = vmatpush1.msra.mxu0 %v5842
        %5908 = vmatprep.subr.mxu0 %v5845
        %5909 = vmatpush1.msra.mxu0 %v5844
        %5910 = vmatprep.subr.mxu0 %v5847
        %5911 = vmatpush1.msra.mxu0 %v5846
        %5912 = vmatprep.subr.mxu0 %v5849
        %5913 = vmatpush1.msra.mxu0 %v5848
        %5914 = vmatprep.mubr.f32.mxu0 %v5763
        %5915 = vmatmul.mubr.f32.gmra.mrb[0].mxu0 %v5760
        %v5916 = vpop.f32.mrb[0].mxu0
        %v5917 = vadd.f32 0.0, %v5916
        %v5918 = vpop.f32.mrb[0].mxu0
        %v5919 = vadd.f32 0.0, %v5918
        %5920 = vmatprep.mubr.f32.mxu0 %v5767
        %5921 = vmatmul.mubr.f32.gmra.mrb[0].mxu0 %v5765
        %v5922 = vpop.f32.mrb[0].mxu0
        %v5923 = vadd.f32 0.0, %v5922
        %v5924 = vpop.f32.mrb[0].mxu0
        %v5925 = vadd.f32 0.0, %v5924
        %5926 = vmatprep.mubr.f32.mxu0 %v5773
        %5927 = vmatmul.mubr.f32.gmra.mrb[0].mxu0 %v5770
        %v5928 = vpop.f32.mrb[0].mxu0
        %v5929 = vadd.f32 0.0, %v5928
        %v5930 = vpop.f32.mrb[0].mxu0
        %v5931 = vadd.f32 0.0, %v5930
        %5932 = vmatprep.mubr.f32.mxu0 %v5777
        %5933 = vmatmul.mubr.f32.gmra.mrb[0].mxu0 %v5775
        %v5934 = vpop.f32.mrb[0].mxu0
        %v5935 = vadd.f32 0.0, %v5934
        %v5936 = vpop.f32.mrb[0].mxu0
        %v5937 = vadd.f32 0.0, %v5936
        %5938 = vdwg.mxu0
        %v5939 = vadd.f32 %v5720, %v5917
        %v5940 = vadd.f32 %v5722, %v5919
        %v5941 = vadd.f32 %v5726, %v5923
        %v5942 = vadd.f32 %v5728, %v5925
        %v5943 = vadd.f32 %v5732, %v5929
        %v5944 = vadd.f32 %v5734, %v5931
        %v5945 = vadd.f32 %v5738, %v5935
        %v5946 = vadd.f32 %v5740, %v5937
        %v5947 = vadd.f32 %v5939, %v1669
        %v5948 = vadd.f32 %v5940, %v1673
        %v5949 = vadd.f32 %v5941, %v1669
        %v5950 = vadd.f32 %v5942, %v1673
        %v5951 = vadd.f32 %v5943, %v1669
        %v5952 = vadd.f32 %v5944, %v1673
        %v5953 = vadd.f32 %v5945, %v1669
        %v5954 = vadd.f32 %v5946, %v1673
        %v5955 = vld [vmem:[#allocation4] sm:$0xff]
        %v5956 = vld [vmem:[#allocation4 + $0x8] sm:$0xff]
        %v5957 = vld [vmem:[#allocation4 + $0x10] sm:$0xff]
        %v5958 = vld [vmem:[#allocation4 + $0x18] sm:$0xff]
        %v5959 = vld [vmem:[#allocation4 + $0x20] sm:$0xff]
        %v5960 = vld [vmem:[#allocation4 + $0x28] sm:$0xff]
        %v5961 = vld [vmem:[#allocation4 + $0x30] sm:$0xff]
        %v5962 = vld [vmem:[#allocation4 + $0x38] sm:$0xff]
        %v5963 = vsub.f32 %v5947, %v5955
        %v5964 = vsub.f32 %v5948, %v5956
        %v5965 = vsub.f32 %v5949, %v5957
        %v5966 = vsub.f32 %v5950, %v5958
        %v5967 = vsub.f32 %v5951, %v5959
        %v5968 = vsub.f32 %v5952, %v5960
        %v5969 = vsub.f32 %v5953, %v5961
        %v5970 = vsub.f32 %v5954, %v5962
        %v5971 = vmul.f32 %v5963, 0.5
        %v5972 = vmul.f32 %v5964, 0.5
        %v5973 = vmul.f32 %v5965, 0.5
        %v5974 = vmul.f32 %v5966, 0.5
        %v5975 = vmul.f32 %v5967, 0.5
        %v5976 = vmul.f32 %v5968, 0.5
        %v5977 = vmul.f32 %v5969, 0.5
        %v5978 = vmul.f32 %v5970, 0.5
        %v5979 = vadd.f32 %v5955, %v5971
        %v5980 = vadd.f32 %v5956, %v5972
        %v5981 = vadd.f32 %v5957, %v5973
        %v5982 = vadd.f32 %v5958, %v5974
        %v5983 = vadd.f32 %v5959, %v5975
        %v5984 = vadd.f32 %v5960, %v5976
        %v5985 = vadd.f32 %v5961, %v5977
        %v5986 = vadd.f32 %v5962, %v5978
        %vm5987 = vcmp.ge.f32.partialorder %v5979, 1.0
        %vm5988 = vcmp.ge.f32.partialorder %v5980, 1.0
        %vm5989 = vcmp.ge.f32.partialorder %v5981, 1.0
        %vm5990 = vcmp.ge.f32.partialorder %v5982, 1.0
        %vm5991 = vcmp.ge.f32.partialorder %v5983, 1.0
        %vm5992 = vcmp.ge.f32.partialorder %v5984, 1.0
        %vm5993 = vcmp.ge.f32.partialorder %v5985, 1.0
        %vm5994 = vcmp.ge.f32.partialorder %v5986, 1.0
        %v5995 = vsel %vm5987, 1, 0
        %v5996 = vsel %vm5988, 1, 0
        %v5997 = vsel %vm5989, 1, 0
        %v5998 = vsel %vm5990, 1, 0
        %v5999 = vsel %vm5991, 1, 0
        %v6000 = vsel %vm5992, 1, 0
        %v6001 = vsel %vm5993, 1, 0
        %v6002 = vsel %vm5994, 1, 0
        %v6003 = vcvt.s32.f32 %v5995
        %v6004 = vcvt.s32.f32 %v5996
        %v6005 = vcvt.s32.f32 %v5997
        %v6006 = vcvt.s32.f32 %v5998
        %v6007 = vcvt.s32.f32 %v5999
        %v6008 = vcvt.s32.f32 %v6000
        %v6009 = vcvt.s32.f32 %v6001
        %v6010 = vcvt.s32.f32 %v6002
        %v6011 = vsub.f32 1.0, %v6003
        %v6012 = vsub.f32 1.0, %v6004
        %v6013 = vsub.f32 1.0, %v6005
        %v6014 = vsub.f32 1.0, %v6006
        %v6015 = vsub.f32 1.0, %v6007
        %v6016 = vsub.f32 1.0, %v6008
        %v6017 = vsub.f32 1.0, %v6009
        %v6018 = vsub.f32 1.0, %v6010
        %v6019 = vmul.f32 %v5979, %v6011
        %v6020 = vmul.f32 %v5980, %v6012
        %v6021 = vmul.f32 %v5981, %v6013
        %v6022 = vmul.f32 %v5982, %v6014
        %v6023 = vmul.f32 %v5983, %v6015
        %v6024 = vmul.f32 %v5984, %v6016
        %v6025 = vmul.f32 %v5985, %v6017
        %v6026 = vmul.f32 %v5986, %v6018
        %6027 = vst [vmem:[#allocation4] sm:$0xff] %v6019
        %6028 = vst [vmem:[#allocation4 + $0x8] sm:$0xff] %v6020
        %6029 = vst [vmem:[#allocation4 + $0x10] sm:$0xff] %v6021
        %6030 = vst [vmem:[#allocation4 + $0x18] sm:$0xff] %v6022
        %6031 = vst [vmem:[#allocation4 + $0x20] sm:$0xff] %v6023
        %6032 = vst [vmem:[#allocation4 + $0x28] sm:$0xff] %v6024
        %6033 = vst [vmem:[#allocation4 + $0x30] sm:$0xff] %v6025
        %6034 = vst [vmem:[#allocation4 + $0x38] sm:$0xff] %v6026
        %v6035 = vadd.f32 %v6003, %v4629
        %v6036 = vadd.f32 %v6004, %v4630
        %v6037 = vadd.f32 %v6005, %v4631
        %v6038 = vadd.f32 %v6006, %v4632
        %v6039 = vadd.f32 %v6007, %v4633
        %v6040 = vadd.f32 %v6008, %v4634
        %v6041 = vadd.f32 %v6009, %v4635
        %v6042 = vadd.f32 %v6010, %v4636
        %s6043 = scalar_lea.vmem %s289, 192 [#allocation11]
        %6044 = vst [vmem:[%s6043] sm:$0xff] %v6035
        %6045 = vst [vmem:[%s6043 + $0x8] sm:$0xff] %v6036
        %6046 = vst [vmem:[%s6043 + $0x10] sm:$0xff] %v6037
        %6047 = vst [vmem:[%s6043 + $0x18] sm:$0xff] %v6038
        %6048 = vst [vmem:[%s6043 + $0x20] sm:$0xff] %v6039
        %6049 = vst [vmem:[%s6043 + $0x28] sm:$0xff] %v6040
        %6050 = vst [vmem:[%s6043 + $0x30] sm:$0xff] %v6041
        %6051 = vst [vmem:[%s6043 + $0x38] sm:$0xff] %v6042
        %s6052 = sand.u32 %s135, 1
        %s6053 = scalar_lea.sflag [#allocation7], %s6052
        %s6054 = sand.u32 %s135, 1
        %s6055 = smul.addr %s6054, 256
        %s6056 = scalar_lea.vmem [#allocation11], %s6055
        // Predicated region
        $region53: #{tpu_custom_call.1} parent=35 // pred_check
          %p6057 = pneg %p145
        $region54: #{tpu_custom_call.1} parent=35 // pred_check_branch
          %6059 = sbr.rel (%p6057) target = $region56
        $region55: #{tpu_custom_call.1} parent=35 // pred_region
          #allocation15 [shape = 'u32[6]{0}', space=smem, size = 0x18, scoped, tag = 'DMA stride descriptor']
          %s6060 = smul.u32 4, %s27
          %s6061 = smul.u32 2, %s26
          %s6063 = ssub.s32 4096, 4096
          %6064 = vsyncadd %s6053, %s6063
          %s6065 = smul.addr %s6061, 4
          %s6066 = smul.addr %s6060, 16
          %s6067 = sadd.s32 %s6065, %s6066
          %s6068 = smul.addr %s6067, 128
          %s6069 = scalar_lea.hbm %s4, %s6068
          %s6071 = sshll.u32 1, 14
          %s6072 = sxor.u32 4294967295, %s6071
          %s6075 = sshll.u32 7, 18
          %s6076 = sxor.u32 4294967295, %s6075
          %s6077 = sand.u32 0, %s6076
          %s6079 = sor.u32 %s6077, 0
          %s6081 = sshll.u32 3, 24
          %s6082 = sxor.u32 4294967295, %s6081
          %s6083 = sand.u32 %s6079, %s6082
          %s6085 = sor.u32 %s6083, 0
          %s6086 = sshll.u32 %s6056, 4
          %s6087 = int_to_ptr.vmem [resolvable:$true] %s6086
          %6093 = sst [smem:[#allocation15]] 1024
          %s6094 = scalar_lea.smem [#allocation15], 1
          %6095 = sst [smem:[%s6094]] 2048
          %s6096 = scalar_lea.smem [#allocation15], 2
          %6097 = sst [smem:[%s6096]] 4
          %s6098 = scalar_lea.smem [#allocation15], 3
          %6099 = sst [smem:[%s6098]] 256
          %s6100 = scalar_lea.smem [#allocation15], 4
          %6101 = sst [smem:[%s6100]] 256
          %s6102 = scalar_lea.smem [#allocation15], 5
          %6103 = sst [smem:[%s6102]] 16
          %6105 = dma.general %s6087, 4096, %s6069, %s6053, [#allocation14], [#allocation15], %s6085, 0
        $region56: #{tpu_custom_call.1} parent=35 // pred_fallthru
          _
      $region36: #{tpu_custom_call.1} parent=5 // pred_fallthru
        _
      %p6106 = scmp.le.s32.totalorder 2, %s17
      // Predicated region
      $region57: #{tpu_custom_call.1} parent=5 // pred_check
        %p6107 = pneg %p6106
      $region58: #{tpu_custom_call.1} parent=5 // pred_check_branch
        %6109 = sbr.rel (%p6107) target = $region60
      $region59: #{tpu_custom_call.1} parent=5 // pred_region
        %s6110 = ssub.s32 %s17, 2
        // Predicated region
        $region61: #{tpu_custom_call.1} parent=59 // pred_check
          %p6111 = pneg %p151
        $region62: #{tpu_custom_call.1} parent=59 // pred_check_branch
          %6113 = sbr.rel (%p6111) target = $region64
        $region63: #{tpu_custom_call.1} parent=59 // pred_region
          %s6114 = sand.u32 %s136, 1
          %s6115 = scalar_lea.sflag [#allocation7], %s6114
          %s6116 = sand.u32 %s136, 1
          %s6117 = smul.addr %s6116, 256
          %s6118 = scalar_lea.vmem [#allocation11], %s6117
          %6119 = dma.done %s6115, 4096
        $region64: #{tpu_custom_call.1} parent=59 // pred_fallthru
          _
      $region60: #{tpu_custom_call.1} parent=5 // pred_fallthru
        _
    $region6: #{tpu_custom_call.1} parent=1 // loop_footer
      %s21 = sadd.s32 1, %s17
    $region7: #{tpu_custom_call.1} parent=1 // loop_footer_branch
      %16 = sbr.rel target = $region3
    $region8: #{tpu_custom_call.1} parent=1 // loop_exit
      _
    %6120 = vsyncpa [#allocation6], 1
    %s6121 = scalar_lea.sflag [#allocation6], 1
    %6122 = vsyncpa %s6121, 1
    %6123 = vsyncpa [#allocation9], 1
    %6124 = vsyncpa [#allocation7], 1
    %s6125 = scalar_lea.sflag [#allocation7], 1
    %6126 = vsyncpa %s6125, 1

</llo_original>
